<compile_context>
chip_gen: v7x
topology: tpu7x:2x2x1
jax: 0.10.0
libtpu: 0.0.40
codegen_flags: <defaults>
</compile_context>

<pallas_src>
import functools

import jax
import jax.numpy as jnp
import numpy as np
from jax.experimental import pallas as pl
from jax.experimental.pallas import tpu as pltpu

EPS = 1e-5
EXPANSION = 4


# ------------------------------ helpers ------------------------------------

def _pick_tile(m, cap=512):
    """Largest multiple of 128 that divides m, capped (use 1024-2048 at real sizes)."""
    t = min(cap, m)
    t -= t % 128
    while t > 128 and m % t:
        t -= 128
    assert t >= 128 and m % t == 0, f"M={m} must be a multiple of 128"
    return t


def _scale_shift(stats, gamma, beta, m):
    """Fold batch stats (sum, sumsq) + gamma/beta into the affine y*scale + shift (f32)."""
    mean = stats[:, 0] / m
    var = stats[:, 1] / m - mean * mean          # biased variance (matches train-mode BN)
    scale = gamma * jax.lax.rsqrt(var + EPS)
    shift = beta - mean * scale
    return scale[:, None], shift[:, None]        # (C, 1) for channels-first broadcast


# ----------------------------- Pallas kernels -------------------------------

def _stage1_kernel(x_ref, w1_ref, y1_ref, st_ref):
    # conv1 (1x1x1) as (P, Cin) @ (Cin, TM) bf16 matmul, f32 accumulate.
    y = jnp.dot(w1_ref[...], x_ref[...].astype(jnp.bfloat16),
                preferred_element_type=jnp.float32)            # (P, TM) f32
    y1_ref[...] = y
    # partial BN1 statistics for this tile (summed across tiles in the wrapper).
    s = jnp.sum(y, axis=1, keepdims=True)
    q = jnp.sum(y * y, axis=1, keepdims=True)
    st_ref[0] = jnp.concatenate([s, q], axis=1)                # (P, 2)


def _make_conv2_kernel(planes, s_pad, hpwp, wp):
    """bn1-apply + ReLU + 3x3x3 conv (27 shifted matmuls) + partial BN2 stats, per sample."""

    def kernel(y1p_ref, w2_ref, sc1_ref, sh1_ref, mi_ref, mo_ref, y2_ref, st_ref):
        # bn1 apply + relu; mask zeroes the conv zero-padding ring (and the tail).
        h = jnp.maximum(y1p_ref[0] * sc1_ref[...] + sh1_ref[...], 0.0) * mi_ref[...]
        h = h.astype(jnp.bfloat16)                             # (P, S_halo)

        acc = jnp.zeros((planes, s_pad), jnp.float32)
        for k in range(27):                                    # unrolled taps
            kd, r = divmod(k, 9)
            kh, kw = divmod(r, 3)
            off = kd * hpwp + kh * wp + kw
            acc = acc + jnp.dot(w2_ref[k], h[:, off:off + s_pad],
                                preferred_element_type=jnp.float32)

        y2_ref[0] = acc                                        # padded-layout conv output
        # partial BN2 stats over VALID output positions only.
        accv = acc * mo_ref[...]
        s = jnp.sum(accv, axis=1, keepdims=True)
        q = jnp.sum(accv * acc, axis=1, keepdims=True)
        st_ref[0] = jnp.concatenate([s, q], axis=1)            # (P, 2)

    return kernel


def _stage3_kernel(y2_ref, w3_ref, sc2_ref, sh2_ref, y3_ref, st_ref):
    # bn2 apply + relu fused with conv3 (1x1x1) and partial BN3 stats.
    h2 = jnp.maximum(y2_ref[...] * sc2_ref[...] + sh2_ref[...], 0.0)
    y3 = jnp.dot(w3_ref[...], h2.astype(jnp.bfloat16),
                 preferred_element_type=jnp.float32)           # (Cout, TM)
    y3_ref[...] = y3
    s = jnp.sum(y3, axis=1, keepdims=True)
    q = jnp.sum(y3 * y3, axis=1, keepdims=True)
    st_ref[0] = jnp.concatenate([s, q], axis=1)                # (Cout, 2)


def _stage4_kernel(y3_ref, x_ref, sc3_ref, sh3_ref, o_ref):
    # bn3 apply + identity residual add + relu.
    o_ref[...] = jnp.maximum(
        y3_ref[...] * sc3_ref[...] + sh3_ref[...] + x_ref[...], 0.0)


# ------------------------------ forward pass --------------------------------

def bottleneck_forward(x_ncdhw, params):
    """Bottleneck forward (stride=1, downsample=None). I/O in PyTorch NCDHW layout."""
    n, c_in, d, h, w = x_ncdhw.shape
    planes = params["w1"].shape[0]
    c_out = params["w3"].shape[0]
    assert c_in == c_out, "identity residual requires in_planes == planes * expansion"
    m = n * d * h * w
    tm = _pick_tile(m)
    n_tiles = m // tm
    par = pltpu.CompilerParams(dimension_semantics=("parallel",))

    # channels-first flat activations (C, M); M index order = (n, d, h, w)
    x_cf = jnp.transpose(x_ncdhw, (1, 0, 2, 3, 4)).reshape(c_in, m)

    # packed weights, bf16 (MXU operands); accumulation stays f32.
    w1 = params["w1"][:, :, 0, 0, 0].astype(jnp.bfloat16)                          # (P, Cin)
    w2 = jnp.transpose(params["w2"], (2, 3, 4, 0, 1)).reshape(
        27, planes, planes).astype(jnp.bfloat16)                                   # (27, Pout, Pin)
    w3 = params["w3"][:, :, 0, 0, 0].astype(jnp.bfloat16)                          # (Cout, P)

    # ---- stage 1: y1 = conv1(x)  + partial bn1 stats (M-tiled, parallel) ----
    y1, st1 = pl.pallas_call(
        _stage1_kernel,
        out_shape=(jax.ShapeDtypeStruct((planes, m), jnp.float32),
                   jax.ShapeDtypeStruct((n_tiles, planes, 2), jnp.float32)),
        grid=(n_tiles,),
        in_specs=[pl.BlockSpec((c_in, tm), lambda i: (0, i)),
                  pl.BlockSpec((planes, c_in), lambda i: (0, 0))],
        out_specs=(pl.BlockSpec((planes, tm), lambda i: (0, i)),
                   pl.BlockSpec((1, planes, 2), lambda i: (i, 0, 0))),
        compiler_params=par,
    )(x_cf, w1)
    sc1, sh1 = _scale_shift(st1.sum(0), params["g1"], params["b1"], m)

    # ---- stage 2: bn1+relu fused into conv2 (3x3x3, pad=1), per-sample grid ----
    dp, hp, wp = d + 2, h + 2, w + 2
    s_pad = dp * hp * wp                       # padded spatial positions per sample
    hpwp = hp * wp
    tail = 2 * hpwp + 2 * wp + 2               # keeps every tap slice in bounds
    s_halo = s_pad + tail

    # y1 padded (pre-BN; pad values get zeroed in-kernel after bn+relu via the mask)
    y1p = jnp.pad(y1.reshape(planes, n, d, h, w),
                  ((0, 0), (0, 0), (1, 1), (1, 1), (1, 1)))
    y1p = jnp.transpose(y1p, (1, 0, 2, 3, 4)).reshape(n, planes, s_pad)
    y1p = jnp.pad(y1p, ((0, 0), (0, 0), (0, tail)))            # (N, P, S_halo)

    # static masks: valid-data positions of the padded input / valid output positions
    dd, hh, ww = np.meshgrid(np.arange(dp), np.arange(hp), np.arange(wp), indexing="ij")
    m_in = ((dd >= 1) & (dd <= d) & (hh >= 1) & (hh <= h) & (ww >= 1) & (ww <= w))
    m_out = ((dd < d) & (hh < h) & (ww < w))
    mask_in = jnp.asarray(
        np.concatenate([m_in.reshape(1, s_pad).astype(np.float32),
                        np.zeros((1, tail), np.float32)], axis=1), jnp.float32)
    mask_out = jnp.asarray(m_out.reshape(1, s_pad).astype(np.float32), jnp.float32)

    conv2_kernel = _make_conv2_kernel(planes, s_pad, hpwp, wp)
    y2p, st2 = pl.pallas_call(
        conv2_kernel,
        out_shape=(jax.ShapeDtypeStruct((n, planes, s_pad), jnp.float32),
                   jax.ShapeDtypeStruct((n, planes, 2), jnp.float32)),
        grid=(n,),
        in_specs=[pl.BlockSpec((1, planes, s_halo), lambda i: (i, 0, 0)),
                  pl.BlockSpec((27, planes, planes), lambda i: (0, 0, 0)),
                  pl.BlockSpec((planes, 1), lambda i: (0, 0)),
                  pl.BlockSpec((planes, 1), lambda i: (0, 0)),
                  pl.BlockSpec((1, s_halo), lambda i: (0, 0)),
                  pl.BlockSpec((1, s_pad), lambda i: (0, 0))],
        out_specs=(pl.BlockSpec((1, planes, s_pad), lambda i: (i, 0, 0)),
                   pl.BlockSpec((1, planes, 2), lambda i: (i, 0, 0))),
        compiler_params=par,
    )(y1p, w2, sc1, sh1, mask_in, mask_out)
    sc2, sh2 = _scale_shift(st2.sum(0), params["g2"], params["b2"], m)

    # drop the invalid border outputs -> compact (P, M)
    y2 = y2p.reshape(n, planes, dp, hp, wp)[:, :, :d, :h, :w]
    y2 = jnp.transpose(y2, (1, 0, 2, 3, 4)).reshape(planes, m)

    # ---- stage 3: bn2+relu + conv3 (1x1x1) + partial bn3 stats (M-tiled) ----
    y3, st3 = pl.pallas_call(
        _stage3_kernel,
        out_shape=(jax.ShapeDtypeStruct((c_out, m), jnp.float32),
                   jax.ShapeDtypeStruct((n_tiles, c_out, 2), jnp.float32)),
        grid=(n_tiles,),
        in_specs=[pl.BlockSpec((planes, tm), lambda i: (0, i)),
                  pl.BlockSpec((c_out, planes), lambda i: (0, 0)),
                  pl.BlockSpec((planes, 1), lambda i: (0, 0)),
                  pl.BlockSpec((planes, 1), lambda i: (0, 0))],
        out_specs=(pl.BlockSpec((c_out, tm), lambda i: (0, i)),
                   pl.BlockSpec((1, c_out, 2), lambda i: (i, 0, 0))),
        compiler_params=par,
    )(y2, w3, sc2, sh2)
    sc3, sh3 = _scale_shift(st3.sum(0), params["g3"], params["b3"], m)

    # ---- stage 4: bn3 apply + identity residual + relu (M-tiled) ----
    out_cf = pl.pallas_call(
        _stage4_kernel,
        out_shape=jax.ShapeDtypeStruct((c_out, m), jnp.float32),
        grid=(n_tiles,),
        in_specs=[pl.BlockSpec((c_out, tm), lambda i: (0, i)),
                  pl.BlockSpec((c_in, tm), lambda i: (0, i)),
                  pl.BlockSpec((c_out, 1), lambda i: (0, 0)),
                  pl.BlockSpec((c_out, 1), lambda i: (0, 0))],
        out_specs=pl.BlockSpec((c_out, tm), lambda i: (0, i)),
        compiler_params=par,
    )(y3, x_cf, sc3, sh3)

    return jnp.transpose(out_cf.reshape(c_out, n, d, h, w), (1, 0, 2, 3, 4))  # NCDHW


# ------------------------------ params init ---------------------------------

def init_params(key, in_planes, planes):
    """Deterministic init. Conv weights use PyTorch Conv3d layout (Cout, Cin, kD, kH, kW)."""
    ks = jax.random.split(key, 9)

    def conv_w(k, shape):
        fan_in = shape[1] * shape[2] * shape[3] * shape[4]
        return (jax.random.normal(k, shape, jnp.float32) / np.sqrt(fan_in)).astype(jnp.float32)

    p = {}
    p["w1"] = conv_w(ks[0], (planes, in_planes, 1, 1, 1))
    p["w2"] = conv_w(ks[1], (planes, planes, 3, 3, 3))
    p["w3"] = conv_w(ks[2], (planes * EXPANSION, planes, 1, 1, 1))
    p["g1"] = 1.0 + 0.1 * jax.random.normal(ks[3], (planes,), jnp.float32)
    p["b1"] = 0.1 * jax.random.normal(ks[4], (planes,), jnp.float32)
    p["g2"] = 1.0 + 0.1 * jax.random.normal(ks[5], (planes,), jnp.float32)
    p["b2"] = 0.1 * jax.random.normal(ks[6], (planes,), jnp.float32)
    p["g3"] = 1.0 + 0.1 * jax.random.normal(ks[7], (planes * EXPANSION,), jnp.float32)
    p["b3"] = 0.1 * jax.random.normal(ks[8], (planes * EXPANSION,), jnp.float32)
    return p


# ------------------------- pure-JAX reference check --------------------------
# Replicates the kernel's bf16 matmul operands (f32 accumulation, f32 BN math),
# so the comparison is tight; the f32-only module semantics differ only by bf16
# rounding of the MXU operands.

def _bn_apply_ref(y, gamma, beta):
    m = y.shape[0]
    mean = jnp.sum(y, axis=0) / m
    var = jnp.sum(y * y, axis=0) / m - mean * mean
    scale = gamma * jax.lax.rsqrt(var + EPS)
    shift = beta - mean * scale
    return y * scale + shift


def bottleneck_ref(x_ncdhw, params):
    n, c_in, d, h, w = x_ncdhw.shape
    planes = params["w1"].shape[0]
    c_out = params["w3"].shape[0]
    m = n * d * h * w
    bf = jnp.bfloat16

    x2d = jnp.transpose(x_ncdhw, (0, 2, 3, 4, 1)).reshape(m, c_in)

    w1 = params["w1"][:, :, 0, 0, 0].T                                   # (Cin, P)
    y1 = jnp.dot(x2d.astype(bf), w1.astype(bf), preferred_element_type=jnp.float32)
    h1 = jnp.maximum(_bn_apply_ref(y1, params["g1"], params["b1"]), 0.0).astype(bf)

    h1p = jnp.pad(h1.reshape(n, d, h, w, planes),
                  ((0, 0), (1, 1), (1, 1), (1, 1), (0, 0)))
    cols = []
    for kd in range(3):
        for kh in range(3):
            for kw in range(3):
                cols.append(h1p[:, kd:kd + d, kh:kh + h, kw:kw + w, :])
    cols = jnp.concatenate(cols, axis=-1).reshape(m, 27 * planes)
    w2 = jnp.transpose(params["w2"], (2, 3, 4, 1, 0)).reshape(27 * planes, planes)
    y2 = jnp.dot(cols, w2.astype(bf), preferred_element_type=jnp.float32)
    h2 = jnp.maximum(_bn_apply_ref(y2, params["g2"], params["b2"]), 0.0).astype(bf)

    w3 = params["w3"][:, :, 0, 0, 0].T                                   # (P, Cout)
    y3 = jnp.dot(h2, w3.astype(bf), preferred_element_type=jnp.float32)
    o = jnp.maximum(_bn_apply_ref(y3, params["g3"], params["b3"]) + x2d, 0.0)
    return jnp.transpose(o.reshape(n, d, h, w, c_out), (0, 4, 1, 2, 3))


# ---------------------------------- main -------------------------------------

if __name__ == "__main__":
    key = jax.random.PRNGKey(0)
    k_x, k_p = jax.random.split(key)

    N, in_planes, planes = 2, 16, 4        # in_planes == planes * 4 -> identity residual
    D = H = W = 8

    x = jax.random.normal(k_x, (N, in_planes, D, H, W), jnp.float32)
    params = init_params(k_p, in_planes, planes)

    fwd = jax.jit(bottleneck_forward)
    out = jax.block_until_ready(fwd(x, params))
    ref = jax.block_until_ready(bottleneck_ref(x, params))

    assert out.shape == (N, planes * EXPANSION, D, H, W), out.shape
    np.testing.assert_allclose(np.asarray(out), np.asarray(ref), rtol=5e-3, atol=5e-3)

    print("KERNEL_OK")
</pallas_src>

<mosaic_0001>
module attributes {stable_mosaic.version = 11 : i64} {
  func.func @_stage1_kernel(%arg0: i32, %arg1: memref<16x512xf32, #tpu.memory_space<vmem>>, %arg2: memref<4x16xbf16, #tpu.memory_space<vmem>>, %arg3: memref<4x512xf32, #tpu.memory_space<vmem>>, %arg4: memref<1x4x2xf32, #tpu.memory_space<vmem>>) attributes {dimension_semantics = [#tpu.dimension_semantics<parallel>], iteration_bounds = array<i64: 2>, scalar_prefetch = 0 : i64, scratch_operands = 0 : i64, tpu.core_type = #tpu.core_type<tc>, window_params = [{transform_indices = @transform_0, window_bounds = array<i64: 16, 512>}, {pipeline_mode = #tpu.pipeline_mode<synchronous>, transform_indices = @transform_1, window_bounds = array<i64: 4, 16>}, {transform_indices = @transform_2, window_bounds = array<i64: 4, 512>}, {transform_indices = @transform_3, window_bounds = array<i64: 1, 4, 2>}]} {
    %c0 = arith.constant 0 : index
    %c0_0 = arith.constant 0 : index
    %0 = vector.load %arg2[%c0, %c0_0] : memref<4x16xbf16, #tpu.memory_space<vmem>>, vector<4x16xbf16>
    %c0_1 = arith.constant 0 : index
    %c0_2 = arith.constant 0 : index
    %1 = vector.load %arg1[%c0_1, %c0_2] : memref<16x512xf32, #tpu.memory_space<vmem>>, vector<16x512xf32>
    %2 = arith.truncf %1 : vector<16x512xf32> to vector<16x512xbf16>
    %cst = arith.constant dense<0.000000e+00> : vector<4x512xf32>
    %3 = tpu.matmul %0, %2, %cst {dimension_numbers = #tpu.dot_dimension_numbers<[1], [0], [0], [1], [0, 0, 1, 1], [], []>} : vector<4x16xbf16>, vector<16x512xbf16>, vector<4x512xf32> -> vector<4x512xf32>
    %c0_3 = arith.constant 0 : index
    %c0_4 = arith.constant 0 : index
    %4 = vector.load %arg3[%c0_3, %c0_4] : memref<4x512xf32, #tpu.memory_space<vmem>>, vector<4x512xf32>
    tpu.vector_store %arg3[%c0_3, %c0_4], %3 {strides = array<i32>} : memref<4x512xf32, #tpu.memory_space<vmem>>, vector<4x512xf32>,
    %cst_5 = arith.constant dense<0.000000e+00> : vector<4xf32>
    %5 = vector.multi_reduction <add>, %3, %cst_5 [1] : vector<4x512xf32> to vector<4xf32>
    %6 = vector.shape_cast %5 : vector<4xf32> to vector<4x1xf32>
    %7 = arith.mulf %3, %3 : vector<4x512xf32>
    %cst_6 = arith.constant dense<0.000000e+00> : vector<4xf32>
    %8 = vector.multi_reduction <add>, %7, %cst_6 [1] : vector<4x512xf32> to vector<4xf32>
    %9 = vector.shape_cast %8 : vector<4xf32> to vector<4x1xf32>
    %10 = tpu.concatenate %6, %9 in 1 : vector<4x1xf32>, vector<4x1xf32> -> vector<4x2xf32>
    %c0_7 = arith.constant 0 : index
    %c0_8 = arith.constant 0 : index
    %c0_9 = arith.constant 0 : index
    %11 = vector.load %arg4[%c0_7, %c0_8, %c0_9] : memref<1x4x2xf32, #tpu.memory_space<vmem>>, vector<1x4x2xf32>
    %12 = vector.shape_cast %11 : vector<1x4x2xf32> to vector<4x2xf32>
    %13 = vector.shape_cast %10 : vector<4x2xf32> to vector<1x4x2xf32>
    tpu.vector_store %arg4[%c0_7, %c0_8, %c0_9], %13 {strides = array<i32>} : memref<1x4x2xf32, #tpu.memory_space<vmem>>, vector<1x4x2xf32>,
    return
  }
  func.func @transform_0(%arg0: i32) -> (i32, i32) {
    %c0_i32 = arith.constant 0 : i32
    %c0_i32_0 = arith.constant 0 : i32
    return %c0_i32, %arg0 : i32, i32
  }
  func.func @transform_1(%arg0: i32) -> (i32, i32) {
    %c0_i32 = arith.constant 0 : i32
    %c0_i32_0 = arith.constant 0 : i32
    %c0_i32_1 = arith.constant 0 : i32
    return %c0_i32, %c0_i32_0 : i32, i32
  }
  func.func @transform_2(%arg0: i32) -> (i32, i32) {
    %c0_i32 = arith.constant 0 : i32
    %c0_i32_0 = arith.constant 0 : i32
    return %c0_i32, %arg0 : i32, i32
  }
  func.func @transform_3(%arg0: i32) -> (i32, i32, i32) {
    %c0_i32 = arith.constant 0 : i32
    %c0_i32_0 = arith.constant 0 : i32
    %c0_i32_1 = arith.constant 0 : i32
    return %arg0, %c0_i32, %c0_i32_0 : i32, i32, i32
  }
}

module attributes {stable_mosaic.version = 11 : i64} {
  func.func @kernel(%arg0: i32, %arg1: memref<1x4x1222xf32, #tpu.memory_space<vmem>>, %arg2: memref<27x4x4xbf16, #tpu.memory_space<vmem>>, %arg3: memref<4x1xf32, #tpu.memory_space<vmem>>, %arg4: memref<4x1xf32, #tpu.memory_space<vmem>>, %arg5: memref<1x1222xf32, #tpu.memory_space<vmem>>, %arg6: memref<1x1000xf32, #tpu.memory_space<vmem>>, %arg7: memref<1x4x1000xf32, #tpu.memory_space<vmem>>, %arg8: memref<1x4x2xf32, #tpu.memory_space<vmem>>) attributes {dimension_semantics = [#tpu.dimension_semantics<parallel>], iteration_bounds = array<i64: 2>, scalar_prefetch = 0 : i64, scratch_operands = 0 : i64, tpu.core_type = #tpu.core_type<tc>, window_params = [{transform_indices = @transform_0, window_bounds = array<i64: 1, 4, 1222>}, {pipeline_mode = #tpu.pipeline_mode<synchronous>, transform_indices = @transform_1, window_bounds = array<i64: 27, 4, 4>}, {pipeline_mode = #tpu.pipeline_mode<synchronous>, transform_indices = @transform_2, window_bounds = array<i64: 4, 1>}, {pipeline_mode = #tpu.pipeline_mode<synchronous>, transform_indices = @transform_3, window_bounds = array<i64: 4, 1>}, {pipeline_mode = #tpu.pipeline_mode<synchronous>, transform_indices = @transform_4, window_bounds = array<i64: 1, 1222>}, {pipeline_mode = #tpu.pipeline_mode<synchronous>, transform_indices = @transform_5, window_bounds = array<i64: 1, 1000>}, {transform_indices = @transform_6, window_bounds = array<i64: 1, 4, 1000>}, {transform_indices = @transform_7, window_bounds = array<i64: 1, 4, 2>}]} {
    %c0 = arith.constant 0 : index
    %c0_0 = arith.constant 0 : index
    %c0_1 = arith.constant 0 : index
    %0 = vector.load %arg1[%c0, %c0_0, %c0_1] : memref<1x4x1222xf32, #tpu.memory_space<vmem>>, vector<1x4x1222xf32>
    %1 = vector.shape_cast %0 : vector<1x4x1222xf32> to vector<4x1222xf32>
    %c0_2 = arith.constant 0 : index
    %c0_3 = arith.constant 0 : index
    %2 = vector.load %arg3[%c0_2, %c0_3] : memref<4x1xf32, #tpu.memory_space<vmem>>, vector<4x1xf32>
    %3 = vector.broadcast %2 : vector<4x1xf32> to vector<4x1222xf32>
    %4 = arith.mulf %1, %3 : vector<4x1222xf32>
    %c0_4 = arith.constant 0 : index
    %c0_5 = arith.constant 0 : index
    %5 = vector.load %arg4[%c0_4, %c0_5] : memref<4x1xf32, #tpu.memory_space<vmem>>, vector<4x1xf32>
    %6 = vector.broadcast %5 : vector<4x1xf32> to vector<4x1222xf32>
    %7 = arith.addf %4, %6 : vector<4x1222xf32>
    %cst = arith.constant 0.000000e+00 : f32
    %8 = vector.broadcast %cst : f32 to vector<4x1222xf32>
    %9 = arith.maximumf %7, %8 : vector<4x1222xf32>
    %c0_6 = arith.constant 0 : index
    %c0_7 = arith.constant 0 : index
    %10 = vector.load %arg5[%c0_6, %c0_7] : memref<1x1222xf32, #tpu.memory_space<vmem>>, vector<1x1222xf32>
    %11 = vector.broadcast %10 : vector<1x1222xf32> to vector<4x1222xf32>
    %12 = arith.mulf %9, %11 : vector<4x1222xf32>
    %13 = arith.truncf %12 : vector<4x1222xf32> to vector<4x1222xbf16>
    %cst_8 = arith.constant 0.000000e+00 : f32
    %14 = vector.broadcast %cst_8 : f32 to vector<4x1000xf32>
    %c0_9 = arith.constant 0 : index
    %c0_10 = arith.constant 0 : index
    %c0_11 = arith.constant 0 : index
    %15 = vector.load %arg2[%c0_9, %c0_10, %c0_11] : memref<27x4x4xbf16, #tpu.memory_space<vmem>>, vector<1x4x4xbf16>
    %16 = vector.shape_cast %15 : vector<1x4x4xbf16> to vector<4x4xbf16>
    %17 = vector.extract_strided_slice %13 {offsets = [0, 0], sizes = [4, 1000], strides = [1, 1]} : vector<4x1222xbf16> to vector<4x1000xbf16>
    %cst_12 = arith.constant dense<0.000000e+00> : vector<4x1000xf32>
    %18 = tpu.matmul %16, %17, %cst_12 {dimension_numbers = #tpu.dot_dimension_numbers<[1], [0], [0], [1], [0, 0, 1, 1], [], []>} : vector<4x4xbf16>, vector<4x1000xbf16>, vector<4x1000xf32> -> vector<4x1000xf32>
    %19 = arith.addf %14, %18 : vector<4x1000xf32>
    %c1 = arith.constant 1 : index
    %c0_13 = arith.constant 0 : index
    %c0_14 = arith.constant 0 : index
    %20 = vector.load %arg2[%c1, %c0_13, %c0_14] : memref<27x4x4xbf16, #tpu.memory_space<vmem>>, vector<1x4x4xbf16>
    %21 = vector.shape_cast %20 : vector<1x4x4xbf16> to vector<4x4xbf16>
    %22 = vector.extract_strided_slice %13 {offsets = [0, 1], sizes = [4, 1000], strides = [1, 1]} : vector<4x1222xbf16> to vector<4x1000xbf16>
    %cst_15 = arith.constant dense<0.000000e+00> : vector<4x1000xf32>
    %23 = tpu.matmul %21, %22, %cst_15 {dimension_numbers = #tpu.dot_dimension_numbers<[1], [0], [0], [1], [0, 0, 1, 1], [], []>} : vector<4x4xbf16>, vector<4x1000xbf16>, vector<4x1000xf32> -> vector<4x1000xf32>
    %24 = arith.addf %19, %23 : vector<4x1000xf32>
    %c2 = arith.constant 2 : index
    %c0_16 = arith.constant 0 : index
    %c0_17 = arith.constant 0 : index
    %25 = vector.load %arg2[%c2, %c0_16, %c0_17] : memref<27x4x4xbf16, #tpu.memory_space<vmem>>, vector<1x4x4xbf16>
    %26 = vector.shape_cast %25 : vector<1x4x4xbf16> to vector<4x4xbf16>
    %27 = vector.extract_strided_slice %13 {offsets = [0, 2], sizes = [4, 1000], strides = [1, 1]} : vector<4x1222xbf16> to vector<4x1000xbf16>
    %cst_18 = arith.constant dense<0.000000e+00> : vector<4x1000xf32>
    %28 = tpu.matmul %26, %27, %cst_18 {dimension_numbers = #tpu.dot_dimension_numbers<[1], [0], [0], [1], [0, 0, 1, 1], [], []>} : vector<4x4xbf16>, vector<4x1000xbf16>, vector<4x1000xf32> -> vector<4x1000xf32>
    %29 = arith.addf %24, %28 : vector<4x1000xf32>
    %c3 = arith.constant 3 : index
    %c0_19 = arith.constant 0 : index
    %c0_20 = arith.constant 0 : index
    %30 = vector.load %arg2[%c3, %c0_19, %c0_20] : memref<27x4x4xbf16, #tpu.memory_space<vmem>>, vector<1x4x4xbf16>
    %31 = vector.shape_cast %30 : vector<1x4x4xbf16> to vector<4x4xbf16>
    %32 = vector.extract_strided_slice %13 {offsets = [0, 10], sizes = [4, 1000], strides = [1, 1]} : vector<4x1222xbf16> to vector<4x1000xbf16>
    %cst_21 = arith.constant dense<0.000000e+00> : vector<4x1000xf32>
    %33 = tpu.matmul %31, %32, %cst_21 {dimension_numbers = #tpu.dot_dimension_numbers<[1], [0], [0], [1], [0, 0, 1, 1], [], []>} : vector<4x4xbf16>, vector<4x1000xbf16>, vector<4x1000xf32> -> vector<4x1000xf32>
    %34 = arith.addf %29, %33 : vector<4x1000xf32>
    %c4 = arith.constant 4 : index
    %c0_22 = arith.constant 0 : index
    %c0_23 = arith.constant 0 : index
    %35 = vector.load %arg2[%c4, %c0_22, %c0_23] : memref<27x4x4xbf16, #tpu.memory_space<vmem>>, vector<1x4x4xbf16>
    %36 = vector.shape_cast %35 : vector<1x4x4xbf16> to vector<4x4xbf16>
    %37 = vector.extract_strided_slice %13 {offsets = [0, 11], sizes = [4, 1000], strides = [1, 1]} : vector<4x1222xbf16> to vector<4x1000xbf16>
    %cst_24 = arith.constant dense<0.000000e+00> : vector<4x1000xf32>
    %38 = tpu.matmul %36, %37, %cst_24 {dimension_numbers = #tpu.dot_dimension_numbers<[1], [0], [0], [1], [0, 0, 1, 1], [], []>} : vector<4x4xbf16>, vector<4x1000xbf16>, vector<4x1000xf32> -> vector<4x1000xf32>
    %39 = arith.addf %34, %38 : vector<4x1000xf32>
    %c5 = arith.constant 5 : index
    %c0_25 = arith.constant 0 : index
    %c0_26 = arith.constant 0 : index
    %40 = vector.load %arg2[%c5, %c0_25, %c0_26] : memref<27x4x4xbf16, #tpu.memory_space<vmem>>, vector<1x4x4xbf16>
    %41 = vector.shape_cast %40 : vector<1x4x4xbf16> to vector<4x4xbf16>
    %42 = vector.extract_strided_slice %13 {offsets = [0, 12], sizes = [4, 1000], strides = [1, 1]} : vector<4x1222xbf16> to vector<4x1000xbf16>
    %cst_27 = arith.constant dense<0.000000e+00> : vector<4x1000xf32>
    %43 = tpu.matmul %41, %42, %cst_27 {dimension_numbers = #tpu.dot_dimension_numbers<[1], [0], [0], [1], [0, 0, 1, 1], [], []>} : vector<4x4xbf16>, vector<4x1000xbf16>, vector<4x1000xf32> -> vector<4x1000xf32>
    %44 = arith.addf %39, %43 : vector<4x1000xf32>
    %c6 = arith.constant 6 : index
    %c0_28 = arith.constant 0 : index
    %c0_29 = arith.constant 0 : index
    %45 = vector.load %arg2[%c6, %c0_28, %c0_29] : memref<27x4x4xbf16, #tpu.memory_space<vmem>>, vector<1x4x4xbf16>
    %46 = vector.shape_cast %45 : vector<1x4x4xbf16> to vector<4x4xbf16>
    %47 = vector.extract_strided_slice %13 {offsets = [0, 20], sizes = [4, 1000], strides = [1, 1]} : vector<4x1222xbf16> to vector<4x1000xbf16>
    %cst_30 = arith.constant dense<0.000000e+00> : vector<4x1000xf32>
    %48 = tpu.matmul %46, %47, %cst_30 {dimension_numbers = #tpu.dot_dimension_numbers<[1], [0], [0], [1], [0, 0, 1, 1], [], []>} : vector<4x4xbf16>, vector<4x1000xbf16>, vector<4x1000xf32> -> vector<4x1000xf32>
    %49 = arith.addf %44, %48 : vector<4x1000xf32>
    %c7 = arith.constant 7 : index
    %c0_31 = arith.constant 0 : index
    %c0_32 = arith.constant 0 : index
    %50 = vector.load %arg2[%c7, %c0_31, %c0_32] : memref<27x4x4xbf16, #tpu.memory_space<vmem>>, vector<1x4x4xbf16>
    %51 = vector.shape_cast %50 : vector<1x4x4xbf16> to vector<4x4xbf16>
    %52 = vector.extract_strided_slice %13 {offsets = [0, 21], sizes = [4, 1000], strides = [1, 1]} : vector<4x1222xbf16> to vector<4x1000xbf16>
    %cst_33 = arith.constant dense<0.000000e+00> : vector<4x1000xf32>
    %53 = tpu.matmul %51, %52, %cst_33 {dimension_numbers = #tpu.dot_dimension_numbers<[1], [0], [0], [1], [0, 0, 1, 1], [], []>} : vector<4x4xbf16>, vector<4x1000xbf16>, vector<4x1000xf32> -> vector<4x1000xf32>
    %54 = arith.addf %49, %53 : vector<4x1000xf32>
    %c8 = arith.constant 8 : index
    %c0_34 = arith.constant 0 : index
    %c0_35 = arith.constant 0 : index
    %55 = vector.load %arg2[%c8, %c0_34, %c0_35] : memref<27x4x4xbf16, #tpu.memory_space<vmem>>, vector<1x4x4xbf16>
    %56 = vector.shape_cast %55 : vector<1x4x4xbf16> to vector<4x4xbf16>
    %57 = vector.extract_strided_slice %13 {offsets = [0, 22], sizes = [4, 1000], strides = [1, 1]} : vector<4x1222xbf16> to vector<4x1000xbf16>
    %cst_36 = arith.constant dense<0.000000e+00> : vector<4x1000xf32>
    %58 = tpu.matmul %56, %57, %cst_36 {dimension_numbers = #tpu.dot_dimension_numbers<[1], [0], [0], [1], [0, 0, 1, 1], [], []>} : vector<4x4xbf16>, vector<4x1000xbf16>, vector<4x1000xf32> -> vector<4x1000xf32>
    %59 = arith.addf %54, %58 : vector<4x1000xf32>
    %c9 = arith.constant 9 : index
    %c0_37 = arith.constant 0 : index
    %c0_38 = arith.constant 0 : index
    %60 = vector.load %arg2[%c9, %c0_37, %c0_38] : memref<27x4x4xbf16, #tpu.memory_space<vmem>>, vector<1x4x4xbf16>
    %61 = vector.shape_cast %60 : vector<1x4x4xbf16> to vector<4x4xbf16>
    %62 = vector.extract_strided_slice %13 {offsets = [0, 100], sizes = [4, 1000], strides = [1, 1]} : vector<4x1222xbf16> to vector<4x1000xbf16>
    %cst_39 = arith.constant dense<0.000000e+00> : vector<4x1000xf32>
    %63 = tpu.matmul %61, %62, %cst_39 {dimension_numbers = #tpu.dot_dimension_numbers<[1], [0], [0], [1], [0, 0, 1, 1], [], []>} : vector<4x4xbf16>, vector<4x1000xbf16>, vector<4x1000xf32> -> vector<4x1000xf32>
    %64 = arith.addf %59, %63 : vector<4x1000xf32>
    %c10 = arith.constant 10 : index
    %c0_40 = arith.constant 0 : index
    %c0_41 = arith.constant 0 : index
    %65 = vector.load %arg2[%c10, %c0_40, %c0_41] : memref<27x4x4xbf16, #tpu.memory_space<vmem>>, vector<1x4x4xbf16>
    %66 = vector.shape_cast %65 : vector<1x4x4xbf16> to vector<4x4xbf16>
    %67 = vector.extract_strided_slice %13 {offsets = [0, 101], sizes = [4, 1000], strides = [1, 1]} : vector<4x1222xbf16> to vector<4x1000xbf16>
    %cst_42 = arith.constant dense<0.000000e+00> : vector<4x1000xf32>
    %68 = tpu.matmul %66, %67, %cst_42 {dimension_numbers = #tpu.dot_dimension_numbers<[1], [0], [0], [1], [0, 0, 1, 1], [], []>} : vector<4x4xbf16>, vector<4x1000xbf16>, vector<4x1000xf32> -> vector<4x1000xf32>
    %69 = arith.addf %64, %68 : vector<4x1000xf32>
    %c11 = arith.constant 11 : index
    %c0_43 = arith.constant 0 : index
    %c0_44 = arith.constant 0 : index
    %70 = vector.load %arg2[%c11, %c0_43, %c0_44] : memref<27x4x4xbf16, #tpu.memory_space<vmem>>, vector<1x4x4xbf16>
    %71 = vector.shape_cast %70 : vector<1x4x4xbf16> to vector<4x4xbf16>
    %72 = vector.extract_strided_slice %13 {offsets = [0, 102], sizes = [4, 1000], strides = [1, 1]} : vector<4x1222xbf16> to vector<4x1000xbf16>
    %cst_45 = arith.constant dense<0.000000e+00> : vector<4x1000xf32>
    %73 = tpu.matmul %71, %72, %cst_45 {dimension_numbers = #tpu.dot_dimension_numbers<[1], [0], [0], [1], [0, 0, 1, 1], [], []>} : vector<4x4xbf16>, vector<4x1000xbf16>, vector<4x1000xf32> -> vector<4x1000xf32>
    %74 = arith.addf %69, %73 : vector<4x1000xf32>
    %c12 = arith.constant 12 : index
    %c0_46 = arith.constant 0 : index
    %c0_47 = arith.constant 0 : index
    %75 = vector.load %arg2[%c12, %c0_46, %c0_47] : memref<27x4x4xbf16, #tpu.memory_space<vmem>>, vector<1x4x4xbf16>
    %76 = vector.shape_cast %75 : vector<1x4x4xbf16> to vector<4x4xbf16>
    %77 = vector.extract_strided_slice %13 {offsets = [0, 110], sizes = [4, 1000], strides = [1, 1]} : vector<4x1222xbf16> to vector<4x1000xbf16>
    %cst_48 = arith.constant dense<0.000000e+00> : vector<4x1000xf32>
    %78 = tpu.matmul %76, %77, %cst_48 {dimension_numbers = #tpu.dot_dimension_numbers<[1], [0], [0], [1], [0, 0, 1, 1], [], []>} : vector<4x4xbf16>, vector<4x1000xbf16>, vector<4x1000xf32> -> vector<4x1000xf32>
    %79 = arith.addf %74, %78 : vector<4x1000xf32>
    %c13 = arith.constant 13 : index
    %c0_49 = arith.constant 0 : index
    %c0_50 = arith.constant 0 : index
    %80 = vector.load %arg2[%c13, %c0_49, %c0_50] : memref<27x4x4xbf16, #tpu.memory_space<vmem>>, vector<1x4x4xbf16>
    %81 = vector.shape_cast %80 : vector<1x4x4xbf16> to vector<4x4xbf16>
    %82 = vector.extract_strided_slice %13 {offsets = [0, 111], sizes = [4, 1000], strides = [1, 1]} : vector<4x1222xbf16> to vector<4x1000xbf16>
    %cst_51 = arith.constant dense<0.000000e+00> : vector<4x1000xf32>
    %83 = tpu.matmul %81, %82, %cst_51 {dimension_numbers = #tpu.dot_dimension_numbers<[1], [0], [0], [1], [0, 0, 1, 1], [], []>} : vector<4x4xbf16>, vector<4x1000xbf16>, vector<4x1000xf32> -> vector<4x1000xf32>
    %84 = arith.addf %79, %83 : vector<4x1000xf32>
    %c14 = arith.constant 14 : index
    %c0_52 = arith.constant 0 : index
    %c0_53 = arith.constant 0 : index
    %85 = vector.load %arg2[%c14, %c0_52, %c0_53] : memref<27x4x4xbf16, #tpu.memory_space<vmem>>, vector<1x4x4xbf16>
    %86 = vector.shape_cast %85 : vector<1x4x4xbf16> to vector<4x4xbf16>
    %87 = vector.extract_strided_slice %13 {offsets = [0, 112], sizes = [4, 1000], strides = [1, 1]} : vector<4x1222xbf16> to vector<4x1000xbf16>
    %cst_54 = arith.constant dense<0.000000e+00> : vector<4x1000xf32>
    %88 = tpu.matmul %86, %87, %cst_54 {dimension_numbers = #tpu.dot_dimension_numbers<[1], [0], [0], [1], [0, 0, 1, 1], [], []>} : vector<4x4xbf16>, vector<4x1000xbf16>, vector<4x1000xf32> -> vector<4x1000xf32>
    %89 = arith.addf %84, %88 : vector<4x1000xf32>
    %c15 = arith.constant 15 : index
    %c0_55 = arith.constant 0 : index
    %c0_56 = arith.constant 0 : index
    %90 = vector.load %arg2[%c15, %c0_55, %c0_56] : memref<27x4x4xbf16, #tpu.memory_space<vmem>>, vector<1x4x4xbf16>
    %91 = vector.shape_cast %90 : vector<1x4x4xbf16> to vector<4x4xbf16>
    %92 = vector.extract_strided_slice %13 {offsets = [0, 120], sizes = [4, 1000], strides = [1, 1]} : vector<4x1222xbf16> to vector<4x1000xbf16>
    %cst_57 = arith.constant dense<0.000000e+00> : vector<4x1000xf32>
    %93 = tpu.matmul %91, %92, %cst_57 {dimension_numbers = #tpu.dot_dimension_numbers<[1], [0], [0], [1], [0, 0, 1, 1], [], []>} : vector<4x4xbf16>, vector<4x1000xbf16>, vector<4x1000xf32> -> vector<4x1000xf32>
    %94 = arith.addf %89, %93 : vector<4x1000xf32>
    %c16 = arith.constant 16 : index
    %c0_58 = arith.constant 0 : index
    %c0_59 = arith.constant 0 : index
    %95 = vector.load %arg2[%c16, %c0_58, %c0_59] : memref<27x4x4xbf16, #tpu.memory_space<vmem>>, vector<1x4x4xbf16>
    %96 = vector.shape_cast %95 : vector<1x4x4xbf16> to vector<4x4xbf16>
    %97 = vector.extract_strided_slice %13 {offsets = [0, 121], sizes = [4, 1000], strides = [1, 1]} : vector<4x1222xbf16> to vector<4x1000xbf16>
    %cst_60 = arith.constant dense<0.000000e+00> : vector<4x1000xf32>
    %98 = tpu.matmul %96, %97, %cst_60 {dimension_numbers = #tpu.dot_dimension_numbers<[1], [0], [0], [1], [0, 0, 1, 1], [], []>} : vector<4x4xbf16>, vector<4x1000xbf16>, vector<4x1000xf32> -> vector<4x1000xf32>
    %99 = arith.addf %94, %98 : vector<4x1000xf32>
    %c17 = arith.constant 17 : index
    %c0_61 = arith.constant 0 : index
    %c0_62 = arith.constant 0 : index
    %100 = vector.load %arg2[%c17, %c0_61, %c0_62] : memref<27x4x4xbf16, #tpu.memory_space<vmem>>, vector<1x4x4xbf16>
    %101 = vector.shape_cast %100 : vector<1x4x4xbf16> to vector<4x4xbf16>
    %102 = vector.extract_strided_slice %13 {offsets = [0, 122], sizes = [4, 1000], strides = [1, 1]} : vector<4x1222xbf16> to vector<4x1000xbf16>
    %cst_63 = arith.constant dense<0.000000e+00> : vector<4x1000xf32>
    %103 = tpu.matmul %101, %102, %cst_63 {dimension_numbers = #tpu.dot_dimension_numbers<[1], [0], [0], [1], [0, 0, 1, 1], [], []>} : vector<4x4xbf16>, vector<4x1000xbf16>, vector<4x1000xf32> -> vector<4x1000xf32>
    %104 = arith.addf %99, %103 : vector<4x1000xf32>
    %c18 = arith.constant 18 : index
    %c0_64 = arith.constant 0 : index
    %c0_65 = arith.constant 0 : index
    %105 = vector.load %arg2[%c18, %c0_64, %c0_65] : memref<27x4x4xbf16, #tpu.memory_space<vmem>>, vector<1x4x4xbf16>
    %106 = vector.shape_cast %105 : vector<1x4x4xbf16> to vector<4x4xbf16>
    %107 = vector.extract_strided_slice %13 {offsets = [0, 200], sizes = [4, 1000], strides = [1, 1]} : vector<4x1222xbf16> to vector<4x1000xbf16>
    %cst_66 = arith.constant dense<0.000000e+00> : vector<4x1000xf32>
    %108 = tpu.matmul %106, %107, %cst_66 {dimension_numbers = #tpu.dot_dimension_numbers<[1], [0], [0], [1], [0, 0, 1, 1], [], []>} : vector<4x4xbf16>, vector<4x1000xbf16>, vector<4x1000xf32> -> vector<4x1000xf32>
    %109 = arith.addf %104, %108 : vector<4x1000xf32>
    %c19 = arith.constant 19 : index
    %c0_67 = arith.constant 0 : index
    %c0_68 = arith.constant 0 : index
    %110 = vector.load %arg2[%c19, %c0_67, %c0_68] : memref<27x4x4xbf16, #tpu.memory_space<vmem>>, vector<1x4x4xbf16>
    %111 = vector.shape_cast %110 : vector<1x4x4xbf16> to vector<4x4xbf16>
    %112 = vector.extract_strided_slice %13 {offsets = [0, 201], sizes = [4, 1000], strides = [1, 1]} : vector<4x1222xbf16> to vector<4x1000xbf16>
    %cst_69 = arith.constant dense<0.000000e+00> : vector<4x1000xf32>
    %113 = tpu.matmul %111, %112, %cst_69 {dimension_numbers = #tpu.dot_dimension_numbers<[1], [0], [0], [1], [0, 0, 1, 1], [], []>} : vector<4x4xbf16>, vector<4x1000xbf16>, vector<4x1000xf32> -> vector<4x1000xf32>
    %114 = arith.addf %109, %113 : vector<4x1000xf32>
    %c20 = arith.constant 20 : index
    %c0_70 = arith.constant 0 : index
    %c0_71 = arith.constant 0 : index
    %115 = vector.load %arg2[%c20, %c0_70, %c0_71] : memref<27x4x4xbf16, #tpu.memory_space<vmem>>, vector<1x4x4xbf16>
    %116 = vector.shape_cast %115 : vector<1x4x4xbf16> to vector<4x4xbf16>
    %117 = vector.extract_strided_slice %13 {offsets = [0, 202], sizes = [4, 1000], strides = [1, 1]} : vector<4x1222xbf16> to vector<4x1000xbf16>
    %cst_72 = arith.constant dense<0.000000e+00> : vector<4x1000xf32>
    %118 = tpu.matmul %116, %117, %cst_72 {dimension_numbers = #tpu.dot_dimension_numbers<[1], [0], [0], [1], [0, 0, 1, 1], [], []>} : vector<4x4xbf16>, vector<4x1000xbf16>, vector<4x1000xf32> -> vector<4x1000xf32>
    %119 = arith.addf %114, %118 : vector<4x1000xf32>
    %c21 = arith.constant 21 : index
    %c0_73 = arith.constant 0 : index
    %c0_74 = arith.constant 0 : index
    %120 = vector.load %arg2[%c21, %c0_73, %c0_74] : memref<27x4x4xbf16, #tpu.memory_space<vmem>>, vector<1x4x4xbf16>
    %121 = vector.shape_cast %120 : vector<1x4x4xbf16> to vector<4x4xbf16>
    %122 = vector.extract_strided_slice %13 {offsets = [0, 210], sizes = [4, 1000], strides = [1, 1]} : vector<4x1222xbf16> to vector<4x1000xbf16>
    %cst_75 = arith.constant dense<0.000000e+00> : vector<4x1000xf32>
    %123 = tpu.matmul %121, %122, %cst_75 {dimension_numbers = #tpu.dot_dimension_numbers<[1], [0], [0], [1], [0, 0, 1, 1], [], []>} : vector<4x4xbf16>, vector<4x1000xbf16>, vector<4x1000xf32> -> vector<4x1000xf32>
    %124 = arith.addf %119, %123 : vector<4x1000xf32>
    %c22 = arith.constant 22 : index
    %c0_76 = arith.constant 0 : index
    %c0_77 = arith.constant 0 : index
    %125 = vector.load %arg2[%c22, %c0_76, %c0_77] : memref<27x4x4xbf16, #tpu.memory_space<vmem>>, vector<1x4x4xbf16>
    %126 = vector.shape_cast %125 : vector<1x4x4xbf16> to vector<4x4xbf16>
    %127 = vector.extract_strided_slice %13 {offsets = [0, 211], sizes = [4, 1000], strides = [1, 1]} : vector<4x1222xbf16> to vector<4x1000xbf16>
    %cst_78 = arith.constant dense<0.000000e+00> : vector<4x1000xf32>
    %128 = tpu.matmul %126, %127, %cst_78 {dimension_numbers = #tpu.dot_dimension_numbers<[1], [0], [0], [1], [0, 0, 1, 1], [], []>} : vector<4x4xbf16>, vector<4x1000xbf16>, vector<4x1000xf32> -> vector<4x1000xf32>
    %129 = arith.addf %124, %128 : vector<4x1000xf32>
    %c23 = arith.constant 23 : index
    %c0_79 = arith.constant 0 : index
    %c0_80 = arith.constant 0 : index
    %130 = vector.load %arg2[%c23, %c0_79, %c0_80] : memref<27x4x4xbf16, #tpu.memory_space<vmem>>, vector<1x4x4xbf16>
    %131 = vector.shape_cast %130 : vector<1x4x4xbf16> to vector<4x4xbf16>
    %132 = vector.extract_strided_slice %13 {offsets = [0, 212], sizes = [4, 1000], strides = [1, 1]} : vector<4x1222xbf16> to vector<4x1000xbf16>
    %cst_81 = arith.constant dense<0.000000e+00> : vector<4x1000xf32>
    %133 = tpu.matmul %131, %132, %cst_81 {dimension_numbers = #tpu.dot_dimension_numbers<[1], [0], [0], [1], [0, 0, 1, 1], [], []>} : vector<4x4xbf16>, vector<4x1000xbf16>, vector<4x1000xf32> -> vector<4x1000xf32>
    %134 = arith.addf %129, %133 : vector<4x1000xf32>
    %c24 = arith.constant 24 : index
    %c0_82 = arith.constant 0 : index
    %c0_83 = arith.constant 0 : index
    %135 = vector.load %arg2[%c24, %c0_82, %c0_83] : memref<27x4x4xbf16, #tpu.memory_space<vmem>>, vector<1x4x4xbf16>
    %136 = vector.shape_cast %135 : vector<1x4x4xbf16> to vector<4x4xbf16>
    %137 = vector.extract_strided_slice %13 {offsets = [0, 220], sizes = [4, 1000], strides = [1, 1]} : vector<4x1222xbf16> to vector<4x1000xbf16>
    %cst_84 = arith.constant dense<0.000000e+00> : vector<4x1000xf32>
    %138 = tpu.matmul %136, %137, %cst_84 {dimension_numbers = #tpu.dot_dimension_numbers<[1], [0], [0], [1], [0, 0, 1, 1], [], []>} : vector<4x4xbf16>, vector<4x1000xbf16>, vector<4x1000xf32> -> vector<4x1000xf32>
    %139 = arith.addf %134, %138 : vector<4x1000xf32>
    %c25 = arith.constant 25 : index
    %c0_85 = arith.constant 0 : index
    %c0_86 = arith.constant 0 : index
    %140 = vector.load %arg2[%c25, %c0_85, %c0_86] : memref<27x4x4xbf16, #tpu.memory_space<vmem>>, vector<1x4x4xbf16>
    %141 = vector.shape_cast %140 : vector<1x4x4xbf16> to vector<4x4xbf16>
    %142 = vector.extract_strided_slice %13 {offsets = [0, 221], sizes = [4, 1000], strides = [1, 1]} : vector<4x1222xbf16> to vector<4x1000xbf16>
    %cst_87 = arith.constant dense<0.000000e+00> : vector<4x1000xf32>
    %143 = tpu.matmul %141, %142, %cst_87 {dimension_numbers = #tpu.dot_dimension_numbers<[1], [0], [0], [1], [0, 0, 1, 1], [], []>} : vector<4x4xbf16>, vector<4x1000xbf16>, vector<4x1000xf32> -> vector<4x1000xf32>
    %144 = arith.addf %139, %143 : vector<4x1000xf32>
    %c26 = arith.constant 26 : index
    %c0_88 = arith.constant 0 : index
    %c0_89 = arith.constant 0 : index
    %145 = vector.load %arg2[%c26, %c0_88, %c0_89] : memref<27x4x4xbf16, #tpu.memory_space<vmem>>, vector<1x4x4xbf16>
    %146 = vector.shape_cast %145 : vector<1x4x4xbf16> to vector<4x4xbf16>
    %147 = vector.extract_strided_slice %13 {offsets = [0, 222], sizes = [4, 1000], strides = [1, 1]} : vector<4x1222xbf16> to vector<4x1000xbf16>
    %cst_90 = arith.constant dense<0.000000e+00> : vector<4x1000xf32>
    %148 = tpu.matmul %146, %147, %cst_90 {dimension_numbers = #tpu.dot_dimension_numbers<[1], [0], [0], [1], [0, 0, 1, 1], [], []>} : vector<4x4xbf16>, vector<4x1000xbf16>, vector<4x1000xf32> -> vector<4x1000xf32>
    %149 = arith.addf %144, %148 : vector<4x1000xf32>
    %c0_91 = arith.constant 0 : index
    %c0_92 = arith.constant 0 : index
    %c0_93 = arith.constant 0 : index
    %150 = vector.load %arg7[%c0_91, %c0_92, %c0_93] : memref<1x4x1000xf32, #tpu.memory_space<vmem>>, vector<1x4x1000xf32>
    %151 = vector.shape_cast %150 : vector<1x4x1000xf32> to vector<4x1000xf32>
    %152 = vector.shape_cast %149 : vector<4x1000xf32> to vector<1x4x1000xf32>
    tpu.vector_store %arg7[%c0_91, %c0_92, %c0_93], %152 {strides = array<i32>} : memref<1x4x1000xf32, #tpu.memory_space<vmem>>, vector<1x4x1000xf32>,
    %c0_94 = arith.constant 0 : index
    %c0_95 = arith.constant 0 : index
    %153 = vector.load %arg6[%c0_94, %c0_95] : memref<1x1000xf32, #tpu.memory_space<vmem>>, vector<1x1000xf32>
    %154 = vector.broadcast %153 : vector<1x1000xf32> to vector<4x1000xf32>
    %155 = arith.mulf %149, %154 : vector<4x1000xf32>
    %cst_96 = arith.constant dense<0.000000e+00> : vector<4xf32>
    %156 = vector.multi_reduction <add>, %155, %cst_96 [1] : vector<4x1000xf32> to vector<4xf32>
    %157 = vector.shape_cast %156 : vector<4xf32> to vector<4x1xf32>
    %158 = arith.mulf %155, %149 : vector<4x1000xf32>
    %cst_97 = arith.constant dense<0.000000e+00> : vector<4xf32>
    %159 = vector.multi_reduction <add>, %158, %cst_97 [1] : vector<4x1000xf32> to vector<4xf32>
    %160 = vector.shape_cast %159 : vector<4xf32> to vector<4x1xf32>
    %161 = tpu.concatenate %157, %160 in 1 : vector<4x1xf32>, vector<4x1xf32> -> vector<4x2xf32>
    %c0_98 = arith.constant 0 : index
    %c0_99 = arith.constant 0 : index
    %c0_100 = arith.constant 0 : index
    %162 = vector.load %arg8[%c0_98, %c0_99, %c0_100] : memref<1x4x2xf32, #tpu.memory_space<vmem>>, vector<1x4x2xf32>
    %163 = vector.shape_cast %162 : vector<1x4x2xf32> to vector<4x2xf32>
    %164 = vector.shape_cast %161 : vector<4x2xf32> to vector<1x4x2xf32>
    tpu.vector_store %arg8[%c0_98, %c0_99, %c0_100], %164 {strides = array<i32>} : memref<1x4x2xf32, #tpu.memory_space<vmem>>, vector<1x4x2xf32>,
    return
  }
  func.func @transform_0(%arg0: i32) -> (i32, i32, i32) {
    %c0_i32 = arith.constant 0 : i32
    %c0_i32_0 = arith.constant 0 : i32
    %c0_i32_1 = arith.constant 0 : i32
    return %arg0, %c0_i32, %c0_i32_0 : i32, i32, i32
  }
  func.func @transform_1(%arg0: i32) -> (i32, i32, i32) {
    %c0_i32 = arith.constant 0 : i32
    %c0_i32_0 = arith.constant 0 : i32
    %c0_i32_1 = arith.constant 0 : i32
    %c0_i32_2 = arith.constant 0 : i32
    return %c0_i32, %c0_i32_0, %c0_i32_1 : i32, i32, i32
  }
  func.func @transform_2(%arg0: i32) -> (i32, i32) {
    %c0_i32 = arith.constant 0 : i32
    %c0_i32_0 = arith.constant 0 : i32
    %c0_i32_1 = arith.constant 0 : i32
    return %c0_i32, %c0_i32_0 : i32, i32
  }
  func.func @transform_3(%arg0: i32) -> (i32, i32) {
    %c0_i32 = arith.constant 0 : i32
    %c0_i32_0 = arith.constant 0 : i32
    %c0_i32_1 = arith.constant 0 : i32
    return %c0_i32, %c0_i32_0 : i32, i32
  }
  func.func @transform_4(%arg0: i32) -> (i32, i32) {
    %c0_i32 = arith.constant 0 : i32
    %c0_i32_0 = arith.constant 0 : i32
    %c0_i32_1 = arith.constant 0 : i32
    return %c0_i32, %c0_i32_0 : i32, i32
  }
  func.func @transform_5(%arg0: i32) -> (i32, i32) {
    %c0_i32 = arith.constant 0 : i32
    %c0_i32_0 = arith.constant 0 : i32
    %c0_i32_1 = arith.constant 0 : i32
    return %c0_i32, %c0_i32_0 : i32, i32
  }
  func.func @transform_6(%arg0: i32) -> (i32, i32, i32) {
    %c0_i32 = arith.constant 0 : i32
    %c0_i32_0 = arith.constant 0 : i32
    %c0_i32_1 = arith.constant 0 : i32
    return %arg0, %c0_i32, %c0_i32_0 : i32, i32, i32
  }
  func.func @transform_7(%arg0: i32) -> (i32, i32, i32) {
    %c0_i32 = arith.constant 0 : i32
    %c0_i32_0 = arith.constant 0 : i32
    %c0_i32_1 = arith.constant 0 : i32
    return %arg0, %c0_i32, %c0_i32_0 : i32, i32, i32
  }
}

module attributes {stable_mosaic.version = 11 : i64} {
  func.func @_stage3_kernel(%arg0: i32, %arg1: memref<4x512xf32, #tpu.memory_space<vmem>>, %arg2: memref<16x4xbf16, #tpu.memory_space<vmem>>, %arg3: memref<4x1xf32, #tpu.memory_space<vmem>>, %arg4: memref<4x1xf32, #tpu.memory_space<vmem>>, %arg5: memref<16x512xf32, #tpu.memory_space<vmem>>, %arg6: memref<1x16x2xf32, #tpu.memory_space<vmem>>) attributes {dimension_semantics = [#tpu.dimension_semantics<parallel>], iteration_bounds = array<i64: 2>, scalar_prefetch = 0 : i64, scratch_operands = 0 : i64, tpu.core_type = #tpu.core_type<tc>, window_params = [{transform_indices = @transform_0, window_bounds = array<i64: 4, 512>}, {pipeline_mode = #tpu.pipeline_mode<synchronous>, transform_indices = @transform_1, window_bounds = array<i64: 16, 4>}, {pipeline_mode = #tpu.pipeline_mode<synchronous>, transform_indices = @transform_2, window_bounds = array<i64: 4, 1>}, {pipeline_mode = #tpu.pipeline_mode<synchronous>, transform_indices = @transform_3, window_bounds = array<i64: 4, 1>}, {transform_indices = @transform_4, window_bounds = array<i64: 16, 512>}, {transform_indices = @transform_5, window_bounds = array<i64: 1, 16, 2>}]} {
    %c0 = arith.constant 0 : index
    %c0_0 = arith.constant 0 : index
    %0 = vector.load %arg1[%c0, %c0_0] : memref<4x512xf32, #tpu.memory_space<vmem>>, vector<4x512xf32>
    %c0_1 = arith.constant 0 : index
    %c0_2 = arith.constant 0 : index
    %1 = vector.load %arg3[%c0_1, %c0_2] : memref<4x1xf32, #tpu.memory_space<vmem>>, vector<4x1xf32>
    %2 = vector.broadcast %1 : vector<4x1xf32> to vector<4x512xf32>
    %3 = arith.mulf %0, %2 : vector<4x512xf32>
    %c0_3 = arith.constant 0 : index
    %c0_4 = arith.constant 0 : index
    %4 = vector.load %arg4[%c0_3, %c0_4] : memref<4x1xf32, #tpu.memory_space<vmem>>, vector<4x1xf32>
    %5 = vector.broadcast %4 : vector<4x1xf32> to vector<4x512xf32>
    %6 = arith.addf %3, %5 : vector<4x512xf32>
    %cst = arith.constant 0.000000e+00 : f32
    %7 = vector.broadcast %cst : f32 to vector<4x512xf32>
    %8 = arith.maximumf %6, %7 : vector<4x512xf32>
    %c0_5 = arith.constant 0 : index
    %c0_6 = arith.constant 0 : index
    %9 = vector.load %arg2[%c0_5, %c0_6] : memref<16x4xbf16, #tpu.memory_space<vmem>>, vector<16x4xbf16>
    %10 = arith.truncf %8 : vector<4x512xf32> to vector<4x512xbf16>
    %cst_7 = arith.constant dense<0.000000e+00> : vector<16x512xf32>
    %11 = tpu.matmul %9, %10, %cst_7 {dimension_numbers = #tpu.dot_dimension_numbers<[1], [0], [0], [1], [0, 0, 1, 1], [], []>} : vector<16x4xbf16>, vector<4x512xbf16>, vector<16x512xf32> -> vector<16x512xf32>
    %c0_8 = arith.constant 0 : index
    %c0_9 = arith.constant 0 : index
    %12 = vector.load %arg5[%c0_8, %c0_9] : memref<16x512xf32, #tpu.memory_space<vmem>>, vector<16x512xf32>
    tpu.vector_store %arg5[%c0_8, %c0_9], %11 {strides = array<i32>} : memref<16x512xf32, #tpu.memory_space<vmem>>, vector<16x512xf32>,
    %cst_10 = arith.constant dense<0.000000e+00> : vector<16xf32>
    %13 = vector.multi_reduction <add>, %11, %cst_10 [1] : vector<16x512xf32> to vector<16xf32>
    %14 = vector.shape_cast %13 : vector<16xf32> to vector<16x1xf32>
    %15 = arith.mulf %11, %11 : vector<16x512xf32>
    %cst_11 = arith.constant dense<0.000000e+00> : vector<16xf32>
    %16 = vector.multi_reduction <add>, %15, %cst_11 [1] : vector<16x512xf32> to vector<16xf32>
    %17 = vector.shape_cast %16 : vector<16xf32> to vector<16x1xf32>
    %18 = tpu.concatenate %14, %17 in 1 : vector<16x1xf32>, vector<16x1xf32> -> vector<16x2xf32>
    %c0_12 = arith.constant 0 : index
    %c0_13 = arith.constant 0 : index
    %c0_14 = arith.constant 0 : index
    %19 = vector.load %arg6[%c0_12, %c0_13, %c0_14] : memref<1x16x2xf32, #tpu.memory_space<vmem>>, vector<1x16x2xf32>
    %20 = vector.shape_cast %19 : vector<1x16x2xf32> to vector<16x2xf32>
    %21 = vector.shape_cast %18 : vector<16x2xf32> to vector<1x16x2xf32>
    tpu.vector_store %arg6[%c0_12, %c0_13, %c0_14], %21 {strides = array<i32>} : memref<1x16x2xf32, #tpu.memory_space<vmem>>, vector<1x16x2xf32>,
    return
  }
  func.func @transform_0(%arg0: i32) -> (i32, i32) {
    %c0_i32 = arith.constant 0 : i32
    %c0_i32_0 = arith.constant 0 : i32
    return %c0_i32, %arg0 : i32, i32
  }
  func.func @transform_1(%arg0: i32) -> (i32, i32) {
    %c0_i32 = arith.constant 0 : i32
    %c0_i32_0 = arith.constant 0 : i32
    %c0_i32_1 = arith.constant 0 : i32
    return %c0_i32, %c0_i32_0 : i32, i32
  }
  func.func @transform_2(%arg0: i32) -> (i32, i32) {
    %c0_i32 = arith.constant 0 : i32
    %c0_i32_0 = arith.constant 0 : i32
    %c0_i32_1 = arith.constant 0 : i32
    return %c0_i32, %c0_i32_0 : i32, i32
  }
  func.func @transform_3(%arg0: i32) -> (i32, i32) {
    %c0_i32 = arith.constant 0 : i32
    %c0_i32_0 = arith.constant 0 : i32
    %c0_i32_1 = arith.constant 0 : i32
    return %c0_i32, %c0_i32_0 : i32, i32
  }
  func.func @transform_4(%arg0: i32) -> (i32, i32) {
    %c0_i32 = arith.constant 0 : i32
    %c0_i32_0 = arith.constant 0 : i32
    return %c0_i32, %arg0 : i32, i32
  }
  func.func @transform_5(%arg0: i32) -> (i32, i32, i32) {
    %c0_i32 = arith.constant 0 : i32
    %c0_i32_0 = arith.constant 0 : i32
    %c0_i32_1 = arith.constant 0 : i32
    return %arg0, %c0_i32, %c0_i32_0 : i32, i32, i32
  }
}

module attributes {stable_mosaic.version = 11 : i64} {
  func.func @_stage4_kernel(%arg0: i32, %arg1: memref<16x512xf32, #tpu.memory_space<vmem>>, %arg2: memref<16x512xf32, #tpu.memory_space<vmem>>, %arg3: memref<16x1xf32, #tpu.memory_space<vmem>>, %arg4: memref<16x1xf32, #tpu.memory_space<vmem>>, %arg5: memref<16x512xf32, #tpu.memory_space<vmem>>) attributes {dimension_semantics = [#tpu.dimension_semantics<parallel>], iteration_bounds = array<i64: 2>, scalar_prefetch = 0 : i64, scratch_operands = 0 : i64, tpu.core_type = #tpu.core_type<tc>, window_params = [{transform_indices = @transform_0, window_bounds = array<i64: 16, 512>}, {transform_indices = @transform_1, window_bounds = array<i64: 16, 512>}, {pipeline_mode = #tpu.pipeline_mode<synchronous>, transform_indices = @transform_2, window_bounds = array<i64: 16, 1>}, {pipeline_mode = #tpu.pipeline_mode<synchronous>, transform_indices = @transform_3, window_bounds = array<i64: 16, 1>}, {transform_indices = @transform_4, window_bounds = array<i64: 16, 512>}]} {
    %c0 = arith.constant 0 : index
    %c0_0 = arith.constant 0 : index
    %0 = vector.load %arg1[%c0, %c0_0] : memref<16x512xf32, #tpu.memory_space<vmem>>, vector<16x512xf32>
    %c0_1 = arith.constant 0 : index
    %c0_2 = arith.constant 0 : index
    %1 = vector.load %arg3[%c0_1, %c0_2] : memref<16x1xf32, #tpu.memory_space<vmem>>, vector<16x1xf32>
    %2 = vector.broadcast %1 : vector<16x1xf32> to vector<16x512xf32>
    %3 = arith.mulf %0, %2 : vector<16x512xf32>
    %c0_3 = arith.constant 0 : index
    %c0_4 = arith.constant 0 : index
    %4 = vector.load %arg4[%c0_3, %c0_4] : memref<16x1xf32, #tpu.memory_space<vmem>>, vector<16x1xf32>
    %5 = vector.broadcast %4 : vector<16x1xf32> to vector<16x512xf32>
    %6 = arith.addf %3, %5 : vector<16x512xf32>
    %c0_5 = arith.constant 0 : index
    %c0_6 = arith.constant 0 : index
    %7 = vector.load %arg2[%c0_5, %c0_6] : memref<16x512xf32, #tpu.memory_space<vmem>>, vector<16x512xf32>
    %8 = arith.addf %6, %7 : vector<16x512xf32>
    %cst = arith.constant 0.000000e+00 : f32
    %9 = vector.broadcast %cst : f32 to vector<16x512xf32>
    %10 = arith.maximumf %8, %9 : vector<16x512xf32>
    %c0_7 = arith.constant 0 : index
    %c0_8 = arith.constant 0 : index
    %11 = vector.load %arg5[%c0_7, %c0_8] : memref<16x512xf32, #tpu.memory_space<vmem>>, vector<16x512xf32>
    tpu.vector_store %arg5[%c0_7, %c0_8], %10 {strides = array<i32>} : memref<16x512xf32, #tpu.memory_space<vmem>>, vector<16x512xf32>,
    return
  }
  func.func @transform_0(%arg0: i32) -> (i32, i32) {
    %c0_i32 = arith.constant 0 : i32
    %c0_i32_0 = arith.constant 0 : i32
    return %c0_i32, %arg0 : i32, i32
  }
  func.func @transform_1(%arg0: i32) -> (i32, i32) {
    %c0_i32 = arith.constant 0 : i32
    %c0_i32_0 = arith.constant 0 : i32
    return %c0_i32, %arg0 : i32, i32
  }
  func.func @transform_2(%arg0: i32) -> (i32, i32) {
    %c0_i32 = arith.constant 0 : i32
    %c0_i32_0 = arith.constant 0 : i32
    %c0_i32_1 = arith.constant 0 : i32
    return %c0_i32, %c0_i32_0 : i32, i32
  }
  func.func @transform_3(%arg0: i32) -> (i32, i32) {
    %c0_i32 = arith.constant 0 : i32
    %c0_i32_0 = arith.constant 0 : i32
    %c0_i32_1 = arith.constant 0 : i32
    return %c0_i32, %c0_i32_0 : i32, i32
  }
  func.func @transform_4(%arg0: i32) -> (i32, i32) {
    %c0_i32 = arith.constant 0 : i32
    %c0_i32_0 = arith.constant 0 : i32
    return %c0_i32, %arg0 : i32, i32
  }
}

</mosaic_0001>

<llo_original>
// kernel: bottleneck_forward.4
$region0: #{bottleneck_forward.4}
  #allocation0 [shape = 'u32[]', space=smem, size = 0x4, offset = 0x4, fixed_abs, tag = 'smem constant byte address 0x4 - core index']
  #allocation1 [shape = 'u32[144,128]{1,0:T(1,128)}', space=vmem, size = 0x12000, scoped, tag = 'internal scratch']
  %s0 = inlined_call_operand.vmem [shape: f32[16,1024], index: 0, kind: input, shape index: {}]
  %s1 = inlined_call_operand.vmem [shape: bf16[4,16], index: 1, kind: input, shape index: {}]
  %s2 = inlined_call_operand.vmem [shape: f32[4,1024], index: 2, kind: output, shape index: {0}]
  %s3 = inlined_call_operand.vmem [shape: f32[2,4,2], index: 3, kind: output, shape index: {1}]
  %4 = xla_tuple %s2, %s3
  %s5 = sld [smem:[#allocation0]]
  $region72: #{bottleneck_forward.4} parent=0
    _
  %s7 = ssub.s32 1, %s5
  %s8 = scalar_select 0, %s7, %s5
  $region1: #{bottleneck_forward.4} parent=0
    #allocation2 [shape = 'u8[65536]{0}', space=vmem, size = 0x10000, scoped, tag = 'input window, operand 0']
    loop: start=0, step=1, limit=4
    $region2: #{bottleneck_forward.4} parent=1 // loop_pre_header
      _
    $region3: #{bottleneck_forward.4} parent=1 // loop_header
      %s10 = sphi 0, %s14
      %p11 = scmp.ge.s32.totalorder %s10, 4
      %s20 = sphi 0, %s22
      %s23 = sphi 0, %s20
      %s24 = sphi 0, %s23
      %s40 = sphi 0, %s24
      %s44 = sphi 0, %s44
      %s46 = sphi 0, %s44
      %s47 = sphi 0, %s46
      %s61 = sphi 0, %s47
      %s67 = sphi 0, %s69
      %s70 = sphi 0, %s67
      %s71 = sphi 0, %s70
      %s87 = sphi 0, %s71
      %s93 = sphi 0, %s95
      %s96 = sphi 0, %s93
      %s97 = sphi 0, %s96
      %s113 = sphi 0, %s97
    $region4: #{bottleneck_forward.4} parent=1 // loop_header_branch
      %13 = sbr.rel (%p11) target = $region8
    $region5: #{bottleneck_forward.4} parent=1 // loop_body
      %s15 = ssub.s32 %s10, 1
      %s16 = ssub.s32 %s10, 2
      %s17 = sadd.s32 %s10, 1
      %s18 = ssub.s32 %s10, %s17
      %p19 = scmp.eq.s32.totalorder %s18, 0
      %s21 = sadd.s32 %s20, 1
      %s22 = scalar_select %p19, %s20, %s21
      %p25 = pneg %p19
      %p26 = scmp.eq.s32.totalorder %s10, 1
      %p27 = por %p25, %p26
      %p28 = scmp.ne.s32.totalorder %s20, %s23
      %p29 = scmp.eq.s32.totalorder %s10, 0
      %p30 = por %p28, %p29
      %p31 = scmp.ne.s32.totalorder %s20, %s23
      %p32 = scmp.eq.s32.totalorder %s15, 1
      %p33 = por %p31, %p32
      %p34 = scmp.ne.s32.totalorder %s23, %s24
      %p35 = scmp.eq.s32.totalorder %s15, 0
      %p36 = por %p34, %p35
      %p37 = scmp.ne.s32.totalorder %s23, %s24
      %p38 = scmp.eq.s32.totalorder %s16, 1
      %p39 = por %p37, %p38
      %p41 = scmp.ne.s32.totalorder %s24, %s40
      %p42 = scmp.eq.s32.totalorder %s16, 0
      %p43 = por %p41, %p42
      %s45 = sadd.s32 %s44, 1
      %p48 = scmp.eq.s32.totalorder %s10, 1
      %p49 = scmp.ne.s32.totalorder %s44, %s46
      %p50 = scmp.eq.s32.totalorder %s10, 0
      %p51 = por %p49, %p50
      %p52 = scmp.ne.s32.totalorder %s44, %s46
      %p53 = scmp.eq.s32.totalorder %s15, 1
      %p54 = por %p52, %p53
      %p55 = scmp.ne.s32.totalorder %s46, %s47
      %p56 = scmp.eq.s32.totalorder %s15, 0
      %p57 = por %p55, %p56
      %p58 = scmp.ne.s32.totalorder %s46, %s47
      %p59 = scmp.eq.s32.totalorder %s16, 1
      %p60 = por %p58, %p59
      %p62 = scmp.ne.s32.totalorder %s47, %s61
      %p63 = scmp.eq.s32.totalorder %s16, 0
      %p64 = por %p62, %p63
      %s65 = ssub.s32 %s10, %s17
      %p66 = scmp.eq.s32.totalorder %s65, 0
      %s68 = sadd.s32 %s67, 1
      %s69 = scalar_select %p66, %s67, %s68
      %p72 = pneg %p66
      %p73 = scmp.eq.s32.totalorder %s10, 1
      %p74 = por %p72, %p73
      %p75 = scmp.ne.s32.totalorder %s67, %s70
      %p76 = scmp.eq.s32.totalorder %s10, 0
      %p77 = por %p75, %p76
      %p78 = scmp.ne.s32.totalorder %s67, %s70
      %p79 = scmp.eq.s32.totalorder %s15, 1
      %p80 = por %p78, %p79
      %p81 = scmp.ne.s32.totalorder %s70, %s71
      %p82 = scmp.eq.s32.totalorder %s15, 0
      %p83 = por %p81, %p82
      %p84 = scmp.ne.s32.totalorder %s70, %s71
      %p85 = scmp.eq.s32.totalorder %s16, 1
      %p86 = por %p84, %p85
      %p88 = scmp.ne.s32.totalorder %s71, %s87
      %p89 = scmp.eq.s32.totalorder %s16, 0
      %p90 = por %p88, %p89
      %s91 = ssub.s32 %s10, %s17
      %p92 = scmp.eq.s32.totalorder %s91, 0
      %s94 = sadd.s32 %s93, 1
      %s95 = scalar_select %p92, %s93, %s94
      %p98 = pneg %p92
      %p99 = scmp.eq.s32.totalorder %s10, 1
      %p100 = por %p98, %p99
      %p101 = scmp.ne.s32.totalorder %s93, %s96
      %p102 = scmp.eq.s32.totalorder %s10, 0
      %p103 = por %p101, %p102
      %p104 = scmp.ne.s32.totalorder %s93, %s96
      %p105 = scmp.eq.s32.totalorder %s15, 1
      %p106 = por %p104, %p105
      %p107 = scmp.ne.s32.totalorder %s96, %s97
      %p108 = scmp.eq.s32.totalorder %s15, 0
      %p109 = por %p107, %p108
      %p110 = scmp.ne.s32.totalorder %s96, %s97
      %p111 = scmp.eq.s32.totalorder %s16, 1
      %p112 = por %p110, %p111
      %p114 = scmp.ne.s32.totalorder %s97, %s113
      %p115 = scmp.eq.s32.totalorder %s16, 0
      %p116 = por %p114, %p115
      %p117 = scmp.le.s32.totalorder 1, %s10
      %p118 = scmp.lt.s32.totalorder %s10, 3
      %p119 = pnand %p117, %p118
      %p120 = pneg %p119
      // Predicated region
      $region9: #{bottleneck_forward.4} parent=5 // pred_check
        _
      $region10: #{bottleneck_forward.4} parent=5 // pred_check_branch
        %122 = sbr.rel (%p119) target = $region12
      $region11: #{bottleneck_forward.4} parent=5 // pred_region
        %s123 = ssub.s32 %s10, 1
        // Predicated region
        $region13: #{bottleneck_forward.4} parent=11 // pred_check
          %p124 = pneg %p57
        $region14: #{bottleneck_forward.4} parent=11 // pred_check_branch
          %126 = sbr.rel (%p124) target = $region16
        $region15: #{bottleneck_forward.4} parent=11 // pred_region
          _
        $region16: #{bottleneck_forward.4} parent=11 // pred_fallthru
          _
      $region12: #{bottleneck_forward.4} parent=5 // pred_fallthru
        _
      %p127 = scmp.lt.s32.totalorder %s10, 2
      // Predicated region
      $region17: #{bottleneck_forward.4} parent=5 // pred_check
        %p128 = pneg %p127
      $region18: #{bottleneck_forward.4} parent=5 // pred_check_branch
        %130 = sbr.rel (%p128) target = $region20
      $region19: #{bottleneck_forward.4} parent=5 // pred_region
        // Predicated region
        $region21: #{bottleneck_forward.4} parent=19 // pred_check
          %p131 = pneg %p30
        $region22: #{bottleneck_forward.4} parent=19 // pred_check_branch
          %133 = sbr.rel (%p131) target = $region24
        $region23: #{bottleneck_forward.4} parent=19 // pred_region
          %s134 = sand.u32 %s20, 1
          %s135 = sand.u32 %s20, 1
          %s136 = smul.addr %s135, 64
          %s137 = scalar_lea.vmem [#allocation2], %s136
          %s138 = smul.u32 4, %s10
          %s139 = smul.addr %s138, 8
          %s140 = scalar_lea.vmem %s0, %s139
          // Predicated region
          $region25: #{bottleneck_forward.4} parent=23 // pred_check
            _
          $region26: #{bottleneck_forward.4} parent=23 // pred_check_branch
            %142 = sbr.rel (0) target = $region28
          $region27: #{bottleneck_forward.4} parent=23 // pred_region
            // Predicated region
            $region29: #{bottleneck_forward.4} parent=27 // pred_check
              _
            $region30: #{bottleneck_forward.4} parent=27 // pred_check_branch
              %144 = sbr.rel (0) target = $region32
            $region31: #{bottleneck_forward.4} parent=27 // pred_region
              loop: start=0, step=1, limit=1
              $region33: #{bottleneck_forward.4} parent=31 // loop_pre_header
                _
              $region34: #{bottleneck_forward.4} parent=31 // loop_header
                %s146 = sphi 0, %s150
                %p147 = scmp.ge.s32.totalorder %s146, 1
                %s151 = sphi %s140, %s140
                %s152 = sphi %s137, %s137
              $region35: #{bottleneck_forward.4} parent=31 // loop_header_branch
                %149 = sbr.rel (%p147) target = $region39
              $region36: #{bottleneck_forward.4} parent=31 // loop_body
                %v153 = vld [vmem:[%s151] sm:$0xff]
                %154 = vst [vmem:[%s152] sm:$0xff] %v153
                %v155 = vld [vmem:[%s151 + $0x8] sm:$0xff]
                %156 = vst [vmem:[%s152 + $0x8] sm:$0xff] %v155
                %v157 = vld [vmem:[%s151 + $0x10] sm:$0xff]
                %158 = vst [vmem:[%s152 + $0x10] sm:$0xff] %v157
                %v159 = vld [vmem:[%s151 + $0x18] sm:$0xff]
                %160 = vst [vmem:[%s152 + $0x18] sm:$0xff] %v159
                %v161 = vld [vmem:[%s151 + $0x40] sm:$0xff]
                %162 = vst [vmem:[%s152 + $0x20] sm:$0xff] %v161
                %v163 = vld [vmem:[%s151 + $0x48] sm:$0xff]
                %164 = vst [vmem:[%s152 + $0x28] sm:$0xff] %v163
                %v165 = vld [vmem:[%s151 + $0x50] sm:$0xff]
                %166 = vst [vmem:[%s152 + $0x30] sm:$0xff] %v165
                %v167 = vld [vmem:[%s151 + $0x58] sm:$0xff]
                %168 = vst [vmem:[%s152 + $0x38] sm:$0xff] %v167
              $region37: #{bottleneck_forward.4} parent=31 // loop_footer
                %s150 = sadd.s32 1, %s146
              $region38: #{bottleneck_forward.4} parent=31 // loop_footer_branch
                %145 = sbr.rel target = $region34
              $region39: #{bottleneck_forward.4} parent=31 // loop_exit
                _
            $region32: #{bottleneck_forward.4} parent=27 // pred_fallthru
              _
            // Predicated region
            $region40: #{bottleneck_forward.4} parent=27 // pred_check
              _
            $region41: #{bottleneck_forward.4} parent=27 // pred_check_branch
              %170 = sbr.rel target = $region43
            $region42: #{bottleneck_forward.4} parent=27 // pred_region
              _
            $region43: #{bottleneck_forward.4} parent=27 // pred_fallthru
              _
          $region28: #{bottleneck_forward.4} parent=23 // pred_fallthru
            _
          %171 = vnop
        $region24: #{bottleneck_forward.4} parent=19 // pred_fallthru
          _
      $region20: #{bottleneck_forward.4} parent=5 // pred_fallthru
        _
      %p172 = scmp.le.s32.totalorder 1, %s10
      %p173 = scmp.lt.s32.totalorder %s10, 3
      %p174 = pnand %p172, %p173
      %p175 = pneg %p174
      // Predicated region
      $region44: #{bottleneck_forward.4} parent=5 // pred_check
        _
      $region45: #{bottleneck_forward.4} parent=5 // pred_check_branch
        %177 = sbr.rel (%p174) target = $region47
      $region46: #{bottleneck_forward.4} parent=5 // pred_region
        %s178 = ssub.s32 %s10, 1
        %s179 = sand.u32 %s23, 1
        %s180 = sand.u32 %s23, 1
        %s181 = smul.addr %s180, 64
        %s182 = scalar_lea.vmem [#allocation2], %s181
        // Predicated region
        $region48: #{bottleneck_forward.4} parent=46 // pred_check
          %p183 = pneg %p36
        $region49: #{bottleneck_forward.4} parent=46 // pred_check_branch
          %185 = sbr.rel (%p183) target = $region51
        $region50: #{bottleneck_forward.4} parent=46 // pred_region
          _
        $region51: #{bottleneck_forward.4} parent=46 // pred_fallthru
          _
        %s186 = sand.u32 %s23, 1
        %s187 = sand.u32 %s23, 1
        %s188 = smul.addr %s187, 64
        %s189 = scalar_lea.vmem [#allocation2], %s188
        %p190 = pneg %p36
        %p191 = pneg %p33
        %p192 = pneg %p57
        %p193 = pneg %p54
        %p194 = pneg %p83
        %p195 = pneg %p80
        %s196 = smul.u32 4, %s15
        %p197 = scmp.lt.s32.totalorder %s196, 7
        %s198 = scalar_select %p197, %s196, 7
        %s199 = smul.addr %s198, 4
        %s200 = scalar_lea.vmem %s2, %s199
        %p201 = pneg %p109
        %p202 = pneg %p106
        %p203 = scmp.lt.s32.totalorder %s15, 1
        %s204 = scalar_select %p203, %s15, 1
        %s205 = smul.addr %s204, 4
        %s206 = scalar_lea.vmem %s3, %s205
        %s207 = smul.u32 4, %s15
        %s208 = smul.u32 4, %s15
        %p209 = scmp.lt.s32.totalorder %s208, 7
        %s210 = scalar_select %p209, %s208, 7
        %s211 = smul.addr %s210, 4
        %s212 = scalar_lea.vmem %s2, %s211
        %s213 = smul.u32 4, %s15
        %p214 = scmp.lt.s32.totalorder %s15, 1
        %s215 = scalar_select %p214, %s15, 1
        %s216 = smul.addr %s215, 4
        %s217 = scalar_lea.vmem %s3, %s216
        %v219 = vld [vmem:[%s1] sm:$0x3]
        %v220 = vld [vmem:[%s182] sm:$0xff]
        %v221 = vld [vmem:[%s182 + $0x8] sm:$0xff]
        %v222 = vld [vmem:[%s182 + $0x10] sm:$0xff]
        %v223 = vld [vmem:[%s182 + $0x18] sm:$0xff]
        %v224 = vld [vmem:[%s182 + $0x20] sm:$0xff]
        %v225 = vld [vmem:[%s182 + $0x28] sm:$0xff]
        %v226 = vld [vmem:[%s182 + $0x30] sm:$0xff]
        %v227 = vld [vmem:[%s182 + $0x38] sm:$0xff]
        %v228 = vpack.c.bf16 %v224, %v220
        %v229 = vpack.c.bf16 %v225, %v221
        %v230 = vpack.c.bf16 %v226, %v222
        %v231 = vpack.c.bf16 %v227, %v223
        %vm232 = vcmask 130048
        %v234 = vsel %vm232, %v219, 0
        %236 = vmatprep.subr.bf16.mxu0 %v229
        %237 = vmatpush1.bf16.msra.mxu0 %v228
        %238 = vmatprep.subr.bf16.mxu0 0
        %239 = vmatpush1.bf16.msra.mxu0 0
        %240 = vmatprep.subr.bf16.mxu0 0
        %241 = vmatpush1.bf16.msra.mxu0 0
        %242 = vmatprep.subr.bf16.mxu0 0
        %243 = vmatpush1.bf16.msra.mxu0 0
        %244 = vmatprep.subr.bf16.mxu0 0
        %245 = vmatpush1.bf16.msra.mxu0 0
        %246 = vmatprep.subr.bf16.mxu0 0
        %247 = vmatpush1.bf16.msra.mxu0 0
        %248 = vmatprep.subr.bf16.mxu0 0
        %249 = vmatpush1.bf16.msra.mxu0 0
        %250 = vmatprep.subr.bf16.mxu0 0
        %251 = vmatpush1.bf16.msra.mxu0 0
        %252 = vmatprep.subr.bf16.mxu0 0
        %253 = vmatpush1.bf16.msra.mxu0 0
        %254 = vmatprep.subr.bf16.mxu0 0
        %255 = vmatpush1.bf16.msra.mxu0 0
        %256 = vmatprep.subr.bf16.mxu0 0
        %257 = vmatpush1.bf16.msra.mxu0 0
        %258 = vmatprep.subr.bf16.mxu0 0
        %259 = vmatpush1.bf16.msra.mxu0 0
        %260 = vmatprep.subr.bf16.mxu0 0
        %261 = vmatpush1.bf16.msra.mxu0 0
        %262 = vmatprep.subr.bf16.mxu0 0
        %263 = vmatpush1.bf16.msra.mxu0 0
        %264 = vmatprep.subr.bf16.mxu0 0
        %265 = vmatpush1.bf16.msra.mxu0 0
        %266 = vmatprep.subr.bf16.mxu0 0
        %267 = vmatpush1.bf16.msra.mxu0 0
        %268 = vmatprep.mubr.bf16.mxu0 0
        %269 = vmatmul.mubr.bf16.gmra.mrb[0].mxu0 %v234
        %v270 = vpop.f32.mrb[0].mxu0
        %v271 = vadd.f32 0.0, %v270
        %v272 = vpop.f32.mrb[0].mxu0
        %v273 = vadd.f32 0.0, %v272
        %v274 = vpop.f32.mrb[0].mxu0
        %v275 = vpop.f32.mrb[0].mxu0
        %276 = vdwg.mxu0
        %277 = vmatprep.subr.bf16.mxu0 %v231
        %278 = vmatpush1.bf16.msra.mxu0 %v230
        %279 = vmatprep.subr.bf16.mxu0 0
        %280 = vmatpush1.bf16.msra.mxu0 0
        %281 = vmatprep.subr.bf16.mxu0 0
        %282 = vmatpush1.bf16.msra.mxu0 0
        %283 = vmatprep.subr.bf16.mxu0 0
        %284 = vmatpush1.bf16.msra.mxu0 0
        %285 = vmatprep.subr.bf16.mxu0 0
        %286 = vmatpush1.bf16.msra.mxu0 0
        %287 = vmatprep.subr.bf16.mxu0 0
        %288 = vmatpush1.bf16.msra.mxu0 0
        %289 = vmatprep.subr.bf16.mxu0 0
        %290 = vmatpush1.bf16.msra.mxu0 0
        %291 = vmatprep.subr.bf16.mxu0 0
        %292 = vmatpush1.bf16.msra.mxu0 0
        %293 = vmatprep.subr.bf16.mxu0 0
        %294 = vmatpush1.bf16.msra.mxu0 0
        %295 = vmatprep.subr.bf16.mxu0 0
        %296 = vmatpush1.bf16.msra.mxu0 0
        %297 = vmatprep.subr.bf16.mxu0 0
        %298 = vmatpush1.bf16.msra.mxu0 0
        %299 = vmatprep.subr.bf16.mxu0 0
        %300 = vmatpush1.bf16.msra.mxu0 0
        %301 = vmatprep.subr.bf16.mxu0 0
        %302 = vmatpush1.bf16.msra.mxu0 0
        %303 = vmatprep.subr.bf16.mxu0 0
        %304 = vmatpush1.bf16.msra.mxu0 0
        %305 = vmatprep.subr.bf16.mxu0 0
        %306 = vmatpush1.bf16.msra.mxu0 0
        %307 = vmatprep.subr.bf16.mxu0 0
        %308 = vmatpush1.bf16.msra.mxu0 0
        %309 = vmatprep.mubr.bf16.mxu0 0
        %310 = vmatmul.mubr.bf16.gmra.mrb[0].mxu0 %v234
        %v311 = vpop.f32.mrb[0].mxu0
        %v312 = vadd.f32 0.0, %v311
        %v313 = vpop.f32.mrb[0].mxu0
        %v314 = vadd.f32 0.0, %v313
        %v315 = vpop.f32.mrb[0].mxu0
        %v316 = vpop.f32.mrb[0].mxu0
        %317 = vdwg.mxu0
        %v322 = vcombine.low %v271, %v273
        %v323 = vcombine.low %v312, %v314
        %326 = vst [vmem:[%s212] sm:$0xff] %v322
        %327 = vst [vmem:[%s212 + $0x8] sm:$0xff] %v323
        %vm328 = vcmask 1043456
        %v329 = vsel %vm328, %v271, 0.0
        %v330 = vsel %vm328, %v273, 0.0
        %v331 = vadd.f32 %v329, %v330
        %v332 = vsel %vm328, %v312, 0.0
        %v333 = vadd.f32 %v331, %v332
        %v334 = vsel %vm328, %v314, 0.0
        %v335 = vadd.f32 %v333, %v334
        %336 = vadd.xlane.f32.xlu0 %v335
        %v337 = vpop.xlane.xlu0 %336
        %v338 = vmul.f32 %v271, %v271
        %v339 = vmul.f32 %v273, %v273
        %v340 = vmul.f32 %v312, %v312
        %v341 = vmul.f32 %v314, %v314
        %v342 = vsel %vm328, %v338, 0.0
        %v343 = vsel %vm328, %v339, 0.0
        %v344 = vadd.f32 %v342, %v343
        %v345 = vsel %vm328, %v340, 0.0
        %v346 = vadd.f32 %v344, %v345
        %v347 = vsel %vm328, %v341, 0.0
        %v348 = vadd.f32 %v346, %v347
        %349 = vadd.xlane.f32.xlu0 %v348
        %v350 = vpop.xlane.xlu0 %349
        %vm351 = vcmask 7168
        %v352 = vsel %vm351, %v337, %v350
        %vm353 = vcmask 11264
        %354 = vst.msk [vmem:[%s217] sm:$0xf] %vm353, %v352
        %s355 = smul.u32 4, %s15
        %p356 = scmp.lt.s32.totalorder %s355, 7
        %s357 = scalar_select %p356, %s355, 7
        %s358 = smul.addr %s357, 4
        %s359 = scalar_lea.vmem %s2, %s358
        %p360 = scmp.lt.s32.totalorder %s15, 1
        %s361 = scalar_select %p360, %s15, 1
        %s362 = smul.addr %s361, 4
        %s363 = scalar_lea.vmem %s3, %s362
        // Predicated region
        $region52: #{bottleneck_forward.4} parent=46 // pred_check
          %p364 = pneg %p80
        $region53: #{bottleneck_forward.4} parent=46 // pred_check_branch
          %366 = sbr.rel (%p364) target = $region55
        $region54: #{bottleneck_forward.4} parent=46 // pred_region
          %s367 = smul.u32 4, %s15
        $region55: #{bottleneck_forward.4} parent=46 // pred_fallthru
          _
        // Predicated region
        $region56: #{bottleneck_forward.4} parent=46 // pred_check
          %p368 = pneg %p106
        $region57: #{bottleneck_forward.4} parent=46 // pred_check_branch
          %370 = sbr.rel (%p368) target = $region59
        $region58: #{bottleneck_forward.4} parent=46 // pred_region
          _
        $region59: #{bottleneck_forward.4} parent=46 // pred_fallthru
          _
      $region47: #{bottleneck_forward.4} parent=5 // pred_fallthru
        _
      %p371 = scmp.le.s32.totalorder 2, %s10
      // Predicated region
      $region60: #{bottleneck_forward.4} parent=5 // pred_check
        %p372 = pneg %p371
      $region61: #{bottleneck_forward.4} parent=5 // pred_check_branch
        %374 = sbr.rel (%p372) target = $region63
      $region62: #{bottleneck_forward.4} parent=5 // pred_region
        %s375 = ssub.s32 %s10, 2
        // Predicated region
        $region64: #{bottleneck_forward.4} parent=62 // pred_check
          %p376 = pneg %p86
        $region65: #{bottleneck_forward.4} parent=62 // pred_check_branch
          %378 = sbr.rel (%p376) target = $region67
        $region66: #{bottleneck_forward.4} parent=62 // pred_region
          %s379 = smul.u32 4, %s16
          %p380 = scmp.lt.s32.totalorder %s379, 7
          %s381 = scalar_select %p380, %s379, 7
          %s382 = smul.addr %s381, 4
          %s383 = scalar_lea.vmem %s2, %s382
        $region67: #{bottleneck_forward.4} parent=62 // pred_fallthru
          _
        // Predicated region
        $region68: #{bottleneck_forward.4} parent=62 // pred_check
          %p384 = pneg %p112
        $region69: #{bottleneck_forward.4} parent=62 // pred_check_branch
          %386 = sbr.rel (%p384) target = $region71
        $region70: #{bottleneck_forward.4} parent=62 // pred_region
          %p387 = scmp.lt.s32.totalorder %s16, 1
          %s388 = scalar_select %p387, %s16, 1
          %s389 = smul.addr %s388, 4
          %s390 = scalar_lea.vmem %s3, %s389
        $region71: #{bottleneck_forward.4} parent=62 // pred_fallthru
          _
      $region63: #{bottleneck_forward.4} parent=5 // pred_fallthru
        _
    $region6: #{bottleneck_forward.4} parent=1 // loop_footer
      %s14 = sadd.s32 1, %s10
    $region7: #{bottleneck_forward.4} parent=1 // loop_footer_branch
      %9 = sbr.rel target = $region3
    $region8: #{bottleneck_forward.4} parent=1 // loop_exit
      _

// kernel: bottleneck_forward.6
$region0: #{bottleneck_forward.6}
  #allocation0 [shape = 'u32[]', space=smem, size = 0x4, offset = 0x4, fixed_abs, tag = 'smem constant byte address 0x4 - core index']
  #allocation1 [shape = 'u32[144,128]{1,0:T(1,128)}', space=vmem, size = 0x12000, scoped, tag = 'internal scratch']
  %s0 = inlined_call_operand.vmem [shape: f32[4,1024], index: 0, kind: input, shape index: {}]
  %s1 = inlined_call_operand.vmem [shape: bf16[16,4], index: 1, kind: input, shape index: {}]
  %s2 = inlined_call_operand.vmem [shape: f32[4,1], index: 2, kind: input, shape index: {}]
  %s3 = inlined_call_operand.vmem [shape: f32[4,1], index: 3, kind: input, shape index: {}]
  %s4 = inlined_call_operand.vmem [shape: f32[16,1024], index: 4, kind: output, shape index: {0}]
  %s5 = inlined_call_operand.vmem [shape: f32[2,16,2], index: 5, kind: output, shape index: {1}]
  %6 = xla_tuple %s4, %s5
  %s7 = sld [smem:[#allocation0]]
  $region76: #{bottleneck_forward.6} parent=0
    _
  %s9 = ssub.s32 1, %s7
  %s10 = scalar_select 0, %s9, %s7
  $region1: #{bottleneck_forward.6} parent=0
    #allocation2 [shape = 'u8[65536]{0}', space=vmem, size = 0x10000, scoped, tag = 'output window, operand 0']
    loop: start=0, step=1, limit=4
    $region2: #{bottleneck_forward.6} parent=1 // loop_pre_header
      _
    $region3: #{bottleneck_forward.6} parent=1 // loop_header
      %s12 = sphi 0, %s16
      %p13 = scmp.ge.s32.totalorder %s12, 4
      %s22 = sphi 0, %s24
      %s25 = sphi 0, %s22
      %s26 = sphi 0, %s25
      %s42 = sphi 0, %s26
      %s46 = sphi 0, %s46
      %s48 = sphi 0, %s46
      %s49 = sphi 0, %s48
      %s63 = sphi 0, %s49
      %s67 = sphi 0, %s67
      %s69 = sphi 0, %s67
      %s70 = sphi 0, %s69
      %s84 = sphi 0, %s70
      %s88 = sphi 0, %s88
      %s90 = sphi 0, %s88
      %s91 = sphi 0, %s90
      %s105 = sphi 0, %s91
      %s111 = sphi 0, %s113
      %s114 = sphi 0, %s111
      %s115 = sphi 0, %s114
      %s131 = sphi 0, %s115
      %s137 = sphi 0, %s139
      %s140 = sphi 0, %s137
      %s141 = sphi 0, %s140
      %s157 = sphi 0, %s141
    $region4: #{bottleneck_forward.6} parent=1 // loop_header_branch
      %15 = sbr.rel (%p13) target = $region8
    $region5: #{bottleneck_forward.6} parent=1 // loop_body
      %s17 = ssub.s32 %s12, 1
      %s18 = ssub.s32 %s12, 2
      %s19 = sadd.s32 %s12, 1
      %s20 = ssub.s32 %s12, %s19
      %p21 = scmp.eq.s32.totalorder %s20, 0
      %s23 = sadd.s32 %s22, 1
      %s24 = scalar_select %p21, %s22, %s23
      %p27 = pneg %p21
      %p28 = scmp.eq.s32.totalorder %s12, 1
      %p29 = por %p27, %p28
      %p30 = scmp.ne.s32.totalorder %s22, %s25
      %p31 = scmp.eq.s32.totalorder %s12, 0
      %p32 = por %p30, %p31
      %p33 = scmp.ne.s32.totalorder %s22, %s25
      %p34 = scmp.eq.s32.totalorder %s17, 1
      %p35 = por %p33, %p34
      %p36 = scmp.ne.s32.totalorder %s25, %s26
      %p37 = scmp.eq.s32.totalorder %s17, 0
      %p38 = por %p36, %p37
      %p39 = scmp.ne.s32.totalorder %s25, %s26
      %p40 = scmp.eq.s32.totalorder %s18, 1
      %p41 = por %p39, %p40
      %p43 = scmp.ne.s32.totalorder %s26, %s42
      %p44 = scmp.eq.s32.totalorder %s18, 0
      %p45 = por %p43, %p44
      %s47 = sadd.s32 %s46, 1
      %p50 = scmp.eq.s32.totalorder %s12, 1
      %p51 = scmp.ne.s32.totalorder %s46, %s48
      %p52 = scmp.eq.s32.totalorder %s12, 0
      %p53 = por %p51, %p52
      %p54 = scmp.ne.s32.totalorder %s46, %s48
      %p55 = scmp.eq.s32.totalorder %s17, 1
      %p56 = por %p54, %p55
      %p57 = scmp.ne.s32.totalorder %s48, %s49
      %p58 = scmp.eq.s32.totalorder %s17, 0
      %p59 = por %p57, %p58
      %p60 = scmp.ne.s32.totalorder %s48, %s49
      %p61 = scmp.eq.s32.totalorder %s18, 1
      %p62 = por %p60, %p61
      %p64 = scmp.ne.s32.totalorder %s49, %s63
      %p65 = scmp.eq.s32.totalorder %s18, 0
      %p66 = por %p64, %p65
      %s68 = sadd.s32 %s67, 1
      %p71 = scmp.eq.s32.totalorder %s12, 1
      %p72 = scmp.ne.s32.totalorder %s67, %s69
      %p73 = scmp.eq.s32.totalorder %s12, 0
      %p74 = por %p72, %p73
      %p75 = scmp.ne.s32.totalorder %s67, %s69
      %p76 = scmp.eq.s32.totalorder %s17, 1
      %p77 = por %p75, %p76
      %p78 = scmp.ne.s32.totalorder %s69, %s70
      %p79 = scmp.eq.s32.totalorder %s17, 0
      %p80 = por %p78, %p79
      %p81 = scmp.ne.s32.totalorder %s69, %s70
      %p82 = scmp.eq.s32.totalorder %s18, 1
      %p83 = por %p81, %p82
      %p85 = scmp.ne.s32.totalorder %s70, %s84
      %p86 = scmp.eq.s32.totalorder %s18, 0
      %p87 = por %p85, %p86
      %s89 = sadd.s32 %s88, 1
      %p92 = scmp.eq.s32.totalorder %s12, 1
      %p93 = scmp.ne.s32.totalorder %s88, %s90
      %p94 = scmp.eq.s32.totalorder %s12, 0
      %p95 = por %p93, %p94
      %p96 = scmp.ne.s32.totalorder %s88, %s90
      %p97 = scmp.eq.s32.totalorder %s17, 1
      %p98 = por %p96, %p97
      %p99 = scmp.ne.s32.totalorder %s90, %s91
      %p100 = scmp.eq.s32.totalorder %s17, 0
      %p101 = por %p99, %p100
      %p102 = scmp.ne.s32.totalorder %s90, %s91
      %p103 = scmp.eq.s32.totalorder %s18, 1
      %p104 = por %p102, %p103
      %p106 = scmp.ne.s32.totalorder %s91, %s105
      %p107 = scmp.eq.s32.totalorder %s18, 0
      %p108 = por %p106, %p107
      %s109 = ssub.s32 %s12, %s19
      %p110 = scmp.eq.s32.totalorder %s109, 0
      %s112 = sadd.s32 %s111, 1
      %s113 = scalar_select %p110, %s111, %s112
      %p116 = pneg %p110
      %p117 = scmp.eq.s32.totalorder %s12, 1
      %p118 = por %p116, %p117
      %p119 = scmp.ne.s32.totalorder %s111, %s114
      %p120 = scmp.eq.s32.totalorder %s12, 0
      %p121 = por %p119, %p120
      %p122 = scmp.ne.s32.totalorder %s111, %s114
      %p123 = scmp.eq.s32.totalorder %s17, 1
      %p124 = por %p122, %p123
      %p125 = scmp.ne.s32.totalorder %s114, %s115
      %p126 = scmp.eq.s32.totalorder %s17, 0
      %p127 = por %p125, %p126
      %p128 = scmp.ne.s32.totalorder %s114, %s115
      %p129 = scmp.eq.s32.totalorder %s18, 1
      %p130 = por %p128, %p129
      %p132 = scmp.ne.s32.totalorder %s115, %s131
      %p133 = scmp.eq.s32.totalorder %s18, 0
      %p134 = por %p132, %p133
      %s135 = ssub.s32 %s12, %s19
      %p136 = scmp.eq.s32.totalorder %s135, 0
      %s138 = sadd.s32 %s137, 1
      %s139 = scalar_select %p136, %s137, %s138
      %p142 = pneg %p136
      %p143 = scmp.eq.s32.totalorder %s12, 1
      %p144 = por %p142, %p143
      %p145 = scmp.ne.s32.totalorder %s137, %s140
      %p146 = scmp.eq.s32.totalorder %s12, 0
      %p147 = por %p145, %p146
      %p148 = scmp.ne.s32.totalorder %s137, %s140
      %p149 = scmp.eq.s32.totalorder %s17, 1
      %p150 = por %p148, %p149
      %p151 = scmp.ne.s32.totalorder %s140, %s141
      %p152 = scmp.eq.s32.totalorder %s17, 0
      %p153 = por %p151, %p152
      %p154 = scmp.ne.s32.totalorder %s140, %s141
      %p155 = scmp.eq.s32.totalorder %s18, 1
      %p156 = por %p154, %p155
      %p158 = scmp.ne.s32.totalorder %s141, %s157
      %p159 = scmp.eq.s32.totalorder %s18, 0
      %p160 = por %p158, %p159
      %p161 = scmp.le.s32.totalorder 1, %s12
      %p162 = scmp.lt.s32.totalorder %s12, 3
      %p163 = pnand %p161, %p162
      %p164 = pneg %p163
      // Predicated region
      $region9: #{bottleneck_forward.6} parent=5 // pred_check
        _
      $region10: #{bottleneck_forward.6} parent=5 // pred_check_branch
        %166 = sbr.rel (%p163) target = $region12
      $region11: #{bottleneck_forward.6} parent=5 // pred_region
        %s167 = ssub.s32 %s12, 1
        // Predicated region
        $region13: #{bottleneck_forward.6} parent=11 // pred_check
          %p168 = pneg %p59
        $region14: #{bottleneck_forward.6} parent=11 // pred_check_branch
          %170 = sbr.rel (%p168) target = $region16
        $region15: #{bottleneck_forward.6} parent=11 // pred_region
          _
        $region16: #{bottleneck_forward.6} parent=11 // pred_fallthru
          _
        // Predicated region
        $region17: #{bottleneck_forward.6} parent=11 // pred_check
          %p171 = pneg %p80
        $region18: #{bottleneck_forward.6} parent=11 // pred_check_branch
          %173 = sbr.rel (%p171) target = $region20
        $region19: #{bottleneck_forward.6} parent=11 // pred_region
          _
        $region20: #{bottleneck_forward.6} parent=11 // pred_fallthru
          _
        // Predicated region
        $region21: #{bottleneck_forward.6} parent=11 // pred_check
          %p174 = pneg %p101
        $region22: #{bottleneck_forward.6} parent=11 // pred_check_branch
          %176 = sbr.rel (%p174) target = $region24
        $region23: #{bottleneck_forward.6} parent=11 // pred_region
          _
        $region24: #{bottleneck_forward.6} parent=11 // pred_fallthru
          _
      $region12: #{bottleneck_forward.6} parent=5 // pred_fallthru
        _
      %p177 = scmp.lt.s32.totalorder %s12, 2
      // Predicated region
      $region25: #{bottleneck_forward.6} parent=5 // pred_check
        %p178 = pneg %p177
      $region26: #{bottleneck_forward.6} parent=5 // pred_check_branch
        %180 = sbr.rel (%p178) target = $region28
      $region27: #{bottleneck_forward.6} parent=5 // pred_region
        // Predicated region
        $region29: #{bottleneck_forward.6} parent=27 // pred_check
          %p181 = pneg %p32
        $region30: #{bottleneck_forward.6} parent=27 // pred_check_branch
          %183 = sbr.rel (%p181) target = $region32
        $region31: #{bottleneck_forward.6} parent=27 // pred_region
          %s184 = smul.u32 4, %s12
          %p185 = scmp.lt.s32.totalorder %s184, 7
          %s186 = scalar_select %p185, %s184, 7
          %s187 = smul.addr %s186, 4
          %s188 = scalar_lea.vmem %s0, %s187
          %s189 = smul.u32 4, %s12
        $region32: #{bottleneck_forward.6} parent=27 // pred_fallthru
          _
      $region28: #{bottleneck_forward.6} parent=5 // pred_fallthru
        _
      %p190 = scmp.le.s32.totalorder 1, %s12
      %p191 = scmp.lt.s32.totalorder %s12, 3
      %p192 = pnand %p190, %p191
      %p193 = pneg %p192
      // Predicated region
      $region33: #{bottleneck_forward.6} parent=5 // pred_check
        _
      $region34: #{bottleneck_forward.6} parent=5 // pred_check_branch
        %195 = sbr.rel (%p192) target = $region36
      $region35: #{bottleneck_forward.6} parent=5 // pred_region
        %s196 = ssub.s32 %s12, 1
        %s197 = smul.u32 4, %s17
        %p198 = scmp.lt.s32.totalorder %s197, 7
        %s199 = scalar_select %p198, %s197, 7
        %s200 = smul.addr %s199, 4
        %s201 = scalar_lea.vmem %s0, %s200
        %p202 = pneg %p38
        %p203 = pneg %p35
        %p204 = pneg %p59
        %p205 = pneg %p56
        %p206 = pneg %p80
        %p207 = pneg %p77
        %p208 = pneg %p101
        %p209 = pneg %p98
        %p210 = pneg %p127
        %p211 = pneg %p124
        %s212 = sand.u32 %s114, 1
        %s213 = sand.u32 %s114, 1
        %s214 = smul.addr %s213, 64
        %s215 = scalar_lea.vmem [#allocation2], %s214
        %p216 = pneg %p153
        %p217 = pneg %p150
        %p218 = scmp.lt.s32.totalorder %s17, 1
        %s219 = scalar_select %p218, %s17, 1
        %s220 = smul.addr %s219, 2
        %s221 = smul.addr %s220, 8
        %s222 = scalar_lea.vmem %s5, %s221
        %s223 = smul.u32 4, %s17
        %p224 = scmp.lt.s32.totalorder %s223, 7
        %s225 = scalar_select %p224, %s223, 7
        %s226 = smul.addr %s225, 4
        %s227 = scalar_lea.vmem %s0, %s226
        %s228 = smul.u32 4, %s17
        %s229 = smul.u32 4, %s17
        %p230 = scmp.lt.s32.totalorder %s17, 1
        %s231 = scalar_select %p230, %s17, 1
        %s232 = smul.addr %s231, 2
        %s233 = smul.addr %s232, 8
        %s234 = scalar_lea.vmem %s5, %s233
        %v236 = vld [vmem:[%s227] sm:$0xff]
        %v237 = vld [vmem:[%s227 + $0x8] sm:$0xff]
        %v238 = vld [vmem:[%s2] sm:$0xf]
        %240 = vset.pattern.permute.xlu0 0
        %241 = vperm.xlu0 %240, %v238
        %v242 = vpop.permute.xlu0 %241
        %v244 = vunpack.c.l.s4 839922192
        %v245 = vunpack.c.0.s8 %v244
        %v246 = vlaneseq
        %v247 = vshrl.u32 %v246, 7
        %v248 = vsub.s32 %v245, %v247
        %v249 = vrot.slane %v242, %v248
        %v251 = vmul.f32 %v236, %v249
        %v252 = vmul.f32 %v237, %v249
        %v253 = vld [vmem:[%s3] sm:$0xf]
        %255 = vset.pattern.permute.xlu0 0
        %256 = vperm.xlu0 %255, %v253
        %v257 = vpop.permute.xlu0 %256
        %v259 = vunpack.c.l.s4 839922192
        %v260 = vunpack.c.0.s8 %v259
        %v261 = vlaneseq
        %v262 = vshrl.u32 %v261, 7
        %v263 = vsub.s32 %v260, %v262
        %v264 = vrot.slane %v257, %v263
        %v266 = vadd.f32 %v251, %v264
        %v267 = vadd.f32 %v252, %v264
        %v268 = vmax.f32 %v266, 0.0
        %v269 = vmax.f32 %v267, 0.0
        %v270 = vld [vmem:[%s1] sm:$0xf]
        %v271 = vld [vmem:[%s1 + $0x4] sm:$0xf]
        %v274 = vcombine.high %v268, %v268
        %v275 = vcombine.high %v269, %v269
        %v278 = vpack.c.bf16 %v268, %v268
        %v279 = vpack.c.bf16 %v274, %v274
        %v280 = vpack.c.bf16 %v269, %v269
        %v281 = vpack.c.bf16 %v275, %v275
        %v284 = vunpack.c.l.b16 %v270
        %v285 = vunpack.c.l.b16 %v271
        %v286 = vpack.c.b16 %v285, %v284
        %vm287 = vcmask 31744
        %v289 = vsel %vm287, %v286, 0
        %vm291 = vcmask 1041408
        %v293 = vsel %vm291, %v278, 0
        %v296 = vsel %vm291, %v279, 0
        %v299 = vsel %vm291, %v280, 0
        %v302 = vsel %vm291, %v281, 0
        %304 = vmatprep.subr.bf16.mxu0 %v296
        %305 = vmatpush1.bf16.msra.mxu0 %v293
        %306 = vmatprep.subr.bf16.mxu0 0
        %307 = vmatpush1.bf16.msra.mxu0 0
        %308 = vmatprep.subr.bf16.mxu0 0
        %309 = vmatpush1.bf16.msra.mxu0 0
        %310 = vmatprep.subr.bf16.mxu0 0
        %311 = vmatpush1.bf16.msra.mxu0 0
        %312 = vmatprep.subr.bf16.mxu0 0
        %313 = vmatpush1.bf16.msra.mxu0 0
        %314 = vmatprep.subr.bf16.mxu0 0
        %315 = vmatpush1.bf16.msra.mxu0 0
        %316 = vmatprep.subr.bf16.mxu0 0
        %317 = vmatpush1.bf16.msra.mxu0 0
        %318 = vmatprep.subr.bf16.mxu0 0
        %319 = vmatpush1.bf16.msra.mxu0 0
        %320 = vmatprep.subr.bf16.mxu0 0
        %321 = vmatpush1.bf16.msra.mxu0 0
        %322 = vmatprep.subr.bf16.mxu0 0
        %323 = vmatpush1.bf16.msra.mxu0 0
        %324 = vmatprep.subr.bf16.mxu0 0
        %325 = vmatpush1.bf16.msra.mxu0 0
        %326 = vmatprep.subr.bf16.mxu0 0
        %327 = vmatpush1.bf16.msra.mxu0 0
        %328 = vmatprep.subr.bf16.mxu0 0
        %329 = vmatpush1.bf16.msra.mxu0 0
        %330 = vmatprep.subr.bf16.mxu0 0
        %331 = vmatpush1.bf16.msra.mxu0 0
        %332 = vmatprep.subr.bf16.mxu0 0
        %333 = vmatpush1.bf16.msra.mxu0 0
        %334 = vmatprep.subr.bf16.mxu0 0
        %335 = vmatpush1.bf16.msra.mxu0 0
        %336 = vmatprep.mubr.bf16.mxu0 0
        %337 = vmatmul.mubr.bf16.gmra.mrb[0].mxu0 %v289
        %v338 = vpop.f32.mrb[0].mxu0
        %v339 = vadd.f32 0.0, %v338
        %v340 = vpop.f32.mrb[0].mxu0
        %v341 = vadd.f32 0.0, %v340
        %v342 = vpop.f32.mrb[0].mxu0
        %v343 = vadd.f32 0.0, %v342
        %v344 = vpop.f32.mrb[0].mxu0
        %v345 = vadd.f32 0.0, %v344
        %346 = vdwg.mxu0
        %347 = vmatprep.subr.bf16.mxu0 %v302
        %348 = vmatpush1.bf16.msra.mxu0 %v299
        %349 = vmatprep.subr.bf16.mxu0 0
        %350 = vmatpush1.bf16.msra.mxu0 0
        %351 = vmatprep.subr.bf16.mxu0 0
        %352 = vmatpush1.bf16.msra.mxu0 0
        %353 = vmatprep.subr.bf16.mxu0 0
        %354 = vmatpush1.bf16.msra.mxu0 0
        %355 = vmatprep.subr.bf16.mxu0 0
        %356 = vmatpush1.bf16.msra.mxu0 0
        %357 = vmatprep.subr.bf16.mxu0 0
        %358 = vmatpush1.bf16.msra.mxu0 0
        %359 = vmatprep.subr.bf16.mxu0 0
        %360 = vmatpush1.bf16.msra.mxu0 0
        %361 = vmatprep.subr.bf16.mxu0 0
        %362 = vmatpush1.bf16.msra.mxu0 0
        %363 = vmatprep.subr.bf16.mxu0 0
        %364 = vmatpush1.bf16.msra.mxu0 0
        %365 = vmatprep.subr.bf16.mxu0 0
        %366 = vmatpush1.bf16.msra.mxu0 0
        %367 = vmatprep.subr.bf16.mxu0 0
        %368 = vmatpush1.bf16.msra.mxu0 0
        %369 = vmatprep.subr.bf16.mxu0 0
        %370 = vmatpush1.bf16.msra.mxu0 0
        %371 = vmatprep.subr.bf16.mxu0 0
        %372 = vmatpush1.bf16.msra.mxu0 0
        %373 = vmatprep.subr.bf16.mxu0 0
        %374 = vmatpush1.bf16.msra.mxu0 0
        %375 = vmatprep.subr.bf16.mxu0 0
        %376 = vmatpush1.bf16.msra.mxu0 0
        %377 = vmatprep.subr.bf16.mxu0 0
        %378 = vmatpush1.bf16.msra.mxu0 0
        %379 = vmatprep.mubr.bf16.mxu0 0
        %380 = vmatmul.mubr.bf16.gmra.mrb[0].mxu0 %v289
        %v381 = vpop.f32.mrb[0].mxu0
        %v382 = vadd.f32 0.0, %v381
        %v383 = vpop.f32.mrb[0].mxu0
        %v384 = vadd.f32 0.0, %v383
        %v385 = vpop.f32.mrb[0].mxu0
        %v386 = vadd.f32 0.0, %v385
        %v387 = vpop.f32.mrb[0].mxu0
        %v388 = vadd.f32 0.0, %v387
        %389 = vdwg.mxu0
        %390 = vst [vmem:[%s215] sm:$0xff] %v339
        %391 = vst [vmem:[%s215 + $0x8] sm:$0xff] %v341
        %392 = vst [vmem:[%s215 + $0x10] sm:$0xff] %v382
        %393 = vst [vmem:[%s215 + $0x18] sm:$0xff] %v384
        %394 = vst [vmem:[%s215 + $0x20] sm:$0xff] %v343
        %395 = vst [vmem:[%s215 + $0x28] sm:$0xff] %v345
        %396 = vst [vmem:[%s215 + $0x30] sm:$0xff] %v386
        %397 = vst [vmem:[%s215 + $0x38] sm:$0xff] %v388
        %v398 = vadd.f32 %v339, %v341
        %v399 = vadd.f32 %v398, %v382
        %v400 = vadd.f32 %v399, %v384
        %401 = vadd.xlane.f32.xlu0 %v400
        %v402 = vpop.xlane.xlu0 %401
        %v403 = vadd.f32 %v343, %v345
        %v404 = vadd.f32 %v403, %v386
        %v405 = vadd.f32 %v404, %v388
        %406 = vadd.xlane.f32.xlu0 %v405
        %v407 = vpop.xlane.xlu0 %406
        %v408 = vmul.f32 %v339, %v339
        %v409 = vmul.f32 %v341, %v341
        %v410 = vmul.f32 %v382, %v382
        %v411 = vmul.f32 %v384, %v384
        %v412 = vmul.f32 %v343, %v343
        %v413 = vmul.f32 %v345, %v345
        %v414 = vmul.f32 %v386, %v386
        %v415 = vmul.f32 %v388, %v388
        %v416 = vadd.f32 %v408, %v409
        %v417 = vadd.f32 %v416, %v410
        %v418 = vadd.f32 %v417, %v411
        %419 = vadd.xlane.f32.xlu0 %v418
        %v420 = vpop.xlane.xlu0 %419
        %v421 = vadd.f32 %v412, %v413
        %v422 = vadd.f32 %v421, %v414
        %v423 = vadd.f32 %v422, %v415
        %424 = vadd.xlane.f32.xlu0 %v423
        %v425 = vpop.xlane.xlu0 %424
        %vm426 = vcmask 7168
        %v427 = vsel %vm426, %v402, %v420
        %v428 = vsel %vm426, %v407, %v425
        %vm429 = vcmask 15360
        %430 = vst.msk [vmem:[%s234] sm:$0xff] %vm429, %v427
        %431 = vst.msk [vmem:[%s234 + $0x8] sm:$0xff] %vm429, %v428
        %s432 = sand.u32 %s114, 1
        %s433 = sand.u32 %s114, 1
        %s434 = smul.addr %s433, 64
        %s435 = scalar_lea.vmem [#allocation2], %s434
        %p436 = scmp.lt.s32.totalorder %s17, 1
        %s437 = scalar_select %p436, %s17, 1
        %s438 = smul.addr %s437, 2
        %s439 = smul.addr %s438, 8
        %s440 = scalar_lea.vmem %s5, %s439
        // Predicated region
        $region37: #{bottleneck_forward.6} parent=35 // pred_check
          %p441 = pneg %p124
        $region38: #{bottleneck_forward.6} parent=35 // pred_check_branch
          %443 = sbr.rel (%p441) target = $region40
        $region39: #{bottleneck_forward.6} parent=35 // pred_region
          %s444 = smul.u32 4, %s17
          %s445 = smul.addr %s444, 8
          %s446 = scalar_lea.vmem %s4, %s445
          // Predicated region
          $region41: #{bottleneck_forward.6} parent=39 // pred_check
            _
          $region42: #{bottleneck_forward.6} parent=39 // pred_check_branch
            %448 = sbr.rel (0) target = $region44
          $region43: #{bottleneck_forward.6} parent=39 // pred_region
            // Predicated region
            $region45: #{bottleneck_forward.6} parent=43 // pred_check
              _
            $region46: #{bottleneck_forward.6} parent=43 // pred_check_branch
              %450 = sbr.rel (0) target = $region48
            $region47: #{bottleneck_forward.6} parent=43 // pred_region
              loop: start=0, step=1, limit=1
              $region49: #{bottleneck_forward.6} parent=47 // loop_pre_header
                _
              $region50: #{bottleneck_forward.6} parent=47 // loop_header
                %s452 = sphi 0, %s456
                %p453 = scmp.ge.s32.totalorder %s452, 1
                %s457 = sphi %s435, %s435
                %s458 = sphi %s446, %s446
              $region51: #{bottleneck_forward.6} parent=47 // loop_header_branch
                %455 = sbr.rel (%p453) target = $region55
              $region52: #{bottleneck_forward.6} parent=47 // loop_body
                %v459 = vld [vmem:[%s457] sm:$0xff]
                %460 = vst [vmem:[%s458] sm:$0xff] %v459
                %v461 = vld [vmem:[%s457 + $0x8] sm:$0xff]
                %462 = vst [vmem:[%s458 + $0x8] sm:$0xff] %v461
                %v463 = vld [vmem:[%s457 + $0x10] sm:$0xff]
                %464 = vst [vmem:[%s458 + $0x10] sm:$0xff] %v463
                %v465 = vld [vmem:[%s457 + $0x18] sm:$0xff]
                %466 = vst [vmem:[%s458 + $0x18] sm:$0xff] %v465
                %v467 = vld [vmem:[%s457 + $0x20] sm:$0xff]
                %468 = vst [vmem:[%s458 + $0x40] sm:$0xff] %v467
                %v469 = vld [vmem:[%s457 + $0x28] sm:$0xff]
                %470 = vst [vmem:[%s458 + $0x48] sm:$0xff] %v469
                %v471 = vld [vmem:[%s457 + $0x30] sm:$0xff]
                %472 = vst [vmem:[%s458 + $0x50] sm:$0xff] %v471
                %v473 = vld [vmem:[%s457 + $0x38] sm:$0xff]
                %474 = vst [vmem:[%s458 + $0x58] sm:$0xff] %v473
              $region53: #{bottleneck_forward.6} parent=47 // loop_footer
                %s456 = sadd.s32 1, %s452
              $region54: #{bottleneck_forward.6} parent=47 // loop_footer_branch
                %451 = sbr.rel target = $region50
              $region55: #{bottleneck_forward.6} parent=47 // loop_exit
                _
            $region48: #{bottleneck_forward.6} parent=43 // pred_fallthru
              _
            // Predicated region
            $region56: #{bottleneck_forward.6} parent=43 // pred_check
              _
            $region57: #{bottleneck_forward.6} parent=43 // pred_check_branch
              %476 = sbr.rel target = $region59
            $region58: #{bottleneck_forward.6} parent=43 // pred_region
              _
            $region59: #{bottleneck_forward.6} parent=43 // pred_fallthru
              _
          $region44: #{bottleneck_forward.6} parent=39 // pred_fallthru
            _
          %477 = vnop
        $region40: #{bottleneck_forward.6} parent=35 // pred_fallthru
          _
        // Predicated region
        $region60: #{bottleneck_forward.6} parent=35 // pred_check
          %p478 = pneg %p150
        $region61: #{bottleneck_forward.6} parent=35 // pred_check_branch
          %480 = sbr.rel (%p478) target = $region63
        $region62: #{bottleneck_forward.6} parent=35 // pred_region
          _
        $region63: #{bottleneck_forward.6} parent=35 // pred_fallthru
          _
      $region36: #{bottleneck_forward.6} parent=5 // pred_fallthru
        _
      %p481 = scmp.le.s32.totalorder 2, %s12
      // Predicated region
      $region64: #{bottleneck_forward.6} parent=5 // pred_check
        %p482 = pneg %p481
      $region65: #{bottleneck_forward.6} parent=5 // pred_check_branch
        %484 = sbr.rel (%p482) target = $region67
      $region66: #{bottleneck_forward.6} parent=5 // pred_region
        %s485 = ssub.s32 %s12, 2
        // Predicated region
        $region68: #{bottleneck_forward.6} parent=66 // pred_check
          %p486 = pneg %p130
        $region69: #{bottleneck_forward.6} parent=66 // pred_check_branch
          %488 = sbr.rel (%p486) target = $region71
        $region70: #{bottleneck_forward.6} parent=66 // pred_region
          %s489 = sand.u32 %s115, 1
          %s490 = sand.u32 %s115, 1
          %s491 = smul.addr %s490, 64
          %s492 = scalar_lea.vmem [#allocation2], %s491
        $region71: #{bottleneck_forward.6} parent=66 // pred_fallthru
          _
        // Predicated region
        $region72: #{bottleneck_forward.6} parent=66 // pred_check
          %p493 = pneg %p156
        $region73: #{bottleneck_forward.6} parent=66 // pred_check_branch
          %495 = sbr.rel (%p493) target = $region75
        $region74: #{bottleneck_forward.6} parent=66 // pred_region
          %p496 = scmp.lt.s32.totalorder %s18, 1
          %s497 = scalar_select %p496, %s18, 1
          %s498 = smul.addr %s497, 2
          %s499 = smul.addr %s498, 8
          %s500 = scalar_lea.vmem %s5, %s499
        $region75: #{bottleneck_forward.6} parent=66 // pred_fallthru
          _
      $region67: #{bottleneck_forward.6} parent=5 // pred_fallthru
        _
    $region6: #{bottleneck_forward.6} parent=1 // loop_footer
      %s16 = sadd.s32 1, %s12
    $region7: #{bottleneck_forward.6} parent=1 // loop_footer_branch
      %11 = sbr.rel target = $region3
    $region8: #{bottleneck_forward.6} parent=1 // loop_exit
      _

// kernel: bottleneck_forward.7
$region0: #{bottleneck_forward.7}
  #allocation0 [shape = 'u32[]', space=smem, size = 0x4, offset = 0x4, fixed_abs, tag = 'smem constant byte address 0x4 - core index']
  #allocation1 [shape = 'u32[144,128]{1,0:T(1,128)}', space=vmem, size = 0x12000, scoped, tag = 'internal scratch']
  %s0 = inlined_call_operand.vmem [shape: f32[16,1024], index: 0, kind: input, shape index: {}]
  %s1 = inlined_call_operand.vmem [shape: f32[16,1024], index: 1, kind: input, shape index: {}]
  %s2 = inlined_call_operand.vmem [shape: f32[16,1], index: 2, kind: input, shape index: {}]
  %s3 = inlined_call_operand.vmem [shape: f32[16,1], index: 3, kind: input, shape index: {}]
  %s4 = inlined_call_operand.vmem [shape: f32[16,1024], index: 4, kind: output, shape index: {}]
  %s5 = sld [smem:[#allocation0]]
  $region114: #{bottleneck_forward.7} parent=0
    _
  %s7 = ssub.s32 1, %s5
  %s8 = scalar_select 0, %s7, %s5
  $region1: #{bottleneck_forward.7} parent=0
    #allocation2 [shape = 'u8[65536]{0}', space=vmem, size = 0x10000, scoped, tag = 'input window, operand 0']
    #allocation3 [shape = 'u8[65536]{0}', space=vmem, size = 0x10000, scoped, tag = 'input window, operand 1']
    #allocation4 [shape = 'u8[65536]{0}', space=vmem, size = 0x10000, scoped, tag = 'output window, operand 0']
    loop: start=0, step=1, limit=4
    $region2: #{bottleneck_forward.7} parent=1 // loop_pre_header
      _
    $region3: #{bottleneck_forward.7} parent=1 // loop_header
      %s10 = sphi 0, %s14
      %p11 = scmp.ge.s32.totalorder %s10, 4
      %s20 = sphi 0, %s22
      %s23 = sphi 0, %s20
      %s24 = sphi 0, %s23
      %s40 = sphi 0, %s24
      %s46 = sphi 0, %s48
      %s49 = sphi 0, %s46
      %s50 = sphi 0, %s49
      %s66 = sphi 0, %s50
      %s70 = sphi 0, %s70
      %s72 = sphi 0, %s70
      %s73 = sphi 0, %s72
      %s87 = sphi 0, %s73
      %s91 = sphi 0, %s91
      %s93 = sphi 0, %s91
      %s94 = sphi 0, %s93
      %s108 = sphi 0, %s94
      %s114 = sphi 0, %s116
      %s117 = sphi 0, %s114
      %s118 = sphi 0, %s117
      %s134 = sphi 0, %s118
    $region4: #{bottleneck_forward.7} parent=1 // loop_header_branch
      %13 = sbr.rel (%p11) target = $region8
    $region5: #{bottleneck_forward.7} parent=1 // loop_body
      %s15 = ssub.s32 %s10, 1
      %s16 = ssub.s32 %s10, 2
      %s17 = sadd.s32 %s10, 1
      %s18 = ssub.s32 %s10, %s17
      %p19 = scmp.eq.s32.totalorder %s18, 0
      %s21 = sadd.s32 %s20, 1
      %s22 = scalar_select %p19, %s20, %s21
      %p25 = pneg %p19
      %p26 = scmp.eq.s32.totalorder %s10, 1
      %p27 = por %p25, %p26
      %p28 = scmp.ne.s32.totalorder %s20, %s23
      %p29 = scmp.eq.s32.totalorder %s10, 0
      %p30 = por %p28, %p29
      %p31 = scmp.ne.s32.totalorder %s20, %s23
      %p32 = scmp.eq.s32.totalorder %s15, 1
      %p33 = por %p31, %p32
      %p34 = scmp.ne.s32.totalorder %s23, %s24
      %p35 = scmp.eq.s32.totalorder %s15, 0
      %p36 = por %p34, %p35
      %p37 = scmp.ne.s32.totalorder %s23, %s24
      %p38 = scmp.eq.s32.totalorder %s16, 1
      %p39 = por %p37, %p38
      %p41 = scmp.ne.s32.totalorder %s24, %s40
      %p42 = scmp.eq.s32.totalorder %s16, 0
      %p43 = por %p41, %p42
      %s44 = ssub.s32 %s10, %s17
      %p45 = scmp.eq.s32.totalorder %s44, 0
      %s47 = sadd.s32 %s46, 1
      %s48 = scalar_select %p45, %s46, %s47
      %p51 = pneg %p45
      %p52 = scmp.eq.s32.totalorder %s10, 1
      %p53 = por %p51, %p52
      %p54 = scmp.ne.s32.totalorder %s46, %s49
      %p55 = scmp.eq.s32.totalorder %s10, 0
      %p56 = por %p54, %p55
      %p57 = scmp.ne.s32.totalorder %s46, %s49
      %p58 = scmp.eq.s32.totalorder %s15, 1
      %p59 = por %p57, %p58
      %p60 = scmp.ne.s32.totalorder %s49, %s50
      %p61 = scmp.eq.s32.totalorder %s15, 0
      %p62 = por %p60, %p61
      %p63 = scmp.ne.s32.totalorder %s49, %s50
      %p64 = scmp.eq.s32.totalorder %s16, 1
      %p65 = por %p63, %p64
      %p67 = scmp.ne.s32.totalorder %s50, %s66
      %p68 = scmp.eq.s32.totalorder %s16, 0
      %p69 = por %p67, %p68
      %s71 = sadd.s32 %s70, 1
      %p74 = scmp.eq.s32.totalorder %s10, 1
      %p75 = scmp.ne.s32.totalorder %s70, %s72
      %p76 = scmp.eq.s32.totalorder %s10, 0
      %p77 = por %p75, %p76
      %p78 = scmp.ne.s32.totalorder %s70, %s72
      %p79 = scmp.eq.s32.totalorder %s15, 1
      %p80 = por %p78, %p79
      %p81 = scmp.ne.s32.totalorder %s72, %s73
      %p82 = scmp.eq.s32.totalorder %s15, 0
      %p83 = por %p81, %p82
      %p84 = scmp.ne.s32.totalorder %s72, %s73
      %p85 = scmp.eq.s32.totalorder %s16, 1
      %p86 = por %p84, %p85
      %p88 = scmp.ne.s32.totalorder %s73, %s87
      %p89 = scmp.eq.s32.totalorder %s16, 0
      %p90 = por %p88, %p89
      %s92 = sadd.s32 %s91, 1
      %p95 = scmp.eq.s32.totalorder %s10, 1
      %p96 = scmp.ne.s32.totalorder %s91, %s93
      %p97 = scmp.eq.s32.totalorder %s10, 0
      %p98 = por %p96, %p97
      %p99 = scmp.ne.s32.totalorder %s91, %s93
      %p100 = scmp.eq.s32.totalorder %s15, 1
      %p101 = por %p99, %p100
      %p102 = scmp.ne.s32.totalorder %s93, %s94
      %p103 = scmp.eq.s32.totalorder %s15, 0
      %p104 = por %p102, %p103
      %p105 = scmp.ne.s32.totalorder %s93, %s94
      %p106 = scmp.eq.s32.totalorder %s16, 1
      %p107 = por %p105, %p106
      %p109 = scmp.ne.s32.totalorder %s94, %s108
      %p110 = scmp.eq.s32.totalorder %s16, 0
      %p111 = por %p109, %p110
      %s112 = ssub.s32 %s10, %s17
      %p113 = scmp.eq.s32.totalorder %s112, 0
      %s115 = sadd.s32 %s114, 1
      %s116 = scalar_select %p113, %s114, %s115
      %p119 = pneg %p113
      %p120 = scmp.eq.s32.totalorder %s10, 1
      %p121 = por %p119, %p120
      %p122 = scmp.ne.s32.totalorder %s114, %s117
      %p123 = scmp.eq.s32.totalorder %s10, 0
      %p124 = por %p122, %p123
      %p125 = scmp.ne.s32.totalorder %s114, %s117
      %p126 = scmp.eq.s32.totalorder %s15, 1
      %p127 = por %p125, %p126
      %p128 = scmp.ne.s32.totalorder %s117, %s118
      %p129 = scmp.eq.s32.totalorder %s15, 0
      %p130 = por %p128, %p129
      %p131 = scmp.ne.s32.totalorder %s117, %s118
      %p132 = scmp.eq.s32.totalorder %s16, 1
      %p133 = por %p131, %p132
      %p135 = scmp.ne.s32.totalorder %s118, %s134
      %p136 = scmp.eq.s32.totalorder %s16, 0
      %p137 = por %p135, %p136
      %p138 = scmp.le.s32.totalorder 1, %s10
      %p139 = scmp.lt.s32.totalorder %s10, 3
      %p140 = pnand %p138, %p139
      %p141 = pneg %p140
      // Predicated region
      $region9: #{bottleneck_forward.7} parent=5 // pred_check
        _
      $region10: #{bottleneck_forward.7} parent=5 // pred_check_branch
        %143 = sbr.rel (%p140) target = $region12
      $region11: #{bottleneck_forward.7} parent=5 // pred_region
        %s144 = ssub.s32 %s10, 1
        // Predicated region
        $region13: #{bottleneck_forward.7} parent=11 // pred_check
          %p145 = pneg %p83
        $region14: #{bottleneck_forward.7} parent=11 // pred_check_branch
          %147 = sbr.rel (%p145) target = $region16
        $region15: #{bottleneck_forward.7} parent=11 // pred_region
          _
        $region16: #{bottleneck_forward.7} parent=11 // pred_fallthru
          _
        // Predicated region
        $region17: #{bottleneck_forward.7} parent=11 // pred_check
          %p148 = pneg %p104
        $region18: #{bottleneck_forward.7} parent=11 // pred_check_branch
          %150 = sbr.rel (%p148) target = $region20
        $region19: #{bottleneck_forward.7} parent=11 // pred_region
          _
        $region20: #{bottleneck_forward.7} parent=11 // pred_fallthru
          _
      $region12: #{bottleneck_forward.7} parent=5 // pred_fallthru
        _
      %p151 = scmp.lt.s32.totalorder %s10, 2
      // Predicated region
      $region21: #{bottleneck_forward.7} parent=5 // pred_check
        %p152 = pneg %p151
      $region22: #{bottleneck_forward.7} parent=5 // pred_check_branch
        %154 = sbr.rel (%p152) target = $region24
      $region23: #{bottleneck_forward.7} parent=5 // pred_region
        // Predicated region
        $region25: #{bottleneck_forward.7} parent=23 // pred_check
          %p155 = pneg %p30
        $region26: #{bottleneck_forward.7} parent=23 // pred_check_branch
          %157 = sbr.rel (%p155) target = $region28
        $region27: #{bottleneck_forward.7} parent=23 // pred_region
          %s158 = sand.u32 %s20, 1
          %s159 = sand.u32 %s20, 1
          %s160 = smul.addr %s159, 64
          %s161 = scalar_lea.vmem [#allocation2], %s160
          %s162 = smul.u32 4, %s10
          %s163 = smul.addr %s162, 8
          %s164 = scalar_lea.vmem %s0, %s163
          // Predicated region
          $region29: #{bottleneck_forward.7} parent=27 // pred_check
            _
          $region30: #{bottleneck_forward.7} parent=27 // pred_check_branch
            %166 = sbr.rel (0) target = $region32
          $region31: #{bottleneck_forward.7} parent=27 // pred_region
            // Predicated region
            $region33: #{bottleneck_forward.7} parent=31 // pred_check
              _
            $region34: #{bottleneck_forward.7} parent=31 // pred_check_branch
              %168 = sbr.rel (0) target = $region36
            $region35: #{bottleneck_forward.7} parent=31 // pred_region
              loop: start=0, step=1, limit=1
              $region37: #{bottleneck_forward.7} parent=35 // loop_pre_header
                _
              $region38: #{bottleneck_forward.7} parent=35 // loop_header
                %s170 = sphi 0, %s174
                %p171 = scmp.ge.s32.totalorder %s170, 1
                %s175 = sphi %s164, %s164
                %s176 = sphi %s161, %s161
              $region39: #{bottleneck_forward.7} parent=35 // loop_header_branch
                %173 = sbr.rel (%p171) target = $region43
              $region40: #{bottleneck_forward.7} parent=35 // loop_body
                %v177 = vld [vmem:[%s175] sm:$0xff]
                %178 = vst [vmem:[%s176] sm:$0xff] %v177
                %v179 = vld [vmem:[%s175 + $0x8] sm:$0xff]
                %180 = vst [vmem:[%s176 + $0x8] sm:$0xff] %v179
                %v181 = vld [vmem:[%s175 + $0x10] sm:$0xff]
                %182 = vst [vmem:[%s176 + $0x10] sm:$0xff] %v181
                %v183 = vld [vmem:[%s175 + $0x18] sm:$0xff]
                %184 = vst [vmem:[%s176 + $0x18] sm:$0xff] %v183
                %v185 = vld [vmem:[%s175 + $0x40] sm:$0xff]
                %186 = vst [vmem:[%s176 + $0x20] sm:$0xff] %v185
                %v187 = vld [vmem:[%s175 + $0x48] sm:$0xff]
                %188 = vst [vmem:[%s176 + $0x28] sm:$0xff] %v187
                %v189 = vld [vmem:[%s175 + $0x50] sm:$0xff]
                %190 = vst [vmem:[%s176 + $0x30] sm:$0xff] %v189
                %v191 = vld [vmem:[%s175 + $0x58] sm:$0xff]
                %192 = vst [vmem:[%s176 + $0x38] sm:$0xff] %v191
              $region41: #{bottleneck_forward.7} parent=35 // loop_footer
                %s174 = sadd.s32 1, %s170
              $region42: #{bottleneck_forward.7} parent=35 // loop_footer_branch
                %169 = sbr.rel target = $region38
              $region43: #{bottleneck_forward.7} parent=35 // loop_exit
                _
            $region36: #{bottleneck_forward.7} parent=31 // pred_fallthru
              _
            // Predicated region
            $region44: #{bottleneck_forward.7} parent=31 // pred_check
              _
            $region45: #{bottleneck_forward.7} parent=31 // pred_check_branch
              %194 = sbr.rel target = $region47
            $region46: #{bottleneck_forward.7} parent=31 // pred_region
              _
            $region47: #{bottleneck_forward.7} parent=31 // pred_fallthru
              _
          $region32: #{bottleneck_forward.7} parent=27 // pred_fallthru
            _
          %195 = vnop
        $region28: #{bottleneck_forward.7} parent=23 // pred_fallthru
          _
        // Predicated region
        $region48: #{bottleneck_forward.7} parent=23 // pred_check
          %p196 = pneg %p56
        $region49: #{bottleneck_forward.7} parent=23 // pred_check_branch
          %198 = sbr.rel (%p196) target = $region51
        $region50: #{bottleneck_forward.7} parent=23 // pred_region
          %s199 = sand.u32 %s46, 1
          %s200 = sand.u32 %s46, 1
          %s201 = smul.addr %s200, 64
          %s202 = scalar_lea.vmem [#allocation3], %s201
          %s203 = smul.u32 4, %s10
          %s204 = smul.addr %s203, 8
          %s205 = scalar_lea.vmem %s1, %s204
          // Predicated region
          $region52: #{bottleneck_forward.7} parent=50 // pred_check
            _
          $region53: #{bottleneck_forward.7} parent=50 // pred_check_branch
            %207 = sbr.rel (0) target = $region55
          $region54: #{bottleneck_forward.7} parent=50 // pred_region
            // Predicated region
            $region56: #{bottleneck_forward.7} parent=54 // pred_check
              _
            $region57: #{bottleneck_forward.7} parent=54 // pred_check_branch
              %209 = sbr.rel (0) target = $region59
            $region58: #{bottleneck_forward.7} parent=54 // pred_region
              loop: start=0, step=1, limit=1
              $region60: #{bottleneck_forward.7} parent=58 // loop_pre_header
                _
              $region61: #{bottleneck_forward.7} parent=58 // loop_header
                %s211 = sphi 0, %s215
                %p212 = scmp.ge.s32.totalorder %s211, 1
                %s216 = sphi %s205, %s205
                %s217 = sphi %s202, %s202
              $region62: #{bottleneck_forward.7} parent=58 // loop_header_branch
                %214 = sbr.rel (%p212) target = $region66
              $region63: #{bottleneck_forward.7} parent=58 // loop_body
                %v218 = vld [vmem:[%s216] sm:$0xff]
                %219 = vst [vmem:[%s217] sm:$0xff] %v218
                %v220 = vld [vmem:[%s216 + $0x8] sm:$0xff]
                %221 = vst [vmem:[%s217 + $0x8] sm:$0xff] %v220
                %v222 = vld [vmem:[%s216 + $0x10] sm:$0xff]
                %223 = vst [vmem:[%s217 + $0x10] sm:$0xff] %v222
                %v224 = vld [vmem:[%s216 + $0x18] sm:$0xff]
                %225 = vst [vmem:[%s217 + $0x18] sm:$0xff] %v224
                %v226 = vld [vmem:[%s216 + $0x40] sm:$0xff]
                %227 = vst [vmem:[%s217 + $0x20] sm:$0xff] %v226
                %v228 = vld [vmem:[%s216 + $0x48] sm:$0xff]
                %229 = vst [vmem:[%s217 + $0x28] sm:$0xff] %v228
                %v230 = vld [vmem:[%s216 + $0x50] sm:$0xff]
                %231 = vst [vmem:[%s217 + $0x30] sm:$0xff] %v230
                %v232 = vld [vmem:[%s216 + $0x58] sm:$0xff]
                %233 = vst [vmem:[%s217 + $0x38] sm:$0xff] %v232
              $region64: #{bottleneck_forward.7} parent=58 // loop_footer
                %s215 = sadd.s32 1, %s211
              $region65: #{bottleneck_forward.7} parent=58 // loop_footer_branch
                %210 = sbr.rel target = $region61
              $region66: #{bottleneck_forward.7} parent=58 // loop_exit
                _
            $region59: #{bottleneck_forward.7} parent=54 // pred_fallthru
              _
            // Predicated region
            $region67: #{bottleneck_forward.7} parent=54 // pred_check
              _
            $region68: #{bottleneck_forward.7} parent=54 // pred_check_branch
              %235 = sbr.rel target = $region70
            $region69: #{bottleneck_forward.7} parent=54 // pred_region
              _
            $region70: #{bottleneck_forward.7} parent=54 // pred_fallthru
              _
          $region55: #{bottleneck_forward.7} parent=50 // pred_fallthru
            _
          %236 = vnop
        $region51: #{bottleneck_forward.7} parent=23 // pred_fallthru
          _
      $region24: #{bottleneck_forward.7} parent=5 // pred_fallthru
        _
      %p237 = scmp.le.s32.totalorder 1, %s10
      %p238 = scmp.lt.s32.totalorder %s10, 3
      %p239 = pnand %p237, %p238
      %p240 = pneg %p239
      // Predicated region
      $region71: #{bottleneck_forward.7} parent=5 // pred_check
        _
      $region72: #{bottleneck_forward.7} parent=5 // pred_check_branch
        %242 = sbr.rel (%p239) target = $region74
      $region73: #{bottleneck_forward.7} parent=5 // pred_region
        %s243 = ssub.s32 %s10, 1
        %s244 = sand.u32 %s23, 1
        %s245 = sand.u32 %s23, 1
        %s246 = smul.addr %s245, 64
        %s247 = scalar_lea.vmem [#allocation2], %s246
        // Predicated region
        $region75: #{bottleneck_forward.7} parent=73 // pred_check
          %p248 = pneg %p36
        $region76: #{bottleneck_forward.7} parent=73 // pred_check_branch
          %250 = sbr.rel (%p248) target = $region78
        $region77: #{bottleneck_forward.7} parent=73 // pred_region
          _
        $region78: #{bottleneck_forward.7} parent=73 // pred_fallthru
          _
        %s251 = sand.u32 %s49, 1
        %s252 = sand.u32 %s49, 1
        %s253 = smul.addr %s252, 64
        %s254 = scalar_lea.vmem [#allocation3], %s253
        // Predicated region
        $region79: #{bottleneck_forward.7} parent=73 // pred_check
          %p255 = pneg %p62
        $region80: #{bottleneck_forward.7} parent=73 // pred_check_branch
          %257 = sbr.rel (%p255) target = $region82
        $region81: #{bottleneck_forward.7} parent=73 // pred_region
          _
        $region82: #{bottleneck_forward.7} parent=73 // pred_fallthru
          _
        %s258 = sand.u32 %s23, 1
        %s259 = sand.u32 %s23, 1
        %s260 = smul.addr %s259, 64
        %s261 = scalar_lea.vmem [#allocation2], %s260
        %p262 = pneg %p36
        %p263 = pneg %p33
        %s264 = sand.u32 %s49, 1
        %s265 = sand.u32 %s49, 1
        %s266 = smul.addr %s265, 64
        %s267 = scalar_lea.vmem [#allocation3], %s266
        %p268 = pneg %p62
        %p269 = pneg %p59
        %p270 = pneg %p83
        %p271 = pneg %p80
        %p272 = pneg %p104
        %p273 = pneg %p101
        %p274 = pneg %p130
        %p275 = pneg %p127
        %s276 = sand.u32 %s117, 1
        %s277 = sand.u32 %s117, 1
        %s278 = smul.addr %s277, 64
        %s279 = scalar_lea.vmem [#allocation4], %s278
        %s280 = smul.u32 4, %s15
        %s281 = smul.u32 4, %s15
        %s282 = smul.u32 4, %s15
        %v283 = vld [vmem:[%s247] sm:$0xff]
        %v284 = vld [vmem:[%s247 + $0x8] sm:$0xff]
        %v285 = vld [vmem:[%s247 + $0x10] sm:$0xff]
        %v286 = vld [vmem:[%s247 + $0x18] sm:$0xff]
        %v287 = vld [vmem:[%s247 + $0x20] sm:$0xff]
        %v288 = vld [vmem:[%s247 + $0x28] sm:$0xff]
        %v289 = vld [vmem:[%s247 + $0x30] sm:$0xff]
        %v290 = vld [vmem:[%s247 + $0x38] sm:$0xff]
        %v291 = vld [vmem:[%s2] sm:$0xff]
        %v292 = vld [vmem:[%s2 + $0x8] sm:$0xff]
        %294 = vset.pattern.permute.xlu0 0
        %295 = vperm.xlu0 %294, %v291
        %v296 = vpop.permute.xlu0 %295
        %299 = vset.pattern.permute.xlu0 0
        %300 = vperm.xlu0 %299, %v292
        %v301 = vpop.permute.xlu0 %300
        %v303 = vmul.f32 %v283, %v296
        %v304 = vmul.f32 %v284, %v296
        %v305 = vmul.f32 %v285, %v296
        %v306 = vmul.f32 %v286, %v296
        %v307 = vmul.f32 %v287, %v301
        %v308 = vmul.f32 %v288, %v301
        %v309 = vmul.f32 %v289, %v301
        %v310 = vmul.f32 %v290, %v301
        %v311 = vld [vmem:[%s3] sm:$0xff]
        %v312 = vld [vmem:[%s3 + $0x8] sm:$0xff]
        %314 = vset.pattern.permute.xlu0 0
        %315 = vperm.xlu0 %314, %v311
        %v316 = vpop.permute.xlu0 %315
        %319 = vset.pattern.permute.xlu0 0
        %320 = vperm.xlu0 %319, %v312
        %v321 = vpop.permute.xlu0 %320
        %v323 = vadd.f32 %v303, %v316
        %v324 = vadd.f32 %v304, %v316
        %v325 = vadd.f32 %v305, %v316
        %v326 = vadd.f32 %v306, %v316
        %v327 = vadd.f32 %v307, %v321
        %v328 = vadd.f32 %v308, %v321
        %v329 = vadd.f32 %v309, %v321
        %v330 = vadd.f32 %v310, %v321
        %v331 = vld [vmem:[%s254] sm:$0xff]
        %v332 = vld [vmem:[%s254 + $0x8] sm:$0xff]
        %v333 = vld [vmem:[%s254 + $0x10] sm:$0xff]
        %v334 = vld [vmem:[%s254 + $0x18] sm:$0xff]
        %v335 = vld [vmem:[%s254 + $0x20] sm:$0xff]
        %v336 = vld [vmem:[%s254 + $0x28] sm:$0xff]
        %v337 = vld [vmem:[%s254 + $0x30] sm:$0xff]
        %v338 = vld [vmem:[%s254 + $0x38] sm:$0xff]
        %v339 = vadd.f32 %v323, %v331
        %v340 = vadd.f32 %v324, %v332
        %v341 = vadd.f32 %v325, %v333
        %v342 = vadd.f32 %v326, %v334
        %v343 = vadd.f32 %v327, %v335
        %v344 = vadd.f32 %v328, %v336
        %v345 = vadd.f32 %v329, %v337
        %v346 = vadd.f32 %v330, %v338
        %v347 = vmax.f32 %v339, 0.0
        %v348 = vmax.f32 %v340, 0.0
        %v349 = vmax.f32 %v341, 0.0
        %v350 = vmax.f32 %v342, 0.0
        %v351 = vmax.f32 %v343, 0.0
        %v352 = vmax.f32 %v344, 0.0
        %v353 = vmax.f32 %v345, 0.0
        %v354 = vmax.f32 %v346, 0.0
        %355 = vst [vmem:[%s279] sm:$0xff] %v347
        %356 = vst [vmem:[%s279 + $0x8] sm:$0xff] %v348
        %357 = vst [vmem:[%s279 + $0x10] sm:$0xff] %v349
        %358 = vst [vmem:[%s279 + $0x18] sm:$0xff] %v350
        %359 = vst [vmem:[%s279 + $0x20] sm:$0xff] %v351
        %360 = vst [vmem:[%s279 + $0x28] sm:$0xff] %v352
        %361 = vst [vmem:[%s279 + $0x30] sm:$0xff] %v353
        %362 = vst [vmem:[%s279 + $0x38] sm:$0xff] %v354
        %s363 = sand.u32 %s117, 1
        %s364 = sand.u32 %s117, 1
        %s365 = smul.addr %s364, 64
        %s366 = scalar_lea.vmem [#allocation4], %s365
        // Predicated region
        $region83: #{bottleneck_forward.7} parent=73 // pred_check
          %p367 = pneg %p127
        $region84: #{bottleneck_forward.7} parent=73 // pred_check_branch
          %369 = sbr.rel (%p367) target = $region86
        $region85: #{bottleneck_forward.7} parent=73 // pred_region
          %s370 = smul.u32 4, %s15
          %s371 = smul.addr %s370, 8
          %s372 = scalar_lea.vmem %s4, %s371
          // Predicated region
          $region87: #{bottleneck_forward.7} parent=85 // pred_check
            _
          $region88: #{bottleneck_forward.7} parent=85 // pred_check_branch
            %374 = sbr.rel (0) target = $region90
          $region89: #{bottleneck_forward.7} parent=85 // pred_region
            // Predicated region
            $region91: #{bottleneck_forward.7} parent=89 // pred_check
              _
            $region92: #{bottleneck_forward.7} parent=89 // pred_check_branch
              %376 = sbr.rel (0) target = $region94
            $region93: #{bottleneck_forward.7} parent=89 // pred_region
              loop: start=0, step=1, limit=1
              $region95: #{bottleneck_forward.7} parent=93 // loop_pre_header
                _
              $region96: #{bottleneck_forward.7} parent=93 // loop_header
                %s378 = sphi 0, %s382
                %p379 = scmp.ge.s32.totalorder %s378, 1
                %s383 = sphi %s366, %s366
                %s384 = sphi %s372, %s372
              $region97: #{bottleneck_forward.7} parent=93 // loop_header_branch
                %381 = sbr.rel (%p379) target = $region101
              $region98: #{bottleneck_forward.7} parent=93 // loop_body
                %v385 = vld [vmem:[%s383] sm:$0xff]
                %386 = vst [vmem:[%s384] sm:$0xff] %v385
                %v387 = vld [vmem:[%s383 + $0x8] sm:$0xff]
                %388 = vst [vmem:[%s384 + $0x8] sm:$0xff] %v387
                %v389 = vld [vmem:[%s383 + $0x10] sm:$0xff]
                %390 = vst [vmem:[%s384 + $0x10] sm:$0xff] %v389
                %v391 = vld [vmem:[%s383 + $0x18] sm:$0xff]
                %392 = vst [vmem:[%s384 + $0x18] sm:$0xff] %v391
                %v393 = vld [vmem:[%s383 + $0x20] sm:$0xff]
                %394 = vst [vmem:[%s384 + $0x40] sm:$0xff] %v393
                %v395 = vld [vmem:[%s383 + $0x28] sm:$0xff]
                %396 = vst [vmem:[%s384 + $0x48] sm:$0xff] %v395
                %v397 = vld [vmem:[%s383 + $0x30] sm:$0xff]
                %398 = vst [vmem:[%s384 + $0x50] sm:$0xff] %v397
                %v399 = vld [vmem:[%s383 + $0x38] sm:$0xff]
                %400 = vst [vmem:[%s384 + $0x58] sm:$0xff] %v399
              $region99: #{bottleneck_forward.7} parent=93 // loop_footer
                %s382 = sadd.s32 1, %s378
              $region100: #{bottleneck_forward.7} parent=93 // loop_footer_branch
                %377 = sbr.rel target = $region96
              $region101: #{bottleneck_forward.7} parent=93 // loop_exit
                _
            $region94: #{bottleneck_forward.7} parent=89 // pred_fallthru
              _
            // Predicated region
            $region102: #{bottleneck_forward.7} parent=89 // pred_check
              _
            $region103: #{bottleneck_forward.7} parent=89 // pred_check_branch
              %402 = sbr.rel target = $region105
            $region104: #{bottleneck_forward.7} parent=89 // pred_region
              _
            $region105: #{bottleneck_forward.7} parent=89 // pred_fallthru
              _
          $region90: #{bottleneck_forward.7} parent=85 // pred_fallthru
            _
          %403 = vnop
        $region86: #{bottleneck_forward.7} parent=73 // pred_fallthru
          _
      $region74: #{bottleneck_forward.7} parent=5 // pred_fallthru
        _
      %p404 = scmp.le.s32.totalorder 2, %s10
      // Predicated region
      $region106: #{bottleneck_forward.7} parent=5 // pred_check
        %p405 = pneg %p404
      $region107: #{bottleneck_forward.7} parent=5 // pred_check_branch
        %407 = sbr.rel (%p405) target = $region109
      $region108: #{bottleneck_forward.7} parent=5 // pred_region
        %s408 = ssub.s32 %s10, 2
        // Predicated region
        $region110: #{bottleneck_forward.7} parent=108 // pred_check
          %p409 = pneg %p133
        $region111: #{bottleneck_forward.7} parent=108 // pred_check_branch
          %411 = sbr.rel (%p409) target = $region113
        $region112: #{bottleneck_forward.7} parent=108 // pred_region
          %s412 = sand.u32 %s118, 1
          %s413 = sand.u32 %s118, 1
          %s414 = smul.addr %s413, 64
          %s415 = scalar_lea.vmem [#allocation4], %s414
        $region113: #{bottleneck_forward.7} parent=108 // pred_fallthru
          _
      $region109: #{bottleneck_forward.7} parent=5 // pred_fallthru
        _
    $region6: #{bottleneck_forward.7} parent=1 // loop_footer
      %s14 = sadd.s32 1, %s10
    $region7: #{bottleneck_forward.7} parent=1 // loop_footer_branch
      %9 = sbr.rel target = $region3
    $region8: #{bottleneck_forward.7} parent=1 // loop_exit
      _

// kernel: bottleneck_forward.5
$region0: #{bottleneck_forward.5}
  #allocation0 [shape = 'u32[]', space=smem, size = 0x4, offset = 0x4, fixed_abs, tag = 'smem constant byte address 0x4 - core index']
  #allocation1 [shape = 'u32[144,128]{1,0:T(1,128)}', space=vmem, size = 0x12000, scoped, tag = 'internal scratch']
  %s0 = inlined_call_operand.vmem [shape: f32[2,4,1222], index: 0, kind: input, shape index: {}]
  %s1 = inlined_call_operand.vmem [shape: bf16[27,4,4], index: 1, kind: input, shape index: {}]
  %s2 = inlined_call_operand.vmem [shape: f32[4,1], index: 2, kind: input, shape index: {}]
  %s3 = inlined_call_operand.vmem [shape: f32[4,1], index: 3, kind: input, shape index: {}]
  %s4 = inlined_call_operand.vmem [shape: f32[1,1222], index: 4, kind: input, shape index: {}]
  %s5 = inlined_call_operand.vmem [shape: f32[1,1000], index: 5, kind: input, shape index: {}]
  %s6 = inlined_call_operand.vmem [shape: f32[2,4,1000], index: 6, kind: output, shape index: {0}]
  %s7 = inlined_call_operand.vmem [shape: f32[2,4,2], index: 7, kind: output, shape index: {1}]
  %8 = xla_tuple %s6, %s7
  %s9 = sld [smem:[#allocation0]]
  $region65: #{bottleneck_forward.5} parent=0
    _
  %s11 = ssub.s32 1, %s9
  %s12 = scalar_select 0, %s11, %s9
  loop: start=0, step=1, limit=4
  $region2: #{bottleneck_forward.5} parent=0 // loop_pre_header
    _
  $region3: #{bottleneck_forward.5} parent=0 // loop_header
    %s14 = sphi 0, %s18
    %p15 = scmp.ge.s32.totalorder %s14, 4
    %s24 = sphi 0, %s26
    %s27 = sphi 0, %s24
    %s28 = sphi 0, %s27
    %s44 = sphi 0, %s28
    %s48 = sphi 0, %s48
    %s50 = sphi 0, %s48
    %s51 = sphi 0, %s50
    %s65 = sphi 0, %s51
    %s69 = sphi 0, %s69
    %s71 = sphi 0, %s69
    %s72 = sphi 0, %s71
    %s86 = sphi 0, %s72
    %s90 = sphi 0, %s90
    %s92 = sphi 0, %s90
    %s93 = sphi 0, %s92
    %s107 = sphi 0, %s93
    %s111 = sphi 0, %s111
    %s113 = sphi 0, %s111
    %s114 = sphi 0, %s113
    %s128 = sphi 0, %s114
    %s132 = sphi 0, %s132
    %s134 = sphi 0, %s132
    %s135 = sphi 0, %s134
    %s149 = sphi 0, %s135
    %s155 = sphi 0, %s157
    %s158 = sphi 0, %s155
    %s159 = sphi 0, %s158
    %s175 = sphi 0, %s159
    %s181 = sphi 0, %s183
    %s184 = sphi 0, %s181
    %s185 = sphi 0, %s184
    %s201 = sphi 0, %s185
  $region4: #{bottleneck_forward.5} parent=0 // loop_header_branch
    %17 = sbr.rel (%p15) target = $region8
  $region5: #{bottleneck_forward.5} parent=0 // loop_body
    %s19 = ssub.s32 %s14, 1
    %s20 = ssub.s32 %s14, 2
    %s21 = sadd.s32 %s14, 1
    %s22 = ssub.s32 %s14, %s21
    %p23 = scmp.eq.s32.totalorder %s22, 0
    %s25 = sadd.s32 %s24, 1
    %s26 = scalar_select %p23, %s24, %s25
    %p29 = pneg %p23
    %p30 = scmp.eq.s32.totalorder %s14, 1
    %p31 = por %p29, %p30
    %p32 = scmp.ne.s32.totalorder %s24, %s27
    %p33 = scmp.eq.s32.totalorder %s14, 0
    %p34 = por %p32, %p33
    %p35 = scmp.ne.s32.totalorder %s24, %s27
    %p36 = scmp.eq.s32.totalorder %s19, 1
    %p37 = por %p35, %p36
    %p38 = scmp.ne.s32.totalorder %s27, %s28
    %p39 = scmp.eq.s32.totalorder %s19, 0
    %p40 = por %p38, %p39
    %p41 = scmp.ne.s32.totalorder %s27, %s28
    %p42 = scmp.eq.s32.totalorder %s20, 1
    %p43 = por %p41, %p42
    %p45 = scmp.ne.s32.totalorder %s28, %s44
    %p46 = scmp.eq.s32.totalorder %s20, 0
    %p47 = por %p45, %p46
    %s49 = sadd.s32 %s48, 1
    %p52 = scmp.eq.s32.totalorder %s14, 1
    %p53 = scmp.ne.s32.totalorder %s48, %s50
    %p54 = scmp.eq.s32.totalorder %s14, 0
    %p55 = por %p53, %p54
    %p56 = scmp.ne.s32.totalorder %s48, %s50
    %p57 = scmp.eq.s32.totalorder %s19, 1
    %p58 = por %p56, %p57
    %p59 = scmp.ne.s32.totalorder %s50, %s51
    %p60 = scmp.eq.s32.totalorder %s19, 0
    %p61 = por %p59, %p60
    %p62 = scmp.ne.s32.totalorder %s50, %s51
    %p63 = scmp.eq.s32.totalorder %s20, 1
    %p64 = por %p62, %p63
    %p66 = scmp.ne.s32.totalorder %s51, %s65
    %p67 = scmp.eq.s32.totalorder %s20, 0
    %p68 = por %p66, %p67
    %s70 = sadd.s32 %s69, 1
    %p73 = scmp.eq.s32.totalorder %s14, 1
    %p74 = scmp.ne.s32.totalorder %s69, %s71
    %p75 = scmp.eq.s32.totalorder %s14, 0
    %p76 = por %p74, %p75
    %p77 = scmp.ne.s32.totalorder %s69, %s71
    %p78 = scmp.eq.s32.totalorder %s19, 1
    %p79 = por %p77, %p78
    %p80 = scmp.ne.s32.totalorder %s71, %s72
    %p81 = scmp.eq.s32.totalorder %s19, 0
    %p82 = por %p80, %p81
    %p83 = scmp.ne.s32.totalorder %s71, %s72
    %p84 = scmp.eq.s32.totalorder %s20, 1
    %p85 = por %p83, %p84
    %p87 = scmp.ne.s32.totalorder %s72, %s86
    %p88 = scmp.eq.s32.totalorder %s20, 0
    %p89 = por %p87, %p88
    %s91 = sadd.s32 %s90, 1
    %p94 = scmp.eq.s32.totalorder %s14, 1
    %p95 = scmp.ne.s32.totalorder %s90, %s92
    %p96 = scmp.eq.s32.totalorder %s14, 0
    %p97 = por %p95, %p96
    %p98 = scmp.ne.s32.totalorder %s90, %s92
    %p99 = scmp.eq.s32.totalorder %s19, 1
    %p100 = por %p98, %p99
    %p101 = scmp.ne.s32.totalorder %s92, %s93
    %p102 = scmp.eq.s32.totalorder %s19, 0
    %p103 = por %p101, %p102
    %p104 = scmp.ne.s32.totalorder %s92, %s93
    %p105 = scmp.eq.s32.totalorder %s20, 1
    %p106 = por %p104, %p105
    %p108 = scmp.ne.s32.totalorder %s93, %s107
    %p109 = scmp.eq.s32.totalorder %s20, 0
    %p110 = por %p108, %p109
    %s112 = sadd.s32 %s111, 1
    %p115 = scmp.eq.s32.totalorder %s14, 1
    %p116 = scmp.ne.s32.totalorder %s111, %s113
    %p117 = scmp.eq.s32.totalorder %s14, 0
    %p118 = por %p116, %p117
    %p119 = scmp.ne.s32.totalorder %s111, %s113
    %p120 = scmp.eq.s32.totalorder %s19, 1
    %p121 = por %p119, %p120
    %p122 = scmp.ne.s32.totalorder %s113, %s114
    %p123 = scmp.eq.s32.totalorder %s19, 0
    %p124 = por %p122, %p123
    %p125 = scmp.ne.s32.totalorder %s113, %s114
    %p126 = scmp.eq.s32.totalorder %s20, 1
    %p127 = por %p125, %p126
    %p129 = scmp.ne.s32.totalorder %s114, %s128
    %p130 = scmp.eq.s32.totalorder %s20, 0
    %p131 = por %p129, %p130
    %s133 = sadd.s32 %s132, 1
    %p136 = scmp.eq.s32.totalorder %s14, 1
    %p137 = scmp.ne.s32.totalorder %s132, %s134
    %p138 = scmp.eq.s32.totalorder %s14, 0
    %p139 = por %p137, %p138
    %p140 = scmp.ne.s32.totalorder %s132, %s134
    %p141 = scmp.eq.s32.totalorder %s19, 1
    %p142 = por %p140, %p141
    %p143 = scmp.ne.s32.totalorder %s134, %s135
    %p144 = scmp.eq.s32.totalorder %s19, 0
    %p145 = por %p143, %p144
    %p146 = scmp.ne.s32.totalorder %s134, %s135
    %p147 = scmp.eq.s32.totalorder %s20, 1
    %p148 = por %p146, %p147
    %p150 = scmp.ne.s32.totalorder %s135, %s149
    %p151 = scmp.eq.s32.totalorder %s20, 0
    %p152 = por %p150, %p151
    %s153 = ssub.s32 %s14, %s21
    %p154 = scmp.eq.s32.totalorder %s153, 0
    %s156 = sadd.s32 %s155, 1
    %s157 = scalar_select %p154, %s155, %s156
    %p160 = pneg %p154
    %p161 = scmp.eq.s32.totalorder %s14, 1
    %p162 = por %p160, %p161
    %p163 = scmp.ne.s32.totalorder %s155, %s158
    %p164 = scmp.eq.s32.totalorder %s14, 0
    %p165 = por %p163, %p164
    %p166 = scmp.ne.s32.totalorder %s155, %s158
    %p167 = scmp.eq.s32.totalorder %s19, 1
    %p168 = por %p166, %p167
    %p169 = scmp.ne.s32.totalorder %s158, %s159
    %p170 = scmp.eq.s32.totalorder %s19, 0
    %p171 = por %p169, %p170
    %p172 = scmp.ne.s32.totalorder %s158, %s159
    %p173 = scmp.eq.s32.totalorder %s20, 1
    %p174 = por %p172, %p173
    %p176 = scmp.ne.s32.totalorder %s159, %s175
    %p177 = scmp.eq.s32.totalorder %s20, 0
    %p178 = por %p176, %p177
    %s179 = ssub.s32 %s14, %s21
    %p180 = scmp.eq.s32.totalorder %s179, 0
    %s182 = sadd.s32 %s181, 1
    %s183 = scalar_select %p180, %s181, %s182
    %p186 = pneg %p180
    %p187 = scmp.eq.s32.totalorder %s14, 1
    %p188 = por %p186, %p187
    %p189 = scmp.ne.s32.totalorder %s181, %s184
    %p190 = scmp.eq.s32.totalorder %s14, 0
    %p191 = por %p189, %p190
    %p192 = scmp.ne.s32.totalorder %s181, %s184
    %p193 = scmp.eq.s32.totalorder %s19, 1
    %p194 = por %p192, %p193
    %p195 = scmp.ne.s32.totalorder %s184, %s185
    %p196 = scmp.eq.s32.totalorder %s19, 0
    %p197 = por %p195, %p196
    %p198 = scmp.ne.s32.totalorder %s184, %s185
    %p199 = scmp.eq.s32.totalorder %s20, 1
    %p200 = por %p198, %p199
    %p202 = scmp.ne.s32.totalorder %s185, %s201
    %p203 = scmp.eq.s32.totalorder %s20, 0
    %p204 = por %p202, %p203
    %p205 = scmp.le.s32.totalorder 1, %s14
    %p206 = scmp.lt.s32.totalorder %s14, 3
    %p207 = pnand %p205, %p206
    %p208 = pneg %p207
    // Predicated region
    $region9: #{bottleneck_forward.5} parent=5 // pred_check
      _
    $region10: #{bottleneck_forward.5} parent=5 // pred_check_branch
      %210 = sbr.rel (%p207) target = $region12
    $region11: #{bottleneck_forward.5} parent=5 // pred_region
      %s211 = ssub.s32 %s14, 1
      // Predicated region
      $region13: #{bottleneck_forward.5} parent=11 // pred_check
        %p212 = pneg %p61
      $region14: #{bottleneck_forward.5} parent=11 // pred_check_branch
        %214 = sbr.rel (%p212) target = $region16
      $region15: #{bottleneck_forward.5} parent=11 // pred_region
        _
      $region16: #{bottleneck_forward.5} parent=11 // pred_fallthru
        _
      // Predicated region
      $region17: #{bottleneck_forward.5} parent=11 // pred_check
        %p215 = pneg %p82
      $region18: #{bottleneck_forward.5} parent=11 // pred_check_branch
        %217 = sbr.rel (%p215) target = $region20
      $region19: #{bottleneck_forward.5} parent=11 // pred_region
        _
      $region20: #{bottleneck_forward.5} parent=11 // pred_fallthru
        _
      // Predicated region
      $region21: #{bottleneck_forward.5} parent=11 // pred_check
        %p218 = pneg %p103
      $region22: #{bottleneck_forward.5} parent=11 // pred_check_branch
        %220 = sbr.rel (%p218) target = $region24
      $region23: #{bottleneck_forward.5} parent=11 // pred_region
        _
      $region24: #{bottleneck_forward.5} parent=11 // pred_fallthru
        _
      // Predicated region
      $region25: #{bottleneck_forward.5} parent=11 // pred_check
        %p221 = pneg %p124
      $region26: #{bottleneck_forward.5} parent=11 // pred_check_branch
        %223 = sbr.rel (%p221) target = $region28
      $region27: #{bottleneck_forward.5} parent=11 // pred_region
        _
      $region28: #{bottleneck_forward.5} parent=11 // pred_fallthru
        _
      // Predicated region
      $region29: #{bottleneck_forward.5} parent=11 // pred_check
        %p224 = pneg %p145
      $region30: #{bottleneck_forward.5} parent=11 // pred_check_branch
        %226 = sbr.rel (%p224) target = $region32
      $region31: #{bottleneck_forward.5} parent=11 // pred_region
        _
      $region32: #{bottleneck_forward.5} parent=11 // pred_fallthru
        _
    $region12: #{bottleneck_forward.5} parent=5 // pred_fallthru
      _
    %p227 = scmp.lt.s32.totalorder %s14, 2
    // Predicated region
    $region33: #{bottleneck_forward.5} parent=5 // pred_check
      %p228 = pneg %p227
    $region34: #{bottleneck_forward.5} parent=5 // pred_check_branch
      %230 = sbr.rel (%p228) target = $region36
    $region35: #{bottleneck_forward.5} parent=5 // pred_region
      // Predicated region
      $region37: #{bottleneck_forward.5} parent=35 // pred_check
        %p231 = pneg %p34
      $region38: #{bottleneck_forward.5} parent=35 // pred_check_branch
        %233 = sbr.rel (%p231) target = $region40
      $region39: #{bottleneck_forward.5} parent=35 // pred_region
        %p234 = scmp.lt.s32.totalorder %s14, 1
        %s235 = scalar_select %p234, %s14, 1
        %s236 = smul.addr %s235, 10
        %s237 = smul.addr %s236, 4
        %s238 = scalar_lea.vmem %s0, %s237
      $region40: #{bottleneck_forward.5} parent=35 // pred_fallthru
        _
    $region36: #{bottleneck_forward.5} parent=5 // pred_fallthru
      _
    %p239 = scmp.le.s32.totalorder 1, %s14
    %p240 = scmp.lt.s32.totalorder %s14, 3
    %p241 = pnand %p239, %p240
    %p242 = pneg %p241
    // Predicated region
    $region41: #{bottleneck_forward.5} parent=5 // pred_check
      _
    $region42: #{bottleneck_forward.5} parent=5 // pred_check_branch
      %244 = sbr.rel (%p241) target = $region44
    $region43: #{bottleneck_forward.5} parent=5 // pred_region
      %s245 = ssub.s32 %s14, 1
      %p246 = scmp.lt.s32.totalorder %s19, 1
      %s247 = scalar_select %p246, %s19, 1
      %s248 = smul.addr %s247, 10
      %s249 = smul.addr %s248, 4
      %s250 = scalar_lea.vmem %s0, %s249
      %p251 = pneg %p40
      %p252 = pneg %p37
      %p253 = pneg %p61
      %p254 = pneg %p58
      %p255 = pneg %p82
      %p256 = pneg %p79
      %p257 = pneg %p103
      %p258 = pneg %p100
      %p259 = pneg %p124
      %p260 = pneg %p121
      %p261 = pneg %p145
      %p262 = pneg %p142
      %p263 = pneg %p171
      %p264 = pneg %p168
      %p265 = scmp.lt.s32.totalorder %s19, 1
      %s266 = scalar_select %p265, %s19, 1
      %s267 = smul.addr %s266, 8
      %s268 = smul.addr %s267, 4
      %s269 = scalar_lea.vmem %s6, %s268
      %p270 = pneg %p197
      %p271 = pneg %p194
      %p272 = scmp.lt.s32.totalorder %s19, 1
      %s273 = scalar_select %p272, %s19, 1
      %s274 = smul.addr %s273, 4
      %s275 = scalar_lea.vmem %s7, %s274
      %p276 = scmp.lt.s32.totalorder %s19, 1
      %s277 = scalar_select %p276, %s19, 1
      %s278 = smul.addr %s277, 10
      %s279 = smul.addr %s278, 4
      %s280 = scalar_lea.vmem %s0, %s279
      %p281 = scmp.lt.s32.totalorder %s19, 1
      %s282 = scalar_select %p281, %s19, 1
      %s283 = smul.addr %s282, 8
      %s284 = smul.addr %s283, 4
      %s285 = scalar_lea.vmem %s6, %s284
      %p286 = scmp.lt.s32.totalorder %s19, 1
      %s287 = scalar_select %p286, %s19, 1
      %s288 = smul.addr %s287, 4
      %s289 = scalar_lea.vmem %s7, %s288
      %v291 = vld [vmem:[%s280] sm:$0xff]
      %v292 = vld [vmem:[%s280 + $0x8] sm:$0xff]
      %v293 = vld [vmem:[%s280 + $0x10] sm:$0xff]
      %v294 = vld [vmem:[%s280 + $0x18] sm:$0xff]
      %v295 = vld [vmem:[%s280 + $0x20] sm:$0xff]
      %v296 = vld [vmem:[%s2] sm:$0xf]
      %298 = vset.pattern.permute.xlu0 0
      %299 = vperm.xlu0 %298, %v296
      %v300 = vpop.permute.xlu0 %299
      %v302 = vunpack.c.l.s4 839922192
      %v303 = vunpack.c.0.s8 %v302
      %v304 = vlaneseq
      %v305 = vshrl.u32 %v304, 7
      %v306 = vsub.s32 %v303, %v305
      %v307 = vrot.slane %v300, %v306
      %v309 = vmul.f32 %v291, %v307
      %v310 = vmul.f32 %v292, %v307
      %v311 = vmul.f32 %v293, %v307
      %v312 = vmul.f32 %v294, %v307
      %v313 = vmul.f32 %v295, %v307
      %v314 = vld [vmem:[%s3] sm:$0xf]
      %316 = vset.pattern.permute.xlu0 0
      %317 = vperm.xlu0 %316, %v314
      %v318 = vpop.permute.xlu0 %317
      %v320 = vunpack.c.l.s4 839922192
      %v321 = vunpack.c.0.s8 %v320
      %v322 = vlaneseq
      %v323 = vshrl.u32 %v322, 7
      %v324 = vsub.s32 %v321, %v323
      %v325 = vrot.slane %v318, %v324
      %v327 = vadd.f32 %v309, %v325
      %v328 = vadd.f32 %v310, %v325
      %v329 = vadd.f32 %v311, %v325
      %v330 = vadd.f32 %v312, %v325
      %v331 = vadd.f32 %v313, %v325
      %v332 = vmax.f32 %v327, 0.0
      %v333 = vmax.f32 %v328, 0.0
      %v334 = vmax.f32 %v329, 0.0
      %v335 = vmax.f32 %v330, 0.0
      %v336 = vmax.f32 %v331, 0.0
      %v337 = vld [vmem:[%s4] sm:$0xff]
      %v338 = vld [vmem:[%s4 + $0x8] sm:$0x3]
      %v341 = vlaneseq
      %v342 = vshrl.u32 %v341, 7
      %v343 = vsub.s32 0, %v342
      %v344 = vrot.slane %v337, %v343
      %v345 = vlaneseq
      %v346 = vshrl.u32 %v345, 7
      %v347 = vsub.s32 1, %v346
      %v348 = vrot.slane %v337, %v347
      %v349 = vlaneseq
      %v350 = vshrl.u32 %v349, 7
      %v351 = vsub.s32 2, %v350
      %v352 = vrot.slane %v337, %v351
      %v353 = vlaneseq
      %v354 = vshrl.u32 %v353, 7
      %v355 = vsub.s32 3, %v354
      %v356 = vrot.slane %v337, %v355
      %v357 = vlaneseq
      %v358 = vshrl.u32 %v357, 7
      %v359 = vsub.s32 4, %v358
      %v360 = vrot.slane %v337, %v359
      %v361 = vlaneseq
      %v362 = vshrl.u32 %v361, 7
      %v363 = vsub.s32 5, %v362
      %v364 = vrot.slane %v337, %v363
      %v365 = vlaneseq
      %v366 = vshrl.u32 %v365, 7
      %v367 = vsub.s32 6, %v366
      %v368 = vrot.slane %v337, %v367
      %v369 = vlaneseq
      %v370 = vshrl.u32 %v369, 7
      %v371 = vsub.s32 7, %v370
      %v372 = vrot.slane %v337, %v371
      %v373 = vlaneseq
      %v374 = vshrl.u32 %v373, 7
      %v375 = vsub.s32 0, %v374
      %v376 = vrot.slane %v338, %v375
      %v377 = vlaneseq
      %v378 = vshrl.u32 %v377, 7
      %v379 = vsub.s32 1, %v378
      %v380 = vrot.slane %v338, %v379
      %v381 = vcombine.low %v344, %v348
      %v382 = vcombine.low %v352, %v356
      %v383 = vcombine.low %v360, %v364
      %v384 = vcombine.low %v368, %v372
      %v385 = vcombine.low %v376, %v380
      %v391 = vmul.f32 %v332, %v381
      %v392 = vmul.f32 %v333, %v382
      %v393 = vmul.f32 %v334, %v383
      %v394 = vmul.f32 %v335, %v384
      %v395 = vmul.f32 %v336, %v385
      %v401 = vcombine.high %v391, %v391
      %v402 = vcombine.high %v392, %v392
      %v403 = vcombine.high %v393, %v393
      %v404 = vcombine.high %v394, %v394
      %v405 = vcombine.high %v395, %v395
      %v411 = vpack.c.bf16 %v391, %v391
      %v412 = vpack.c.bf16 %v401, %v401
      %v413 = vpack.c.bf16 %v392, %v392
      %v414 = vpack.c.bf16 %v402, %v402
      %v415 = vpack.c.bf16 %v393, %v393
      %v416 = vpack.c.bf16 %v403, %v403
      %v417 = vpack.c.bf16 %v394, %v394
      %v418 = vpack.c.bf16 %v404, %v404
      %v419 = vpack.c.bf16 %v395, %v395
      %v420 = vpack.c.bf16 %v405, %v405
      %v421 = vld [vmem:[%s1] sm:$0x3]
      %s422 = scalar_lea.vmem %s1, 2
      %v423 = vld [vmem:[%s422] sm:$0x3]
      %432 = vrot.lane.b32.xlu0 %v411, 127
      %v433 = vpop.permute.xlu0 %432
      %434 = vrot.lane.b32.xlu0 %v412, 127
      %v435 = vpop.permute.xlu0 %434
      %436 = vrot.lane.b32.xlu0 %v413, 127
      %v437 = vpop.permute.xlu0 %436
      %438 = vrot.lane.b32.xlu0 %v414, 127
      %v439 = vpop.permute.xlu0 %438
      %440 = vrot.lane.b32.xlu0 %v415, 127
      %v441 = vpop.permute.xlu0 %440
      %442 = vrot.lane.b32.xlu0 %v416, 127
      %v443 = vpop.permute.xlu0 %442
      %444 = vrot.lane.b32.xlu0 %v417, 127
      %v445 = vpop.permute.xlu0 %444
      %446 = vrot.lane.b32.xlu0 %v418, 127
      %v447 = vpop.permute.xlu0 %446
      %vm448 = vcmask 1039360
      %v449 = vsel %vm448, %v433, %v435
      %v450 = vsel %vm448, %v435, %v437
      %v451 = vsel %vm448, %v437, %v439
      %v452 = vsel %vm448, %v439, %v441
      %v453 = vsel %vm448, %v441, %v443
      %v454 = vsel %vm448, %v443, %v445
      %v455 = vsel %vm448, %v445, %v447
      %vm456 = vcmask 31744
      %v458 = vsel %vm456, %v423, 0
      %vm460 = vcmask 1041408
      %v462 = vsel %vm460, %v449, 0
      %v465 = vsel %vm460, %v450, 0
      %v468 = vsel %vm460, %v451, 0
      %v471 = vsel %vm460, %v452, 0
      %v474 = vsel %vm460, %v453, 0
      %v477 = vsel %vm460, %v454, 0
      %v480 = vsel %vm460, %v455, 0
      %v483 = vsel %vm460, %v447, 0
      %485 = vmatprep.subr.bf16.mxu0 %v465
      %486 = vmatpush1.bf16.msra.mxu0 %v462
      %487 = vmatprep.subr.bf16.mxu0 0
      %488 = vmatpush1.bf16.msra.mxu0 0
      %489 = vmatprep.subr.bf16.mxu0 0
      %490 = vmatpush1.bf16.msra.mxu0 0
      %491 = vmatprep.subr.bf16.mxu0 0
      %492 = vmatpush1.bf16.msra.mxu0 0
      %493 = vmatprep.subr.bf16.mxu0 0
      %494 = vmatpush1.bf16.msra.mxu0 0
      %495 = vmatprep.subr.bf16.mxu0 0
      %496 = vmatpush1.bf16.msra.mxu0 0
      %497 = vmatprep.subr.bf16.mxu0 0
      %498 = vmatpush1.bf16.msra.mxu0 0
      %499 = vmatprep.subr.bf16.mxu0 0
      %500 = vmatpush1.bf16.msra.mxu0 0
      %501 = vmatprep.subr.bf16.mxu0 0
      %502 = vmatpush1.bf16.msra.mxu0 0
      %503 = vmatprep.subr.bf16.mxu0 0
      %504 = vmatpush1.bf16.msra.mxu0 0
      %505 = vmatprep.subr.bf16.mxu0 0
      %506 = vmatpush1.bf16.msra.mxu0 0
      %507 = vmatprep.subr.bf16.mxu0 0
      %508 = vmatpush1.bf16.msra.mxu0 0
      %509 = vmatprep.subr.bf16.mxu0 0
      %510 = vmatpush1.bf16.msra.mxu0 0
      %511 = vmatprep.subr.bf16.mxu0 0
      %512 = vmatpush1.bf16.msra.mxu0 0
      %513 = vmatprep.subr.bf16.mxu0 0
      %514 = vmatpush1.bf16.msra.mxu0 0
      %515 = vmatprep.subr.bf16.mxu0 0
      %516 = vmatpush1.bf16.msra.mxu0 0
      %517 = vmatprep.mubr.bf16.mxu0 0
      %518 = vmatmul.mubr.bf16.gmra.mrb[0].mxu0 %v458
      %v519 = vpop.f32.mrb[0].mxu0
      %v520 = vadd.f32 0.0, %v519
      %v521 = vpop.f32.mrb[0].mxu0
      %v522 = vadd.f32 0.0, %v521
      %v523 = vpop.f32.mrb[0].mxu0
      %v524 = vpop.f32.mrb[0].mxu0
      %525 = vdwg.mxu0
      %526 = vmatprep.subr.bf16.mxu0 %v471
      %527 = vmatpush1.bf16.msra.mxu0 %v468
      %528 = vmatprep.subr.bf16.mxu0 0
      %529 = vmatpush1.bf16.msra.mxu0 0
      %530 = vmatprep.subr.bf16.mxu0 0
      %531 = vmatpush1.bf16.msra.mxu0 0
      %532 = vmatprep.subr.bf16.mxu0 0
      %533 = vmatpush1.bf16.msra.mxu0 0
      %534 = vmatprep.subr.bf16.mxu0 0
      %535 = vmatpush1.bf16.msra.mxu0 0
      %536 = vmatprep.subr.bf16.mxu0 0
      %537 = vmatpush1.bf16.msra.mxu0 0
      %538 = vmatprep.subr.bf16.mxu0 0
      %539 = vmatpush1.bf16.msra.mxu0 0
      %540 = vmatprep.subr.bf16.mxu0 0
      %541 = vmatpush1.bf16.msra.mxu0 0
      %542 = vmatprep.subr.bf16.mxu0 0
      %543 = vmatpush1.bf16.msra.mxu0 0
      %544 = vmatprep.subr.bf16.mxu0 0
      %545 = vmatpush1.bf16.msra.mxu0 0
      %546 = vmatprep.subr.bf16.mxu0 0
      %547 = vmatpush1.bf16.msra.mxu0 0
      %548 = vmatprep.subr.bf16.mxu0 0
      %549 = vmatpush1.bf16.msra.mxu0 0
      %550 = vmatprep.subr.bf16.mxu0 0
      %551 = vmatpush1.bf16.msra.mxu0 0
      %552 = vmatprep.subr.bf16.mxu0 0
      %553 = vmatpush1.bf16.msra.mxu0 0
      %554 = vmatprep.subr.bf16.mxu0 0
      %555 = vmatpush1.bf16.msra.mxu0 0
      %556 = vmatprep.subr.bf16.mxu0 0
      %557 = vmatpush1.bf16.msra.mxu0 0
      %558 = vmatprep.mubr.bf16.mxu0 0
      %559 = vmatmul.mubr.bf16.gmra.mrb[0].mxu0 %v458
      %v560 = vpop.f32.mrb[0].mxu0
      %v561 = vadd.f32 0.0, %v560
      %v562 = vpop.f32.mrb[0].mxu0
      %v563 = vadd.f32 0.0, %v562
      %v564 = vpop.f32.mrb[0].mxu0
      %v565 = vpop.f32.mrb[0].mxu0
      %566 = vdwg.mxu0
      %567 = vmatprep.subr.bf16.mxu0 %v477
      %568 = vmatpush1.bf16.msra.mxu0 %v474
      %569 = vmatprep.subr.bf16.mxu0 0
      %570 = vmatpush1.bf16.msra.mxu0 0
      %571 = vmatprep.subr.bf16.mxu0 0
      %572 = vmatpush1.bf16.msra.mxu0 0
      %573 = vmatprep.subr.bf16.mxu0 0
      %574 = vmatpush1.bf16.msra.mxu0 0
      %575 = vmatprep.subr.bf16.mxu0 0
      %576 = vmatpush1.bf16.msra.mxu0 0
      %577 = vmatprep.subr.bf16.mxu0 0
      %578 = vmatpush1.bf16.msra.mxu0 0
      %579 = vmatprep.subr.bf16.mxu0 0
      %580 = vmatpush1.bf16.msra.mxu0 0
      %581 = vmatprep.subr.bf16.mxu0 0
      %582 = vmatpush1.bf16.msra.mxu0 0
      %583 = vmatprep.subr.bf16.mxu0 0
      %584 = vmatpush1.bf16.msra.mxu0 0
      %585 = vmatprep.subr.bf16.mxu0 0
      %586 = vmatpush1.bf16.msra.mxu0 0
      %587 = vmatprep.subr.bf16.mxu0 0
      %588 = vmatpush1.bf16.msra.mxu0 0
      %589 = vmatprep.subr.bf16.mxu0 0
      %590 = vmatpush1.bf16.msra.mxu0 0
      %591 = vmatprep.subr.bf16.mxu0 0
      %592 = vmatpush1.bf16.msra.mxu0 0
      %593 = vmatprep.subr.bf16.mxu0 0
      %594 = vmatpush1.bf16.msra.mxu0 0
      %595 = vmatprep.subr.bf16.mxu0 0
      %596 = vmatpush1.bf16.msra.mxu0 0
      %597 = vmatprep.subr.bf16.mxu0 0
      %598 = vmatpush1.bf16.msra.mxu0 0
      %599 = vmatprep.mubr.bf16.mxu0 0
      %600 = vmatmul.mubr.bf16.gmra.mrb[0].mxu0 %v458
      %v601 = vpop.f32.mrb[0].mxu0
      %v602 = vadd.f32 0.0, %v601
      %v603 = vpop.f32.mrb[0].mxu0
      %v604 = vadd.f32 0.0, %v603
      %v605 = vpop.f32.mrb[0].mxu0
      %v606 = vpop.f32.mrb[0].mxu0
      %607 = vdwg.mxu0
      %608 = vmatprep.subr.bf16.mxu0 %v483
      %609 = vmatpush1.bf16.msra.mxu0 %v480
      %610 = vmatprep.subr.bf16.mxu0 0
      %611 = vmatpush1.bf16.msra.mxu0 0
      %612 = vmatprep.subr.bf16.mxu0 0
      %613 = vmatpush1.bf16.msra.mxu0 0
      %614 = vmatprep.subr.bf16.mxu0 0
      %615 = vmatpush1.bf16.msra.mxu0 0
      %616 = vmatprep.subr.bf16.mxu0 0
      %617 = vmatpush1.bf16.msra.mxu0 0
      %618 = vmatprep.subr.bf16.mxu0 0
      %619 = vmatpush1.bf16.msra.mxu0 0
      %620 = vmatprep.subr.bf16.mxu0 0
      %621 = vmatpush1.bf16.msra.mxu0 0
      %622 = vmatprep.subr.bf16.mxu0 0
      %623 = vmatpush1.bf16.msra.mxu0 0
      %624 = vmatprep.subr.bf16.mxu0 0
      %625 = vmatpush1.bf16.msra.mxu0 0
      %626 = vmatprep.subr.bf16.mxu0 0
      %627 = vmatpush1.bf16.msra.mxu0 0
      %628 = vmatprep.subr.bf16.mxu0 0
      %629 = vmatpush1.bf16.msra.mxu0 0
      %630 = vmatprep.subr.bf16.mxu0 0
      %631 = vmatpush1.bf16.msra.mxu0 0
      %632 = vmatprep.subr.bf16.mxu0 0
      %633 = vmatpush1.bf16.msra.mxu0 0
      %634 = vmatprep.subr.bf16.mxu0 0
      %635 = vmatpush1.bf16.msra.mxu0 0
      %636 = vmatprep.subr.bf16.mxu0 0
      %637 = vmatpush1.bf16.msra.mxu0 0
      %638 = vmatprep.subr.bf16.mxu0 0
      %639 = vmatpush1.bf16.msra.mxu0 0
      %640 = vmatprep.mubr.bf16.mxu0 0
      %641 = vmatmul.mubr.bf16.gmra.mrb[0].mxu0 %v458
      %v642 = vpop.f32.mrb[0].mxu0
      %v643 = vadd.f32 0.0, %v642
      %v644 = vpop.f32.mrb[0].mxu0
      %v645 = vadd.f32 0.0, %v644
      %v646 = vpop.f32.mrb[0].mxu0
      %v647 = vpop.f32.mrb[0].mxu0
      %648 = vdwg.mxu0
      %v650 = vsel %vm456, %v421, 0
      %v653 = vsel %vm460, %v411, 0
      %v656 = vsel %vm460, %v412, 0
      %v659 = vsel %vm460, %v413, 0
      %v662 = vsel %vm460, %v414, 0
      %v665 = vsel %vm460, %v415, 0
      %v668 = vsel %vm460, %v416, 0
      %v671 = vsel %vm460, %v417, 0
      %v674 = vsel %vm460, %v418, 0
      %676 = vmatprep.subr.bf16.mxu0 %v656
      %677 = vmatpush1.bf16.msra.mxu0 %v653
      %678 = vmatprep.subr.bf16.mxu0 0
      %679 = vmatpush1.bf16.msra.mxu0 0
      %680 = vmatprep.subr.bf16.mxu0 0
      %681 = vmatpush1.bf16.msra.mxu0 0
      %682 = vmatprep.subr.bf16.mxu0 0
      %683 = vmatpush1.bf16.msra.mxu0 0
      %684 = vmatprep.subr.bf16.mxu0 0
      %685 = vmatpush1.bf16.msra.mxu0 0
      %686 = vmatprep.subr.bf16.mxu0 0
      %687 = vmatpush1.bf16.msra.mxu0 0
      %688 = vmatprep.subr.bf16.mxu0 0
      %689 = vmatpush1.bf16.msra.mxu0 0
      %690 = vmatprep.subr.bf16.mxu0 0
      %691 = vmatpush1.bf16.msra.mxu0 0
      %692 = vmatprep.subr.bf16.mxu0 0
      %693 = vmatpush1.bf16.msra.mxu0 0
      %694 = vmatprep.subr.bf16.mxu0 0
      %695 = vmatpush1.bf16.msra.mxu0 0
      %696 = vmatprep.subr.bf16.mxu0 0
      %697 = vmatpush1.bf16.msra.mxu0 0
      %698 = vmatprep.subr.bf16.mxu0 0
      %699 = vmatpush1.bf16.msra.mxu0 0
      %700 = vmatprep.subr.bf16.mxu0 0
      %701 = vmatpush1.bf16.msra.mxu0 0
      %702 = vmatprep.subr.bf16.mxu0 0
      %703 = vmatpush1.bf16.msra.mxu0 0
      %704 = vmatprep.subr.bf16.mxu0 0
      %705 = vmatpush1.bf16.msra.mxu0 0
      %706 = vmatprep.subr.bf16.mxu0 0
      %707 = vmatpush1.bf16.msra.mxu0 0
      %708 = vmatprep.mubr.bf16.mxu0 0
      %709 = vmatmul.mubr.bf16.gmra.mrb[0].mxu0 %v650
      %v710 = vpop.f32.mrb[0].mxu0
      %v711 = vadd.f32 %v520, %v710
      %v712 = vpop.f32.mrb[0].mxu0
      %v713 = vadd.f32 %v522, %v712
      %v714 = vpop.f32.mrb[0].mxu0
      %v715 = vpop.f32.mrb[0].mxu0
      %716 = vdwg.mxu0
      %717 = vmatprep.subr.bf16.mxu0 %v662
      %718 = vmatpush1.bf16.msra.mxu0 %v659
      %719 = vmatprep.subr.bf16.mxu0 0
      %720 = vmatpush1.bf16.msra.mxu0 0
      %721 = vmatprep.subr.bf16.mxu0 0
      %722 = vmatpush1.bf16.msra.mxu0 0
      %723 = vmatprep.subr.bf16.mxu0 0
      %724 = vmatpush1.bf16.msra.mxu0 0
      %725 = vmatprep.subr.bf16.mxu0 0
      %726 = vmatpush1.bf16.msra.mxu0 0
      %727 = vmatprep.subr.bf16.mxu0 0
      %728 = vmatpush1.bf16.msra.mxu0 0
      %729 = vmatprep.subr.bf16.mxu0 0
      %730 = vmatpush1.bf16.msra.mxu0 0
      %731 = vmatprep.subr.bf16.mxu0 0
      %732 = vmatpush1.bf16.msra.mxu0 0
      %733 = vmatprep.subr.bf16.mxu0 0
      %734 = vmatpush1.bf16.msra.mxu0 0
      %735 = vmatprep.subr.bf16.mxu0 0
      %736 = vmatpush1.bf16.msra.mxu0 0
      %737 = vmatprep.subr.bf16.mxu0 0
      %738 = vmatpush1.bf16.msra.mxu0 0
      %739 = vmatprep.subr.bf16.mxu0 0
      %740 = vmatpush1.bf16.msra.mxu0 0
      %741 = vmatprep.subr.bf16.mxu0 0
      %742 = vmatpush1.bf16.msra.mxu0 0
      %743 = vmatprep.subr.bf16.mxu0 0
      %744 = vmatpush1.bf16.msra.mxu0 0
      %745 = vmatprep.subr.bf16.mxu0 0
      %746 = vmatpush1.bf16.msra.mxu0 0
      %747 = vmatprep.subr.bf16.mxu0 0
      %748 = vmatpush1.bf16.msra.mxu0 0
      %749 = vmatprep.mubr.bf16.mxu0 0
      %750 = vmatmul.mubr.bf16.gmra.mrb[0].mxu0 %v650
      %v751 = vpop.f32.mrb[0].mxu0
      %v752 = vadd.f32 %v561, %v751
      %v753 = vpop.f32.mrb[0].mxu0
      %v754 = vadd.f32 %v563, %v753
      %v755 = vpop.f32.mrb[0].mxu0
      %v756 = vpop.f32.mrb[0].mxu0
      %757 = vdwg.mxu0
      %758 = vmatprep.subr.bf16.mxu0 %v668
      %759 = vmatpush1.bf16.msra.mxu0 %v665
      %760 = vmatprep.subr.bf16.mxu0 0
      %761 = vmatpush1.bf16.msra.mxu0 0
      %762 = vmatprep.subr.bf16.mxu0 0
      %763 = vmatpush1.bf16.msra.mxu0 0
      %764 = vmatprep.subr.bf16.mxu0 0
      %765 = vmatpush1.bf16.msra.mxu0 0
      %766 = vmatprep.subr.bf16.mxu0 0
      %767 = vmatpush1.bf16.msra.mxu0 0
      %768 = vmatprep.subr.bf16.mxu0 0
      %769 = vmatpush1.bf16.msra.mxu0 0
      %770 = vmatprep.subr.bf16.mxu0 0
      %771 = vmatpush1.bf16.msra.mxu0 0
      %772 = vmatprep.subr.bf16.mxu0 0
      %773 = vmatpush1.bf16.msra.mxu0 0
      %774 = vmatprep.subr.bf16.mxu0 0
      %775 = vmatpush1.bf16.msra.mxu0 0
      %776 = vmatprep.subr.bf16.mxu0 0
      %777 = vmatpush1.bf16.msra.mxu0 0
      %778 = vmatprep.subr.bf16.mxu0 0
      %779 = vmatpush1.bf16.msra.mxu0 0
      %780 = vmatprep.subr.bf16.mxu0 0
      %781 = vmatpush1.bf16.msra.mxu0 0
      %782 = vmatprep.subr.bf16.mxu0 0
      %783 = vmatpush1.bf16.msra.mxu0 0
      %784 = vmatprep.subr.bf16.mxu0 0
      %785 = vmatpush1.bf16.msra.mxu0 0
      %786 = vmatprep.subr.bf16.mxu0 0
      %787 = vmatpush1.bf16.msra.mxu0 0
      %788 = vmatprep.subr.bf16.mxu0 0
      %789 = vmatpush1.bf16.msra.mxu0 0
      %790 = vmatprep.mubr.bf16.mxu0 0
      %791 = vmatmul.mubr.bf16.gmra.mrb[0].mxu0 %v650
      %v792 = vpop.f32.mrb[0].mxu0
      %v793 = vadd.f32 %v602, %v792
      %v794 = vpop.f32.mrb[0].mxu0
      %v795 = vadd.f32 %v604, %v794
      %v796 = vpop.f32.mrb[0].mxu0
      %v797 = vpop.f32.mrb[0].mxu0
      %798 = vdwg.mxu0
      %799 = vmatprep.subr.bf16.mxu0 %v674
      %800 = vmatpush1.bf16.msra.mxu0 %v671
      %801 = vmatprep.subr.bf16.mxu0 0
      %802 = vmatpush1.bf16.msra.mxu0 0
      %803 = vmatprep.subr.bf16.mxu0 0
      %804 = vmatpush1.bf16.msra.mxu0 0
      %805 = vmatprep.subr.bf16.mxu0 0
      %806 = vmatpush1.bf16.msra.mxu0 0
      %807 = vmatprep.subr.bf16.mxu0 0
      %808 = vmatpush1.bf16.msra.mxu0 0
      %809 = vmatprep.subr.bf16.mxu0 0
      %810 = vmatpush1.bf16.msra.mxu0 0
      %811 = vmatprep.subr.bf16.mxu0 0
      %812 = vmatpush1.bf16.msra.mxu0 0
      %813 = vmatprep.subr.bf16.mxu0 0
      %814 = vmatpush1.bf16.msra.mxu0 0
      %815 = vmatprep.subr.bf16.mxu0 0
      %816 = vmatpush1.bf16.msra.mxu0 0
      %817 = vmatprep.subr.bf16.mxu0 0
      %818 = vmatpush1.bf16.msra.mxu0 0
      %819 = vmatprep.subr.bf16.mxu0 0
      %820 = vmatpush1.bf16.msra.mxu0 0
      %821 = vmatprep.subr.bf16.mxu0 0
      %822 = vmatpush1.bf16.msra.mxu0 0
      %823 = vmatprep.subr.bf16.mxu0 0
      %824 = vmatpush1.bf16.msra.mxu0 0
      %825 = vmatprep.subr.bf16.mxu0 0
      %826 = vmatpush1.bf16.msra.mxu0 0
      %827 = vmatprep.subr.bf16.mxu0 0
      %828 = vmatpush1.bf16.msra.mxu0 0
      %829 = vmatprep.subr.bf16.mxu0 0
      %830 = vmatpush1.bf16.msra.mxu0 0
      %831 = vmatprep.mubr.bf16.mxu0 0
      %832 = vmatmul.mubr.bf16.gmra.mrb[0].mxu0 %v650
      %v833 = vpop.f32.mrb[0].mxu0
      %v834 = vadd.f32 %v643, %v833
      %v835 = vpop.f32.mrb[0].mxu0
      %v836 = vadd.f32 %v645, %v835
      %v837 = vpop.f32.mrb[0].mxu0
      %v838 = vpop.f32.mrb[0].mxu0
      %839 = vdwg.mxu0
      %s840 = scalar_lea.vmem %s1, 4
      %v841 = vld [vmem:[%s840] sm:$0x3]
      %842 = vrot.lane.b32.xlu0 %v411, 126
      %v843 = vpop.permute.xlu0 %842
      %844 = vrot.lane.b32.xlu0 %v412, 126
      %v845 = vpop.permute.xlu0 %844
      %846 = vrot.lane.b32.xlu0 %v413, 126
      %v847 = vpop.permute.xlu0 %846
      %848 = vrot.lane.b32.xlu0 %v414, 126
      %v849 = vpop.permute.xlu0 %848
      %850 = vrot.lane.b32.xlu0 %v415, 126
      %v851 = vpop.permute.xlu0 %850
      %852 = vrot.lane.b32.xlu0 %v416, 126
      %v853 = vpop.permute.xlu0 %852
      %854 = vrot.lane.b32.xlu0 %v417, 126
      %v855 = vpop.permute.xlu0 %854
      %856 = vrot.lane.b32.xlu0 %v418, 126
      %v857 = vpop.permute.xlu0 %856
      %vm858 = vcmask 1031168
      %v859 = vsel %vm858, %v843, %v845
      %v860 = vsel %vm858, %v845, %v847
      %v861 = vsel %vm858, %v847, %v849
      %v862 = vsel %vm858, %v849, %v851
      %v863 = vsel %vm858, %v851, %v853
      %v864 = vsel %vm858, %v853, %v855
      %v865 = vsel %vm858, %v855, %v857
      %v867 = vsel %vm456, %v841, 0
      %v870 = vsel %vm460, %v859, 0
      %v873 = vsel %vm460, %v860, 0
      %v876 = vsel %vm460, %v861, 0
      %v879 = vsel %vm460, %v862, 0
      %v882 = vsel %vm460, %v863, 0
      %v885 = vsel %vm460, %v864, 0
      %v888 = vsel %vm460, %v865, 0
      %v891 = vsel %vm460, %v857, 0
      %893 = vmatprep.subr.bf16.mxu0 %v873
      %894 = vmatpush1.bf16.msra.mxu0 %v870
      %895 = vmatprep.subr.bf16.mxu0 0
      %896 = vmatpush1.bf16.msra.mxu0 0
      %897 = vmatprep.subr.bf16.mxu0 0
      %898 = vmatpush1.bf16.msra.mxu0 0
      %899 = vmatprep.subr.bf16.mxu0 0
      %900 = vmatpush1.bf16.msra.mxu0 0
      %901 = vmatprep.subr.bf16.mxu0 0
      %902 = vmatpush1.bf16.msra.mxu0 0
      %903 = vmatprep.subr.bf16.mxu0 0
      %904 = vmatpush1.bf16.msra.mxu0 0
      %905 = vmatprep.subr.bf16.mxu0 0
      %906 = vmatpush1.bf16.msra.mxu0 0
      %907 = vmatprep.subr.bf16.mxu0 0
      %908 = vmatpush1.bf16.msra.mxu0 0
      %909 = vmatprep.subr.bf16.mxu0 0
      %910 = vmatpush1.bf16.msra.mxu0 0
      %911 = vmatprep.subr.bf16.mxu0 0
      %912 = vmatpush1.bf16.msra.mxu0 0
      %913 = vmatprep.subr.bf16.mxu0 0
      %914 = vmatpush1.bf16.msra.mxu0 0
      %915 = vmatprep.subr.bf16.mxu0 0
      %916 = vmatpush1.bf16.msra.mxu0 0
      %917 = vmatprep.subr.bf16.mxu0 0
      %918 = vmatpush1.bf16.msra.mxu0 0
      %919 = vmatprep.subr.bf16.mxu0 0
      %920 = vmatpush1.bf16.msra.mxu0 0
      %921 = vmatprep.subr.bf16.mxu0 0
      %922 = vmatpush1.bf16.msra.mxu0 0
      %923 = vmatprep.subr.bf16.mxu0 0
      %924 = vmatpush1.bf16.msra.mxu0 0
      %925 = vmatprep.mubr.bf16.mxu0 0
      %926 = vmatmul.mubr.bf16.gmra.mrb[0].mxu0 %v867
      %v927 = vpop.f32.mrb[0].mxu0
      %v928 = vadd.f32 0.0, %v927
      %v929 = vpop.f32.mrb[0].mxu0
      %v930 = vadd.f32 0.0, %v929
      %v931 = vpop.f32.mrb[0].mxu0
      %v932 = vpop.f32.mrb[0].mxu0
      %933 = vdwg.mxu0
      %934 = vmatprep.subr.bf16.mxu0 %v879
      %935 = vmatpush1.bf16.msra.mxu0 %v876
      %936 = vmatprep.subr.bf16.mxu0 0
      %937 = vmatpush1.bf16.msra.mxu0 0
      %938 = vmatprep.subr.bf16.mxu0 0
      %939 = vmatpush1.bf16.msra.mxu0 0
      %940 = vmatprep.subr.bf16.mxu0 0
      %941 = vmatpush1.bf16.msra.mxu0 0
      %942 = vmatprep.subr.bf16.mxu0 0
      %943 = vmatpush1.bf16.msra.mxu0 0
      %944 = vmatprep.subr.bf16.mxu0 0
      %945 = vmatpush1.bf16.msra.mxu0 0
      %946 = vmatprep.subr.bf16.mxu0 0
      %947 = vmatpush1.bf16.msra.mxu0 0
      %948 = vmatprep.subr.bf16.mxu0 0
      %949 = vmatpush1.bf16.msra.mxu0 0
      %950 = vmatprep.subr.bf16.mxu0 0
      %951 = vmatpush1.bf16.msra.mxu0 0
      %952 = vmatprep.subr.bf16.mxu0 0
      %953 = vmatpush1.bf16.msra.mxu0 0
      %954 = vmatprep.subr.bf16.mxu0 0
      %955 = vmatpush1.bf16.msra.mxu0 0
      %956 = vmatprep.subr.bf16.mxu0 0
      %957 = vmatpush1.bf16.msra.mxu0 0
      %958 = vmatprep.subr.bf16.mxu0 0
      %959 = vmatpush1.bf16.msra.mxu0 0
      %960 = vmatprep.subr.bf16.mxu0 0
      %961 = vmatpush1.bf16.msra.mxu0 0
      %962 = vmatprep.subr.bf16.mxu0 0
      %963 = vmatpush1.bf16.msra.mxu0 0
      %964 = vmatprep.subr.bf16.mxu0 0
      %965 = vmatpush1.bf16.msra.mxu0 0
      %966 = vmatprep.mubr.bf16.mxu0 0
      %967 = vmatmul.mubr.bf16.gmra.mrb[0].mxu0 %v867
      %v968 = vpop.f32.mrb[0].mxu0
      %v969 = vadd.f32 0.0, %v968
      %v970 = vpop.f32.mrb[0].mxu0
      %v971 = vadd.f32 0.0, %v970
      %v972 = vpop.f32.mrb[0].mxu0
      %v973 = vpop.f32.mrb[0].mxu0
      %974 = vdwg.mxu0
      %975 = vmatprep.subr.bf16.mxu0 %v885
      %976 = vmatpush1.bf16.msra.mxu0 %v882
      %977 = vmatprep.subr.bf16.mxu0 0
      %978 = vmatpush1.bf16.msra.mxu0 0
      %979 = vmatprep.subr.bf16.mxu0 0
      %980 = vmatpush1.bf16.msra.mxu0 0
      %981 = vmatprep.subr.bf16.mxu0 0
      %982 = vmatpush1.bf16.msra.mxu0 0
      %983 = vmatprep.subr.bf16.mxu0 0
      %984 = vmatpush1.bf16.msra.mxu0 0
      %985 = vmatprep.subr.bf16.mxu0 0
      %986 = vmatpush1.bf16.msra.mxu0 0
      %987 = vmatprep.subr.bf16.mxu0 0
      %988 = vmatpush1.bf16.msra.mxu0 0
      %989 = vmatprep.subr.bf16.mxu0 0
      %990 = vmatpush1.bf16.msra.mxu0 0
      %991 = vmatprep.subr.bf16.mxu0 0
      %992 = vmatpush1.bf16.msra.mxu0 0
      %993 = vmatprep.subr.bf16.mxu0 0
      %994 = vmatpush1.bf16.msra.mxu0 0
      %995 = vmatprep.subr.bf16.mxu0 0
      %996 = vmatpush1.bf16.msra.mxu0 0
      %997 = vmatprep.subr.bf16.mxu0 0
      %998 = vmatpush1.bf16.msra.mxu0 0
      %999 = vmatprep.subr.bf16.mxu0 0
      %1000 = vmatpush1.bf16.msra.mxu0 0
      %1001 = vmatprep.subr.bf16.mxu0 0
      %1002 = vmatpush1.bf16.msra.mxu0 0
      %1003 = vmatprep.subr.bf16.mxu0 0
      %1004 = vmatpush1.bf16.msra.mxu0 0
      %1005 = vmatprep.subr.bf16.mxu0 0
      %1006 = vmatpush1.bf16.msra.mxu0 0
      %1007 = vmatprep.mubr.bf16.mxu0 0
      %1008 = vmatmul.mubr.bf16.gmra.mrb[0].mxu0 %v867
      %v1009 = vpop.f32.mrb[0].mxu0
      %v1010 = vadd.f32 0.0, %v1009
      %v1011 = vpop.f32.mrb[0].mxu0
      %v1012 = vadd.f32 0.0, %v1011
      %v1013 = vpop.f32.mrb[0].mxu0
      %v1014 = vpop.f32.mrb[0].mxu0
      %1015 = vdwg.mxu0
      %1016 = vmatprep.subr.bf16.mxu0 %v891
      %1017 = vmatpush1.bf16.msra.mxu0 %v888
      %1018 = vmatprep.subr.bf16.mxu0 0
      %1019 = vmatpush1.bf16.msra.mxu0 0
      %1020 = vmatprep.subr.bf16.mxu0 0
      %1021 = vmatpush1.bf16.msra.mxu0 0
      %1022 = vmatprep.subr.bf16.mxu0 0
      %1023 = vmatpush1.bf16.msra.mxu0 0
      %1024 = vmatprep.subr.bf16.mxu0 0
      %1025 = vmatpush1.bf16.msra.mxu0 0
      %1026 = vmatprep.subr.bf16.mxu0 0
      %1027 = vmatpush1.bf16.msra.mxu0 0
      %1028 = vmatprep.subr.bf16.mxu0 0
      %1029 = vmatpush1.bf16.msra.mxu0 0
      %1030 = vmatprep.subr.bf16.mxu0 0
      %1031 = vmatpush1.bf16.msra.mxu0 0
      %1032 = vmatprep.subr.bf16.mxu0 0
      %1033 = vmatpush1.bf16.msra.mxu0 0
      %1034 = vmatprep.subr.bf16.mxu0 0
      %1035 = vmatpush1.bf16.msra.mxu0 0
      %1036 = vmatprep.subr.bf16.mxu0 0
      %1037 = vmatpush1.bf16.msra.mxu0 0
      %1038 = vmatprep.subr.bf16.mxu0 0
      %1039 = vmatpush1.bf16.msra.mxu0 0
      %1040 = vmatprep.subr.bf16.mxu0 0
      %1041 = vmatpush1.bf16.msra.mxu0 0
      %1042 = vmatprep.subr.bf16.mxu0 0
      %1043 = vmatpush1.bf16.msra.mxu0 0
      %1044 = vmatprep.subr.bf16.mxu0 0
      %1045 = vmatpush1.bf16.msra.mxu0 0
      %1046 = vmatprep.subr.bf16.mxu0 0
      %1047 = vmatpush1.bf16.msra.mxu0 0
      %1048 = vmatprep.mubr.bf16.mxu0 0
      %1049 = vmatmul.mubr.bf16.gmra.mrb[0].mxu0 %v867
      %v1050 = vpop.f32.mrb[0].mxu0
      %v1051 = vadd.f32 0.0, %v1050
      %v1052 = vpop.f32.mrb[0].mxu0
      %v1053 = vadd.f32 0.0, %v1052
      %v1054 = vpop.f32.mrb[0].mxu0
      %v1055 = vpop.f32.mrb[0].mxu0
      %1056 = vdwg.mxu0
      %v1057 = vadd.f32 %v711, %v928
      %v1058 = vadd.f32 %v713, %v930
      %v1059 = vadd.f32 %v752, %v969
      %v1060 = vadd.f32 %v754, %v971
      %v1061 = vadd.f32 %v793, %v1010
      %v1062 = vadd.f32 %v795, %v1012
      %v1063 = vadd.f32 %v834, %v1051
      %v1064 = vadd.f32 %v836, %v1053
      %s1065 = scalar_lea.vmem %s1, 6
      %v1066 = vld [vmem:[%s1065] sm:$0x3]
      %1067 = vrot.lane.b32.xlu0 %v411, 118
      %v1068 = vpop.permute.xlu0 %1067
      %1069 = vrot.lane.b32.xlu0 %v412, 118
      %v1070 = vpop.permute.xlu0 %1069
      %1071 = vrot.lane.b32.xlu0 %v413, 118
      %v1072 = vpop.permute.xlu0 %1071
      %1073 = vrot.lane.b32.xlu0 %v414, 118
      %v1074 = vpop.permute.xlu0 %1073
      %1075 = vrot.lane.b32.xlu0 %v415, 118
      %v1076 = vpop.permute.xlu0 %1075
      %1077 = vrot.lane.b32.xlu0 %v416, 118
      %v1078 = vpop.permute.xlu0 %1077
      %1079 = vrot.lane.b32.xlu0 %v417, 118
      %v1080 = vpop.permute.xlu0 %1079
      %1081 = vrot.lane.b32.xlu0 %v418, 118
      %v1082 = vpop.permute.xlu0 %1081
      %vm1083 = vcmask 965632
      %v1084 = vsel %vm1083, %v1068, %v1070
      %v1085 = vsel %vm1083, %v1070, %v1072
      %v1086 = vsel %vm1083, %v1072, %v1074
      %v1087 = vsel %vm1083, %v1074, %v1076
      %v1088 = vsel %vm1083, %v1076, %v1078
      %v1089 = vsel %vm1083, %v1078, %v1080
      %v1090 = vsel %vm1083, %v1080, %v1082
      %v1092 = vsel %vm456, %v1066, 0
      %v1095 = vsel %vm460, %v1084, 0
      %v1098 = vsel %vm460, %v1085, 0
      %v1101 = vsel %vm460, %v1086, 0
      %v1104 = vsel %vm460, %v1087, 0
      %v1107 = vsel %vm460, %v1088, 0
      %v1110 = vsel %vm460, %v1089, 0
      %v1113 = vsel %vm460, %v1090, 0
      %v1116 = vsel %vm460, %v1082, 0
      %1118 = vmatprep.subr.bf16.mxu0 %v1098
      %1119 = vmatpush1.bf16.msra.mxu0 %v1095
      %1120 = vmatprep.subr.bf16.mxu0 0
      %1121 = vmatpush1.bf16.msra.mxu0 0
      %1122 = vmatprep.subr.bf16.mxu0 0
      %1123 = vmatpush1.bf16.msra.mxu0 0
      %1124 = vmatprep.subr.bf16.mxu0 0
      %1125 = vmatpush1.bf16.msra.mxu0 0
      %1126 = vmatprep.subr.bf16.mxu0 0
      %1127 = vmatpush1.bf16.msra.mxu0 0
      %1128 = vmatprep.subr.bf16.mxu0 0
      %1129 = vmatpush1.bf16.msra.mxu0 0
      %1130 = vmatprep.subr.bf16.mxu0 0
      %1131 = vmatpush1.bf16.msra.mxu0 0
      %1132 = vmatprep.subr.bf16.mxu0 0
      %1133 = vmatpush1.bf16.msra.mxu0 0
      %1134 = vmatprep.subr.bf16.mxu0 0
      %1135 = vmatpush1.bf16.msra.mxu0 0
      %1136 = vmatprep.subr.bf16.mxu0 0
      %1137 = vmatpush1.bf16.msra.mxu0 0
      %1138 = vmatprep.subr.bf16.mxu0 0
      %1139 = vmatpush1.bf16.msra.mxu0 0
      %1140 = vmatprep.subr.bf16.mxu0 0
      %1141 = vmatpush1.bf16.msra.mxu0 0
      %1142 = vmatprep.subr.bf16.mxu0 0
      %1143 = vmatpush1.bf16.msra.mxu0 0
      %1144 = vmatprep.subr.bf16.mxu0 0
      %1145 = vmatpush1.bf16.msra.mxu0 0
      %1146 = vmatprep.subr.bf16.mxu0 0
      %1147 = vmatpush1.bf16.msra.mxu0 0
      %1148 = vmatprep.subr.bf16.mxu0 0
      %1149 = vmatpush1.bf16.msra.mxu0 0
      %1150 = vmatprep.mubr.bf16.mxu0 0
      %1151 = vmatmul.mubr.bf16.gmra.mrb[0].mxu0 %v1092
      %v1152 = vpop.f32.mrb[0].mxu0
      %v1153 = vadd.f32 0.0, %v1152
      %v1154 = vpop.f32.mrb[0].mxu0
      %v1155 = vadd.f32 0.0, %v1154
      %v1156 = vpop.f32.mrb[0].mxu0
      %v1157 = vpop.f32.mrb[0].mxu0
      %1158 = vdwg.mxu0
      %1159 = vmatprep.subr.bf16.mxu0 %v1104
      %1160 = vmatpush1.bf16.msra.mxu0 %v1101
      %1161 = vmatprep.subr.bf16.mxu0 0
      %1162 = vmatpush1.bf16.msra.mxu0 0
      %1163 = vmatprep.subr.bf16.mxu0 0
      %1164 = vmatpush1.bf16.msra.mxu0 0
      %1165 = vmatprep.subr.bf16.mxu0 0
      %1166 = vmatpush1.bf16.msra.mxu0 0
      %1167 = vmatprep.subr.bf16.mxu0 0
      %1168 = vmatpush1.bf16.msra.mxu0 0
      %1169 = vmatprep.subr.bf16.mxu0 0
      %1170 = vmatpush1.bf16.msra.mxu0 0
      %1171 = vmatprep.subr.bf16.mxu0 0
      %1172 = vmatpush1.bf16.msra.mxu0 0
      %1173 = vmatprep.subr.bf16.mxu0 0
      %1174 = vmatpush1.bf16.msra.mxu0 0
      %1175 = vmatprep.subr.bf16.mxu0 0
      %1176 = vmatpush1.bf16.msra.mxu0 0
      %1177 = vmatprep.subr.bf16.mxu0 0
      %1178 = vmatpush1.bf16.msra.mxu0 0
      %1179 = vmatprep.subr.bf16.mxu0 0
      %1180 = vmatpush1.bf16.msra.mxu0 0
      %1181 = vmatprep.subr.bf16.mxu0 0
      %1182 = vmatpush1.bf16.msra.mxu0 0
      %1183 = vmatprep.subr.bf16.mxu0 0
      %1184 = vmatpush1.bf16.msra.mxu0 0
      %1185 = vmatprep.subr.bf16.mxu0 0
      %1186 = vmatpush1.bf16.msra.mxu0 0
      %1187 = vmatprep.subr.bf16.mxu0 0
      %1188 = vmatpush1.bf16.msra.mxu0 0
      %1189 = vmatprep.subr.bf16.mxu0 0
      %1190 = vmatpush1.bf16.msra.mxu0 0
      %1191 = vmatprep.mubr.bf16.mxu0 0
      %1192 = vmatmul.mubr.bf16.gmra.mrb[0].mxu0 %v1092
      %v1193 = vpop.f32.mrb[0].mxu0
      %v1194 = vadd.f32 0.0, %v1193
      %v1195 = vpop.f32.mrb[0].mxu0
      %v1196 = vadd.f32 0.0, %v1195
      %v1197 = vpop.f32.mrb[0].mxu0
      %v1198 = vpop.f32.mrb[0].mxu0
      %1199 = vdwg.mxu0
      %1200 = vmatprep.subr.bf16.mxu0 %v1110
      %1201 = vmatpush1.bf16.msra.mxu0 %v1107
      %1202 = vmatprep.subr.bf16.mxu0 0
      %1203 = vmatpush1.bf16.msra.mxu0 0
      %1204 = vmatprep.subr.bf16.mxu0 0
      %1205 = vmatpush1.bf16.msra.mxu0 0
      %1206 = vmatprep.subr.bf16.mxu0 0
      %1207 = vmatpush1.bf16.msra.mxu0 0
      %1208 = vmatprep.subr.bf16.mxu0 0
      %1209 = vmatpush1.bf16.msra.mxu0 0
      %1210 = vmatprep.subr.bf16.mxu0 0
      %1211 = vmatpush1.bf16.msra.mxu0 0
      %1212 = vmatprep.subr.bf16.mxu0 0
      %1213 = vmatpush1.bf16.msra.mxu0 0
      %1214 = vmatprep.subr.bf16.mxu0 0
      %1215 = vmatpush1.bf16.msra.mxu0 0
      %1216 = vmatprep.subr.bf16.mxu0 0
      %1217 = vmatpush1.bf16.msra.mxu0 0
      %1218 = vmatprep.subr.bf16.mxu0 0
      %1219 = vmatpush1.bf16.msra.mxu0 0
      %1220 = vmatprep.subr.bf16.mxu0 0
      %1221 = vmatpush1.bf16.msra.mxu0 0
      %1222 = vmatprep.subr.bf16.mxu0 0
      %1223 = vmatpush1.bf16.msra.mxu0 0
      %1224 = vmatprep.subr.bf16.mxu0 0
      %1225 = vmatpush1.bf16.msra.mxu0 0
      %1226 = vmatprep.subr.bf16.mxu0 0
      %1227 = vmatpush1.bf16.msra.mxu0 0
      %1228 = vmatprep.subr.bf16.mxu0 0
      %1229 = vmatpush1.bf16.msra.mxu0 0
      %1230 = vmatprep.subr.bf16.mxu0 0
      %1231 = vmatpush1.bf16.msra.mxu0 0
      %1232 = vmatprep.mubr.bf16.mxu0 0
      %1233 = vmatmul.mubr.bf16.gmra.mrb[0].mxu0 %v1092
      %v1234 = vpop.f32.mrb[0].mxu0
      %v1235 = vadd.f32 0.0, %v1234
      %v1236 = vpop.f32.mrb[0].mxu0
      %v1237 = vadd.f32 0.0, %v1236
      %v1238 = vpop.f32.mrb[0].mxu0
      %v1239 = vpop.f32.mrb[0].mxu0
      %1240 = vdwg.mxu0
      %1241 = vmatprep.subr.bf16.mxu0 %v1116
      %1242 = vmatpush1.bf16.msra.mxu0 %v1113
      %1243 = vmatprep.subr.bf16.mxu0 0
      %1244 = vmatpush1.bf16.msra.mxu0 0
      %1245 = vmatprep.subr.bf16.mxu0 0
      %1246 = vmatpush1.bf16.msra.mxu0 0
      %1247 = vmatprep.subr.bf16.mxu0 0
      %1248 = vmatpush1.bf16.msra.mxu0 0
      %1249 = vmatprep.subr.bf16.mxu0 0
      %1250 = vmatpush1.bf16.msra.mxu0 0
      %1251 = vmatprep.subr.bf16.mxu0 0
      %1252 = vmatpush1.bf16.msra.mxu0 0
      %1253 = vmatprep.subr.bf16.mxu0 0
      %1254 = vmatpush1.bf16.msra.mxu0 0
      %1255 = vmatprep.subr.bf16.mxu0 0
      %1256 = vmatpush1.bf16.msra.mxu0 0
      %1257 = vmatprep.subr.bf16.mxu0 0
      %1258 = vmatpush1.bf16.msra.mxu0 0
      %1259 = vmatprep.subr.bf16.mxu0 0
      %1260 = vmatpush1.bf16.msra.mxu0 0
      %1261 = vmatprep.subr.bf16.mxu0 0
      %1262 = vmatpush1.bf16.msra.mxu0 0
      %1263 = vmatprep.subr.bf16.mxu0 0
      %1264 = vmatpush1.bf16.msra.mxu0 0
      %1265 = vmatprep.subr.bf16.mxu0 0
      %1266 = vmatpush1.bf16.msra.mxu0 0
      %1267 = vmatprep.subr.bf16.mxu0 0
      %1268 = vmatpush1.bf16.msra.mxu0 0
      %1269 = vmatprep.subr.bf16.mxu0 0
      %1270 = vmatpush1.bf16.msra.mxu0 0
      %1271 = vmatprep.subr.bf16.mxu0 0
      %1272 = vmatpush1.bf16.msra.mxu0 0
      %1273 = vmatprep.mubr.bf16.mxu0 0
      %1274 = vmatmul.mubr.bf16.gmra.mrb[0].mxu0 %v1092
      %v1275 = vpop.f32.mrb[0].mxu0
      %v1276 = vadd.f32 0.0, %v1275
      %v1277 = vpop.f32.mrb[0].mxu0
      %v1278 = vadd.f32 0.0, %v1277
      %v1279 = vpop.f32.mrb[0].mxu0
      %v1280 = vpop.f32.mrb[0].mxu0
      %1281 = vdwg.mxu0
      %v1282 = vadd.f32 %v1057, %v1153
      %v1283 = vadd.f32 %v1058, %v1155
      %v1284 = vadd.f32 %v1059, %v1194
      %v1285 = vadd.f32 %v1060, %v1196
      %v1286 = vadd.f32 %v1061, %v1235
      %v1287 = vadd.f32 %v1062, %v1237
      %v1288 = vadd.f32 %v1063, %v1276
      %v1289 = vadd.f32 %v1064, %v1278
      %s1290 = scalar_lea.vmem %s1, 8
      %v1291 = vld [vmem:[%s1290] sm:$0x3]
      %1292 = vrot.lane.b32.xlu0 %v411, 117
      %v1293 = vpop.permute.xlu0 %1292
      %1294 = vrot.lane.b32.xlu0 %v412, 117
      %v1295 = vpop.permute.xlu0 %1294
      %1296 = vrot.lane.b32.xlu0 %v413, 117
      %v1297 = vpop.permute.xlu0 %1296
      %1298 = vrot.lane.b32.xlu0 %v414, 117
      %v1299 = vpop.permute.xlu0 %1298
      %1300 = vrot.lane.b32.xlu0 %v415, 117
      %v1301 = vpop.permute.xlu0 %1300
      %1302 = vrot.lane.b32.xlu0 %v416, 117
      %v1303 = vpop.permute.xlu0 %1302
      %1304 = vrot.lane.b32.xlu0 %v417, 117
      %v1305 = vpop.permute.xlu0 %1304
      %1306 = vrot.lane.b32.xlu0 %v418, 117
      %v1307 = vpop.permute.xlu0 %1306
      %vm1308 = vcmask 957440
      %v1309 = vsel %vm1308, %v1293, %v1295
      %v1310 = vsel %vm1308, %v1295, %v1297
      %v1311 = vsel %vm1308, %v1297, %v1299
      %v1312 = vsel %vm1308, %v1299, %v1301
      %v1313 = vsel %vm1308, %v1301, %v1303
      %v1314 = vsel %vm1308, %v1303, %v1305
      %v1315 = vsel %vm1308, %v1305, %v1307
      %v1317 = vsel %vm456, %v1291, 0
      %v1320 = vsel %vm460, %v1309, 0
      %v1323 = vsel %vm460, %v1310, 0
      %v1326 = vsel %vm460, %v1311, 0
      %v1329 = vsel %vm460, %v1312, 0
      %v1332 = vsel %vm460, %v1313, 0
      %v1335 = vsel %vm460, %v1314, 0
      %v1338 = vsel %vm460, %v1315, 0
      %v1341 = vsel %vm460, %v1307, 0
      %1343 = vmatprep.subr.bf16.mxu0 %v1323
      %1344 = vmatpush1.bf16.msra.mxu0 %v1320
      %1345 = vmatprep.subr.bf16.mxu0 0
      %1346 = vmatpush1.bf16.msra.mxu0 0
      %1347 = vmatprep.subr.bf16.mxu0 0
      %1348 = vmatpush1.bf16.msra.mxu0 0
      %1349 = vmatprep.subr.bf16.mxu0 0
      %1350 = vmatpush1.bf16.msra.mxu0 0
      %1351 = vmatprep.subr.bf16.mxu0 0
      %1352 = vmatpush1.bf16.msra.mxu0 0
      %1353 = vmatprep.subr.bf16.mxu0 0
      %1354 = vmatpush1.bf16.msra.mxu0 0
      %1355 = vmatprep.subr.bf16.mxu0 0
      %1356 = vmatpush1.bf16.msra.mxu0 0
      %1357 = vmatprep.subr.bf16.mxu0 0
      %1358 = vmatpush1.bf16.msra.mxu0 0
      %1359 = vmatprep.subr.bf16.mxu0 0
      %1360 = vmatpush1.bf16.msra.mxu0 0
      %1361 = vmatprep.subr.bf16.mxu0 0
      %1362 = vmatpush1.bf16.msra.mxu0 0
      %1363 = vmatprep.subr.bf16.mxu0 0
      %1364 = vmatpush1.bf16.msra.mxu0 0
      %1365 = vmatprep.subr.bf16.mxu0 0
      %1366 = vmatpush1.bf16.msra.mxu0 0
      %1367 = vmatprep.subr.bf16.mxu0 0
      %1368 = vmatpush1.bf16.msra.mxu0 0
      %1369 = vmatprep.subr.bf16.mxu0 0
      %1370 = vmatpush1.bf16.msra.mxu0 0
      %1371 = vmatprep.subr.bf16.mxu0 0
      %1372 = vmatpush1.bf16.msra.mxu0 0
      %1373 = vmatprep.subr.bf16.mxu0 0
      %1374 = vmatpush1.bf16.msra.mxu0 0
      %1375 = vmatprep.mubr.bf16.mxu0 0
      %1376 = vmatmul.mubr.bf16.gmra.mrb[0].mxu0 %v1317
      %v1377 = vpop.f32.mrb[0].mxu0
      %v1378 = vadd.f32 0.0, %v1377
      %v1379 = vpop.f32.mrb[0].mxu0
      %v1380 = vadd.f32 0.0, %v1379
      %v1381 = vpop.f32.mrb[0].mxu0
      %v1382 = vpop.f32.mrb[0].mxu0
      %1383 = vdwg.mxu0
      %1384 = vmatprep.subr.bf16.mxu0 %v1329
      %1385 = vmatpush1.bf16.msra.mxu0 %v1326
      %1386 = vmatprep.subr.bf16.mxu0 0
      %1387 = vmatpush1.bf16.msra.mxu0 0
      %1388 = vmatprep.subr.bf16.mxu0 0
      %1389 = vmatpush1.bf16.msra.mxu0 0
      %1390 = vmatprep.subr.bf16.mxu0 0
      %1391 = vmatpush1.bf16.msra.mxu0 0
      %1392 = vmatprep.subr.bf16.mxu0 0
      %1393 = vmatpush1.bf16.msra.mxu0 0
      %1394 = vmatprep.subr.bf16.mxu0 0
      %1395 = vmatpush1.bf16.msra.mxu0 0
      %1396 = vmatprep.subr.bf16.mxu0 0
      %1397 = vmatpush1.bf16.msra.mxu0 0
      %1398 = vmatprep.subr.bf16.mxu0 0
      %1399 = vmatpush1.bf16.msra.mxu0 0
      %1400 = vmatprep.subr.bf16.mxu0 0
      %1401 = vmatpush1.bf16.msra.mxu0 0
      %1402 = vmatprep.subr.bf16.mxu0 0
      %1403 = vmatpush1.bf16.msra.mxu0 0
      %1404 = vmatprep.subr.bf16.mxu0 0
      %1405 = vmatpush1.bf16.msra.mxu0 0
      %1406 = vmatprep.subr.bf16.mxu0 0
      %1407 = vmatpush1.bf16.msra.mxu0 0
      %1408 = vmatprep.subr.bf16.mxu0 0
      %1409 = vmatpush1.bf16.msra.mxu0 0
      %1410 = vmatprep.subr.bf16.mxu0 0
      %1411 = vmatpush1.bf16.msra.mxu0 0
      %1412 = vmatprep.subr.bf16.mxu0 0
      %1413 = vmatpush1.bf16.msra.mxu0 0
      %1414 = vmatprep.subr.bf16.mxu0 0
      %1415 = vmatpush1.bf16.msra.mxu0 0
      %1416 = vmatprep.mubr.bf16.mxu0 0
      %1417 = vmatmul.mubr.bf16.gmra.mrb[0].mxu0 %v1317
      %v1418 = vpop.f32.mrb[0].mxu0
      %v1419 = vadd.f32 0.0, %v1418
      %v1420 = vpop.f32.mrb[0].mxu0
      %v1421 = vadd.f32 0.0, %v1420
      %v1422 = vpop.f32.mrb[0].mxu0
      %v1423 = vpop.f32.mrb[0].mxu0
      %1424 = vdwg.mxu0
      %1425 = vmatprep.subr.bf16.mxu0 %v1335
      %1426 = vmatpush1.bf16.msra.mxu0 %v1332
      %1427 = vmatprep.subr.bf16.mxu0 0
      %1428 = vmatpush1.bf16.msra.mxu0 0
      %1429 = vmatprep.subr.bf16.mxu0 0
      %1430 = vmatpush1.bf16.msra.mxu0 0
      %1431 = vmatprep.subr.bf16.mxu0 0
      %1432 = vmatpush1.bf16.msra.mxu0 0
      %1433 = vmatprep.subr.bf16.mxu0 0
      %1434 = vmatpush1.bf16.msra.mxu0 0
      %1435 = vmatprep.subr.bf16.mxu0 0
      %1436 = vmatpush1.bf16.msra.mxu0 0
      %1437 = vmatprep.subr.bf16.mxu0 0
      %1438 = vmatpush1.bf16.msra.mxu0 0
      %1439 = vmatprep.subr.bf16.mxu0 0
      %1440 = vmatpush1.bf16.msra.mxu0 0
      %1441 = vmatprep.subr.bf16.mxu0 0
      %1442 = vmatpush1.bf16.msra.mxu0 0
      %1443 = vmatprep.subr.bf16.mxu0 0
      %1444 = vmatpush1.bf16.msra.mxu0 0
      %1445 = vmatprep.subr.bf16.mxu0 0
      %1446 = vmatpush1.bf16.msra.mxu0 0
      %1447 = vmatprep.subr.bf16.mxu0 0
      %1448 = vmatpush1.bf16.msra.mxu0 0
      %1449 = vmatprep.subr.bf16.mxu0 0
      %1450 = vmatpush1.bf16.msra.mxu0 0
      %1451 = vmatprep.subr.bf16.mxu0 0
      %1452 = vmatpush1.bf16.msra.mxu0 0
      %1453 = vmatprep.subr.bf16.mxu0 0
      %1454 = vmatpush1.bf16.msra.mxu0 0
      %1455 = vmatprep.subr.bf16.mxu0 0
      %1456 = vmatpush1.bf16.msra.mxu0 0
      %1457 = vmatprep.mubr.bf16.mxu0 0
      %1458 = vmatmul.mubr.bf16.gmra.mrb[0].mxu0 %v1317
      %v1459 = vpop.f32.mrb[0].mxu0
      %v1460 = vadd.f32 0.0, %v1459
      %v1461 = vpop.f32.mrb[0].mxu0
      %v1462 = vadd.f32 0.0, %v1461
      %v1463 = vpop.f32.mrb[0].mxu0
      %v1464 = vpop.f32.mrb[0].mxu0
      %1465 = vdwg.mxu0
      %1466 = vmatprep.subr.bf16.mxu0 %v1341
      %1467 = vmatpush1.bf16.msra.mxu0 %v1338
      %1468 = vmatprep.subr.bf16.mxu0 0
      %1469 = vmatpush1.bf16.msra.mxu0 0
      %1470 = vmatprep.subr.bf16.mxu0 0
      %1471 = vmatpush1.bf16.msra.mxu0 0
      %1472 = vmatprep.subr.bf16.mxu0 0
      %1473 = vmatpush1.bf16.msra.mxu0 0
      %1474 = vmatprep.subr.bf16.mxu0 0
      %1475 = vmatpush1.bf16.msra.mxu0 0
      %1476 = vmatprep.subr.bf16.mxu0 0
      %1477 = vmatpush1.bf16.msra.mxu0 0
      %1478 = vmatprep.subr.bf16.mxu0 0
      %1479 = vmatpush1.bf16.msra.mxu0 0
      %1480 = vmatprep.subr.bf16.mxu0 0
      %1481 = vmatpush1.bf16.msra.mxu0 0
      %1482 = vmatprep.subr.bf16.mxu0 0
      %1483 = vmatpush1.bf16.msra.mxu0 0
      %1484 = vmatprep.subr.bf16.mxu0 0
      %1485 = vmatpush1.bf16.msra.mxu0 0
      %1486 = vmatprep.subr.bf16.mxu0 0
      %1487 = vmatpush1.bf16.msra.mxu0 0
      %1488 = vmatprep.subr.bf16.mxu0 0
      %1489 = vmatpush1.bf16.msra.mxu0 0
      %1490 = vmatprep.subr.bf16.mxu0 0
      %1491 = vmatpush1.bf16.msra.mxu0 0
      %1492 = vmatprep.subr.bf16.mxu0 0
      %1493 = vmatpush1.bf16.msra.mxu0 0
      %1494 = vmatprep.subr.bf16.mxu0 0
      %1495 = vmatpush1.bf16.msra.mxu0 0
      %1496 = vmatprep.subr.bf16.mxu0 0
      %1497 = vmatpush1.bf16.msra.mxu0 0
      %1498 = vmatprep.mubr.bf16.mxu0 0
      %1499 = vmatmul.mubr.bf16.gmra.mrb[0].mxu0 %v1317
      %v1500 = vpop.f32.mrb[0].mxu0
      %v1501 = vadd.f32 0.0, %v1500
      %v1502 = vpop.f32.mrb[0].mxu0
      %v1503 = vadd.f32 0.0, %v1502
      %v1504 = vpop.f32.mrb[0].mxu0
      %v1505 = vpop.f32.mrb[0].mxu0
      %1506 = vdwg.mxu0
      %v1507 = vadd.f32 %v1282, %v1378
      %v1508 = vadd.f32 %v1283, %v1380
      %v1509 = vadd.f32 %v1284, %v1419
      %v1510 = vadd.f32 %v1285, %v1421
      %v1511 = vadd.f32 %v1286, %v1460
      %v1512 = vadd.f32 %v1287, %v1462
      %v1513 = vadd.f32 %v1288, %v1501
      %v1514 = vadd.f32 %v1289, %v1503
      %s1515 = scalar_lea.vmem %s1, 10
      %v1516 = vld [vmem:[%s1515] sm:$0x3]
      %1517 = vrot.lane.b32.xlu0 %v411, 116
      %v1518 = vpop.permute.xlu0 %1517
      %1519 = vrot.lane.b32.xlu0 %v412, 116
      %v1520 = vpop.permute.xlu0 %1519
      %1521 = vrot.lane.b32.xlu0 %v413, 116
      %v1522 = vpop.permute.xlu0 %1521
      %1523 = vrot.lane.b32.xlu0 %v414, 116
      %v1524 = vpop.permute.xlu0 %1523
      %1525 = vrot.lane.b32.xlu0 %v415, 116
      %v1526 = vpop.permute.xlu0 %1525
      %1527 = vrot.lane.b32.xlu0 %v416, 116
      %v1528 = vpop.permute.xlu0 %1527
      %1529 = vrot.lane.b32.xlu0 %v417, 116
      %v1530 = vpop.permute.xlu0 %1529
      %1531 = vrot.lane.b32.xlu0 %v418, 116
      %v1532 = vpop.permute.xlu0 %1531
      %vm1533 = vcmask 949248
      %v1534 = vsel %vm1533, %v1518, %v1520
      %v1535 = vsel %vm1533, %v1520, %v1522
      %v1536 = vsel %vm1533, %v1522, %v1524
      %v1537 = vsel %vm1533, %v1524, %v1526
      %v1538 = vsel %vm1533, %v1526, %v1528
      %v1539 = vsel %vm1533, %v1528, %v1530
      %v1540 = vsel %vm1533, %v1530, %v1532
      %v1542 = vsel %vm456, %v1516, 0
      %v1545 = vsel %vm460, %v1534, 0
      %v1548 = vsel %vm460, %v1535, 0
      %v1551 = vsel %vm460, %v1536, 0
      %v1554 = vsel %vm460, %v1537, 0
      %v1557 = vsel %vm460, %v1538, 0
      %v1560 = vsel %vm460, %v1539, 0
      %v1563 = vsel %vm460, %v1540, 0
      %v1566 = vsel %vm460, %v1532, 0
      %1568 = vmatprep.subr.bf16.mxu0 %v1548
      %1569 = vmatpush1.bf16.msra.mxu0 %v1545
      %1570 = vmatprep.subr.bf16.mxu0 0
      %1571 = vmatpush1.bf16.msra.mxu0 0
      %1572 = vmatprep.subr.bf16.mxu0 0
      %1573 = vmatpush1.bf16.msra.mxu0 0
      %1574 = vmatprep.subr.bf16.mxu0 0
      %1575 = vmatpush1.bf16.msra.mxu0 0
      %1576 = vmatprep.subr.bf16.mxu0 0
      %1577 = vmatpush1.bf16.msra.mxu0 0
      %1578 = vmatprep.subr.bf16.mxu0 0
      %1579 = vmatpush1.bf16.msra.mxu0 0
      %1580 = vmatprep.subr.bf16.mxu0 0
      %1581 = vmatpush1.bf16.msra.mxu0 0
      %1582 = vmatprep.subr.bf16.mxu0 0
      %1583 = vmatpush1.bf16.msra.mxu0 0
      %1584 = vmatprep.subr.bf16.mxu0 0
      %1585 = vmatpush1.bf16.msra.mxu0 0
      %1586 = vmatprep.subr.bf16.mxu0 0
      %1587 = vmatpush1.bf16.msra.mxu0 0
      %1588 = vmatprep.subr.bf16.mxu0 0
      %1589 = vmatpush1.bf16.msra.mxu0 0
      %1590 = vmatprep.subr.bf16.mxu0 0
      %1591 = vmatpush1.bf16.msra.mxu0 0
      %1592 = vmatprep.subr.bf16.mxu0 0
      %1593 = vmatpush1.bf16.msra.mxu0 0
      %1594 = vmatprep.subr.bf16.mxu0 0
      %1595 = vmatpush1.bf16.msra.mxu0 0
      %1596 = vmatprep.subr.bf16.mxu0 0
      %1597 = vmatpush1.bf16.msra.mxu0 0
      %1598 = vmatprep.subr.bf16.mxu0 0
      %1599 = vmatpush1.bf16.msra.mxu0 0
      %1600 = vmatprep.mubr.bf16.mxu0 0
      %1601 = vmatmul.mubr.bf16.gmra.mrb[0].mxu0 %v1542
      %v1602 = vpop.f32.mrb[0].mxu0
      %v1603 = vadd.f32 0.0, %v1602
      %v1604 = vpop.f32.mrb[0].mxu0
      %v1605 = vadd.f32 0.0, %v1604
      %v1606 = vpop.f32.mrb[0].mxu0
      %v1607 = vpop.f32.mrb[0].mxu0
      %1608 = vdwg.mxu0
      %1609 = vmatprep.subr.bf16.mxu0 %v1554
      %1610 = vmatpush1.bf16.msra.mxu0 %v1551
      %1611 = vmatprep.subr.bf16.mxu0 0
      %1612 = vmatpush1.bf16.msra.mxu0 0
      %1613 = vmatprep.subr.bf16.mxu0 0
      %1614 = vmatpush1.bf16.msra.mxu0 0
      %1615 = vmatprep.subr.bf16.mxu0 0
      %1616 = vmatpush1.bf16.msra.mxu0 0
      %1617 = vmatprep.subr.bf16.mxu0 0
      %1618 = vmatpush1.bf16.msra.mxu0 0
      %1619 = vmatprep.subr.bf16.mxu0 0
      %1620 = vmatpush1.bf16.msra.mxu0 0
      %1621 = vmatprep.subr.bf16.mxu0 0
      %1622 = vmatpush1.bf16.msra.mxu0 0
      %1623 = vmatprep.subr.bf16.mxu0 0
      %1624 = vmatpush1.bf16.msra.mxu0 0
      %1625 = vmatprep.subr.bf16.mxu0 0
      %1626 = vmatpush1.bf16.msra.mxu0 0
      %1627 = vmatprep.subr.bf16.mxu0 0
      %1628 = vmatpush1.bf16.msra.mxu0 0
      %1629 = vmatprep.subr.bf16.mxu0 0
      %1630 = vmatpush1.bf16.msra.mxu0 0
      %1631 = vmatprep.subr.bf16.mxu0 0
      %1632 = vmatpush1.bf16.msra.mxu0 0
      %1633 = vmatprep.subr.bf16.mxu0 0
      %1634 = vmatpush1.bf16.msra.mxu0 0
      %1635 = vmatprep.subr.bf16.mxu0 0
      %1636 = vmatpush1.bf16.msra.mxu0 0
      %1637 = vmatprep.subr.bf16.mxu0 0
      %1638 = vmatpush1.bf16.msra.mxu0 0
      %1639 = vmatprep.subr.bf16.mxu0 0
      %1640 = vmatpush1.bf16.msra.mxu0 0
      %1641 = vmatprep.mubr.bf16.mxu0 0
      %1642 = vmatmul.mubr.bf16.gmra.mrb[0].mxu0 %v1542
      %v1643 = vpop.f32.mrb[0].mxu0
      %v1644 = vadd.f32 0.0, %v1643
      %v1645 = vpop.f32.mrb[0].mxu0
      %v1646 = vadd.f32 0.0, %v1645
      %v1647 = vpop.f32.mrb[0].mxu0
      %v1648 = vpop.f32.mrb[0].mxu0
      %1649 = vdwg.mxu0
      %1650 = vmatprep.subr.bf16.mxu0 %v1560
      %1651 = vmatpush1.bf16.msra.mxu0 %v1557
      %1652 = vmatprep.subr.bf16.mxu0 0
      %1653 = vmatpush1.bf16.msra.mxu0 0
      %1654 = vmatprep.subr.bf16.mxu0 0
      %1655 = vmatpush1.bf16.msra.mxu0 0
      %1656 = vmatprep.subr.bf16.mxu0 0
      %1657 = vmatpush1.bf16.msra.mxu0 0
      %1658 = vmatprep.subr.bf16.mxu0 0
      %1659 = vmatpush1.bf16.msra.mxu0 0
      %1660 = vmatprep.subr.bf16.mxu0 0
      %1661 = vmatpush1.bf16.msra.mxu0 0
      %1662 = vmatprep.subr.bf16.mxu0 0
      %1663 = vmatpush1.bf16.msra.mxu0 0
      %1664 = vmatprep.subr.bf16.mxu0 0
      %1665 = vmatpush1.bf16.msra.mxu0 0
      %1666 = vmatprep.subr.bf16.mxu0 0
      %1667 = vmatpush1.bf16.msra.mxu0 0
      %1668 = vmatprep.subr.bf16.mxu0 0
      %1669 = vmatpush1.bf16.msra.mxu0 0
      %1670 = vmatprep.subr.bf16.mxu0 0
      %1671 = vmatpush1.bf16.msra.mxu0 0
      %1672 = vmatprep.subr.bf16.mxu0 0
      %1673 = vmatpush1.bf16.msra.mxu0 0
      %1674 = vmatprep.subr.bf16.mxu0 0
      %1675 = vmatpush1.bf16.msra.mxu0 0
      %1676 = vmatprep.subr.bf16.mxu0 0
      %1677 = vmatpush1.bf16.msra.mxu0 0
      %1678 = vmatprep.subr.bf16.mxu0 0
      %1679 = vmatpush1.bf16.msra.mxu0 0
      %1680 = vmatprep.subr.bf16.mxu0 0
      %1681 = vmatpush1.bf16.msra.mxu0 0
      %1682 = vmatprep.mubr.bf16.mxu0 0
      %1683 = vmatmul.mubr.bf16.gmra.mrb[0].mxu0 %v1542
      %v1684 = vpop.f32.mrb[0].mxu0
      %v1685 = vadd.f32 0.0, %v1684
      %v1686 = vpop.f32.mrb[0].mxu0
      %v1687 = vadd.f32 0.0, %v1686
      %v1688 = vpop.f32.mrb[0].mxu0
      %v1689 = vpop.f32.mrb[0].mxu0
      %1690 = vdwg.mxu0
      %1691 = vmatprep.subr.bf16.mxu0 %v1566
      %1692 = vmatpush1.bf16.msra.mxu0 %v1563
      %1693 = vmatprep.subr.bf16.mxu0 0
      %1694 = vmatpush1.bf16.msra.mxu0 0
      %1695 = vmatprep.subr.bf16.mxu0 0
      %1696 = vmatpush1.bf16.msra.mxu0 0
      %1697 = vmatprep.subr.bf16.mxu0 0
      %1698 = vmatpush1.bf16.msra.mxu0 0
      %1699 = vmatprep.subr.bf16.mxu0 0
      %1700 = vmatpush1.bf16.msra.mxu0 0
      %1701 = vmatprep.subr.bf16.mxu0 0
      %1702 = vmatpush1.bf16.msra.mxu0 0
      %1703 = vmatprep.subr.bf16.mxu0 0
      %1704 = vmatpush1.bf16.msra.mxu0 0
      %1705 = vmatprep.subr.bf16.mxu0 0
      %1706 = vmatpush1.bf16.msra.mxu0 0
      %1707 = vmatprep.subr.bf16.mxu0 0
      %1708 = vmatpush1.bf16.msra.mxu0 0
      %1709 = vmatprep.subr.bf16.mxu0 0
      %1710 = vmatpush1.bf16.msra.mxu0 0
      %1711 = vmatprep.subr.bf16.mxu0 0
      %1712 = vmatpush1.bf16.msra.mxu0 0
      %1713 = vmatprep.subr.bf16.mxu0 0
      %1714 = vmatpush1.bf16.msra.mxu0 0
      %1715 = vmatprep.subr.bf16.mxu0 0
      %1716 = vmatpush1.bf16.msra.mxu0 0
      %1717 = vmatprep.subr.bf16.mxu0 0
      %1718 = vmatpush1.bf16.msra.mxu0 0
      %1719 = vmatprep.subr.bf16.mxu0 0
      %1720 = vmatpush1.bf16.msra.mxu0 0
      %1721 = vmatprep.subr.bf16.mxu0 0
      %1722 = vmatpush1.bf16.msra.mxu0 0
      %1723 = vmatprep.mubr.bf16.mxu0 0
      %1724 = vmatmul.mubr.bf16.gmra.mrb[0].mxu0 %v1542
      %v1725 = vpop.f32.mrb[0].mxu0
      %v1726 = vadd.f32 0.0, %v1725
      %v1727 = vpop.f32.mrb[0].mxu0
      %v1728 = vadd.f32 0.0, %v1727
      %v1729 = vpop.f32.mrb[0].mxu0
      %v1730 = vpop.f32.mrb[0].mxu0
      %1731 = vdwg.mxu0
      %v1732 = vadd.f32 %v1507, %v1603
      %v1733 = vadd.f32 %v1508, %v1605
      %v1734 = vadd.f32 %v1509, %v1644
      %v1735 = vadd.f32 %v1510, %v1646
      %v1736 = vadd.f32 %v1511, %v1685
      %v1737 = vadd.f32 %v1512, %v1687
      %v1738 = vadd.f32 %v1513, %v1726
      %v1739 = vadd.f32 %v1514, %v1728
      %s1740 = scalar_lea.vmem %s1, 12
      %v1741 = vld [vmem:[%s1740] sm:$0x3]
      %1742 = vrot.lane.b32.xlu0 %v411, 108
      %v1743 = vpop.permute.xlu0 %1742
      %1744 = vrot.lane.b32.xlu0 %v412, 108
      %v1745 = vpop.permute.xlu0 %1744
      %1746 = vrot.lane.b32.xlu0 %v413, 108
      %v1747 = vpop.permute.xlu0 %1746
      %1748 = vrot.lane.b32.xlu0 %v414, 108
      %v1749 = vpop.permute.xlu0 %1748
      %1750 = vrot.lane.b32.xlu0 %v415, 108
      %v1751 = vpop.permute.xlu0 %1750
      %1752 = vrot.lane.b32.xlu0 %v416, 108
      %v1753 = vpop.permute.xlu0 %1752
      %1754 = vrot.lane.b32.xlu0 %v417, 108
      %v1755 = vpop.permute.xlu0 %1754
      %1756 = vrot.lane.b32.xlu0 %v418, 108
      %v1757 = vpop.permute.xlu0 %1756
      %vm1758 = vcmask 883712
      %v1759 = vsel %vm1758, %v1743, %v1745
      %v1760 = vsel %vm1758, %v1745, %v1747
      %v1761 = vsel %vm1758, %v1747, %v1749
      %v1762 = vsel %vm1758, %v1749, %v1751
      %v1763 = vsel %vm1758, %v1751, %v1753
      %v1764 = vsel %vm1758, %v1753, %v1755
      %v1765 = vsel %vm1758, %v1755, %v1757
      %v1767 = vsel %vm456, %v1741, 0
      %v1770 = vsel %vm460, %v1759, 0
      %v1773 = vsel %vm460, %v1760, 0
      %v1776 = vsel %vm460, %v1761, 0
      %v1779 = vsel %vm460, %v1762, 0
      %v1782 = vsel %vm460, %v1763, 0
      %v1785 = vsel %vm460, %v1764, 0
      %v1788 = vsel %vm460, %v1765, 0
      %v1791 = vsel %vm460, %v1757, 0
      %1793 = vmatprep.subr.bf16.mxu0 %v1773
      %1794 = vmatpush1.bf16.msra.mxu0 %v1770
      %1795 = vmatprep.subr.bf16.mxu0 0
      %1796 = vmatpush1.bf16.msra.mxu0 0
      %1797 = vmatprep.subr.bf16.mxu0 0
      %1798 = vmatpush1.bf16.msra.mxu0 0
      %1799 = vmatprep.subr.bf16.mxu0 0
      %1800 = vmatpush1.bf16.msra.mxu0 0
      %1801 = vmatprep.subr.bf16.mxu0 0
      %1802 = vmatpush1.bf16.msra.mxu0 0
      %1803 = vmatprep.subr.bf16.mxu0 0
      %1804 = vmatpush1.bf16.msra.mxu0 0
      %1805 = vmatprep.subr.bf16.mxu0 0
      %1806 = vmatpush1.bf16.msra.mxu0 0
      %1807 = vmatprep.subr.bf16.mxu0 0
      %1808 = vmatpush1.bf16.msra.mxu0 0
      %1809 = vmatprep.subr.bf16.mxu0 0
      %1810 = vmatpush1.bf16.msra.mxu0 0
      %1811 = vmatprep.subr.bf16.mxu0 0
      %1812 = vmatpush1.bf16.msra.mxu0 0
      %1813 = vmatprep.subr.bf16.mxu0 0
      %1814 = vmatpush1.bf16.msra.mxu0 0
      %1815 = vmatprep.subr.bf16.mxu0 0
      %1816 = vmatpush1.bf16.msra.mxu0 0
      %1817 = vmatprep.subr.bf16.mxu0 0
      %1818 = vmatpush1.bf16.msra.mxu0 0
      %1819 = vmatprep.subr.bf16.mxu0 0
      %1820 = vmatpush1.bf16.msra.mxu0 0
      %1821 = vmatprep.subr.bf16.mxu0 0
      %1822 = vmatpush1.bf16.msra.mxu0 0
      %1823 = vmatprep.subr.bf16.mxu0 0
      %1824 = vmatpush1.bf16.msra.mxu0 0
      %1825 = vmatprep.mubr.bf16.mxu0 0
      %1826 = vmatmul.mubr.bf16.gmra.mrb[0].mxu0 %v1767
      %v1827 = vpop.f32.mrb[0].mxu0
      %v1828 = vadd.f32 0.0, %v1827
      %v1829 = vpop.f32.mrb[0].mxu0
      %v1830 = vadd.f32 0.0, %v1829
      %v1831 = vpop.f32.mrb[0].mxu0
      %v1832 = vpop.f32.mrb[0].mxu0
      %1833 = vdwg.mxu0
      %1834 = vmatprep.subr.bf16.mxu0 %v1779
      %1835 = vmatpush1.bf16.msra.mxu0 %v1776
      %1836 = vmatprep.subr.bf16.mxu0 0
      %1837 = vmatpush1.bf16.msra.mxu0 0
      %1838 = vmatprep.subr.bf16.mxu0 0
      %1839 = vmatpush1.bf16.msra.mxu0 0
      %1840 = vmatprep.subr.bf16.mxu0 0
      %1841 = vmatpush1.bf16.msra.mxu0 0
      %1842 = vmatprep.subr.bf16.mxu0 0
      %1843 = vmatpush1.bf16.msra.mxu0 0
      %1844 = vmatprep.subr.bf16.mxu0 0
      %1845 = vmatpush1.bf16.msra.mxu0 0
      %1846 = vmatprep.subr.bf16.mxu0 0
      %1847 = vmatpush1.bf16.msra.mxu0 0
      %1848 = vmatprep.subr.bf16.mxu0 0
      %1849 = vmatpush1.bf16.msra.mxu0 0
      %1850 = vmatprep.subr.bf16.mxu0 0
      %1851 = vmatpush1.bf16.msra.mxu0 0
      %1852 = vmatprep.subr.bf16.mxu0 0
      %1853 = vmatpush1.bf16.msra.mxu0 0
      %1854 = vmatprep.subr.bf16.mxu0 0
      %1855 = vmatpush1.bf16.msra.mxu0 0
      %1856 = vmatprep.subr.bf16.mxu0 0
      %1857 = vmatpush1.bf16.msra.mxu0 0
      %1858 = vmatprep.subr.bf16.mxu0 0
      %1859 = vmatpush1.bf16.msra.mxu0 0
      %1860 = vmatprep.subr.bf16.mxu0 0
      %1861 = vmatpush1.bf16.msra.mxu0 0
      %1862 = vmatprep.subr.bf16.mxu0 0
      %1863 = vmatpush1.bf16.msra.mxu0 0
      %1864 = vmatprep.subr.bf16.mxu0 0
      %1865 = vmatpush1.bf16.msra.mxu0 0
      %1866 = vmatprep.mubr.bf16.mxu0 0
      %1867 = vmatmul.mubr.bf16.gmra.mrb[0].mxu0 %v1767
      %v1868 = vpop.f32.mrb[0].mxu0
      %v1869 = vadd.f32 0.0, %v1868
      %v1870 = vpop.f32.mrb[0].mxu0
      %v1871 = vadd.f32 0.0, %v1870
      %v1872 = vpop.f32.mrb[0].mxu0
      %v1873 = vpop.f32.mrb[0].mxu0
      %1874 = vdwg.mxu0
      %1875 = vmatprep.subr.bf16.mxu0 %v1785
      %1876 = vmatpush1.bf16.msra.mxu0 %v1782
      %1877 = vmatprep.subr.bf16.mxu0 0
      %1878 = vmatpush1.bf16.msra.mxu0 0
      %1879 = vmatprep.subr.bf16.mxu0 0
      %1880 = vmatpush1.bf16.msra.mxu0 0
      %1881 = vmatprep.subr.bf16.mxu0 0
      %1882 = vmatpush1.bf16.msra.mxu0 0
      %1883 = vmatprep.subr.bf16.mxu0 0
      %1884 = vmatpush1.bf16.msra.mxu0 0
      %1885 = vmatprep.subr.bf16.mxu0 0
      %1886 = vmatpush1.bf16.msra.mxu0 0
      %1887 = vmatprep.subr.bf16.mxu0 0
      %1888 = vmatpush1.bf16.msra.mxu0 0
      %1889 = vmatprep.subr.bf16.mxu0 0
      %1890 = vmatpush1.bf16.msra.mxu0 0
      %1891 = vmatprep.subr.bf16.mxu0 0
      %1892 = vmatpush1.bf16.msra.mxu0 0
      %1893 = vmatprep.subr.bf16.mxu0 0
      %1894 = vmatpush1.bf16.msra.mxu0 0
      %1895 = vmatprep.subr.bf16.mxu0 0
      %1896 = vmatpush1.bf16.msra.mxu0 0
      %1897 = vmatprep.subr.bf16.mxu0 0
      %1898 = vmatpush1.bf16.msra.mxu0 0
      %1899 = vmatprep.subr.bf16.mxu0 0
      %1900 = vmatpush1.bf16.msra.mxu0 0
      %1901 = vmatprep.subr.bf16.mxu0 0
      %1902 = vmatpush1.bf16.msra.mxu0 0
      %1903 = vmatprep.subr.bf16.mxu0 0
      %1904 = vmatpush1.bf16.msra.mxu0 0
      %1905 = vmatprep.subr.bf16.mxu0 0
      %1906 = vmatpush1.bf16.msra.mxu0 0
      %1907 = vmatprep.mubr.bf16.mxu0 0
      %1908 = vmatmul.mubr.bf16.gmra.mrb[0].mxu0 %v1767
      %v1909 = vpop.f32.mrb[0].mxu0
      %v1910 = vadd.f32 0.0, %v1909
      %v1911 = vpop.f32.mrb[0].mxu0
      %v1912 = vadd.f32 0.0, %v1911
      %v1913 = vpop.f32.mrb[0].mxu0
      %v1914 = vpop.f32.mrb[0].mxu0
      %1915 = vdwg.mxu0
      %1916 = vmatprep.subr.bf16.mxu0 %v1791
      %1917 = vmatpush1.bf16.msra.mxu0 %v1788
      %1918 = vmatprep.subr.bf16.mxu0 0
      %1919 = vmatpush1.bf16.msra.mxu0 0
      %1920 = vmatprep.subr.bf16.mxu0 0
      %1921 = vmatpush1.bf16.msra.mxu0 0
      %1922 = vmatprep.subr.bf16.mxu0 0
      %1923 = vmatpush1.bf16.msra.mxu0 0
      %1924 = vmatprep.subr.bf16.mxu0 0
      %1925 = vmatpush1.bf16.msra.mxu0 0
      %1926 = vmatprep.subr.bf16.mxu0 0
      %1927 = vmatpush1.bf16.msra.mxu0 0
      %1928 = vmatprep.subr.bf16.mxu0 0
      %1929 = vmatpush1.bf16.msra.mxu0 0
      %1930 = vmatprep.subr.bf16.mxu0 0
      %1931 = vmatpush1.bf16.msra.mxu0 0
      %1932 = vmatprep.subr.bf16.mxu0 0
      %1933 = vmatpush1.bf16.msra.mxu0 0
      %1934 = vmatprep.subr.bf16.mxu0 0
      %1935 = vmatpush1.bf16.msra.mxu0 0
      %1936 = vmatprep.subr.bf16.mxu0 0
      %1937 = vmatpush1.bf16.msra.mxu0 0
      %1938 = vmatprep.subr.bf16.mxu0 0
      %1939 = vmatpush1.bf16.msra.mxu0 0
      %1940 = vmatprep.subr.bf16.mxu0 0
      %1941 = vmatpush1.bf16.msra.mxu0 0
      %1942 = vmatprep.subr.bf16.mxu0 0
      %1943 = vmatpush1.bf16.msra.mxu0 0
      %1944 = vmatprep.subr.bf16.mxu0 0
      %1945 = vmatpush1.bf16.msra.mxu0 0
      %1946 = vmatprep.subr.bf16.mxu0 0
      %1947 = vmatpush1.bf16.msra.mxu0 0
      %1948 = vmatprep.mubr.bf16.mxu0 0
      %1949 = vmatmul.mubr.bf16.gmra.mrb[0].mxu0 %v1767
      %v1950 = vpop.f32.mrb[0].mxu0
      %v1951 = vadd.f32 0.0, %v1950
      %v1952 = vpop.f32.mrb[0].mxu0
      %v1953 = vadd.f32 0.0, %v1952
      %v1954 = vpop.f32.mrb[0].mxu0
      %v1955 = vpop.f32.mrb[0].mxu0
      %1956 = vdwg.mxu0
      %v1957 = vadd.f32 %v1732, %v1828
      %v1958 = vadd.f32 %v1733, %v1830
      %v1959 = vadd.f32 %v1734, %v1869
      %v1960 = vadd.f32 %v1735, %v1871
      %v1961 = vadd.f32 %v1736, %v1910
      %v1962 = vadd.f32 %v1737, %v1912
      %v1963 = vadd.f32 %v1738, %v1951
      %v1964 = vadd.f32 %v1739, %v1953
      %s1965 = scalar_lea.vmem %s1, 14
      %v1966 = vld [vmem:[%s1965] sm:$0x3]
      %1967 = vrot.lane.b32.xlu0 %v411, 107
      %v1968 = vpop.permute.xlu0 %1967
      %1969 = vrot.lane.b32.xlu0 %v412, 107
      %v1970 = vpop.permute.xlu0 %1969
      %1971 = vrot.lane.b32.xlu0 %v413, 107
      %v1972 = vpop.permute.xlu0 %1971
      %1973 = vrot.lane.b32.xlu0 %v414, 107
      %v1974 = vpop.permute.xlu0 %1973
      %1975 = vrot.lane.b32.xlu0 %v415, 107
      %v1976 = vpop.permute.xlu0 %1975
      %1977 = vrot.lane.b32.xlu0 %v416, 107
      %v1978 = vpop.permute.xlu0 %1977
      %1979 = vrot.lane.b32.xlu0 %v417, 107
      %v1980 = vpop.permute.xlu0 %1979
      %1981 = vrot.lane.b32.xlu0 %v418, 107
      %v1982 = vpop.permute.xlu0 %1981
      %vm1983 = vcmask 875520
      %v1984 = vsel %vm1983, %v1968, %v1970
      %v1985 = vsel %vm1983, %v1970, %v1972
      %v1986 = vsel %vm1983, %v1972, %v1974
      %v1987 = vsel %vm1983, %v1974, %v1976
      %v1988 = vsel %vm1983, %v1976, %v1978
      %v1989 = vsel %vm1983, %v1978, %v1980
      %v1990 = vsel %vm1983, %v1980, %v1982
      %v1992 = vsel %vm456, %v1966, 0
      %v1995 = vsel %vm460, %v1984, 0
      %v1998 = vsel %vm460, %v1985, 0
      %v2001 = vsel %vm460, %v1986, 0
      %v2004 = vsel %vm460, %v1987, 0
      %v2007 = vsel %vm460, %v1988, 0
      %v2010 = vsel %vm460, %v1989, 0
      %v2013 = vsel %vm460, %v1990, 0
      %v2016 = vsel %vm460, %v1982, 0
      %2018 = vmatprep.subr.bf16.mxu0 %v1998
      %2019 = vmatpush1.bf16.msra.mxu0 %v1995
      %2020 = vmatprep.subr.bf16.mxu0 0
      %2021 = vmatpush1.bf16.msra.mxu0 0
      %2022 = vmatprep.subr.bf16.mxu0 0
      %2023 = vmatpush1.bf16.msra.mxu0 0
      %2024 = vmatprep.subr.bf16.mxu0 0
      %2025 = vmatpush1.bf16.msra.mxu0 0
      %2026 = vmatprep.subr.bf16.mxu0 0
      %2027 = vmatpush1.bf16.msra.mxu0 0
      %2028 = vmatprep.subr.bf16.mxu0 0
      %2029 = vmatpush1.bf16.msra.mxu0 0
      %2030 = vmatprep.subr.bf16.mxu0 0
      %2031 = vmatpush1.bf16.msra.mxu0 0
      %2032 = vmatprep.subr.bf16.mxu0 0
      %2033 = vmatpush1.bf16.msra.mxu0 0
      %2034 = vmatprep.subr.bf16.mxu0 0
      %2035 = vmatpush1.bf16.msra.mxu0 0
      %2036 = vmatprep.subr.bf16.mxu0 0
      %2037 = vmatpush1.bf16.msra.mxu0 0
      %2038 = vmatprep.subr.bf16.mxu0 0
      %2039 = vmatpush1.bf16.msra.mxu0 0
      %2040 = vmatprep.subr.bf16.mxu0 0
      %2041 = vmatpush1.bf16.msra.mxu0 0
      %2042 = vmatprep.subr.bf16.mxu0 0
      %2043 = vmatpush1.bf16.msra.mxu0 0
      %2044 = vmatprep.subr.bf16.mxu0 0
      %2045 = vmatpush1.bf16.msra.mxu0 0
      %2046 = vmatprep.subr.bf16.mxu0 0
      %2047 = vmatpush1.bf16.msra.mxu0 0
      %2048 = vmatprep.subr.bf16.mxu0 0
      %2049 = vmatpush1.bf16.msra.mxu0 0
      %2050 = vmatprep.mubr.bf16.mxu0 0
      %2051 = vmatmul.mubr.bf16.gmra.mrb[0].mxu0 %v1992
      %v2052 = vpop.f32.mrb[0].mxu0
      %v2053 = vadd.f32 0.0, %v2052
      %v2054 = vpop.f32.mrb[0].mxu0
      %v2055 = vadd.f32 0.0, %v2054
      %v2056 = vpop.f32.mrb[0].mxu0
      %v2057 = vpop.f32.mrb[0].mxu0
      %2058 = vdwg.mxu0
      %2059 = vmatprep.subr.bf16.mxu0 %v2004
      %2060 = vmatpush1.bf16.msra.mxu0 %v2001
      %2061 = vmatprep.subr.bf16.mxu0 0
      %2062 = vmatpush1.bf16.msra.mxu0 0
      %2063 = vmatprep.subr.bf16.mxu0 0
      %2064 = vmatpush1.bf16.msra.mxu0 0
      %2065 = vmatprep.subr.bf16.mxu0 0
      %2066 = vmatpush1.bf16.msra.mxu0 0
      %2067 = vmatprep.subr.bf16.mxu0 0
      %2068 = vmatpush1.bf16.msra.mxu0 0
      %2069 = vmatprep.subr.bf16.mxu0 0
      %2070 = vmatpush1.bf16.msra.mxu0 0
      %2071 = vmatprep.subr.bf16.mxu0 0
      %2072 = vmatpush1.bf16.msra.mxu0 0
      %2073 = vmatprep.subr.bf16.mxu0 0
      %2074 = vmatpush1.bf16.msra.mxu0 0
      %2075 = vmatprep.subr.bf16.mxu0 0
      %2076 = vmatpush1.bf16.msra.mxu0 0
      %2077 = vmatprep.subr.bf16.mxu0 0
      %2078 = vmatpush1.bf16.msra.mxu0 0
      %2079 = vmatprep.subr.bf16.mxu0 0
      %2080 = vmatpush1.bf16.msra.mxu0 0
      %2081 = vmatprep.subr.bf16.mxu0 0
      %2082 = vmatpush1.bf16.msra.mxu0 0
      %2083 = vmatprep.subr.bf16.mxu0 0
      %2084 = vmatpush1.bf16.msra.mxu0 0
      %2085 = vmatprep.subr.bf16.mxu0 0
      %2086 = vmatpush1.bf16.msra.mxu0 0
      %2087 = vmatprep.subr.bf16.mxu0 0
      %2088 = vmatpush1.bf16.msra.mxu0 0
      %2089 = vmatprep.subr.bf16.mxu0 0
      %2090 = vmatpush1.bf16.msra.mxu0 0
      %2091 = vmatprep.mubr.bf16.mxu0 0
      %2092 = vmatmul.mubr.bf16.gmra.mrb[0].mxu0 %v1992
      %v2093 = vpop.f32.mrb[0].mxu0
      %v2094 = vadd.f32 0.0, %v2093
      %v2095 = vpop.f32.mrb[0].mxu0
      %v2096 = vadd.f32 0.0, %v2095
      %v2097 = vpop.f32.mrb[0].mxu0
      %v2098 = vpop.f32.mrb[0].mxu0
      %2099 = vdwg.mxu0
      %2100 = vmatprep.subr.bf16.mxu0 %v2010
      %2101 = vmatpush1.bf16.msra.mxu0 %v2007
      %2102 = vmatprep.subr.bf16.mxu0 0
      %2103 = vmatpush1.bf16.msra.mxu0 0
      %2104 = vmatprep.subr.bf16.mxu0 0
      %2105 = vmatpush1.bf16.msra.mxu0 0
      %2106 = vmatprep.subr.bf16.mxu0 0
      %2107 = vmatpush1.bf16.msra.mxu0 0
      %2108 = vmatprep.subr.bf16.mxu0 0
      %2109 = vmatpush1.bf16.msra.mxu0 0
      %2110 = vmatprep.subr.bf16.mxu0 0
      %2111 = vmatpush1.bf16.msra.mxu0 0
      %2112 = vmatprep.subr.bf16.mxu0 0
      %2113 = vmatpush1.bf16.msra.mxu0 0
      %2114 = vmatprep.subr.bf16.mxu0 0
      %2115 = vmatpush1.bf16.msra.mxu0 0
      %2116 = vmatprep.subr.bf16.mxu0 0
      %2117 = vmatpush1.bf16.msra.mxu0 0
      %2118 = vmatprep.subr.bf16.mxu0 0
      %2119 = vmatpush1.bf16.msra.mxu0 0
      %2120 = vmatprep.subr.bf16.mxu0 0
      %2121 = vmatpush1.bf16.msra.mxu0 0
      %2122 = vmatprep.subr.bf16.mxu0 0
      %2123 = vmatpush1.bf16.msra.mxu0 0
      %2124 = vmatprep.subr.bf16.mxu0 0
      %2125 = vmatpush1.bf16.msra.mxu0 0
      %2126 = vmatprep.subr.bf16.mxu0 0
      %2127 = vmatpush1.bf16.msra.mxu0 0
      %2128 = vmatprep.subr.bf16.mxu0 0
      %2129 = vmatpush1.bf16.msra.mxu0 0
      %2130 = vmatprep.subr.bf16.mxu0 0
      %2131 = vmatpush1.bf16.msra.mxu0 0
      %2132 = vmatprep.mubr.bf16.mxu0 0
      %2133 = vmatmul.mubr.bf16.gmra.mrb[0].mxu0 %v1992
      %v2134 = vpop.f32.mrb[0].mxu0
      %v2135 = vadd.f32 0.0, %v2134
      %v2136 = vpop.f32.mrb[0].mxu0
      %v2137 = vadd.f32 0.0, %v2136
      %v2138 = vpop.f32.mrb[0].mxu0
      %v2139 = vpop.f32.mrb[0].mxu0
      %2140 = vdwg.mxu0
      %2141 = vmatprep.subr.bf16.mxu0 %v2016
      %2142 = vmatpush1.bf16.msra.mxu0 %v2013
      %2143 = vmatprep.subr.bf16.mxu0 0
      %2144 = vmatpush1.bf16.msra.mxu0 0
      %2145 = vmatprep.subr.bf16.mxu0 0
      %2146 = vmatpush1.bf16.msra.mxu0 0
      %2147 = vmatprep.subr.bf16.mxu0 0
      %2148 = vmatpush1.bf16.msra.mxu0 0
      %2149 = vmatprep.subr.bf16.mxu0 0
      %2150 = vmatpush1.bf16.msra.mxu0 0
      %2151 = vmatprep.subr.bf16.mxu0 0
      %2152 = vmatpush1.bf16.msra.mxu0 0
      %2153 = vmatprep.subr.bf16.mxu0 0
      %2154 = vmatpush1.bf16.msra.mxu0 0
      %2155 = vmatprep.subr.bf16.mxu0 0
      %2156 = vmatpush1.bf16.msra.mxu0 0
      %2157 = vmatprep.subr.bf16.mxu0 0
      %2158 = vmatpush1.bf16.msra.mxu0 0
      %2159 = vmatprep.subr.bf16.mxu0 0
      %2160 = vmatpush1.bf16.msra.mxu0 0
      %2161 = vmatprep.subr.bf16.mxu0 0
      %2162 = vmatpush1.bf16.msra.mxu0 0
      %2163 = vmatprep.subr.bf16.mxu0 0
      %2164 = vmatpush1.bf16.msra.mxu0 0
      %2165 = vmatprep.subr.bf16.mxu0 0
      %2166 = vmatpush1.bf16.msra.mxu0 0
      %2167 = vmatprep.subr.bf16.mxu0 0
      %2168 = vmatpush1.bf16.msra.mxu0 0
      %2169 = vmatprep.subr.bf16.mxu0 0
      %2170 = vmatpush1.bf16.msra.mxu0 0
      %2171 = vmatprep.subr.bf16.mxu0 0
      %2172 = vmatpush1.bf16.msra.mxu0 0
      %2173 = vmatprep.mubr.bf16.mxu0 0
      %2174 = vmatmul.mubr.bf16.gmra.mrb[0].mxu0 %v1992
      %v2175 = vpop.f32.mrb[0].mxu0
      %v2176 = vadd.f32 0.0, %v2175
      %v2177 = vpop.f32.mrb[0].mxu0
      %v2178 = vadd.f32 0.0, %v2177
      %v2179 = vpop.f32.mrb[0].mxu0
      %v2180 = vpop.f32.mrb[0].mxu0
      %2181 = vdwg.mxu0
      %v2182 = vadd.f32 %v1957, %v2053
      %v2183 = vadd.f32 %v1958, %v2055
      %v2184 = vadd.f32 %v1959, %v2094
      %v2185 = vadd.f32 %v1960, %v2096
      %v2186 = vadd.f32 %v1961, %v2135
      %v2187 = vadd.f32 %v1962, %v2137
      %v2188 = vadd.f32 %v1963, %v2176
      %v2189 = vadd.f32 %v1964, %v2178
      %s2190 = scalar_lea.vmem %s1, 16
      %v2191 = vld [vmem:[%s2190] sm:$0x3]
      %2192 = vrot.lane.b32.xlu0 %v411, 106
      %v2193 = vpop.permute.xlu0 %2192
      %2194 = vrot.lane.b32.xlu0 %v412, 106
      %v2195 = vpop.permute.xlu0 %2194
      %2196 = vrot.lane.b32.xlu0 %v413, 106
      %v2197 = vpop.permute.xlu0 %2196
      %2198 = vrot.lane.b32.xlu0 %v414, 106
      %v2199 = vpop.permute.xlu0 %2198
      %2200 = vrot.lane.b32.xlu0 %v415, 106
      %v2201 = vpop.permute.xlu0 %2200
      %2202 = vrot.lane.b32.xlu0 %v416, 106
      %v2203 = vpop.permute.xlu0 %2202
      %2204 = vrot.lane.b32.xlu0 %v417, 106
      %v2205 = vpop.permute.xlu0 %2204
      %2206 = vrot.lane.b32.xlu0 %v418, 106
      %v2207 = vpop.permute.xlu0 %2206
      %vm2208 = vcmask 867328
      %v2209 = vsel %vm2208, %v2193, %v2195
      %v2210 = vsel %vm2208, %v2195, %v2197
      %v2211 = vsel %vm2208, %v2197, %v2199
      %v2212 = vsel %vm2208, %v2199, %v2201
      %v2213 = vsel %vm2208, %v2201, %v2203
      %v2214 = vsel %vm2208, %v2203, %v2205
      %v2215 = vsel %vm2208, %v2205, %v2207
      %v2217 = vsel %vm456, %v2191, 0
      %v2220 = vsel %vm460, %v2209, 0
      %v2223 = vsel %vm460, %v2210, 0
      %v2226 = vsel %vm460, %v2211, 0
      %v2229 = vsel %vm460, %v2212, 0
      %v2232 = vsel %vm460, %v2213, 0
      %v2235 = vsel %vm460, %v2214, 0
      %v2238 = vsel %vm460, %v2215, 0
      %v2241 = vsel %vm460, %v2207, 0
      %2243 = vmatprep.subr.bf16.mxu0 %v2223
      %2244 = vmatpush1.bf16.msra.mxu0 %v2220
      %2245 = vmatprep.subr.bf16.mxu0 0
      %2246 = vmatpush1.bf16.msra.mxu0 0
      %2247 = vmatprep.subr.bf16.mxu0 0
      %2248 = vmatpush1.bf16.msra.mxu0 0
      %2249 = vmatprep.subr.bf16.mxu0 0
      %2250 = vmatpush1.bf16.msra.mxu0 0
      %2251 = vmatprep.subr.bf16.mxu0 0
      %2252 = vmatpush1.bf16.msra.mxu0 0
      %2253 = vmatprep.subr.bf16.mxu0 0
      %2254 = vmatpush1.bf16.msra.mxu0 0
      %2255 = vmatprep.subr.bf16.mxu0 0
      %2256 = vmatpush1.bf16.msra.mxu0 0
      %2257 = vmatprep.subr.bf16.mxu0 0
      %2258 = vmatpush1.bf16.msra.mxu0 0
      %2259 = vmatprep.subr.bf16.mxu0 0
      %2260 = vmatpush1.bf16.msra.mxu0 0
      %2261 = vmatprep.subr.bf16.mxu0 0
      %2262 = vmatpush1.bf16.msra.mxu0 0
      %2263 = vmatprep.subr.bf16.mxu0 0
      %2264 = vmatpush1.bf16.msra.mxu0 0
      %2265 = vmatprep.subr.bf16.mxu0 0
      %2266 = vmatpush1.bf16.msra.mxu0 0
      %2267 = vmatprep.subr.bf16.mxu0 0
      %2268 = vmatpush1.bf16.msra.mxu0 0
      %2269 = vmatprep.subr.bf16.mxu0 0
      %2270 = vmatpush1.bf16.msra.mxu0 0
      %2271 = vmatprep.subr.bf16.mxu0 0
      %2272 = vmatpush1.bf16.msra.mxu0 0
      %2273 = vmatprep.subr.bf16.mxu0 0
      %2274 = vmatpush1.bf16.msra.mxu0 0
      %2275 = vmatprep.mubr.bf16.mxu0 0
      %2276 = vmatmul.mubr.bf16.gmra.mrb[0].mxu0 %v2217
      %v2277 = vpop.f32.mrb[0].mxu0
      %v2278 = vadd.f32 0.0, %v2277
      %v2279 = vpop.f32.mrb[0].mxu0
      %v2280 = vadd.f32 0.0, %v2279
      %v2281 = vpop.f32.mrb[0].mxu0
      %v2282 = vpop.f32.mrb[0].mxu0
      %2283 = vdwg.mxu0
      %2284 = vmatprep.subr.bf16.mxu0 %v2229
      %2285 = vmatpush1.bf16.msra.mxu0 %v2226
      %2286 = vmatprep.subr.bf16.mxu0 0
      %2287 = vmatpush1.bf16.msra.mxu0 0
      %2288 = vmatprep.subr.bf16.mxu0 0
      %2289 = vmatpush1.bf16.msra.mxu0 0
      %2290 = vmatprep.subr.bf16.mxu0 0
      %2291 = vmatpush1.bf16.msra.mxu0 0
      %2292 = vmatprep.subr.bf16.mxu0 0
      %2293 = vmatpush1.bf16.msra.mxu0 0
      %2294 = vmatprep.subr.bf16.mxu0 0
      %2295 = vmatpush1.bf16.msra.mxu0 0
      %2296 = vmatprep.subr.bf16.mxu0 0
      %2297 = vmatpush1.bf16.msra.mxu0 0
      %2298 = vmatprep.subr.bf16.mxu0 0
      %2299 = vmatpush1.bf16.msra.mxu0 0
      %2300 = vmatprep.subr.bf16.mxu0 0
      %2301 = vmatpush1.bf16.msra.mxu0 0
      %2302 = vmatprep.subr.bf16.mxu0 0
      %2303 = vmatpush1.bf16.msra.mxu0 0
      %2304 = vmatprep.subr.bf16.mxu0 0
      %2305 = vmatpush1.bf16.msra.mxu0 0
      %2306 = vmatprep.subr.bf16.mxu0 0
      %2307 = vmatpush1.bf16.msra.mxu0 0
      %2308 = vmatprep.subr.bf16.mxu0 0
      %2309 = vmatpush1.bf16.msra.mxu0 0
      %2310 = vmatprep.subr.bf16.mxu0 0
      %2311 = vmatpush1.bf16.msra.mxu0 0
      %2312 = vmatprep.subr.bf16.mxu0 0
      %2313 = vmatpush1.bf16.msra.mxu0 0
      %2314 = vmatprep.subr.bf16.mxu0 0
      %2315 = vmatpush1.bf16.msra.mxu0 0
      %2316 = vmatprep.mubr.bf16.mxu0 0
      %2317 = vmatmul.mubr.bf16.gmra.mrb[0].mxu0 %v2217
      %v2318 = vpop.f32.mrb[0].mxu0
      %v2319 = vadd.f32 0.0, %v2318
      %v2320 = vpop.f32.mrb[0].mxu0
      %v2321 = vadd.f32 0.0, %v2320
      %v2322 = vpop.f32.mrb[0].mxu0
      %v2323 = vpop.f32.mrb[0].mxu0
      %2324 = vdwg.mxu0
      %2325 = vmatprep.subr.bf16.mxu0 %v2235
      %2326 = vmatpush1.bf16.msra.mxu0 %v2232
      %2327 = vmatprep.subr.bf16.mxu0 0
      %2328 = vmatpush1.bf16.msra.mxu0 0
      %2329 = vmatprep.subr.bf16.mxu0 0
      %2330 = vmatpush1.bf16.msra.mxu0 0
      %2331 = vmatprep.subr.bf16.mxu0 0
      %2332 = vmatpush1.bf16.msra.mxu0 0
      %2333 = vmatprep.subr.bf16.mxu0 0
      %2334 = vmatpush1.bf16.msra.mxu0 0
      %2335 = vmatprep.subr.bf16.mxu0 0
      %2336 = vmatpush1.bf16.msra.mxu0 0
      %2337 = vmatprep.subr.bf16.mxu0 0
      %2338 = vmatpush1.bf16.msra.mxu0 0
      %2339 = vmatprep.subr.bf16.mxu0 0
      %2340 = vmatpush1.bf16.msra.mxu0 0
      %2341 = vmatprep.subr.bf16.mxu0 0
      %2342 = vmatpush1.bf16.msra.mxu0 0
      %2343 = vmatprep.subr.bf16.mxu0 0
      %2344 = vmatpush1.bf16.msra.mxu0 0
      %2345 = vmatprep.subr.bf16.mxu0 0
      %2346 = vmatpush1.bf16.msra.mxu0 0
      %2347 = vmatprep.subr.bf16.mxu0 0
      %2348 = vmatpush1.bf16.msra.mxu0 0
      %2349 = vmatprep.subr.bf16.mxu0 0
      %2350 = vmatpush1.bf16.msra.mxu0 0
      %2351 = vmatprep.subr.bf16.mxu0 0
      %2352 = vmatpush1.bf16.msra.mxu0 0
      %2353 = vmatprep.subr.bf16.mxu0 0
      %2354 = vmatpush1.bf16.msra.mxu0 0
      %2355 = vmatprep.subr.bf16.mxu0 0
      %2356 = vmatpush1.bf16.msra.mxu0 0
      %2357 = vmatprep.mubr.bf16.mxu0 0
      %2358 = vmatmul.mubr.bf16.gmra.mrb[0].mxu0 %v2217
      %v2359 = vpop.f32.mrb[0].mxu0
      %v2360 = vadd.f32 0.0, %v2359
      %v2361 = vpop.f32.mrb[0].mxu0
      %v2362 = vadd.f32 0.0, %v2361
      %v2363 = vpop.f32.mrb[0].mxu0
      %v2364 = vpop.f32.mrb[0].mxu0
      %2365 = vdwg.mxu0
      %2366 = vmatprep.subr.bf16.mxu0 %v2241
      %2367 = vmatpush1.bf16.msra.mxu0 %v2238
      %2368 = vmatprep.subr.bf16.mxu0 0
      %2369 = vmatpush1.bf16.msra.mxu0 0
      %2370 = vmatprep.subr.bf16.mxu0 0
      %2371 = vmatpush1.bf16.msra.mxu0 0
      %2372 = vmatprep.subr.bf16.mxu0 0
      %2373 = vmatpush1.bf16.msra.mxu0 0
      %2374 = vmatprep.subr.bf16.mxu0 0
      %2375 = vmatpush1.bf16.msra.mxu0 0
      %2376 = vmatprep.subr.bf16.mxu0 0
      %2377 = vmatpush1.bf16.msra.mxu0 0
      %2378 = vmatprep.subr.bf16.mxu0 0
      %2379 = vmatpush1.bf16.msra.mxu0 0
      %2380 = vmatprep.subr.bf16.mxu0 0
      %2381 = vmatpush1.bf16.msra.mxu0 0
      %2382 = vmatprep.subr.bf16.mxu0 0
      %2383 = vmatpush1.bf16.msra.mxu0 0
      %2384 = vmatprep.subr.bf16.mxu0 0
      %2385 = vmatpush1.bf16.msra.mxu0 0
      %2386 = vmatprep.subr.bf16.mxu0 0
      %2387 = vmatpush1.bf16.msra.mxu0 0
      %2388 = vmatprep.subr.bf16.mxu0 0
      %2389 = vmatpush1.bf16.msra.mxu0 0
      %2390 = vmatprep.subr.bf16.mxu0 0
      %2391 = vmatpush1.bf16.msra.mxu0 0
      %2392 = vmatprep.subr.bf16.mxu0 0
      %2393 = vmatpush1.bf16.msra.mxu0 0
      %2394 = vmatprep.subr.bf16.mxu0 0
      %2395 = vmatpush1.bf16.msra.mxu0 0
      %2396 = vmatprep.subr.bf16.mxu0 0
      %2397 = vmatpush1.bf16.msra.mxu0 0
      %2398 = vmatprep.mubr.bf16.mxu0 0
      %2399 = vmatmul.mubr.bf16.gmra.mrb[0].mxu0 %v2217
      %v2400 = vpop.f32.mrb[0].mxu0
      %v2401 = vadd.f32 0.0, %v2400
      %v2402 = vpop.f32.mrb[0].mxu0
      %v2403 = vadd.f32 0.0, %v2402
      %v2404 = vpop.f32.mrb[0].mxu0
      %v2405 = vpop.f32.mrb[0].mxu0
      %2406 = vdwg.mxu0
      %v2407 = vadd.f32 %v2182, %v2278
      %v2408 = vadd.f32 %v2183, %v2280
      %v2409 = vadd.f32 %v2184, %v2319
      %v2410 = vadd.f32 %v2185, %v2321
      %v2411 = vadd.f32 %v2186, %v2360
      %v2412 = vadd.f32 %v2187, %v2362
      %v2413 = vadd.f32 %v2188, %v2401
      %v2414 = vadd.f32 %v2189, %v2403
      %s2415 = scalar_lea.vmem %s1, 18
      %v2416 = vld [vmem:[%s2415] sm:$0x3]
      %2418 = vrot.lane.b32.xlu0 %v411, 28
      %v2419 = vpop.permute.xlu0 %2418
      %2420 = vrot.lane.b32.xlu0 %v412, 28
      %v2421 = vpop.permute.xlu0 %2420
      %2422 = vrot.lane.b32.xlu0 %v413, 28
      %v2423 = vpop.permute.xlu0 %2422
      %2424 = vrot.lane.b32.xlu0 %v414, 28
      %v2425 = vpop.permute.xlu0 %2424
      %2426 = vrot.lane.b32.xlu0 %v415, 28
      %v2427 = vpop.permute.xlu0 %2426
      %2428 = vrot.lane.b32.xlu0 %v416, 28
      %v2429 = vpop.permute.xlu0 %2428
      %2430 = vrot.lane.b32.xlu0 %v417, 28
      %v2431 = vpop.permute.xlu0 %2430
      %2432 = vrot.lane.b32.xlu0 %v418, 28
      %v2433 = vpop.permute.xlu0 %2432
      %2434 = vrot.lane.b32.xlu0 %v419, 28
      %v2435 = vpop.permute.xlu0 %2434
      %vm2436 = vcmask 228352
      %v2437 = vsel %vm2436, %v2419, %v2421
      %v2438 = vsel %vm2436, %v2421, %v2423
      %v2439 = vsel %vm2436, %v2423, %v2425
      %v2440 = vsel %vm2436, %v2425, %v2427
      %v2441 = vsel %vm2436, %v2427, %v2429
      %v2442 = vsel %vm2436, %v2429, %v2431
      %v2443 = vsel %vm2436, %v2431, %v2433
      %v2444 = vsel %vm2436, %v2433, %v2435
      %v2446 = vsel %vm456, %v2416, 0
      %v2449 = vsel %vm460, %v2437, 0
      %v2452 = vsel %vm460, %v2438, 0
      %v2455 = vsel %vm460, %v2439, 0
      %v2458 = vsel %vm460, %v2440, 0
      %v2461 = vsel %vm460, %v2441, 0
      %v2464 = vsel %vm460, %v2442, 0
      %v2467 = vsel %vm460, %v2443, 0
      %v2470 = vsel %vm460, %v2444, 0
      %2472 = vmatprep.subr.bf16.mxu0 %v2452
      %2473 = vmatpush1.bf16.msra.mxu0 %v2449
      %2474 = vmatprep.subr.bf16.mxu0 0
      %2475 = vmatpush1.bf16.msra.mxu0 0
      %2476 = vmatprep.subr.bf16.mxu0 0
      %2477 = vmatpush1.bf16.msra.mxu0 0
      %2478 = vmatprep.subr.bf16.mxu0 0
      %2479 = vmatpush1.bf16.msra.mxu0 0
      %2480 = vmatprep.subr.bf16.mxu0 0
      %2481 = vmatpush1.bf16.msra.mxu0 0
      %2482 = vmatprep.subr.bf16.mxu0 0
      %2483 = vmatpush1.bf16.msra.mxu0 0
      %2484 = vmatprep.subr.bf16.mxu0 0
      %2485 = vmatpush1.bf16.msra.mxu0 0
      %2486 = vmatprep.subr.bf16.mxu0 0
      %2487 = vmatpush1.bf16.msra.mxu0 0
      %2488 = vmatprep.subr.bf16.mxu0 0
      %2489 = vmatpush1.bf16.msra.mxu0 0
      %2490 = vmatprep.subr.bf16.mxu0 0
      %2491 = vmatpush1.bf16.msra.mxu0 0
      %2492 = vmatprep.subr.bf16.mxu0 0
      %2493 = vmatpush1.bf16.msra.mxu0 0
      %2494 = vmatprep.subr.bf16.mxu0 0
      %2495 = vmatpush1.bf16.msra.mxu0 0
      %2496 = vmatprep.subr.bf16.mxu0 0
      %2497 = vmatpush1.bf16.msra.mxu0 0
      %2498 = vmatprep.subr.bf16.mxu0 0
      %2499 = vmatpush1.bf16.msra.mxu0 0
      %2500 = vmatprep.subr.bf16.mxu0 0
      %2501 = vmatpush1.bf16.msra.mxu0 0
      %2502 = vmatprep.subr.bf16.mxu0 0
      %2503 = vmatpush1.bf16.msra.mxu0 0
      %2504 = vmatprep.mubr.bf16.mxu0 0
      %2505 = vmatmul.mubr.bf16.gmra.mrb[0].mxu0 %v2446
      %v2506 = vpop.f32.mrb[0].mxu0
      %v2507 = vadd.f32 0.0, %v2506
      %v2508 = vpop.f32.mrb[0].mxu0
      %v2509 = vadd.f32 0.0, %v2508
      %v2510 = vpop.f32.mrb[0].mxu0
      %v2511 = vpop.f32.mrb[0].mxu0
      %2512 = vdwg.mxu0
      %2513 = vmatprep.subr.bf16.mxu0 %v2458
      %2514 = vmatpush1.bf16.msra.mxu0 %v2455
      %2515 = vmatprep.subr.bf16.mxu0 0
      %2516 = vmatpush1.bf16.msra.mxu0 0
      %2517 = vmatprep.subr.bf16.mxu0 0
      %2518 = vmatpush1.bf16.msra.mxu0 0
      %2519 = vmatprep.subr.bf16.mxu0 0
      %2520 = vmatpush1.bf16.msra.mxu0 0
      %2521 = vmatprep.subr.bf16.mxu0 0
      %2522 = vmatpush1.bf16.msra.mxu0 0
      %2523 = vmatprep.subr.bf16.mxu0 0
      %2524 = vmatpush1.bf16.msra.mxu0 0
      %2525 = vmatprep.subr.bf16.mxu0 0
      %2526 = vmatpush1.bf16.msra.mxu0 0
      %2527 = vmatprep.subr.bf16.mxu0 0
      %2528 = vmatpush1.bf16.msra.mxu0 0
      %2529 = vmatprep.subr.bf16.mxu0 0
      %2530 = vmatpush1.bf16.msra.mxu0 0
      %2531 = vmatprep.subr.bf16.mxu0 0
      %2532 = vmatpush1.bf16.msra.mxu0 0
      %2533 = vmatprep.subr.bf16.mxu0 0
      %2534 = vmatpush1.bf16.msra.mxu0 0
      %2535 = vmatprep.subr.bf16.mxu0 0
      %2536 = vmatpush1.bf16.msra.mxu0 0
      %2537 = vmatprep.subr.bf16.mxu0 0
      %2538 = vmatpush1.bf16.msra.mxu0 0
      %2539 = vmatprep.subr.bf16.mxu0 0
      %2540 = vmatpush1.bf16.msra.mxu0 0
      %2541 = vmatprep.subr.bf16.mxu0 0
      %2542 = vmatpush1.bf16.msra.mxu0 0
      %2543 = vmatprep.subr.bf16.mxu0 0
      %2544 = vmatpush1.bf16.msra.mxu0 0
      %2545 = vmatprep.mubr.bf16.mxu0 0
      %2546 = vmatmul.mubr.bf16.gmra.mrb[0].mxu0 %v2446
      %v2547 = vpop.f32.mrb[0].mxu0
      %v2548 = vadd.f32 0.0, %v2547
      %v2549 = vpop.f32.mrb[0].mxu0
      %v2550 = vadd.f32 0.0, %v2549
      %v2551 = vpop.f32.mrb[0].mxu0
      %v2552 = vpop.f32.mrb[0].mxu0
      %2553 = vdwg.mxu0
      %2554 = vmatprep.subr.bf16.mxu0 %v2464
      %2555 = vmatpush1.bf16.msra.mxu0 %v2461
      %2556 = vmatprep.subr.bf16.mxu0 0
      %2557 = vmatpush1.bf16.msra.mxu0 0
      %2558 = vmatprep.subr.bf16.mxu0 0
      %2559 = vmatpush1.bf16.msra.mxu0 0
      %2560 = vmatprep.subr.bf16.mxu0 0
      %2561 = vmatpush1.bf16.msra.mxu0 0
      %2562 = vmatprep.subr.bf16.mxu0 0
      %2563 = vmatpush1.bf16.msra.mxu0 0
      %2564 = vmatprep.subr.bf16.mxu0 0
      %2565 = vmatpush1.bf16.msra.mxu0 0
      %2566 = vmatprep.subr.bf16.mxu0 0
      %2567 = vmatpush1.bf16.msra.mxu0 0
      %2568 = vmatprep.subr.bf16.mxu0 0
      %2569 = vmatpush1.bf16.msra.mxu0 0
      %2570 = vmatprep.subr.bf16.mxu0 0
      %2571 = vmatpush1.bf16.msra.mxu0 0
      %2572 = vmatprep.subr.bf16.mxu0 0
      %2573 = vmatpush1.bf16.msra.mxu0 0
      %2574 = vmatprep.subr.bf16.mxu0 0
      %2575 = vmatpush1.bf16.msra.mxu0 0
      %2576 = vmatprep.subr.bf16.mxu0 0
      %2577 = vmatpush1.bf16.msra.mxu0 0
      %2578 = vmatprep.subr.bf16.mxu0 0
      %2579 = vmatpush1.bf16.msra.mxu0 0
      %2580 = vmatprep.subr.bf16.mxu0 0
      %2581 = vmatpush1.bf16.msra.mxu0 0
      %2582 = vmatprep.subr.bf16.mxu0 0
      %2583 = vmatpush1.bf16.msra.mxu0 0
      %2584 = vmatprep.subr.bf16.mxu0 0
      %2585 = vmatpush1.bf16.msra.mxu0 0
      %2586 = vmatprep.mubr.bf16.mxu0 0
      %2587 = vmatmul.mubr.bf16.gmra.mrb[0].mxu0 %v2446
      %v2588 = vpop.f32.mrb[0].mxu0
      %v2589 = vadd.f32 0.0, %v2588
      %v2590 = vpop.f32.mrb[0].mxu0
      %v2591 = vadd.f32 0.0, %v2590
      %v2592 = vpop.f32.mrb[0].mxu0
      %v2593 = vpop.f32.mrb[0].mxu0
      %2594 = vdwg.mxu0
      %2595 = vmatprep.subr.bf16.mxu0 %v2470
      %2596 = vmatpush1.bf16.msra.mxu0 %v2467
      %2597 = vmatprep.subr.bf16.mxu0 0
      %2598 = vmatpush1.bf16.msra.mxu0 0
      %2599 = vmatprep.subr.bf16.mxu0 0
      %2600 = vmatpush1.bf16.msra.mxu0 0
      %2601 = vmatprep.subr.bf16.mxu0 0
      %2602 = vmatpush1.bf16.msra.mxu0 0
      %2603 = vmatprep.subr.bf16.mxu0 0
      %2604 = vmatpush1.bf16.msra.mxu0 0
      %2605 = vmatprep.subr.bf16.mxu0 0
      %2606 = vmatpush1.bf16.msra.mxu0 0
      %2607 = vmatprep.subr.bf16.mxu0 0
      %2608 = vmatpush1.bf16.msra.mxu0 0
      %2609 = vmatprep.subr.bf16.mxu0 0
      %2610 = vmatpush1.bf16.msra.mxu0 0
      %2611 = vmatprep.subr.bf16.mxu0 0
      %2612 = vmatpush1.bf16.msra.mxu0 0
      %2613 = vmatprep.subr.bf16.mxu0 0
      %2614 = vmatpush1.bf16.msra.mxu0 0
      %2615 = vmatprep.subr.bf16.mxu0 0
      %2616 = vmatpush1.bf16.msra.mxu0 0
      %2617 = vmatprep.subr.bf16.mxu0 0
      %2618 = vmatpush1.bf16.msra.mxu0 0
      %2619 = vmatprep.subr.bf16.mxu0 0
      %2620 = vmatpush1.bf16.msra.mxu0 0
      %2621 = vmatprep.subr.bf16.mxu0 0
      %2622 = vmatpush1.bf16.msra.mxu0 0
      %2623 = vmatprep.subr.bf16.mxu0 0
      %2624 = vmatpush1.bf16.msra.mxu0 0
      %2625 = vmatprep.subr.bf16.mxu0 0
      %2626 = vmatpush1.bf16.msra.mxu0 0
      %2627 = vmatprep.mubr.bf16.mxu0 0
      %2628 = vmatmul.mubr.bf16.gmra.mrb[0].mxu0 %v2446
      %v2629 = vpop.f32.mrb[0].mxu0
      %v2630 = vadd.f32 0.0, %v2629
      %v2631 = vpop.f32.mrb[0].mxu0
      %v2632 = vadd.f32 0.0, %v2631
      %v2633 = vpop.f32.mrb[0].mxu0
      %v2634 = vpop.f32.mrb[0].mxu0
      %2635 = vdwg.mxu0
      %v2636 = vadd.f32 %v2407, %v2507
      %v2637 = vadd.f32 %v2408, %v2509
      %v2638 = vadd.f32 %v2409, %v2548
      %v2639 = vadd.f32 %v2410, %v2550
      %v2640 = vadd.f32 %v2411, %v2589
      %v2641 = vadd.f32 %v2412, %v2591
      %v2642 = vadd.f32 %v2413, %v2630
      %v2643 = vadd.f32 %v2414, %v2632
      %s2644 = scalar_lea.vmem %s1, 20
      %v2645 = vld [vmem:[%s2644] sm:$0x3]
      %2646 = vrot.lane.b32.xlu0 %v411, 27
      %v2647 = vpop.permute.xlu0 %2646
      %2648 = vrot.lane.b32.xlu0 %v412, 27
      %v2649 = vpop.permute.xlu0 %2648
      %2650 = vrot.lane.b32.xlu0 %v413, 27
      %v2651 = vpop.permute.xlu0 %2650
      %2652 = vrot.lane.b32.xlu0 %v414, 27
      %v2653 = vpop.permute.xlu0 %2652
      %2654 = vrot.lane.b32.xlu0 %v415, 27
      %v2655 = vpop.permute.xlu0 %2654
      %2656 = vrot.lane.b32.xlu0 %v416, 27
      %v2657 = vpop.permute.xlu0 %2656
      %2658 = vrot.lane.b32.xlu0 %v417, 27
      %v2659 = vpop.permute.xlu0 %2658
      %2660 = vrot.lane.b32.xlu0 %v418, 27
      %v2661 = vpop.permute.xlu0 %2660
      %2662 = vrot.lane.b32.xlu0 %v419, 27
      %v2663 = vpop.permute.xlu0 %2662
      %vm2664 = vcmask 220160
      %v2665 = vsel %vm2664, %v2647, %v2649
      %v2666 = vsel %vm2664, %v2649, %v2651
      %v2667 = vsel %vm2664, %v2651, %v2653
      %v2668 = vsel %vm2664, %v2653, %v2655
      %v2669 = vsel %vm2664, %v2655, %v2657
      %v2670 = vsel %vm2664, %v2657, %v2659
      %v2671 = vsel %vm2664, %v2659, %v2661
      %v2672 = vsel %vm2664, %v2661, %v2663
      %v2674 = vsel %vm456, %v2645, 0
      %v2677 = vsel %vm460, %v2665, 0
      %v2680 = vsel %vm460, %v2666, 0
      %v2683 = vsel %vm460, %v2667, 0
      %v2686 = vsel %vm460, %v2668, 0
      %v2689 = vsel %vm460, %v2669, 0
      %v2692 = vsel %vm460, %v2670, 0
      %v2695 = vsel %vm460, %v2671, 0
      %v2698 = vsel %vm460, %v2672, 0
      %2700 = vmatprep.subr.bf16.mxu0 %v2680
      %2701 = vmatpush1.bf16.msra.mxu0 %v2677
      %2702 = vmatprep.subr.bf16.mxu0 0
      %2703 = vmatpush1.bf16.msra.mxu0 0
      %2704 = vmatprep.subr.bf16.mxu0 0
      %2705 = vmatpush1.bf16.msra.mxu0 0
      %2706 = vmatprep.subr.bf16.mxu0 0
      %2707 = vmatpush1.bf16.msra.mxu0 0
      %2708 = vmatprep.subr.bf16.mxu0 0
      %2709 = vmatpush1.bf16.msra.mxu0 0
      %2710 = vmatprep.subr.bf16.mxu0 0
      %2711 = vmatpush1.bf16.msra.mxu0 0
      %2712 = vmatprep.subr.bf16.mxu0 0
      %2713 = vmatpush1.bf16.msra.mxu0 0
      %2714 = vmatprep.subr.bf16.mxu0 0
      %2715 = vmatpush1.bf16.msra.mxu0 0
      %2716 = vmatprep.subr.bf16.mxu0 0
      %2717 = vmatpush1.bf16.msra.mxu0 0
      %2718 = vmatprep.subr.bf16.mxu0 0
      %2719 = vmatpush1.bf16.msra.mxu0 0
      %2720 = vmatprep.subr.bf16.mxu0 0
      %2721 = vmatpush1.bf16.msra.mxu0 0
      %2722 = vmatprep.subr.bf16.mxu0 0
      %2723 = vmatpush1.bf16.msra.mxu0 0
      %2724 = vmatprep.subr.bf16.mxu0 0
      %2725 = vmatpush1.bf16.msra.mxu0 0
      %2726 = vmatprep.subr.bf16.mxu0 0
      %2727 = vmatpush1.bf16.msra.mxu0 0
      %2728 = vmatprep.subr.bf16.mxu0 0
      %2729 = vmatpush1.bf16.msra.mxu0 0
      %2730 = vmatprep.subr.bf16.mxu0 0
      %2731 = vmatpush1.bf16.msra.mxu0 0
      %2732 = vmatprep.mubr.bf16.mxu0 0
      %2733 = vmatmul.mubr.bf16.gmra.mrb[0].mxu0 %v2674
      %v2734 = vpop.f32.mrb[0].mxu0
      %v2735 = vadd.f32 0.0, %v2734
      %v2736 = vpop.f32.mrb[0].mxu0
      %v2737 = vadd.f32 0.0, %v2736
      %v2738 = vpop.f32.mrb[0].mxu0
      %v2739 = vpop.f32.mrb[0].mxu0
      %2740 = vdwg.mxu0
      %2741 = vmatprep.subr.bf16.mxu0 %v2686
      %2742 = vmatpush1.bf16.msra.mxu0 %v2683
      %2743 = vmatprep.subr.bf16.mxu0 0
      %2744 = vmatpush1.bf16.msra.mxu0 0
      %2745 = vmatprep.subr.bf16.mxu0 0
      %2746 = vmatpush1.bf16.msra.mxu0 0
      %2747 = vmatprep.subr.bf16.mxu0 0
      %2748 = vmatpush1.bf16.msra.mxu0 0
      %2749 = vmatprep.subr.bf16.mxu0 0
      %2750 = vmatpush1.bf16.msra.mxu0 0
      %2751 = vmatprep.subr.bf16.mxu0 0
      %2752 = vmatpush1.bf16.msra.mxu0 0
      %2753 = vmatprep.subr.bf16.mxu0 0
      %2754 = vmatpush1.bf16.msra.mxu0 0
      %2755 = vmatprep.subr.bf16.mxu0 0
      %2756 = vmatpush1.bf16.msra.mxu0 0
      %2757 = vmatprep.subr.bf16.mxu0 0
      %2758 = vmatpush1.bf16.msra.mxu0 0
      %2759 = vmatprep.subr.bf16.mxu0 0
      %2760 = vmatpush1.bf16.msra.mxu0 0
      %2761 = vmatprep.subr.bf16.mxu0 0
      %2762 = vmatpush1.bf16.msra.mxu0 0
      %2763 = vmatprep.subr.bf16.mxu0 0
      %2764 = vmatpush1.bf16.msra.mxu0 0
      %2765 = vmatprep.subr.bf16.mxu0 0
      %2766 = vmatpush1.bf16.msra.mxu0 0
      %2767 = vmatprep.subr.bf16.mxu0 0
      %2768 = vmatpush1.bf16.msra.mxu0 0
      %2769 = vmatprep.subr.bf16.mxu0 0
      %2770 = vmatpush1.bf16.msra.mxu0 0
      %2771 = vmatprep.subr.bf16.mxu0 0
      %2772 = vmatpush1.bf16.msra.mxu0 0
      %2773 = vmatprep.mubr.bf16.mxu0 0
      %2774 = vmatmul.mubr.bf16.gmra.mrb[0].mxu0 %v2674
      %v2775 = vpop.f32.mrb[0].mxu0
      %v2776 = vadd.f32 0.0, %v2775
      %v2777 = vpop.f32.mrb[0].mxu0
      %v2778 = vadd.f32 0.0, %v2777
      %v2779 = vpop.f32.mrb[0].mxu0
      %v2780 = vpop.f32.mrb[0].mxu0
      %2781 = vdwg.mxu0
      %2782 = vmatprep.subr.bf16.mxu0 %v2692
      %2783 = vmatpush1.bf16.msra.mxu0 %v2689
      %2784 = vmatprep.subr.bf16.mxu0 0
      %2785 = vmatpush1.bf16.msra.mxu0 0
      %2786 = vmatprep.subr.bf16.mxu0 0
      %2787 = vmatpush1.bf16.msra.mxu0 0
      %2788 = vmatprep.subr.bf16.mxu0 0
      %2789 = vmatpush1.bf16.msra.mxu0 0
      %2790 = vmatprep.subr.bf16.mxu0 0
      %2791 = vmatpush1.bf16.msra.mxu0 0
      %2792 = vmatprep.subr.bf16.mxu0 0
      %2793 = vmatpush1.bf16.msra.mxu0 0
      %2794 = vmatprep.subr.bf16.mxu0 0
      %2795 = vmatpush1.bf16.msra.mxu0 0
      %2796 = vmatprep.subr.bf16.mxu0 0
      %2797 = vmatpush1.bf16.msra.mxu0 0
      %2798 = vmatprep.subr.bf16.mxu0 0
      %2799 = vmatpush1.bf16.msra.mxu0 0
      %2800 = vmatprep.subr.bf16.mxu0 0
      %2801 = vmatpush1.bf16.msra.mxu0 0
      %2802 = vmatprep.subr.bf16.mxu0 0
      %2803 = vmatpush1.bf16.msra.mxu0 0
      %2804 = vmatprep.subr.bf16.mxu0 0
      %2805 = vmatpush1.bf16.msra.mxu0 0
      %2806 = vmatprep.subr.bf16.mxu0 0
      %2807 = vmatpush1.bf16.msra.mxu0 0
      %2808 = vmatprep.subr.bf16.mxu0 0
      %2809 = vmatpush1.bf16.msra.mxu0 0
      %2810 = vmatprep.subr.bf16.mxu0 0
      %2811 = vmatpush1.bf16.msra.mxu0 0
      %2812 = vmatprep.subr.bf16.mxu0 0
      %2813 = vmatpush1.bf16.msra.mxu0 0
      %2814 = vmatprep.mubr.bf16.mxu0 0
      %2815 = vmatmul.mubr.bf16.gmra.mrb[0].mxu0 %v2674
      %v2816 = vpop.f32.mrb[0].mxu0
      %v2817 = vadd.f32 0.0, %v2816
      %v2818 = vpop.f32.mrb[0].mxu0
      %v2819 = vadd.f32 0.0, %v2818
      %v2820 = vpop.f32.mrb[0].mxu0
      %v2821 = vpop.f32.mrb[0].mxu0
      %2822 = vdwg.mxu0
      %2823 = vmatprep.subr.bf16.mxu0 %v2698
      %2824 = vmatpush1.bf16.msra.mxu0 %v2695
      %2825 = vmatprep.subr.bf16.mxu0 0
      %2826 = vmatpush1.bf16.msra.mxu0 0
      %2827 = vmatprep.subr.bf16.mxu0 0
      %2828 = vmatpush1.bf16.msra.mxu0 0
      %2829 = vmatprep.subr.bf16.mxu0 0
      %2830 = vmatpush1.bf16.msra.mxu0 0
      %2831 = vmatprep.subr.bf16.mxu0 0
      %2832 = vmatpush1.bf16.msra.mxu0 0
      %2833 = vmatprep.subr.bf16.mxu0 0
      %2834 = vmatpush1.bf16.msra.mxu0 0
      %2835 = vmatprep.subr.bf16.mxu0 0
      %2836 = vmatpush1.bf16.msra.mxu0 0
      %2837 = vmatprep.subr.bf16.mxu0 0
      %2838 = vmatpush1.bf16.msra.mxu0 0
      %2839 = vmatprep.subr.bf16.mxu0 0
      %2840 = vmatpush1.bf16.msra.mxu0 0
      %2841 = vmatprep.subr.bf16.mxu0 0
      %2842 = vmatpush1.bf16.msra.mxu0 0
      %2843 = vmatprep.subr.bf16.mxu0 0
      %2844 = vmatpush1.bf16.msra.mxu0 0
      %2845 = vmatprep.subr.bf16.mxu0 0
      %2846 = vmatpush1.bf16.msra.mxu0 0
      %2847 = vmatprep.subr.bf16.mxu0 0
      %2848 = vmatpush1.bf16.msra.mxu0 0
      %2849 = vmatprep.subr.bf16.mxu0 0
      %2850 = vmatpush1.bf16.msra.mxu0 0
      %2851 = vmatprep.subr.bf16.mxu0 0
      %2852 = vmatpush1.bf16.msra.mxu0 0
      %2853 = vmatprep.subr.bf16.mxu0 0
      %2854 = vmatpush1.bf16.msra.mxu0 0
      %2855 = vmatprep.mubr.bf16.mxu0 0
      %2856 = vmatmul.mubr.bf16.gmra.mrb[0].mxu0 %v2674
      %v2857 = vpop.f32.mrb[0].mxu0
      %v2858 = vadd.f32 0.0, %v2857
      %v2859 = vpop.f32.mrb[0].mxu0
      %v2860 = vadd.f32 0.0, %v2859
      %v2861 = vpop.f32.mrb[0].mxu0
      %v2862 = vpop.f32.mrb[0].mxu0
      %2863 = vdwg.mxu0
      %v2864 = vadd.f32 %v2636, %v2735
      %v2865 = vadd.f32 %v2637, %v2737
      %v2866 = vadd.f32 %v2638, %v2776
      %v2867 = vadd.f32 %v2639, %v2778
      %v2868 = vadd.f32 %v2640, %v2817
      %v2869 = vadd.f32 %v2641, %v2819
      %v2870 = vadd.f32 %v2642, %v2858
      %v2871 = vadd.f32 %v2643, %v2860
      %s2872 = scalar_lea.vmem %s1, 22
      %v2873 = vld [vmem:[%s2872] sm:$0x3]
      %2874 = vrot.lane.b32.xlu0 %v411, 26
      %v2875 = vpop.permute.xlu0 %2874
      %2876 = vrot.lane.b32.xlu0 %v412, 26
      %v2877 = vpop.permute.xlu0 %2876
      %2878 = vrot.lane.b32.xlu0 %v413, 26
      %v2879 = vpop.permute.xlu0 %2878
      %2880 = vrot.lane.b32.xlu0 %v414, 26
      %v2881 = vpop.permute.xlu0 %2880
      %2882 = vrot.lane.b32.xlu0 %v415, 26
      %v2883 = vpop.permute.xlu0 %2882
      %2884 = vrot.lane.b32.xlu0 %v416, 26
      %v2885 = vpop.permute.xlu0 %2884
      %2886 = vrot.lane.b32.xlu0 %v417, 26
      %v2887 = vpop.permute.xlu0 %2886
      %2888 = vrot.lane.b32.xlu0 %v418, 26
      %v2889 = vpop.permute.xlu0 %2888
      %2890 = vrot.lane.b32.xlu0 %v419, 26
      %v2891 = vpop.permute.xlu0 %2890
      %vm2892 = vcmask 211968
      %v2893 = vsel %vm2892, %v2875, %v2877
      %v2894 = vsel %vm2892, %v2877, %v2879
      %v2895 = vsel %vm2892, %v2879, %v2881
      %v2896 = vsel %vm2892, %v2881, %v2883
      %v2897 = vsel %vm2892, %v2883, %v2885
      %v2898 = vsel %vm2892, %v2885, %v2887
      %v2899 = vsel %vm2892, %v2887, %v2889
      %v2900 = vsel %vm2892, %v2889, %v2891
      %v2902 = vsel %vm456, %v2873, 0
      %v2905 = vsel %vm460, %v2893, 0
      %v2908 = vsel %vm460, %v2894, 0
      %v2911 = vsel %vm460, %v2895, 0
      %v2914 = vsel %vm460, %v2896, 0
      %v2917 = vsel %vm460, %v2897, 0
      %v2920 = vsel %vm460, %v2898, 0
      %v2923 = vsel %vm460, %v2899, 0
      %v2926 = vsel %vm460, %v2900, 0
      %2928 = vmatprep.subr.bf16.mxu0 %v2908
      %2929 = vmatpush1.bf16.msra.mxu0 %v2905
      %2930 = vmatprep.subr.bf16.mxu0 0
      %2931 = vmatpush1.bf16.msra.mxu0 0
      %2932 = vmatprep.subr.bf16.mxu0 0
      %2933 = vmatpush1.bf16.msra.mxu0 0
      %2934 = vmatprep.subr.bf16.mxu0 0
      %2935 = vmatpush1.bf16.msra.mxu0 0
      %2936 = vmatprep.subr.bf16.mxu0 0
      %2937 = vmatpush1.bf16.msra.mxu0 0
      %2938 = vmatprep.subr.bf16.mxu0 0
      %2939 = vmatpush1.bf16.msra.mxu0 0
      %2940 = vmatprep.subr.bf16.mxu0 0
      %2941 = vmatpush1.bf16.msra.mxu0 0
      %2942 = vmatprep.subr.bf16.mxu0 0
      %2943 = vmatpush1.bf16.msra.mxu0 0
      %2944 = vmatprep.subr.bf16.mxu0 0
      %2945 = vmatpush1.bf16.msra.mxu0 0
      %2946 = vmatprep.subr.bf16.mxu0 0
      %2947 = vmatpush1.bf16.msra.mxu0 0
      %2948 = vmatprep.subr.bf16.mxu0 0
      %2949 = vmatpush1.bf16.msra.mxu0 0
      %2950 = vmatprep.subr.bf16.mxu0 0
      %2951 = vmatpush1.bf16.msra.mxu0 0
      %2952 = vmatprep.subr.bf16.mxu0 0
      %2953 = vmatpush1.bf16.msra.mxu0 0
      %2954 = vmatprep.subr.bf16.mxu0 0
      %2955 = vmatpush1.bf16.msra.mxu0 0
      %2956 = vmatprep.subr.bf16.mxu0 0
      %2957 = vmatpush1.bf16.msra.mxu0 0
      %2958 = vmatprep.subr.bf16.mxu0 0
      %2959 = vmatpush1.bf16.msra.mxu0 0
      %2960 = vmatprep.mubr.bf16.mxu0 0
      %2961 = vmatmul.mubr.bf16.gmra.mrb[0].mxu0 %v2902
      %v2962 = vpop.f32.mrb[0].mxu0
      %v2963 = vadd.f32 0.0, %v2962
      %v2964 = vpop.f32.mrb[0].mxu0
      %v2965 = vadd.f32 0.0, %v2964
      %v2966 = vpop.f32.mrb[0].mxu0
      %v2967 = vpop.f32.mrb[0].mxu0
      %2968 = vdwg.mxu0
      %2969 = vmatprep.subr.bf16.mxu0 %v2914
      %2970 = vmatpush1.bf16.msra.mxu0 %v2911
      %2971 = vmatprep.subr.bf16.mxu0 0
      %2972 = vmatpush1.bf16.msra.mxu0 0
      %2973 = vmatprep.subr.bf16.mxu0 0
      %2974 = vmatpush1.bf16.msra.mxu0 0
      %2975 = vmatprep.subr.bf16.mxu0 0
      %2976 = vmatpush1.bf16.msra.mxu0 0
      %2977 = vmatprep.subr.bf16.mxu0 0
      %2978 = vmatpush1.bf16.msra.mxu0 0
      %2979 = vmatprep.subr.bf16.mxu0 0
      %2980 = vmatpush1.bf16.msra.mxu0 0
      %2981 = vmatprep.subr.bf16.mxu0 0
      %2982 = vmatpush1.bf16.msra.mxu0 0
      %2983 = vmatprep.subr.bf16.mxu0 0
      %2984 = vmatpush1.bf16.msra.mxu0 0
      %2985 = vmatprep.subr.bf16.mxu0 0
      %2986 = vmatpush1.bf16.msra.mxu0 0
      %2987 = vmatprep.subr.bf16.mxu0 0
      %2988 = vmatpush1.bf16.msra.mxu0 0
      %2989 = vmatprep.subr.bf16.mxu0 0
      %2990 = vmatpush1.bf16.msra.mxu0 0
      %2991 = vmatprep.subr.bf16.mxu0 0
      %2992 = vmatpush1.bf16.msra.mxu0 0
      %2993 = vmatprep.subr.bf16.mxu0 0
      %2994 = vmatpush1.bf16.msra.mxu0 0
      %2995 = vmatprep.subr.bf16.mxu0 0
      %2996 = vmatpush1.bf16.msra.mxu0 0
      %2997 = vmatprep.subr.bf16.mxu0 0
      %2998 = vmatpush1.bf16.msra.mxu0 0
      %2999 = vmatprep.subr.bf16.mxu0 0
      %3000 = vmatpush1.bf16.msra.mxu0 0
      %3001 = vmatprep.mubr.bf16.mxu0 0
      %3002 = vmatmul.mubr.bf16.gmra.mrb[0].mxu0 %v2902
      %v3003 = vpop.f32.mrb[0].mxu0
      %v3004 = vadd.f32 0.0, %v3003
      %v3005 = vpop.f32.mrb[0].mxu0
      %v3006 = vadd.f32 0.0, %v3005
      %v3007 = vpop.f32.mrb[0].mxu0
      %v3008 = vpop.f32.mrb[0].mxu0
      %3009 = vdwg.mxu0
      %3010 = vmatprep.subr.bf16.mxu0 %v2920
      %3011 = vmatpush1.bf16.msra.mxu0 %v2917
      %3012 = vmatprep.subr.bf16.mxu0 0
      %3013 = vmatpush1.bf16.msra.mxu0 0
      %3014 = vmatprep.subr.bf16.mxu0 0
      %3015 = vmatpush1.bf16.msra.mxu0 0
      %3016 = vmatprep.subr.bf16.mxu0 0
      %3017 = vmatpush1.bf16.msra.mxu0 0
      %3018 = vmatprep.subr.bf16.mxu0 0
      %3019 = vmatpush1.bf16.msra.mxu0 0
      %3020 = vmatprep.subr.bf16.mxu0 0
      %3021 = vmatpush1.bf16.msra.mxu0 0
      %3022 = vmatprep.subr.bf16.mxu0 0
      %3023 = vmatpush1.bf16.msra.mxu0 0
      %3024 = vmatprep.subr.bf16.mxu0 0
      %3025 = vmatpush1.bf16.msra.mxu0 0
      %3026 = vmatprep.subr.bf16.mxu0 0
      %3027 = vmatpush1.bf16.msra.mxu0 0
      %3028 = vmatprep.subr.bf16.mxu0 0
      %3029 = vmatpush1.bf16.msra.mxu0 0
      %3030 = vmatprep.subr.bf16.mxu0 0
      %3031 = vmatpush1.bf16.msra.mxu0 0
      %3032 = vmatprep.subr.bf16.mxu0 0
      %3033 = vmatpush1.bf16.msra.mxu0 0
      %3034 = vmatprep.subr.bf16.mxu0 0
      %3035 = vmatpush1.bf16.msra.mxu0 0
      %3036 = vmatprep.subr.bf16.mxu0 0
      %3037 = vmatpush1.bf16.msra.mxu0 0
      %3038 = vmatprep.subr.bf16.mxu0 0
      %3039 = vmatpush1.bf16.msra.mxu0 0
      %3040 = vmatprep.subr.bf16.mxu0 0
      %3041 = vmatpush1.bf16.msra.mxu0 0
      %3042 = vmatprep.mubr.bf16.mxu0 0
      %3043 = vmatmul.mubr.bf16.gmra.mrb[0].mxu0 %v2902
      %v3044 = vpop.f32.mrb[0].mxu0
      %v3045 = vadd.f32 0.0, %v3044
      %v3046 = vpop.f32.mrb[0].mxu0
      %v3047 = vadd.f32 0.0, %v3046
      %v3048 = vpop.f32.mrb[0].mxu0
      %v3049 = vpop.f32.mrb[0].mxu0
      %3050 = vdwg.mxu0
      %3051 = vmatprep.subr.bf16.mxu0 %v2926
      %3052 = vmatpush1.bf16.msra.mxu0 %v2923
      %3053 = vmatprep.subr.bf16.mxu0 0
      %3054 = vmatpush1.bf16.msra.mxu0 0
      %3055 = vmatprep.subr.bf16.mxu0 0
      %3056 = vmatpush1.bf16.msra.mxu0 0
      %3057 = vmatprep.subr.bf16.mxu0 0
      %3058 = vmatpush1.bf16.msra.mxu0 0
      %3059 = vmatprep.subr.bf16.mxu0 0
      %3060 = vmatpush1.bf16.msra.mxu0 0
      %3061 = vmatprep.subr.bf16.mxu0 0
      %3062 = vmatpush1.bf16.msra.mxu0 0
      %3063 = vmatprep.subr.bf16.mxu0 0
      %3064 = vmatpush1.bf16.msra.mxu0 0
      %3065 = vmatprep.subr.bf16.mxu0 0
      %3066 = vmatpush1.bf16.msra.mxu0 0
      %3067 = vmatprep.subr.bf16.mxu0 0
      %3068 = vmatpush1.bf16.msra.mxu0 0
      %3069 = vmatprep.subr.bf16.mxu0 0
      %3070 = vmatpush1.bf16.msra.mxu0 0
      %3071 = vmatprep.subr.bf16.mxu0 0
      %3072 = vmatpush1.bf16.msra.mxu0 0
      %3073 = vmatprep.subr.bf16.mxu0 0
      %3074 = vmatpush1.bf16.msra.mxu0 0
      %3075 = vmatprep.subr.bf16.mxu0 0
      %3076 = vmatpush1.bf16.msra.mxu0 0
      %3077 = vmatprep.subr.bf16.mxu0 0
      %3078 = vmatpush1.bf16.msra.mxu0 0
      %3079 = vmatprep.subr.bf16.mxu0 0
      %3080 = vmatpush1.bf16.msra.mxu0 0
      %3081 = vmatprep.subr.bf16.mxu0 0
      %3082 = vmatpush1.bf16.msra.mxu0 0
      %3083 = vmatprep.mubr.bf16.mxu0 0
      %3084 = vmatmul.mubr.bf16.gmra.mrb[0].mxu0 %v2902
      %v3085 = vpop.f32.mrb[0].mxu0
      %v3086 = vadd.f32 0.0, %v3085
      %v3087 = vpop.f32.mrb[0].mxu0
      %v3088 = vadd.f32 0.0, %v3087
      %v3089 = vpop.f32.mrb[0].mxu0
      %v3090 = vpop.f32.mrb[0].mxu0
      %3091 = vdwg.mxu0
      %v3092 = vadd.f32 %v2864, %v2963
      %v3093 = vadd.f32 %v2865, %v2965
      %v3094 = vadd.f32 %v2866, %v3004
      %v3095 = vadd.f32 %v2867, %v3006
      %v3096 = vadd.f32 %v2868, %v3045
      %v3097 = vadd.f32 %v2869, %v3047
      %v3098 = vadd.f32 %v2870, %v3086
      %v3099 = vadd.f32 %v2871, %v3088
      %s3100 = scalar_lea.vmem %s1, 24
      %v3101 = vld [vmem:[%s3100] sm:$0x3]
      %3102 = vrot.lane.b32.xlu0 %v411, 18
      %v3103 = vpop.permute.xlu0 %3102
      %3104 = vrot.lane.b32.xlu0 %v412, 18
      %v3105 = vpop.permute.xlu0 %3104
      %3106 = vrot.lane.b32.xlu0 %v413, 18
      %v3107 = vpop.permute.xlu0 %3106
      %3108 = vrot.lane.b32.xlu0 %v414, 18
      %v3109 = vpop.permute.xlu0 %3108
      %3110 = vrot.lane.b32.xlu0 %v415, 18
      %v3111 = vpop.permute.xlu0 %3110
      %3112 = vrot.lane.b32.xlu0 %v416, 18
      %v3113 = vpop.permute.xlu0 %3112
      %3114 = vrot.lane.b32.xlu0 %v417, 18
      %v3115 = vpop.permute.xlu0 %3114
      %3116 = vrot.lane.b32.xlu0 %v418, 18
      %v3117 = vpop.permute.xlu0 %3116
      %3118 = vrot.lane.b32.xlu0 %v419, 18
      %v3119 = vpop.permute.xlu0 %3118
      %vm3120 = vcmask 146432
      %v3121 = vsel %vm3120, %v3103, %v3105
      %v3122 = vsel %vm3120, %v3105, %v3107
      %v3123 = vsel %vm3120, %v3107, %v3109
      %v3124 = vsel %vm3120, %v3109, %v3111
      %v3125 = vsel %vm3120, %v3111, %v3113
      %v3126 = vsel %vm3120, %v3113, %v3115
      %v3127 = vsel %vm3120, %v3115, %v3117
      %v3128 = vsel %vm3120, %v3117, %v3119
      %v3130 = vsel %vm456, %v3101, 0
      %v3133 = vsel %vm460, %v3121, 0
      %v3136 = vsel %vm460, %v3122, 0
      %v3139 = vsel %vm460, %v3123, 0
      %v3142 = vsel %vm460, %v3124, 0
      %v3145 = vsel %vm460, %v3125, 0
      %v3148 = vsel %vm460, %v3126, 0
      %v3151 = vsel %vm460, %v3127, 0
      %v3154 = vsel %vm460, %v3128, 0
      %3156 = vmatprep.subr.bf16.mxu0 %v3136
      %3157 = vmatpush1.bf16.msra.mxu0 %v3133
      %3158 = vmatprep.subr.bf16.mxu0 0
      %3159 = vmatpush1.bf16.msra.mxu0 0
      %3160 = vmatprep.subr.bf16.mxu0 0
      %3161 = vmatpush1.bf16.msra.mxu0 0
      %3162 = vmatprep.subr.bf16.mxu0 0
      %3163 = vmatpush1.bf16.msra.mxu0 0
      %3164 = vmatprep.subr.bf16.mxu0 0
      %3165 = vmatpush1.bf16.msra.mxu0 0
      %3166 = vmatprep.subr.bf16.mxu0 0
      %3167 = vmatpush1.bf16.msra.mxu0 0
      %3168 = vmatprep.subr.bf16.mxu0 0
      %3169 = vmatpush1.bf16.msra.mxu0 0
      %3170 = vmatprep.subr.bf16.mxu0 0
      %3171 = vmatpush1.bf16.msra.mxu0 0
      %3172 = vmatprep.subr.bf16.mxu0 0
      %3173 = vmatpush1.bf16.msra.mxu0 0
      %3174 = vmatprep.subr.bf16.mxu0 0
      %3175 = vmatpush1.bf16.msra.mxu0 0
      %3176 = vmatprep.subr.bf16.mxu0 0
      %3177 = vmatpush1.bf16.msra.mxu0 0
      %3178 = vmatprep.subr.bf16.mxu0 0
      %3179 = vmatpush1.bf16.msra.mxu0 0
      %3180 = vmatprep.subr.bf16.mxu0 0
      %3181 = vmatpush1.bf16.msra.mxu0 0
      %3182 = vmatprep.subr.bf16.mxu0 0
      %3183 = vmatpush1.bf16.msra.mxu0 0
      %3184 = vmatprep.subr.bf16.mxu0 0
      %3185 = vmatpush1.bf16.msra.mxu0 0
      %3186 = vmatprep.subr.bf16.mxu0 0
      %3187 = vmatpush1.bf16.msra.mxu0 0
      %3188 = vmatprep.mubr.bf16.mxu0 0
      %3189 = vmatmul.mubr.bf16.gmra.mrb[0].mxu0 %v3130
      %v3190 = vpop.f32.mrb[0].mxu0
      %v3191 = vadd.f32 0.0, %v3190
      %v3192 = vpop.f32.mrb[0].mxu0
      %v3193 = vadd.f32 0.0, %v3192
      %v3194 = vpop.f32.mrb[0].mxu0
      %v3195 = vpop.f32.mrb[0].mxu0
      %3196 = vdwg.mxu0
      %3197 = vmatprep.subr.bf16.mxu0 %v3142
      %3198 = vmatpush1.bf16.msra.mxu0 %v3139
      %3199 = vmatprep.subr.bf16.mxu0 0
      %3200 = vmatpush1.bf16.msra.mxu0 0
      %3201 = vmatprep.subr.bf16.mxu0 0
      %3202 = vmatpush1.bf16.msra.mxu0 0
      %3203 = vmatprep.subr.bf16.mxu0 0
      %3204 = vmatpush1.bf16.msra.mxu0 0
      %3205 = vmatprep.subr.bf16.mxu0 0
      %3206 = vmatpush1.bf16.msra.mxu0 0
      %3207 = vmatprep.subr.bf16.mxu0 0
      %3208 = vmatpush1.bf16.msra.mxu0 0
      %3209 = vmatprep.subr.bf16.mxu0 0
      %3210 = vmatpush1.bf16.msra.mxu0 0
      %3211 = vmatprep.subr.bf16.mxu0 0
      %3212 = vmatpush1.bf16.msra.mxu0 0
      %3213 = vmatprep.subr.bf16.mxu0 0
      %3214 = vmatpush1.bf16.msra.mxu0 0
      %3215 = vmatprep.subr.bf16.mxu0 0
      %3216 = vmatpush1.bf16.msra.mxu0 0
      %3217 = vmatprep.subr.bf16.mxu0 0
      %3218 = vmatpush1.bf16.msra.mxu0 0
      %3219 = vmatprep.subr.bf16.mxu0 0
      %3220 = vmatpush1.bf16.msra.mxu0 0
      %3221 = vmatprep.subr.bf16.mxu0 0
      %3222 = vmatpush1.bf16.msra.mxu0 0
      %3223 = vmatprep.subr.bf16.mxu0 0
      %3224 = vmatpush1.bf16.msra.mxu0 0
      %3225 = vmatprep.subr.bf16.mxu0 0
      %3226 = vmatpush1.bf16.msra.mxu0 0
      %3227 = vmatprep.subr.bf16.mxu0 0
      %3228 = vmatpush1.bf16.msra.mxu0 0
      %3229 = vmatprep.mubr.bf16.mxu0 0
      %3230 = vmatmul.mubr.bf16.gmra.mrb[0].mxu0 %v3130
      %v3231 = vpop.f32.mrb[0].mxu0
      %v3232 = vadd.f32 0.0, %v3231
      %v3233 = vpop.f32.mrb[0].mxu0
      %v3234 = vadd.f32 0.0, %v3233
      %v3235 = vpop.f32.mrb[0].mxu0
      %v3236 = vpop.f32.mrb[0].mxu0
      %3237 = vdwg.mxu0
      %3238 = vmatprep.subr.bf16.mxu0 %v3148
      %3239 = vmatpush1.bf16.msra.mxu0 %v3145
      %3240 = vmatprep.subr.bf16.mxu0 0
      %3241 = vmatpush1.bf16.msra.mxu0 0
      %3242 = vmatprep.subr.bf16.mxu0 0
      %3243 = vmatpush1.bf16.msra.mxu0 0
      %3244 = vmatprep.subr.bf16.mxu0 0
      %3245 = vmatpush1.bf16.msra.mxu0 0
      %3246 = vmatprep.subr.bf16.mxu0 0
      %3247 = vmatpush1.bf16.msra.mxu0 0
      %3248 = vmatprep.subr.bf16.mxu0 0
      %3249 = vmatpush1.bf16.msra.mxu0 0
      %3250 = vmatprep.subr.bf16.mxu0 0
      %3251 = vmatpush1.bf16.msra.mxu0 0
      %3252 = vmatprep.subr.bf16.mxu0 0
      %3253 = vmatpush1.bf16.msra.mxu0 0
      %3254 = vmatprep.subr.bf16.mxu0 0
      %3255 = vmatpush1.bf16.msra.mxu0 0
      %3256 = vmatprep.subr.bf16.mxu0 0
      %3257 = vmatpush1.bf16.msra.mxu0 0
      %3258 = vmatprep.subr.bf16.mxu0 0
      %3259 = vmatpush1.bf16.msra.mxu0 0
      %3260 = vmatprep.subr.bf16.mxu0 0
      %3261 = vmatpush1.bf16.msra.mxu0 0
      %3262 = vmatprep.subr.bf16.mxu0 0
      %3263 = vmatpush1.bf16.msra.mxu0 0
      %3264 = vmatprep.subr.bf16.mxu0 0
      %3265 = vmatpush1.bf16.msra.mxu0 0
      %3266 = vmatprep.subr.bf16.mxu0 0
      %3267 = vmatpush1.bf16.msra.mxu0 0
      %3268 = vmatprep.subr.bf16.mxu0 0
      %3269 = vmatpush1.bf16.msra.mxu0 0
      %3270 = vmatprep.mubr.bf16.mxu0 0
      %3271 = vmatmul.mubr.bf16.gmra.mrb[0].mxu0 %v3130
      %v3272 = vpop.f32.mrb[0].mxu0
      %v3273 = vadd.f32 0.0, %v3272
      %v3274 = vpop.f32.mrb[0].mxu0
      %v3275 = vadd.f32 0.0, %v3274
      %v3276 = vpop.f32.mrb[0].mxu0
      %v3277 = vpop.f32.mrb[0].mxu0
      %3278 = vdwg.mxu0
      %3279 = vmatprep.subr.bf16.mxu0 %v3154
      %3280 = vmatpush1.bf16.msra.mxu0 %v3151
      %3281 = vmatprep.subr.bf16.mxu0 0
      %3282 = vmatpush1.bf16.msra.mxu0 0
      %3283 = vmatprep.subr.bf16.mxu0 0
      %3284 = vmatpush1.bf16.msra.mxu0 0
      %3285 = vmatprep.subr.bf16.mxu0 0
      %3286 = vmatpush1.bf16.msra.mxu0 0
      %3287 = vmatprep.subr.bf16.mxu0 0
      %3288 = vmatpush1.bf16.msra.mxu0 0
      %3289 = vmatprep.subr.bf16.mxu0 0
      %3290 = vmatpush1.bf16.msra.mxu0 0
      %3291 = vmatprep.subr.bf16.mxu0 0
      %3292 = vmatpush1.bf16.msra.mxu0 0
      %3293 = vmatprep.subr.bf16.mxu0 0
      %3294 = vmatpush1.bf16.msra.mxu0 0
      %3295 = vmatprep.subr.bf16.mxu0 0
      %3296 = vmatpush1.bf16.msra.mxu0 0
      %3297 = vmatprep.subr.bf16.mxu0 0
      %3298 = vmatpush1.bf16.msra.mxu0 0
      %3299 = vmatprep.subr.bf16.mxu0 0
      %3300 = vmatpush1.bf16.msra.mxu0 0
      %3301 = vmatprep.subr.bf16.mxu0 0
      %3302 = vmatpush1.bf16.msra.mxu0 0
      %3303 = vmatprep.subr.bf16.mxu0 0
      %3304 = vmatpush1.bf16.msra.mxu0 0
      %3305 = vmatprep.subr.bf16.mxu0 0
      %3306 = vmatpush1.bf16.msra.mxu0 0
      %3307 = vmatprep.subr.bf16.mxu0 0
      %3308 = vmatpush1.bf16.msra.mxu0 0
      %3309 = vmatprep.subr.bf16.mxu0 0
      %3310 = vmatpush1.bf16.msra.mxu0 0
      %3311 = vmatprep.mubr.bf16.mxu0 0
      %3312 = vmatmul.mubr.bf16.gmra.mrb[0].mxu0 %v3130
      %v3313 = vpop.f32.mrb[0].mxu0
      %v3314 = vadd.f32 0.0, %v3313
      %v3315 = vpop.f32.mrb[0].mxu0
      %v3316 = vadd.f32 0.0, %v3315
      %v3317 = vpop.f32.mrb[0].mxu0
      %v3318 = vpop.f32.mrb[0].mxu0
      %3319 = vdwg.mxu0
      %v3320 = vadd.f32 %v3092, %v3191
      %v3321 = vadd.f32 %v3093, %v3193
      %v3322 = vadd.f32 %v3094, %v3232
      %v3323 = vadd.f32 %v3095, %v3234
      %v3324 = vadd.f32 %v3096, %v3273
      %v3325 = vadd.f32 %v3097, %v3275
      %v3326 = vadd.f32 %v3098, %v3314
      %v3327 = vadd.f32 %v3099, %v3316
      %s3328 = scalar_lea.vmem %s1, 26
      %v3329 = vld [vmem:[%s3328] sm:$0x3]
      %3330 = vrot.lane.b32.xlu0 %v411, 17
      %v3331 = vpop.permute.xlu0 %3330
      %3332 = vrot.lane.b32.xlu0 %v412, 17
      %v3333 = vpop.permute.xlu0 %3332
      %3334 = vrot.lane.b32.xlu0 %v413, 17
      %v3335 = vpop.permute.xlu0 %3334
      %3336 = vrot.lane.b32.xlu0 %v414, 17
      %v3337 = vpop.permute.xlu0 %3336
      %3338 = vrot.lane.b32.xlu0 %v415, 17
      %v3339 = vpop.permute.xlu0 %3338
      %3340 = vrot.lane.b32.xlu0 %v416, 17
      %v3341 = vpop.permute.xlu0 %3340
      %3342 = vrot.lane.b32.xlu0 %v417, 17
      %v3343 = vpop.permute.xlu0 %3342
      %3344 = vrot.lane.b32.xlu0 %v418, 17
      %v3345 = vpop.permute.xlu0 %3344
      %3346 = vrot.lane.b32.xlu0 %v419, 17
      %v3347 = vpop.permute.xlu0 %3346
      %vm3348 = vcmask 138240
      %v3349 = vsel %vm3348, %v3331, %v3333
      %v3350 = vsel %vm3348, %v3333, %v3335
      %v3351 = vsel %vm3348, %v3335, %v3337
      %v3352 = vsel %vm3348, %v3337, %v3339
      %v3353 = vsel %vm3348, %v3339, %v3341
      %v3354 = vsel %vm3348, %v3341, %v3343
      %v3355 = vsel %vm3348, %v3343, %v3345
      %v3356 = vsel %vm3348, %v3345, %v3347
      %v3358 = vsel %vm456, %v3329, 0
      %v3361 = vsel %vm460, %v3349, 0
      %v3364 = vsel %vm460, %v3350, 0
      %v3367 = vsel %vm460, %v3351, 0
      %v3370 = vsel %vm460, %v3352, 0
      %v3373 = vsel %vm460, %v3353, 0
      %v3376 = vsel %vm460, %v3354, 0
      %v3379 = vsel %vm460, %v3355, 0
      %v3382 = vsel %vm460, %v3356, 0
      %3384 = vmatprep.subr.bf16.mxu0 %v3364
      %3385 = vmatpush1.bf16.msra.mxu0 %v3361
      %3386 = vmatprep.subr.bf16.mxu0 0
      %3387 = vmatpush1.bf16.msra.mxu0 0
      %3388 = vmatprep.subr.bf16.mxu0 0
      %3389 = vmatpush1.bf16.msra.mxu0 0
      %3390 = vmatprep.subr.bf16.mxu0 0
      %3391 = vmatpush1.bf16.msra.mxu0 0
      %3392 = vmatprep.subr.bf16.mxu0 0
      %3393 = vmatpush1.bf16.msra.mxu0 0
      %3394 = vmatprep.subr.bf16.mxu0 0
      %3395 = vmatpush1.bf16.msra.mxu0 0
      %3396 = vmatprep.subr.bf16.mxu0 0
      %3397 = vmatpush1.bf16.msra.mxu0 0
      %3398 = vmatprep.subr.bf16.mxu0 0
      %3399 = vmatpush1.bf16.msra.mxu0 0
      %3400 = vmatprep.subr.bf16.mxu0 0
      %3401 = vmatpush1.bf16.msra.mxu0 0
      %3402 = vmatprep.subr.bf16.mxu0 0
      %3403 = vmatpush1.bf16.msra.mxu0 0
      %3404 = vmatprep.subr.bf16.mxu0 0
      %3405 = vmatpush1.bf16.msra.mxu0 0
      %3406 = vmatprep.subr.bf16.mxu0 0
      %3407 = vmatpush1.bf16.msra.mxu0 0
      %3408 = vmatprep.subr.bf16.mxu0 0
      %3409 = vmatpush1.bf16.msra.mxu0 0
      %3410 = vmatprep.subr.bf16.mxu0 0
      %3411 = vmatpush1.bf16.msra.mxu0 0
      %3412 = vmatprep.subr.bf16.mxu0 0
      %3413 = vmatpush1.bf16.msra.mxu0 0
      %3414 = vmatprep.subr.bf16.mxu0 0
      %3415 = vmatpush1.bf16.msra.mxu0 0
      %3416 = vmatprep.mubr.bf16.mxu0 0
      %3417 = vmatmul.mubr.bf16.gmra.mrb[0].mxu0 %v3358
      %v3418 = vpop.f32.mrb[0].mxu0
      %v3419 = vadd.f32 0.0, %v3418
      %v3420 = vpop.f32.mrb[0].mxu0
      %v3421 = vadd.f32 0.0, %v3420
      %v3422 = vpop.f32.mrb[0].mxu0
      %v3423 = vpop.f32.mrb[0].mxu0
      %3424 = vdwg.mxu0
      %3425 = vmatprep.subr.bf16.mxu0 %v3370
      %3426 = vmatpush1.bf16.msra.mxu0 %v3367
      %3427 = vmatprep.subr.bf16.mxu0 0
      %3428 = vmatpush1.bf16.msra.mxu0 0
      %3429 = vmatprep.subr.bf16.mxu0 0
      %3430 = vmatpush1.bf16.msra.mxu0 0
      %3431 = vmatprep.subr.bf16.mxu0 0
      %3432 = vmatpush1.bf16.msra.mxu0 0
      %3433 = vmatprep.subr.bf16.mxu0 0
      %3434 = vmatpush1.bf16.msra.mxu0 0
      %3435 = vmatprep.subr.bf16.mxu0 0
      %3436 = vmatpush1.bf16.msra.mxu0 0
      %3437 = vmatprep.subr.bf16.mxu0 0
      %3438 = vmatpush1.bf16.msra.mxu0 0
      %3439 = vmatprep.subr.bf16.mxu0 0
      %3440 = vmatpush1.bf16.msra.mxu0 0
      %3441 = vmatprep.subr.bf16.mxu0 0
      %3442 = vmatpush1.bf16.msra.mxu0 0
      %3443 = vmatprep.subr.bf16.mxu0 0
      %3444 = vmatpush1.bf16.msra.mxu0 0
      %3445 = vmatprep.subr.bf16.mxu0 0
      %3446 = vmatpush1.bf16.msra.mxu0 0
      %3447 = vmatprep.subr.bf16.mxu0 0
      %3448 = vmatpush1.bf16.msra.mxu0 0
      %3449 = vmatprep.subr.bf16.mxu0 0
      %3450 = vmatpush1.bf16.msra.mxu0 0
      %3451 = vmatprep.subr.bf16.mxu0 0
      %3452 = vmatpush1.bf16.msra.mxu0 0
      %3453 = vmatprep.subr.bf16.mxu0 0
      %3454 = vmatpush1.bf16.msra.mxu0 0
      %3455 = vmatprep.subr.bf16.mxu0 0
      %3456 = vmatpush1.bf16.msra.mxu0 0
      %3457 = vmatprep.mubr.bf16.mxu0 0
      %3458 = vmatmul.mubr.bf16.gmra.mrb[0].mxu0 %v3358
      %v3459 = vpop.f32.mrb[0].mxu0
      %v3460 = vadd.f32 0.0, %v3459
      %v3461 = vpop.f32.mrb[0].mxu0
      %v3462 = vadd.f32 0.0, %v3461
      %v3463 = vpop.f32.mrb[0].mxu0
      %v3464 = vpop.f32.mrb[0].mxu0
      %3465 = vdwg.mxu0
      %3466 = vmatprep.subr.bf16.mxu0 %v3376
      %3467 = vmatpush1.bf16.msra.mxu0 %v3373
      %3468 = vmatprep.subr.bf16.mxu0 0
      %3469 = vmatpush1.bf16.msra.mxu0 0
      %3470 = vmatprep.subr.bf16.mxu0 0
      %3471 = vmatpush1.bf16.msra.mxu0 0
      %3472 = vmatprep.subr.bf16.mxu0 0
      %3473 = vmatpush1.bf16.msra.mxu0 0
      %3474 = vmatprep.subr.bf16.mxu0 0
      %3475 = vmatpush1.bf16.msra.mxu0 0
      %3476 = vmatprep.subr.bf16.mxu0 0
      %3477 = vmatpush1.bf16.msra.mxu0 0
      %3478 = vmatprep.subr.bf16.mxu0 0
      %3479 = vmatpush1.bf16.msra.mxu0 0
      %3480 = vmatprep.subr.bf16.mxu0 0
      %3481 = vmatpush1.bf16.msra.mxu0 0
      %3482 = vmatprep.subr.bf16.mxu0 0
      %3483 = vmatpush1.bf16.msra.mxu0 0
      %3484 = vmatprep.subr.bf16.mxu0 0
      %3485 = vmatpush1.bf16.msra.mxu0 0
      %3486 = vmatprep.subr.bf16.mxu0 0
      %3487 = vmatpush1.bf16.msra.mxu0 0
      %3488 = vmatprep.subr.bf16.mxu0 0
      %3489 = vmatpush1.bf16.msra.mxu0 0
      %3490 = vmatprep.subr.bf16.mxu0 0
      %3491 = vmatpush1.bf16.msra.mxu0 0
      %3492 = vmatprep.subr.bf16.mxu0 0
      %3493 = vmatpush1.bf16.msra.mxu0 0
      %3494 = vmatprep.subr.bf16.mxu0 0
      %3495 = vmatpush1.bf16.msra.mxu0 0
      %3496 = vmatprep.subr.bf16.mxu0 0
      %3497 = vmatpush1.bf16.msra.mxu0 0
      %3498 = vmatprep.mubr.bf16.mxu0 0
      %3499 = vmatmul.mubr.bf16.gmra.mrb[0].mxu0 %v3358
      %v3500 = vpop.f32.mrb[0].mxu0
      %v3501 = vadd.f32 0.0, %v3500
      %v3502 = vpop.f32.mrb[0].mxu0
      %v3503 = vadd.f32 0.0, %v3502
      %v3504 = vpop.f32.mrb[0].mxu0
      %v3505 = vpop.f32.mrb[0].mxu0
      %3506 = vdwg.mxu0
      %3507 = vmatprep.subr.bf16.mxu0 %v3382
      %3508 = vmatpush1.bf16.msra.mxu0 %v3379
      %3509 = vmatprep.subr.bf16.mxu0 0
      %3510 = vmatpush1.bf16.msra.mxu0 0
      %3511 = vmatprep.subr.bf16.mxu0 0
      %3512 = vmatpush1.bf16.msra.mxu0 0
      %3513 = vmatprep.subr.bf16.mxu0 0
      %3514 = vmatpush1.bf16.msra.mxu0 0
      %3515 = vmatprep.subr.bf16.mxu0 0
      %3516 = vmatpush1.bf16.msra.mxu0 0
      %3517 = vmatprep.subr.bf16.mxu0 0
      %3518 = vmatpush1.bf16.msra.mxu0 0
      %3519 = vmatprep.subr.bf16.mxu0 0
      %3520 = vmatpush1.bf16.msra.mxu0 0
      %3521 = vmatprep.subr.bf16.mxu0 0
      %3522 = vmatpush1.bf16.msra.mxu0 0
      %3523 = vmatprep.subr.bf16.mxu0 0
      %3524 = vmatpush1.bf16.msra.mxu0 0
      %3525 = vmatprep.subr.bf16.mxu0 0
      %3526 = vmatpush1.bf16.msra.mxu0 0
      %3527 = vmatprep.subr.bf16.mxu0 0
      %3528 = vmatpush1.bf16.msra.mxu0 0
      %3529 = vmatprep.subr.bf16.mxu0 0
      %3530 = vmatpush1.bf16.msra.mxu0 0
      %3531 = vmatprep.subr.bf16.mxu0 0
      %3532 = vmatpush1.bf16.msra.mxu0 0
      %3533 = vmatprep.subr.bf16.mxu0 0
      %3534 = vmatpush1.bf16.msra.mxu0 0
      %3535 = vmatprep.subr.bf16.mxu0 0
      %3536 = vmatpush1.bf16.msra.mxu0 0
      %3537 = vmatprep.subr.bf16.mxu0 0
      %3538 = vmatpush1.bf16.msra.mxu0 0
      %3539 = vmatprep.mubr.bf16.mxu0 0
      %3540 = vmatmul.mubr.bf16.gmra.mrb[0].mxu0 %v3358
      %v3541 = vpop.f32.mrb[0].mxu0
      %v3542 = vadd.f32 0.0, %v3541
      %v3543 = vpop.f32.mrb[0].mxu0
      %v3544 = vadd.f32 0.0, %v3543
      %v3545 = vpop.f32.mrb[0].mxu0
      %v3546 = vpop.f32.mrb[0].mxu0
      %3547 = vdwg.mxu0
      %v3548 = vadd.f32 %v3320, %v3419
      %v3549 = vadd.f32 %v3321, %v3421
      %v3550 = vadd.f32 %v3322, %v3460
      %v3551 = vadd.f32 %v3323, %v3462
      %v3552 = vadd.f32 %v3324, %v3501
      %v3553 = vadd.f32 %v3325, %v3503
      %v3554 = vadd.f32 %v3326, %v3542
      %v3555 = vadd.f32 %v3327, %v3544
      %s3556 = scalar_lea.vmem %s1, 28
      %v3557 = vld [vmem:[%s3556] sm:$0x3]
      %3558 = vrot.lane.b32.xlu0 %v411, 16
      %v3559 = vpop.permute.xlu0 %3558
      %3560 = vrot.lane.b32.xlu0 %v412, 16
      %v3561 = vpop.permute.xlu0 %3560
      %3562 = vrot.lane.b32.xlu0 %v413, 16
      %v3563 = vpop.permute.xlu0 %3562
      %3564 = vrot.lane.b32.xlu0 %v414, 16
      %v3565 = vpop.permute.xlu0 %3564
      %3566 = vrot.lane.b32.xlu0 %v415, 16
      %v3567 = vpop.permute.xlu0 %3566
      %3568 = vrot.lane.b32.xlu0 %v416, 16
      %v3569 = vpop.permute.xlu0 %3568
      %3570 = vrot.lane.b32.xlu0 %v417, 16
      %v3571 = vpop.permute.xlu0 %3570
      %3572 = vrot.lane.b32.xlu0 %v418, 16
      %v3573 = vpop.permute.xlu0 %3572
      %3574 = vrot.lane.b32.xlu0 %v419, 16
      %v3575 = vpop.permute.xlu0 %3574
      %vm3576 = vcmask 130048
      %v3577 = vsel %vm3576, %v3559, %v3561
      %v3578 = vsel %vm3576, %v3561, %v3563
      %v3579 = vsel %vm3576, %v3563, %v3565
      %v3580 = vsel %vm3576, %v3565, %v3567
      %v3581 = vsel %vm3576, %v3567, %v3569
      %v3582 = vsel %vm3576, %v3569, %v3571
      %v3583 = vsel %vm3576, %v3571, %v3573
      %v3584 = vsel %vm3576, %v3573, %v3575
      %v3586 = vsel %vm456, %v3557, 0
      %v3589 = vsel %vm460, %v3577, 0
      %v3592 = vsel %vm460, %v3578, 0
      %v3595 = vsel %vm460, %v3579, 0
      %v3598 = vsel %vm460, %v3580, 0
      %v3601 = vsel %vm460, %v3581, 0
      %v3604 = vsel %vm460, %v3582, 0
      %v3607 = vsel %vm460, %v3583, 0
      %v3610 = vsel %vm460, %v3584, 0
      %3612 = vmatprep.subr.bf16.mxu0 %v3592
      %3613 = vmatpush1.bf16.msra.mxu0 %v3589
      %3614 = vmatprep.subr.bf16.mxu0 0
      %3615 = vmatpush1.bf16.msra.mxu0 0
      %3616 = vmatprep.subr.bf16.mxu0 0
      %3617 = vmatpush1.bf16.msra.mxu0 0
      %3618 = vmatprep.subr.bf16.mxu0 0
      %3619 = vmatpush1.bf16.msra.mxu0 0
      %3620 = vmatprep.subr.bf16.mxu0 0
      %3621 = vmatpush1.bf16.msra.mxu0 0
      %3622 = vmatprep.subr.bf16.mxu0 0
      %3623 = vmatpush1.bf16.msra.mxu0 0
      %3624 = vmatprep.subr.bf16.mxu0 0
      %3625 = vmatpush1.bf16.msra.mxu0 0
      %3626 = vmatprep.subr.bf16.mxu0 0
      %3627 = vmatpush1.bf16.msra.mxu0 0
      %3628 = vmatprep.subr.bf16.mxu0 0
      %3629 = vmatpush1.bf16.msra.mxu0 0
      %3630 = vmatprep.subr.bf16.mxu0 0
      %3631 = vmatpush1.bf16.msra.mxu0 0
      %3632 = vmatprep.subr.bf16.mxu0 0
      %3633 = vmatpush1.bf16.msra.mxu0 0
      %3634 = vmatprep.subr.bf16.mxu0 0
      %3635 = vmatpush1.bf16.msra.mxu0 0
      %3636 = vmatprep.subr.bf16.mxu0 0
      %3637 = vmatpush1.bf16.msra.mxu0 0
      %3638 = vmatprep.subr.bf16.mxu0 0
      %3639 = vmatpush1.bf16.msra.mxu0 0
      %3640 = vmatprep.subr.bf16.mxu0 0
      %3641 = vmatpush1.bf16.msra.mxu0 0
      %3642 = vmatprep.subr.bf16.mxu0 0
      %3643 = vmatpush1.bf16.msra.mxu0 0
      %3644 = vmatprep.mubr.bf16.mxu0 0
      %3645 = vmatmul.mubr.bf16.gmra.mrb[0].mxu0 %v3586
      %v3646 = vpop.f32.mrb[0].mxu0
      %v3647 = vadd.f32 0.0, %v3646
      %v3648 = vpop.f32.mrb[0].mxu0
      %v3649 = vadd.f32 0.0, %v3648
      %v3650 = vpop.f32.mrb[0].mxu0
      %v3651 = vpop.f32.mrb[0].mxu0
      %3652 = vdwg.mxu0
      %3653 = vmatprep.subr.bf16.mxu0 %v3598
      %3654 = vmatpush1.bf16.msra.mxu0 %v3595
      %3655 = vmatprep.subr.bf16.mxu0 0
      %3656 = vmatpush1.bf16.msra.mxu0 0
      %3657 = vmatprep.subr.bf16.mxu0 0
      %3658 = vmatpush1.bf16.msra.mxu0 0
      %3659 = vmatprep.subr.bf16.mxu0 0
      %3660 = vmatpush1.bf16.msra.mxu0 0
      %3661 = vmatprep.subr.bf16.mxu0 0
      %3662 = vmatpush1.bf16.msra.mxu0 0
      %3663 = vmatprep.subr.bf16.mxu0 0
      %3664 = vmatpush1.bf16.msra.mxu0 0
      %3665 = vmatprep.subr.bf16.mxu0 0
      %3666 = vmatpush1.bf16.msra.mxu0 0
      %3667 = vmatprep.subr.bf16.mxu0 0
      %3668 = vmatpush1.bf16.msra.mxu0 0
      %3669 = vmatprep.subr.bf16.mxu0 0
      %3670 = vmatpush1.bf16.msra.mxu0 0
      %3671 = vmatprep.subr.bf16.mxu0 0
      %3672 = vmatpush1.bf16.msra.mxu0 0
      %3673 = vmatprep.subr.bf16.mxu0 0
      %3674 = vmatpush1.bf16.msra.mxu0 0
      %3675 = vmatprep.subr.bf16.mxu0 0
      %3676 = vmatpush1.bf16.msra.mxu0 0
      %3677 = vmatprep.subr.bf16.mxu0 0
      %3678 = vmatpush1.bf16.msra.mxu0 0
      %3679 = vmatprep.subr.bf16.mxu0 0
      %3680 = vmatpush1.bf16.msra.mxu0 0
      %3681 = vmatprep.subr.bf16.mxu0 0
      %3682 = vmatpush1.bf16.msra.mxu0 0
      %3683 = vmatprep.subr.bf16.mxu0 0
      %3684 = vmatpush1.bf16.msra.mxu0 0
      %3685 = vmatprep.mubr.bf16.mxu0 0
      %3686 = vmatmul.mubr.bf16.gmra.mrb[0].mxu0 %v3586
      %v3687 = vpop.f32.mrb[0].mxu0
      %v3688 = vadd.f32 0.0, %v3687
      %v3689 = vpop.f32.mrb[0].mxu0
      %v3690 = vadd.f32 0.0, %v3689
      %v3691 = vpop.f32.mrb[0].mxu0
      %v3692 = vpop.f32.mrb[0].mxu0
      %3693 = vdwg.mxu0
      %3694 = vmatprep.subr.bf16.mxu0 %v3604
      %3695 = vmatpush1.bf16.msra.mxu0 %v3601
      %3696 = vmatprep.subr.bf16.mxu0 0
      %3697 = vmatpush1.bf16.msra.mxu0 0
      %3698 = vmatprep.subr.bf16.mxu0 0
      %3699 = vmatpush1.bf16.msra.mxu0 0
      %3700 = vmatprep.subr.bf16.mxu0 0
      %3701 = vmatpush1.bf16.msra.mxu0 0
      %3702 = vmatprep.subr.bf16.mxu0 0
      %3703 = vmatpush1.bf16.msra.mxu0 0
      %3704 = vmatprep.subr.bf16.mxu0 0
      %3705 = vmatpush1.bf16.msra.mxu0 0
      %3706 = vmatprep.subr.bf16.mxu0 0
      %3707 = vmatpush1.bf16.msra.mxu0 0
      %3708 = vmatprep.subr.bf16.mxu0 0
      %3709 = vmatpush1.bf16.msra.mxu0 0
      %3710 = vmatprep.subr.bf16.mxu0 0
      %3711 = vmatpush1.bf16.msra.mxu0 0
      %3712 = vmatprep.subr.bf16.mxu0 0
      %3713 = vmatpush1.bf16.msra.mxu0 0
      %3714 = vmatprep.subr.bf16.mxu0 0
      %3715 = vmatpush1.bf16.msra.mxu0 0
      %3716 = vmatprep.subr.bf16.mxu0 0
      %3717 = vmatpush1.bf16.msra.mxu0 0
      %3718 = vmatprep.subr.bf16.mxu0 0
      %3719 = vmatpush1.bf16.msra.mxu0 0
      %3720 = vmatprep.subr.bf16.mxu0 0
      %3721 = vmatpush1.bf16.msra.mxu0 0
      %3722 = vmatprep.subr.bf16.mxu0 0
      %3723 = vmatpush1.bf16.msra.mxu0 0
      %3724 = vmatprep.subr.bf16.mxu0 0
      %3725 = vmatpush1.bf16.msra.mxu0 0
      %3726 = vmatprep.mubr.bf16.mxu0 0
      %3727 = vmatmul.mubr.bf16.gmra.mrb[0].mxu0 %v3586
      %v3728 = vpop.f32.mrb[0].mxu0
      %v3729 = vadd.f32 0.0, %v3728
      %v3730 = vpop.f32.mrb[0].mxu0
      %v3731 = vadd.f32 0.0, %v3730
      %v3732 = vpop.f32.mrb[0].mxu0
      %v3733 = vpop.f32.mrb[0].mxu0
      %3734 = vdwg.mxu0
      %3735 = vmatprep.subr.bf16.mxu0 %v3610
      %3736 = vmatpush1.bf16.msra.mxu0 %v3607
      %3737 = vmatprep.subr.bf16.mxu0 0
      %3738 = vmatpush1.bf16.msra.mxu0 0
      %3739 = vmatprep.subr.bf16.mxu0 0
      %3740 = vmatpush1.bf16.msra.mxu0 0
      %3741 = vmatprep.subr.bf16.mxu0 0
      %3742 = vmatpush1.bf16.msra.mxu0 0
      %3743 = vmatprep.subr.bf16.mxu0 0
      %3744 = vmatpush1.bf16.msra.mxu0 0
      %3745 = vmatprep.subr.bf16.mxu0 0
      %3746 = vmatpush1.bf16.msra.mxu0 0
      %3747 = vmatprep.subr.bf16.mxu0 0
      %3748 = vmatpush1.bf16.msra.mxu0 0
      %3749 = vmatprep.subr.bf16.mxu0 0
      %3750 = vmatpush1.bf16.msra.mxu0 0
      %3751 = vmatprep.subr.bf16.mxu0 0
      %3752 = vmatpush1.bf16.msra.mxu0 0
      %3753 = vmatprep.subr.bf16.mxu0 0
      %3754 = vmatpush1.bf16.msra.mxu0 0
      %3755 = vmatprep.subr.bf16.mxu0 0
      %3756 = vmatpush1.bf16.msra.mxu0 0
      %3757 = vmatprep.subr.bf16.mxu0 0
      %3758 = vmatpush1.bf16.msra.mxu0 0
      %3759 = vmatprep.subr.bf16.mxu0 0
      %3760 = vmatpush1.bf16.msra.mxu0 0
      %3761 = vmatprep.subr.bf16.mxu0 0
      %3762 = vmatpush1.bf16.msra.mxu0 0
      %3763 = vmatprep.subr.bf16.mxu0 0
      %3764 = vmatpush1.bf16.msra.mxu0 0
      %3765 = vmatprep.subr.bf16.mxu0 0
      %3766 = vmatpush1.bf16.msra.mxu0 0
      %3767 = vmatprep.mubr.bf16.mxu0 0
      %3768 = vmatmul.mubr.bf16.gmra.mrb[0].mxu0 %v3586
      %v3769 = vpop.f32.mrb[0].mxu0
      %v3770 = vadd.f32 0.0, %v3769
      %v3771 = vpop.f32.mrb[0].mxu0
      %v3772 = vadd.f32 0.0, %v3771
      %v3773 = vpop.f32.mrb[0].mxu0
      %v3774 = vpop.f32.mrb[0].mxu0
      %3775 = vdwg.mxu0
      %v3776 = vadd.f32 %v3548, %v3647
      %v3777 = vadd.f32 %v3549, %v3649
      %v3778 = vadd.f32 %v3550, %v3688
      %v3779 = vadd.f32 %v3551, %v3690
      %v3780 = vadd.f32 %v3552, %v3729
      %v3781 = vadd.f32 %v3553, %v3731
      %v3782 = vadd.f32 %v3554, %v3770
      %v3783 = vadd.f32 %v3555, %v3772
      %s3784 = scalar_lea.vmem %s1, 30
      %v3785 = vld [vmem:[%s3784] sm:$0x3]
      %3786 = vrot.lane.b32.xlu0 %v411, 8
      %v3787 = vpop.permute.xlu0 %3786
      %3788 = vrot.lane.b32.xlu0 %v412, 8
      %v3789 = vpop.permute.xlu0 %3788
      %3790 = vrot.lane.b32.xlu0 %v413, 8
      %v3791 = vpop.permute.xlu0 %3790
      %3792 = vrot.lane.b32.xlu0 %v414, 8
      %v3793 = vpop.permute.xlu0 %3792
      %3794 = vrot.lane.b32.xlu0 %v415, 8
      %v3795 = vpop.permute.xlu0 %3794
      %3796 = vrot.lane.b32.xlu0 %v416, 8
      %v3797 = vpop.permute.xlu0 %3796
      %3798 = vrot.lane.b32.xlu0 %v417, 8
      %v3799 = vpop.permute.xlu0 %3798
      %3800 = vrot.lane.b32.xlu0 %v418, 8
      %v3801 = vpop.permute.xlu0 %3800
      %3802 = vrot.lane.b32.xlu0 %v419, 8
      %v3803 = vpop.permute.xlu0 %3802
      %vm3804 = vcmask 64512
      %v3805 = vsel %vm3804, %v3787, %v3789
      %v3806 = vsel %vm3804, %v3789, %v3791
      %v3807 = vsel %vm3804, %v3791, %v3793
      %v3808 = vsel %vm3804, %v3793, %v3795
      %v3809 = vsel %vm3804, %v3795, %v3797
      %v3810 = vsel %vm3804, %v3797, %v3799
      %v3811 = vsel %vm3804, %v3799, %v3801
      %v3812 = vsel %vm3804, %v3801, %v3803
      %v3814 = vsel %vm456, %v3785, 0
      %v3817 = vsel %vm460, %v3805, 0
      %v3820 = vsel %vm460, %v3806, 0
      %v3823 = vsel %vm460, %v3807, 0
      %v3826 = vsel %vm460, %v3808, 0
      %v3829 = vsel %vm460, %v3809, 0
      %v3832 = vsel %vm460, %v3810, 0
      %v3835 = vsel %vm460, %v3811, 0
      %v3838 = vsel %vm460, %v3812, 0
      %3840 = vmatprep.subr.bf16.mxu0 %v3820
      %3841 = vmatpush1.bf16.msra.mxu0 %v3817
      %3842 = vmatprep.subr.bf16.mxu0 0
      %3843 = vmatpush1.bf16.msra.mxu0 0
      %3844 = vmatprep.subr.bf16.mxu0 0
      %3845 = vmatpush1.bf16.msra.mxu0 0
      %3846 = vmatprep.subr.bf16.mxu0 0
      %3847 = vmatpush1.bf16.msra.mxu0 0
      %3848 = vmatprep.subr.bf16.mxu0 0
      %3849 = vmatpush1.bf16.msra.mxu0 0
      %3850 = vmatprep.subr.bf16.mxu0 0
      %3851 = vmatpush1.bf16.msra.mxu0 0
      %3852 = vmatprep.subr.bf16.mxu0 0
      %3853 = vmatpush1.bf16.msra.mxu0 0
      %3854 = vmatprep.subr.bf16.mxu0 0
      %3855 = vmatpush1.bf16.msra.mxu0 0
      %3856 = vmatprep.subr.bf16.mxu0 0
      %3857 = vmatpush1.bf16.msra.mxu0 0
      %3858 = vmatprep.subr.bf16.mxu0 0
      %3859 = vmatpush1.bf16.msra.mxu0 0
      %3860 = vmatprep.subr.bf16.mxu0 0
      %3861 = vmatpush1.bf16.msra.mxu0 0
      %3862 = vmatprep.subr.bf16.mxu0 0
      %3863 = vmatpush1.bf16.msra.mxu0 0
      %3864 = vmatprep.subr.bf16.mxu0 0
      %3865 = vmatpush1.bf16.msra.mxu0 0
      %3866 = vmatprep.subr.bf16.mxu0 0
      %3867 = vmatpush1.bf16.msra.mxu0 0
      %3868 = vmatprep.subr.bf16.mxu0 0
      %3869 = vmatpush1.bf16.msra.mxu0 0
      %3870 = vmatprep.subr.bf16.mxu0 0
      %3871 = vmatpush1.bf16.msra.mxu0 0
      %3872 = vmatprep.mubr.bf16.mxu0 0
      %3873 = vmatmul.mubr.bf16.gmra.mrb[0].mxu0 %v3814
      %v3874 = vpop.f32.mrb[0].mxu0
      %v3875 = vadd.f32 0.0, %v3874
      %v3876 = vpop.f32.mrb[0].mxu0
      %v3877 = vadd.f32 0.0, %v3876
      %v3878 = vpop.f32.mrb[0].mxu0
      %v3879 = vpop.f32.mrb[0].mxu0
      %3880 = vdwg.mxu0
      %3881 = vmatprep.subr.bf16.mxu0 %v3826
      %3882 = vmatpush1.bf16.msra.mxu0 %v3823
      %3883 = vmatprep.subr.bf16.mxu0 0
      %3884 = vmatpush1.bf16.msra.mxu0 0
      %3885 = vmatprep.subr.bf16.mxu0 0
      %3886 = vmatpush1.bf16.msra.mxu0 0
      %3887 = vmatprep.subr.bf16.mxu0 0
      %3888 = vmatpush1.bf16.msra.mxu0 0
      %3889 = vmatprep.subr.bf16.mxu0 0
      %3890 = vmatpush1.bf16.msra.mxu0 0
      %3891 = vmatprep.subr.bf16.mxu0 0
      %3892 = vmatpush1.bf16.msra.mxu0 0
      %3893 = vmatprep.subr.bf16.mxu0 0
      %3894 = vmatpush1.bf16.msra.mxu0 0
      %3895 = vmatprep.subr.bf16.mxu0 0
      %3896 = vmatpush1.bf16.msra.mxu0 0
      %3897 = vmatprep.subr.bf16.mxu0 0
      %3898 = vmatpush1.bf16.msra.mxu0 0
      %3899 = vmatprep.subr.bf16.mxu0 0
      %3900 = vmatpush1.bf16.msra.mxu0 0
      %3901 = vmatprep.subr.bf16.mxu0 0
      %3902 = vmatpush1.bf16.msra.mxu0 0
      %3903 = vmatprep.subr.bf16.mxu0 0
      %3904 = vmatpush1.bf16.msra.mxu0 0
      %3905 = vmatprep.subr.bf16.mxu0 0
      %3906 = vmatpush1.bf16.msra.mxu0 0
      %3907 = vmatprep.subr.bf16.mxu0 0
      %3908 = vmatpush1.bf16.msra.mxu0 0
      %3909 = vmatprep.subr.bf16.mxu0 0
      %3910 = vmatpush1.bf16.msra.mxu0 0
      %3911 = vmatprep.subr.bf16.mxu0 0
      %3912 = vmatpush1.bf16.msra.mxu0 0
      %3913 = vmatprep.mubr.bf16.mxu0 0
      %3914 = vmatmul.mubr.bf16.gmra.mrb[0].mxu0 %v3814
      %v3915 = vpop.f32.mrb[0].mxu0
      %v3916 = vadd.f32 0.0, %v3915
      %v3917 = vpop.f32.mrb[0].mxu0
      %v3918 = vadd.f32 0.0, %v3917
      %v3919 = vpop.f32.mrb[0].mxu0
      %v3920 = vpop.f32.mrb[0].mxu0
      %3921 = vdwg.mxu0
      %3922 = vmatprep.subr.bf16.mxu0 %v3832
      %3923 = vmatpush1.bf16.msra.mxu0 %v3829
      %3924 = vmatprep.subr.bf16.mxu0 0
      %3925 = vmatpush1.bf16.msra.mxu0 0
      %3926 = vmatprep.subr.bf16.mxu0 0
      %3927 = vmatpush1.bf16.msra.mxu0 0
      %3928 = vmatprep.subr.bf16.mxu0 0
      %3929 = vmatpush1.bf16.msra.mxu0 0
      %3930 = vmatprep.subr.bf16.mxu0 0
      %3931 = vmatpush1.bf16.msra.mxu0 0
      %3932 = vmatprep.subr.bf16.mxu0 0
      %3933 = vmatpush1.bf16.msra.mxu0 0
      %3934 = vmatprep.subr.bf16.mxu0 0
      %3935 = vmatpush1.bf16.msra.mxu0 0
      %3936 = vmatprep.subr.bf16.mxu0 0
      %3937 = vmatpush1.bf16.msra.mxu0 0
      %3938 = vmatprep.subr.bf16.mxu0 0
      %3939 = vmatpush1.bf16.msra.mxu0 0
      %3940 = vmatprep.subr.bf16.mxu0 0
      %3941 = vmatpush1.bf16.msra.mxu0 0
      %3942 = vmatprep.subr.bf16.mxu0 0
      %3943 = vmatpush1.bf16.msra.mxu0 0
      %3944 = vmatprep.subr.bf16.mxu0 0
      %3945 = vmatpush1.bf16.msra.mxu0 0
      %3946 = vmatprep.subr.bf16.mxu0 0
      %3947 = vmatpush1.bf16.msra.mxu0 0
      %3948 = vmatprep.subr.bf16.mxu0 0
      %3949 = vmatpush1.bf16.msra.mxu0 0
      %3950 = vmatprep.subr.bf16.mxu0 0
      %3951 = vmatpush1.bf16.msra.mxu0 0
      %3952 = vmatprep.subr.bf16.mxu0 0
      %3953 = vmatpush1.bf16.msra.mxu0 0
      %3954 = vmatprep.mubr.bf16.mxu0 0
      %3955 = vmatmul.mubr.bf16.gmra.mrb[0].mxu0 %v3814
      %v3956 = vpop.f32.mrb[0].mxu0
      %v3957 = vadd.f32 0.0, %v3956
      %v3958 = vpop.f32.mrb[0].mxu0
      %v3959 = vadd.f32 0.0, %v3958
      %v3960 = vpop.f32.mrb[0].mxu0
      %v3961 = vpop.f32.mrb[0].mxu0
      %3962 = vdwg.mxu0
      %3963 = vmatprep.subr.bf16.mxu0 %v3838
      %3964 = vmatpush1.bf16.msra.mxu0 %v3835
      %3965 = vmatprep.subr.bf16.mxu0 0
      %3966 = vmatpush1.bf16.msra.mxu0 0
      %3967 = vmatprep.subr.bf16.mxu0 0
      %3968 = vmatpush1.bf16.msra.mxu0 0
      %3969 = vmatprep.subr.bf16.mxu0 0
      %3970 = vmatpush1.bf16.msra.mxu0 0
      %3971 = vmatprep.subr.bf16.mxu0 0
      %3972 = vmatpush1.bf16.msra.mxu0 0
      %3973 = vmatprep.subr.bf16.mxu0 0
      %3974 = vmatpush1.bf16.msra.mxu0 0
      %3975 = vmatprep.subr.bf16.mxu0 0
      %3976 = vmatpush1.bf16.msra.mxu0 0
      %3977 = vmatprep.subr.bf16.mxu0 0
      %3978 = vmatpush1.bf16.msra.mxu0 0
      %3979 = vmatprep.subr.bf16.mxu0 0
      %3980 = vmatpush1.bf16.msra.mxu0 0
      %3981 = vmatprep.subr.bf16.mxu0 0
      %3982 = vmatpush1.bf16.msra.mxu0 0
      %3983 = vmatprep.subr.bf16.mxu0 0
      %3984 = vmatpush1.bf16.msra.mxu0 0
      %3985 = vmatprep.subr.bf16.mxu0 0
      %3986 = vmatpush1.bf16.msra.mxu0 0
      %3987 = vmatprep.subr.bf16.mxu0 0
      %3988 = vmatpush1.bf16.msra.mxu0 0
      %3989 = vmatprep.subr.bf16.mxu0 0
      %3990 = vmatpush1.bf16.msra.mxu0 0
      %3991 = vmatprep.subr.bf16.mxu0 0
      %3992 = vmatpush1.bf16.msra.mxu0 0
      %3993 = vmatprep.subr.bf16.mxu0 0
      %3994 = vmatpush1.bf16.msra.mxu0 0
      %3995 = vmatprep.mubr.bf16.mxu0 0
      %3996 = vmatmul.mubr.bf16.gmra.mrb[0].mxu0 %v3814
      %v3997 = vpop.f32.mrb[0].mxu0
      %v3998 = vadd.f32 0.0, %v3997
      %v3999 = vpop.f32.mrb[0].mxu0
      %v4000 = vadd.f32 0.0, %v3999
      %v4001 = vpop.f32.mrb[0].mxu0
      %v4002 = vpop.f32.mrb[0].mxu0
      %4003 = vdwg.mxu0
      %v4004 = vadd.f32 %v3776, %v3875
      %v4005 = vadd.f32 %v3777, %v3877
      %v4006 = vadd.f32 %v3778, %v3916
      %v4007 = vadd.f32 %v3779, %v3918
      %v4008 = vadd.f32 %v3780, %v3957
      %v4009 = vadd.f32 %v3781, %v3959
      %v4010 = vadd.f32 %v3782, %v3998
      %v4011 = vadd.f32 %v3783, %v4000
      %s4012 = scalar_lea.vmem %s1, 32
      %v4013 = vld [vmem:[%s4012] sm:$0x3]
      %4014 = vrot.lane.b32.xlu0 %v411, 7
      %v4015 = vpop.permute.xlu0 %4014
      %4016 = vrot.lane.b32.xlu0 %v412, 7
      %v4017 = vpop.permute.xlu0 %4016
      %4018 = vrot.lane.b32.xlu0 %v413, 7
      %v4019 = vpop.permute.xlu0 %4018
      %4020 = vrot.lane.b32.xlu0 %v414, 7
      %v4021 = vpop.permute.xlu0 %4020
      %4022 = vrot.lane.b32.xlu0 %v415, 7
      %v4023 = vpop.permute.xlu0 %4022
      %4024 = vrot.lane.b32.xlu0 %v416, 7
      %v4025 = vpop.permute.xlu0 %4024
      %4026 = vrot.lane.b32.xlu0 %v417, 7
      %v4027 = vpop.permute.xlu0 %4026
      %4028 = vrot.lane.b32.xlu0 %v418, 7
      %v4029 = vpop.permute.xlu0 %4028
      %4030 = vrot.lane.b32.xlu0 %v419, 7
      %v4031 = vpop.permute.xlu0 %4030
      %vm4032 = vcmask 56320
      %v4033 = vsel %vm4032, %v4015, %v4017
      %v4034 = vsel %vm4032, %v4017, %v4019
      %v4035 = vsel %vm4032, %v4019, %v4021
      %v4036 = vsel %vm4032, %v4021, %v4023
      %v4037 = vsel %vm4032, %v4023, %v4025
      %v4038 = vsel %vm4032, %v4025, %v4027
      %v4039 = vsel %vm4032, %v4027, %v4029
      %v4040 = vsel %vm4032, %v4029, %v4031
      %v4042 = vsel %vm456, %v4013, 0
      %v4045 = vsel %vm460, %v4033, 0
      %v4048 = vsel %vm460, %v4034, 0
      %v4051 = vsel %vm460, %v4035, 0
      %v4054 = vsel %vm460, %v4036, 0
      %v4057 = vsel %vm460, %v4037, 0
      %v4060 = vsel %vm460, %v4038, 0
      %v4063 = vsel %vm460, %v4039, 0
      %v4066 = vsel %vm460, %v4040, 0
      %4068 = vmatprep.subr.bf16.mxu0 %v4048
      %4069 = vmatpush1.bf16.msra.mxu0 %v4045
      %4070 = vmatprep.subr.bf16.mxu0 0
      %4071 = vmatpush1.bf16.msra.mxu0 0
      %4072 = vmatprep.subr.bf16.mxu0 0
      %4073 = vmatpush1.bf16.msra.mxu0 0
      %4074 = vmatprep.subr.bf16.mxu0 0
      %4075 = vmatpush1.bf16.msra.mxu0 0
      %4076 = vmatprep.subr.bf16.mxu0 0
      %4077 = vmatpush1.bf16.msra.mxu0 0
      %4078 = vmatprep.subr.bf16.mxu0 0
      %4079 = vmatpush1.bf16.msra.mxu0 0
      %4080 = vmatprep.subr.bf16.mxu0 0
      %4081 = vmatpush1.bf16.msra.mxu0 0
      %4082 = vmatprep.subr.bf16.mxu0 0
      %4083 = vmatpush1.bf16.msra.mxu0 0
      %4084 = vmatprep.subr.bf16.mxu0 0
      %4085 = vmatpush1.bf16.msra.mxu0 0
      %4086 = vmatprep.subr.bf16.mxu0 0
      %4087 = vmatpush1.bf16.msra.mxu0 0
      %4088 = vmatprep.subr.bf16.mxu0 0
      %4089 = vmatpush1.bf16.msra.mxu0 0
      %4090 = vmatprep.subr.bf16.mxu0 0
      %4091 = vmatpush1.bf16.msra.mxu0 0
      %4092 = vmatprep.subr.bf16.mxu0 0
      %4093 = vmatpush1.bf16.msra.mxu0 0
      %4094 = vmatprep.subr.bf16.mxu0 0
      %4095 = vmatpush1.bf16.msra.mxu0 0
      %4096 = vmatprep.subr.bf16.mxu0 0
      %4097 = vmatpush1.bf16.msra.mxu0 0
      %4098 = vmatprep.subr.bf16.mxu0 0
      %4099 = vmatpush1.bf16.msra.mxu0 0
      %4100 = vmatprep.mubr.bf16.mxu0 0
      %4101 = vmatmul.mubr.bf16.gmra.mrb[0].mxu0 %v4042
      %v4102 = vpop.f32.mrb[0].mxu0
      %v4103 = vadd.f32 0.0, %v4102
      %v4104 = vpop.f32.mrb[0].mxu0
      %v4105 = vadd.f32 0.0, %v4104
      %v4106 = vpop.f32.mrb[0].mxu0
      %v4107 = vpop.f32.mrb[0].mxu0
      %4108 = vdwg.mxu0
      %4109 = vmatprep.subr.bf16.mxu0 %v4054
      %4110 = vmatpush1.bf16.msra.mxu0 %v4051
      %4111 = vmatprep.subr.bf16.mxu0 0
      %4112 = vmatpush1.bf16.msra.mxu0 0
      %4113 = vmatprep.subr.bf16.mxu0 0
      %4114 = vmatpush1.bf16.msra.mxu0 0
      %4115 = vmatprep.subr.bf16.mxu0 0
      %4116 = vmatpush1.bf16.msra.mxu0 0
      %4117 = vmatprep.subr.bf16.mxu0 0
      %4118 = vmatpush1.bf16.msra.mxu0 0
      %4119 = vmatprep.subr.bf16.mxu0 0
      %4120 = vmatpush1.bf16.msra.mxu0 0
      %4121 = vmatprep.subr.bf16.mxu0 0
      %4122 = vmatpush1.bf16.msra.mxu0 0
      %4123 = vmatprep.subr.bf16.mxu0 0
      %4124 = vmatpush1.bf16.msra.mxu0 0
      %4125 = vmatprep.subr.bf16.mxu0 0
      %4126 = vmatpush1.bf16.msra.mxu0 0
      %4127 = vmatprep.subr.bf16.mxu0 0
      %4128 = vmatpush1.bf16.msra.mxu0 0
      %4129 = vmatprep.subr.bf16.mxu0 0
      %4130 = vmatpush1.bf16.msra.mxu0 0
      %4131 = vmatprep.subr.bf16.mxu0 0
      %4132 = vmatpush1.bf16.msra.mxu0 0
      %4133 = vmatprep.subr.bf16.mxu0 0
      %4134 = vmatpush1.bf16.msra.mxu0 0
      %4135 = vmatprep.subr.bf16.mxu0 0
      %4136 = vmatpush1.bf16.msra.mxu0 0
      %4137 = vmatprep.subr.bf16.mxu0 0
      %4138 = vmatpush1.bf16.msra.mxu0 0
      %4139 = vmatprep.subr.bf16.mxu0 0
      %4140 = vmatpush1.bf16.msra.mxu0 0
      %4141 = vmatprep.mubr.bf16.mxu0 0
      %4142 = vmatmul.mubr.bf16.gmra.mrb[0].mxu0 %v4042
      %v4143 = vpop.f32.mrb[0].mxu0
      %v4144 = vadd.f32 0.0, %v4143
      %v4145 = vpop.f32.mrb[0].mxu0
      %v4146 = vadd.f32 0.0, %v4145
      %v4147 = vpop.f32.mrb[0].mxu0
      %v4148 = vpop.f32.mrb[0].mxu0
      %4149 = vdwg.mxu0
      %4150 = vmatprep.subr.bf16.mxu0 %v4060
      %4151 = vmatpush1.bf16.msra.mxu0 %v4057
      %4152 = vmatprep.subr.bf16.mxu0 0
      %4153 = vmatpush1.bf16.msra.mxu0 0
      %4154 = vmatprep.subr.bf16.mxu0 0
      %4155 = vmatpush1.bf16.msra.mxu0 0
      %4156 = vmatprep.subr.bf16.mxu0 0
      %4157 = vmatpush1.bf16.msra.mxu0 0
      %4158 = vmatprep.subr.bf16.mxu0 0
      %4159 = vmatpush1.bf16.msra.mxu0 0
      %4160 = vmatprep.subr.bf16.mxu0 0
      %4161 = vmatpush1.bf16.msra.mxu0 0
      %4162 = vmatprep.subr.bf16.mxu0 0
      %4163 = vmatpush1.bf16.msra.mxu0 0
      %4164 = vmatprep.subr.bf16.mxu0 0
      %4165 = vmatpush1.bf16.msra.mxu0 0
      %4166 = vmatprep.subr.bf16.mxu0 0
      %4167 = vmatpush1.bf16.msra.mxu0 0
      %4168 = vmatprep.subr.bf16.mxu0 0
      %4169 = vmatpush1.bf16.msra.mxu0 0
      %4170 = vmatprep.subr.bf16.mxu0 0
      %4171 = vmatpush1.bf16.msra.mxu0 0
      %4172 = vmatprep.subr.bf16.mxu0 0
      %4173 = vmatpush1.bf16.msra.mxu0 0
      %4174 = vmatprep.subr.bf16.mxu0 0
      %4175 = vmatpush1.bf16.msra.mxu0 0
      %4176 = vmatprep.subr.bf16.mxu0 0
      %4177 = vmatpush1.bf16.msra.mxu0 0
      %4178 = vmatprep.subr.bf16.mxu0 0
      %4179 = vmatpush1.bf16.msra.mxu0 0
      %4180 = vmatprep.subr.bf16.mxu0 0
      %4181 = vmatpush1.bf16.msra.mxu0 0
      %4182 = vmatprep.mubr.bf16.mxu0 0
      %4183 = vmatmul.mubr.bf16.gmra.mrb[0].mxu0 %v4042
      %v4184 = vpop.f32.mrb[0].mxu0
      %v4185 = vadd.f32 0.0, %v4184
      %v4186 = vpop.f32.mrb[0].mxu0
      %v4187 = vadd.f32 0.0, %v4186
      %v4188 = vpop.f32.mrb[0].mxu0
      %v4189 = vpop.f32.mrb[0].mxu0
      %4190 = vdwg.mxu0
      %4191 = vmatprep.subr.bf16.mxu0 %v4066
      %4192 = vmatpush1.bf16.msra.mxu0 %v4063
      %4193 = vmatprep.subr.bf16.mxu0 0
      %4194 = vmatpush1.bf16.msra.mxu0 0
      %4195 = vmatprep.subr.bf16.mxu0 0
      %4196 = vmatpush1.bf16.msra.mxu0 0
      %4197 = vmatprep.subr.bf16.mxu0 0
      %4198 = vmatpush1.bf16.msra.mxu0 0
      %4199 = vmatprep.subr.bf16.mxu0 0
      %4200 = vmatpush1.bf16.msra.mxu0 0
      %4201 = vmatprep.subr.bf16.mxu0 0
      %4202 = vmatpush1.bf16.msra.mxu0 0
      %4203 = vmatprep.subr.bf16.mxu0 0
      %4204 = vmatpush1.bf16.msra.mxu0 0
      %4205 = vmatprep.subr.bf16.mxu0 0
      %4206 = vmatpush1.bf16.msra.mxu0 0
      %4207 = vmatprep.subr.bf16.mxu0 0
      %4208 = vmatpush1.bf16.msra.mxu0 0
      %4209 = vmatprep.subr.bf16.mxu0 0
      %4210 = vmatpush1.bf16.msra.mxu0 0
      %4211 = vmatprep.subr.bf16.mxu0 0
      %4212 = vmatpush1.bf16.msra.mxu0 0
      %4213 = vmatprep.subr.bf16.mxu0 0
      %4214 = vmatpush1.bf16.msra.mxu0 0
      %4215 = vmatprep.subr.bf16.mxu0 0
      %4216 = vmatpush1.bf16.msra.mxu0 0
      %4217 = vmatprep.subr.bf16.mxu0 0
      %4218 = vmatpush1.bf16.msra.mxu0 0
      %4219 = vmatprep.subr.bf16.mxu0 0
      %4220 = vmatpush1.bf16.msra.mxu0 0
      %4221 = vmatprep.subr.bf16.mxu0 0
      %4222 = vmatpush1.bf16.msra.mxu0 0
      %4223 = vmatprep.mubr.bf16.mxu0 0
      %4224 = vmatmul.mubr.bf16.gmra.mrb[0].mxu0 %v4042
      %v4225 = vpop.f32.mrb[0].mxu0
      %v4226 = vadd.f32 0.0, %v4225
      %v4227 = vpop.f32.mrb[0].mxu0
      %v4228 = vadd.f32 0.0, %v4227
      %v4229 = vpop.f32.mrb[0].mxu0
      %v4230 = vpop.f32.mrb[0].mxu0
      %4231 = vdwg.mxu0
      %v4232 = vadd.f32 %v4004, %v4103
      %v4233 = vadd.f32 %v4005, %v4105
      %v4234 = vadd.f32 %v4006, %v4144
      %v4235 = vadd.f32 %v4007, %v4146
      %v4236 = vadd.f32 %v4008, %v4185
      %v4237 = vadd.f32 %v4009, %v4187
      %v4238 = vadd.f32 %v4010, %v4226
      %v4239 = vadd.f32 %v4011, %v4228
      %s4240 = scalar_lea.vmem %s1, 34
      %v4241 = vld [vmem:[%s4240] sm:$0x3]
      %4242 = vrot.lane.b32.xlu0 %v411, 6
      %v4243 = vpop.permute.xlu0 %4242
      %4244 = vrot.lane.b32.xlu0 %v412, 6
      %v4245 = vpop.permute.xlu0 %4244
      %4246 = vrot.lane.b32.xlu0 %v413, 6
      %v4247 = vpop.permute.xlu0 %4246
      %4248 = vrot.lane.b32.xlu0 %v414, 6
      %v4249 = vpop.permute.xlu0 %4248
      %4250 = vrot.lane.b32.xlu0 %v415, 6
      %v4251 = vpop.permute.xlu0 %4250
      %4252 = vrot.lane.b32.xlu0 %v416, 6
      %v4253 = vpop.permute.xlu0 %4252
      %4254 = vrot.lane.b32.xlu0 %v417, 6
      %v4255 = vpop.permute.xlu0 %4254
      %4256 = vrot.lane.b32.xlu0 %v418, 6
      %v4257 = vpop.permute.xlu0 %4256
      %4258 = vrot.lane.b32.xlu0 %v419, 6
      %v4259 = vpop.permute.xlu0 %4258
      %vm4260 = vcmask 48128
      %v4261 = vsel %vm4260, %v4243, %v4245
      %v4262 = vsel %vm4260, %v4245, %v4247
      %v4263 = vsel %vm4260, %v4247, %v4249
      %v4264 = vsel %vm4260, %v4249, %v4251
      %v4265 = vsel %vm4260, %v4251, %v4253
      %v4266 = vsel %vm4260, %v4253, %v4255
      %v4267 = vsel %vm4260, %v4255, %v4257
      %v4268 = vsel %vm4260, %v4257, %v4259
      %v4270 = vsel %vm456, %v4241, 0
      %v4273 = vsel %vm460, %v4261, 0
      %v4276 = vsel %vm460, %v4262, 0
      %v4279 = vsel %vm460, %v4263, 0
      %v4282 = vsel %vm460, %v4264, 0
      %v4285 = vsel %vm460, %v4265, 0
      %v4288 = vsel %vm460, %v4266, 0
      %v4291 = vsel %vm460, %v4267, 0
      %v4294 = vsel %vm460, %v4268, 0
      %4296 = vmatprep.subr.bf16.mxu0 %v4276
      %4297 = vmatpush1.bf16.msra.mxu0 %v4273
      %4298 = vmatprep.subr.bf16.mxu0 0
      %4299 = vmatpush1.bf16.msra.mxu0 0
      %4300 = vmatprep.subr.bf16.mxu0 0
      %4301 = vmatpush1.bf16.msra.mxu0 0
      %4302 = vmatprep.subr.bf16.mxu0 0
      %4303 = vmatpush1.bf16.msra.mxu0 0
      %4304 = vmatprep.subr.bf16.mxu0 0
      %4305 = vmatpush1.bf16.msra.mxu0 0
      %4306 = vmatprep.subr.bf16.mxu0 0
      %4307 = vmatpush1.bf16.msra.mxu0 0
      %4308 = vmatprep.subr.bf16.mxu0 0
      %4309 = vmatpush1.bf16.msra.mxu0 0
      %4310 = vmatprep.subr.bf16.mxu0 0
      %4311 = vmatpush1.bf16.msra.mxu0 0
      %4312 = vmatprep.subr.bf16.mxu0 0
      %4313 = vmatpush1.bf16.msra.mxu0 0
      %4314 = vmatprep.subr.bf16.mxu0 0
      %4315 = vmatpush1.bf16.msra.mxu0 0
      %4316 = vmatprep.subr.bf16.mxu0 0
      %4317 = vmatpush1.bf16.msra.mxu0 0
      %4318 = vmatprep.subr.bf16.mxu0 0
      %4319 = vmatpush1.bf16.msra.mxu0 0
      %4320 = vmatprep.subr.bf16.mxu0 0
      %4321 = vmatpush1.bf16.msra.mxu0 0
      %4322 = vmatprep.subr.bf16.mxu0 0
      %4323 = vmatpush1.bf16.msra.mxu0 0
      %4324 = vmatprep.subr.bf16.mxu0 0
      %4325 = vmatpush1.bf16.msra.mxu0 0
      %4326 = vmatprep.subr.bf16.mxu0 0
      %4327 = vmatpush1.bf16.msra.mxu0 0
      %4328 = vmatprep.mubr.bf16.mxu0 0
      %4329 = vmatmul.mubr.bf16.gmra.mrb[0].mxu0 %v4270
      %v4330 = vpop.f32.mrb[0].mxu0
      %v4331 = vadd.f32 0.0, %v4330
      %v4332 = vpop.f32.mrb[0].mxu0
      %v4333 = vadd.f32 0.0, %v4332
      %v4334 = vpop.f32.mrb[0].mxu0
      %v4335 = vpop.f32.mrb[0].mxu0
      %4336 = vdwg.mxu0
      %4337 = vmatprep.subr.bf16.mxu0 %v4282
      %4338 = vmatpush1.bf16.msra.mxu0 %v4279
      %4339 = vmatprep.subr.bf16.mxu0 0
      %4340 = vmatpush1.bf16.msra.mxu0 0
      %4341 = vmatprep.subr.bf16.mxu0 0
      %4342 = vmatpush1.bf16.msra.mxu0 0
      %4343 = vmatprep.subr.bf16.mxu0 0
      %4344 = vmatpush1.bf16.msra.mxu0 0
      %4345 = vmatprep.subr.bf16.mxu0 0
      %4346 = vmatpush1.bf16.msra.mxu0 0
      %4347 = vmatprep.subr.bf16.mxu0 0
      %4348 = vmatpush1.bf16.msra.mxu0 0
      %4349 = vmatprep.subr.bf16.mxu0 0
      %4350 = vmatpush1.bf16.msra.mxu0 0
      %4351 = vmatprep.subr.bf16.mxu0 0
      %4352 = vmatpush1.bf16.msra.mxu0 0
      %4353 = vmatprep.subr.bf16.mxu0 0
      %4354 = vmatpush1.bf16.msra.mxu0 0
      %4355 = vmatprep.subr.bf16.mxu0 0
      %4356 = vmatpush1.bf16.msra.mxu0 0
      %4357 = vmatprep.subr.bf16.mxu0 0
      %4358 = vmatpush1.bf16.msra.mxu0 0
      %4359 = vmatprep.subr.bf16.mxu0 0
      %4360 = vmatpush1.bf16.msra.mxu0 0
      %4361 = vmatprep.subr.bf16.mxu0 0
      %4362 = vmatpush1.bf16.msra.mxu0 0
      %4363 = vmatprep.subr.bf16.mxu0 0
      %4364 = vmatpush1.bf16.msra.mxu0 0
      %4365 = vmatprep.subr.bf16.mxu0 0
      %4366 = vmatpush1.bf16.msra.mxu0 0
      %4367 = vmatprep.subr.bf16.mxu0 0
      %4368 = vmatpush1.bf16.msra.mxu0 0
      %4369 = vmatprep.mubr.bf16.mxu0 0
      %4370 = vmatmul.mubr.bf16.gmra.mrb[0].mxu0 %v4270
      %v4371 = vpop.f32.mrb[0].mxu0
      %v4372 = vadd.f32 0.0, %v4371
      %v4373 = vpop.f32.mrb[0].mxu0
      %v4374 = vadd.f32 0.0, %v4373
      %v4375 = vpop.f32.mrb[0].mxu0
      %v4376 = vpop.f32.mrb[0].mxu0
      %4377 = vdwg.mxu0
      %4378 = vmatprep.subr.bf16.mxu0 %v4288
      %4379 = vmatpush1.bf16.msra.mxu0 %v4285
      %4380 = vmatprep.subr.bf16.mxu0 0
      %4381 = vmatpush1.bf16.msra.mxu0 0
      %4382 = vmatprep.subr.bf16.mxu0 0
      %4383 = vmatpush1.bf16.msra.mxu0 0
      %4384 = vmatprep.subr.bf16.mxu0 0
      %4385 = vmatpush1.bf16.msra.mxu0 0
      %4386 = vmatprep.subr.bf16.mxu0 0
      %4387 = vmatpush1.bf16.msra.mxu0 0
      %4388 = vmatprep.subr.bf16.mxu0 0
      %4389 = vmatpush1.bf16.msra.mxu0 0
      %4390 = vmatprep.subr.bf16.mxu0 0
      %4391 = vmatpush1.bf16.msra.mxu0 0
      %4392 = vmatprep.subr.bf16.mxu0 0
      %4393 = vmatpush1.bf16.msra.mxu0 0
      %4394 = vmatprep.subr.bf16.mxu0 0
      %4395 = vmatpush1.bf16.msra.mxu0 0
      %4396 = vmatprep.subr.bf16.mxu0 0
      %4397 = vmatpush1.bf16.msra.mxu0 0
      %4398 = vmatprep.subr.bf16.mxu0 0
      %4399 = vmatpush1.bf16.msra.mxu0 0
      %4400 = vmatprep.subr.bf16.mxu0 0
      %4401 = vmatpush1.bf16.msra.mxu0 0
      %4402 = vmatprep.subr.bf16.mxu0 0
      %4403 = vmatpush1.bf16.msra.mxu0 0
      %4404 = vmatprep.subr.bf16.mxu0 0
      %4405 = vmatpush1.bf16.msra.mxu0 0
      %4406 = vmatprep.subr.bf16.mxu0 0
      %4407 = vmatpush1.bf16.msra.mxu0 0
      %4408 = vmatprep.subr.bf16.mxu0 0
      %4409 = vmatpush1.bf16.msra.mxu0 0
      %4410 = vmatprep.mubr.bf16.mxu0 0
      %4411 = vmatmul.mubr.bf16.gmra.mrb[0].mxu0 %v4270
      %v4412 = vpop.f32.mrb[0].mxu0
      %v4413 = vadd.f32 0.0, %v4412
      %v4414 = vpop.f32.mrb[0].mxu0
      %v4415 = vadd.f32 0.0, %v4414
      %v4416 = vpop.f32.mrb[0].mxu0
      %v4417 = vpop.f32.mrb[0].mxu0
      %4418 = vdwg.mxu0
      %4419 = vmatprep.subr.bf16.mxu0 %v4294
      %4420 = vmatpush1.bf16.msra.mxu0 %v4291
      %4421 = vmatprep.subr.bf16.mxu0 0
      %4422 = vmatpush1.bf16.msra.mxu0 0
      %4423 = vmatprep.subr.bf16.mxu0 0
      %4424 = vmatpush1.bf16.msra.mxu0 0
      %4425 = vmatprep.subr.bf16.mxu0 0
      %4426 = vmatpush1.bf16.msra.mxu0 0
      %4427 = vmatprep.subr.bf16.mxu0 0
      %4428 = vmatpush1.bf16.msra.mxu0 0
      %4429 = vmatprep.subr.bf16.mxu0 0
      %4430 = vmatpush1.bf16.msra.mxu0 0
      %4431 = vmatprep.subr.bf16.mxu0 0
      %4432 = vmatpush1.bf16.msra.mxu0 0
      %4433 = vmatprep.subr.bf16.mxu0 0
      %4434 = vmatpush1.bf16.msra.mxu0 0
      %4435 = vmatprep.subr.bf16.mxu0 0
      %4436 = vmatpush1.bf16.msra.mxu0 0
      %4437 = vmatprep.subr.bf16.mxu0 0
      %4438 = vmatpush1.bf16.msra.mxu0 0
      %4439 = vmatprep.subr.bf16.mxu0 0
      %4440 = vmatpush1.bf16.msra.mxu0 0
      %4441 = vmatprep.subr.bf16.mxu0 0
      %4442 = vmatpush1.bf16.msra.mxu0 0
      %4443 = vmatprep.subr.bf16.mxu0 0
      %4444 = vmatpush1.bf16.msra.mxu0 0
      %4445 = vmatprep.subr.bf16.mxu0 0
      %4446 = vmatpush1.bf16.msra.mxu0 0
      %4447 = vmatprep.subr.bf16.mxu0 0
      %4448 = vmatpush1.bf16.msra.mxu0 0
      %4449 = vmatprep.subr.bf16.mxu0 0
      %4450 = vmatpush1.bf16.msra.mxu0 0
      %4451 = vmatprep.mubr.bf16.mxu0 0
      %4452 = vmatmul.mubr.bf16.gmra.mrb[0].mxu0 %v4270
      %v4453 = vpop.f32.mrb[0].mxu0
      %v4454 = vadd.f32 0.0, %v4453
      %v4455 = vpop.f32.mrb[0].mxu0
      %v4456 = vadd.f32 0.0, %v4455
      %v4457 = vpop.f32.mrb[0].mxu0
      %v4458 = vpop.f32.mrb[0].mxu0
      %4459 = vdwg.mxu0
      %v4460 = vadd.f32 %v4232, %v4331
      %v4461 = vadd.f32 %v4233, %v4333
      %v4462 = vadd.f32 %v4234, %v4372
      %v4463 = vadd.f32 %v4235, %v4374
      %v4464 = vadd.f32 %v4236, %v4413
      %v4465 = vadd.f32 %v4237, %v4415
      %v4466 = vadd.f32 %v4238, %v4454
      %v4467 = vadd.f32 %v4239, %v4456
      %s4468 = scalar_lea.vmem %s1, 36
      %v4469 = vld [vmem:[%s4468] sm:$0x3]
      %4471 = vrot.lane.b32.xlu0 %v412, 56
      %v4472 = vpop.permute.xlu0 %4471
      %4473 = vrot.lane.b32.xlu0 %v413, 56
      %v4474 = vpop.permute.xlu0 %4473
      %4475 = vrot.lane.b32.xlu0 %v414, 56
      %v4476 = vpop.permute.xlu0 %4475
      %4477 = vrot.lane.b32.xlu0 %v415, 56
      %v4478 = vpop.permute.xlu0 %4477
      %4479 = vrot.lane.b32.xlu0 %v416, 56
      %v4480 = vpop.permute.xlu0 %4479
      %4481 = vrot.lane.b32.xlu0 %v417, 56
      %v4482 = vpop.permute.xlu0 %4481
      %4483 = vrot.lane.b32.xlu0 %v418, 56
      %v4484 = vpop.permute.xlu0 %4483
      %4485 = vrot.lane.b32.xlu0 %v419, 56
      %v4486 = vpop.permute.xlu0 %4485
      %4487 = vrot.lane.b32.xlu0 %v420, 56
      %v4488 = vpop.permute.xlu0 %4487
      %vm4489 = vcmask 457728
      %v4490 = vsel %vm4489, %v4472, %v4474
      %v4491 = vsel %vm4489, %v4474, %v4476
      %v4492 = vsel %vm4489, %v4476, %v4478
      %v4493 = vsel %vm4489, %v4478, %v4480
      %v4494 = vsel %vm4489, %v4480, %v4482
      %v4495 = vsel %vm4489, %v4482, %v4484
      %v4496 = vsel %vm4489, %v4484, %v4486
      %v4497 = vsel %vm4489, %v4486, %v4488
      %v4499 = vsel %vm456, %v4469, 0
      %v4502 = vsel %vm460, %v4490, 0
      %v4505 = vsel %vm460, %v4491, 0
      %v4508 = vsel %vm460, %v4492, 0
      %v4511 = vsel %vm460, %v4493, 0
      %v4514 = vsel %vm460, %v4494, 0
      %v4517 = vsel %vm460, %v4495, 0
      %v4520 = vsel %vm460, %v4496, 0
      %v4523 = vsel %vm460, %v4497, 0
      %4525 = vmatprep.subr.bf16.mxu0 %v4505
      %4526 = vmatpush1.bf16.msra.mxu0 %v4502
      %4527 = vmatprep.subr.bf16.mxu0 0
      %4528 = vmatpush1.bf16.msra.mxu0 0
      %4529 = vmatprep.subr.bf16.mxu0 0
      %4530 = vmatpush1.bf16.msra.mxu0 0
      %4531 = vmatprep.subr.bf16.mxu0 0
      %4532 = vmatpush1.bf16.msra.mxu0 0
      %4533 = vmatprep.subr.bf16.mxu0 0
      %4534 = vmatpush1.bf16.msra.mxu0 0
      %4535 = vmatprep.subr.bf16.mxu0 0
      %4536 = vmatpush1.bf16.msra.mxu0 0
      %4537 = vmatprep.subr.bf16.mxu0 0
      %4538 = vmatpush1.bf16.msra.mxu0 0
      %4539 = vmatprep.subr.bf16.mxu0 0
      %4540 = vmatpush1.bf16.msra.mxu0 0
      %4541 = vmatprep.subr.bf16.mxu0 0
      %4542 = vmatpush1.bf16.msra.mxu0 0
      %4543 = vmatprep.subr.bf16.mxu0 0
      %4544 = vmatpush1.bf16.msra.mxu0 0
      %4545 = vmatprep.subr.bf16.mxu0 0
      %4546 = vmatpush1.bf16.msra.mxu0 0
      %4547 = vmatprep.subr.bf16.mxu0 0
      %4548 = vmatpush1.bf16.msra.mxu0 0
      %4549 = vmatprep.subr.bf16.mxu0 0
      %4550 = vmatpush1.bf16.msra.mxu0 0
      %4551 = vmatprep.subr.bf16.mxu0 0
      %4552 = vmatpush1.bf16.msra.mxu0 0
      %4553 = vmatprep.subr.bf16.mxu0 0
      %4554 = vmatpush1.bf16.msra.mxu0 0
      %4555 = vmatprep.subr.bf16.mxu0 0
      %4556 = vmatpush1.bf16.msra.mxu0 0
      %4557 = vmatprep.mubr.bf16.mxu0 0
      %4558 = vmatmul.mubr.bf16.gmra.mrb[0].mxu0 %v4499
      %v4559 = vpop.f32.mrb[0].mxu0
      %v4560 = vadd.f32 0.0, %v4559
      %v4561 = vpop.f32.mrb[0].mxu0
      %v4562 = vadd.f32 0.0, %v4561
      %v4563 = vpop.f32.mrb[0].mxu0
      %v4564 = vpop.f32.mrb[0].mxu0
      %4565 = vdwg.mxu0
      %4566 = vmatprep.subr.bf16.mxu0 %v4511
      %4567 = vmatpush1.bf16.msra.mxu0 %v4508
      %4568 = vmatprep.subr.bf16.mxu0 0
      %4569 = vmatpush1.bf16.msra.mxu0 0
      %4570 = vmatprep.subr.bf16.mxu0 0
      %4571 = vmatpush1.bf16.msra.mxu0 0
      %4572 = vmatprep.subr.bf16.mxu0 0
      %4573 = vmatpush1.bf16.msra.mxu0 0
      %4574 = vmatprep.subr.bf16.mxu0 0
      %4575 = vmatpush1.bf16.msra.mxu0 0
      %4576 = vmatprep.subr.bf16.mxu0 0
      %4577 = vmatpush1.bf16.msra.mxu0 0
      %4578 = vmatprep.subr.bf16.mxu0 0
      %4579 = vmatpush1.bf16.msra.mxu0 0
      %4580 = vmatprep.subr.bf16.mxu0 0
      %4581 = vmatpush1.bf16.msra.mxu0 0
      %4582 = vmatprep.subr.bf16.mxu0 0
      %4583 = vmatpush1.bf16.msra.mxu0 0
      %4584 = vmatprep.subr.bf16.mxu0 0
      %4585 = vmatpush1.bf16.msra.mxu0 0
      %4586 = vmatprep.subr.bf16.mxu0 0
      %4587 = vmatpush1.bf16.msra.mxu0 0
      %4588 = vmatprep.subr.bf16.mxu0 0
      %4589 = vmatpush1.bf16.msra.mxu0 0
      %4590 = vmatprep.subr.bf16.mxu0 0
      %4591 = vmatpush1.bf16.msra.mxu0 0
      %4592 = vmatprep.subr.bf16.mxu0 0
      %4593 = vmatpush1.bf16.msra.mxu0 0
      %4594 = vmatprep.subr.bf16.mxu0 0
      %4595 = vmatpush1.bf16.msra.mxu0 0
      %4596 = vmatprep.subr.bf16.mxu0 0
      %4597 = vmatpush1.bf16.msra.mxu0 0
      %4598 = vmatprep.mubr.bf16.mxu0 0
      %4599 = vmatmul.mubr.bf16.gmra.mrb[0].mxu0 %v4499
      %v4600 = vpop.f32.mrb[0].mxu0
      %v4601 = vadd.f32 0.0, %v4600
      %v4602 = vpop.f32.mrb[0].mxu0
      %v4603 = vadd.f32 0.0, %v4602
      %v4604 = vpop.f32.mrb[0].mxu0
      %v4605 = vpop.f32.mrb[0].mxu0
      %4606 = vdwg.mxu0
      %4607 = vmatprep.subr.bf16.mxu0 %v4517
      %4608 = vmatpush1.bf16.msra.mxu0 %v4514
      %4609 = vmatprep.subr.bf16.mxu0 0
      %4610 = vmatpush1.bf16.msra.mxu0 0
      %4611 = vmatprep.subr.bf16.mxu0 0
      %4612 = vmatpush1.bf16.msra.mxu0 0
      %4613 = vmatprep.subr.bf16.mxu0 0
      %4614 = vmatpush1.bf16.msra.mxu0 0
      %4615 = vmatprep.subr.bf16.mxu0 0
      %4616 = vmatpush1.bf16.msra.mxu0 0
      %4617 = vmatprep.subr.bf16.mxu0 0
      %4618 = vmatpush1.bf16.msra.mxu0 0
      %4619 = vmatprep.subr.bf16.mxu0 0
      %4620 = vmatpush1.bf16.msra.mxu0 0
      %4621 = vmatprep.subr.bf16.mxu0 0
      %4622 = vmatpush1.bf16.msra.mxu0 0
      %4623 = vmatprep.subr.bf16.mxu0 0
      %4624 = vmatpush1.bf16.msra.mxu0 0
      %4625 = vmatprep.subr.bf16.mxu0 0
      %4626 = vmatpush1.bf16.msra.mxu0 0
      %4627 = vmatprep.subr.bf16.mxu0 0
      %4628 = vmatpush1.bf16.msra.mxu0 0
      %4629 = vmatprep.subr.bf16.mxu0 0
      %4630 = vmatpush1.bf16.msra.mxu0 0
      %4631 = vmatprep.subr.bf16.mxu0 0
      %4632 = vmatpush1.bf16.msra.mxu0 0
      %4633 = vmatprep.subr.bf16.mxu0 0
      %4634 = vmatpush1.bf16.msra.mxu0 0
      %4635 = vmatprep.subr.bf16.mxu0 0
      %4636 = vmatpush1.bf16.msra.mxu0 0
      %4637 = vmatprep.subr.bf16.mxu0 0
      %4638 = vmatpush1.bf16.msra.mxu0 0
      %4639 = vmatprep.mubr.bf16.mxu0 0
      %4640 = vmatmul.mubr.bf16.gmra.mrb[0].mxu0 %v4499
      %v4641 = vpop.f32.mrb[0].mxu0
      %v4642 = vadd.f32 0.0, %v4641
      %v4643 = vpop.f32.mrb[0].mxu0
      %v4644 = vadd.f32 0.0, %v4643
      %v4645 = vpop.f32.mrb[0].mxu0
      %v4646 = vpop.f32.mrb[0].mxu0
      %4647 = vdwg.mxu0
      %4648 = vmatprep.subr.bf16.mxu0 %v4523
      %4649 = vmatpush1.bf16.msra.mxu0 %v4520
      %4650 = vmatprep.subr.bf16.mxu0 0
      %4651 = vmatpush1.bf16.msra.mxu0 0
      %4652 = vmatprep.subr.bf16.mxu0 0
      %4653 = vmatpush1.bf16.msra.mxu0 0
      %4654 = vmatprep.subr.bf16.mxu0 0
      %4655 = vmatpush1.bf16.msra.mxu0 0
      %4656 = vmatprep.subr.bf16.mxu0 0
      %4657 = vmatpush1.bf16.msra.mxu0 0
      %4658 = vmatprep.subr.bf16.mxu0 0
      %4659 = vmatpush1.bf16.msra.mxu0 0
      %4660 = vmatprep.subr.bf16.mxu0 0
      %4661 = vmatpush1.bf16.msra.mxu0 0
      %4662 = vmatprep.subr.bf16.mxu0 0
      %4663 = vmatpush1.bf16.msra.mxu0 0
      %4664 = vmatprep.subr.bf16.mxu0 0
      %4665 = vmatpush1.bf16.msra.mxu0 0
      %4666 = vmatprep.subr.bf16.mxu0 0
      %4667 = vmatpush1.bf16.msra.mxu0 0
      %4668 = vmatprep.subr.bf16.mxu0 0
      %4669 = vmatpush1.bf16.msra.mxu0 0
      %4670 = vmatprep.subr.bf16.mxu0 0
      %4671 = vmatpush1.bf16.msra.mxu0 0
      %4672 = vmatprep.subr.bf16.mxu0 0
      %4673 = vmatpush1.bf16.msra.mxu0 0
      %4674 = vmatprep.subr.bf16.mxu0 0
      %4675 = vmatpush1.bf16.msra.mxu0 0
      %4676 = vmatprep.subr.bf16.mxu0 0
      %4677 = vmatpush1.bf16.msra.mxu0 0
      %4678 = vmatprep.subr.bf16.mxu0 0
      %4679 = vmatpush1.bf16.msra.mxu0 0
      %4680 = vmatprep.mubr.bf16.mxu0 0
      %4681 = vmatmul.mubr.bf16.gmra.mrb[0].mxu0 %v4499
      %v4682 = vpop.f32.mrb[0].mxu0
      %v4683 = vadd.f32 0.0, %v4682
      %v4684 = vpop.f32.mrb[0].mxu0
      %v4685 = vadd.f32 0.0, %v4684
      %v4686 = vpop.f32.mrb[0].mxu0
      %v4687 = vpop.f32.mrb[0].mxu0
      %4688 = vdwg.mxu0
      %v4689 = vadd.f32 %v4460, %v4560
      %v4690 = vadd.f32 %v4461, %v4562
      %v4691 = vadd.f32 %v4462, %v4601
      %v4692 = vadd.f32 %v4463, %v4603
      %v4693 = vadd.f32 %v4464, %v4642
      %v4694 = vadd.f32 %v4465, %v4644
      %v4695 = vadd.f32 %v4466, %v4683
      %v4696 = vadd.f32 %v4467, %v4685
      %s4697 = scalar_lea.vmem %s1, 38
      %v4698 = vld [vmem:[%s4697] sm:$0x3]
      %4699 = vrot.lane.b32.xlu0 %v412, 55
      %v4700 = vpop.permute.xlu0 %4699
      %4701 = vrot.lane.b32.xlu0 %v413, 55
      %v4702 = vpop.permute.xlu0 %4701
      %4703 = vrot.lane.b32.xlu0 %v414, 55
      %v4704 = vpop.permute.xlu0 %4703
      %4705 = vrot.lane.b32.xlu0 %v415, 55
      %v4706 = vpop.permute.xlu0 %4705
      %4707 = vrot.lane.b32.xlu0 %v416, 55
      %v4708 = vpop.permute.xlu0 %4707
      %4709 = vrot.lane.b32.xlu0 %v417, 55
      %v4710 = vpop.permute.xlu0 %4709
      %4711 = vrot.lane.b32.xlu0 %v418, 55
      %v4712 = vpop.permute.xlu0 %4711
      %4713 = vrot.lane.b32.xlu0 %v419, 55
      %v4714 = vpop.permute.xlu0 %4713
      %4715 = vrot.lane.b32.xlu0 %v420, 55
      %v4716 = vpop.permute.xlu0 %4715
      %vm4717 = vcmask 449536
      %v4718 = vsel %vm4717, %v4700, %v4702
      %v4719 = vsel %vm4717, %v4702, %v4704
      %v4720 = vsel %vm4717, %v4704, %v4706
      %v4721 = vsel %vm4717, %v4706, %v4708
      %v4722 = vsel %vm4717, %v4708, %v4710
      %v4723 = vsel %vm4717, %v4710, %v4712
      %v4724 = vsel %vm4717, %v4712, %v4714
      %v4725 = vsel %vm4717, %v4714, %v4716
      %v4727 = vsel %vm456, %v4698, 0
      %v4730 = vsel %vm460, %v4718, 0
      %v4733 = vsel %vm460, %v4719, 0
      %v4736 = vsel %vm460, %v4720, 0
      %v4739 = vsel %vm460, %v4721, 0
      %v4742 = vsel %vm460, %v4722, 0
      %v4745 = vsel %vm460, %v4723, 0
      %v4748 = vsel %vm460, %v4724, 0
      %v4751 = vsel %vm460, %v4725, 0
      %4753 = vmatprep.subr.bf16.mxu0 %v4733
      %4754 = vmatpush1.bf16.msra.mxu0 %v4730
      %4755 = vmatprep.subr.bf16.mxu0 0
      %4756 = vmatpush1.bf16.msra.mxu0 0
      %4757 = vmatprep.subr.bf16.mxu0 0
      %4758 = vmatpush1.bf16.msra.mxu0 0
      %4759 = vmatprep.subr.bf16.mxu0 0
      %4760 = vmatpush1.bf16.msra.mxu0 0
      %4761 = vmatprep.subr.bf16.mxu0 0
      %4762 = vmatpush1.bf16.msra.mxu0 0
      %4763 = vmatprep.subr.bf16.mxu0 0
      %4764 = vmatpush1.bf16.msra.mxu0 0
      %4765 = vmatprep.subr.bf16.mxu0 0
      %4766 = vmatpush1.bf16.msra.mxu0 0
      %4767 = vmatprep.subr.bf16.mxu0 0
      %4768 = vmatpush1.bf16.msra.mxu0 0
      %4769 = vmatprep.subr.bf16.mxu0 0
      %4770 = vmatpush1.bf16.msra.mxu0 0
      %4771 = vmatprep.subr.bf16.mxu0 0
      %4772 = vmatpush1.bf16.msra.mxu0 0
      %4773 = vmatprep.subr.bf16.mxu0 0
      %4774 = vmatpush1.bf16.msra.mxu0 0
      %4775 = vmatprep.subr.bf16.mxu0 0
      %4776 = vmatpush1.bf16.msra.mxu0 0
      %4777 = vmatprep.subr.bf16.mxu0 0
      %4778 = vmatpush1.bf16.msra.mxu0 0
      %4779 = vmatprep.subr.bf16.mxu0 0
      %4780 = vmatpush1.bf16.msra.mxu0 0
      %4781 = vmatprep.subr.bf16.mxu0 0
      %4782 = vmatpush1.bf16.msra.mxu0 0
      %4783 = vmatprep.subr.bf16.mxu0 0
      %4784 = vmatpush1.bf16.msra.mxu0 0
      %4785 = vmatprep.mubr.bf16.mxu0 0
      %4786 = vmatmul.mubr.bf16.gmra.mrb[0].mxu0 %v4727
      %v4787 = vpop.f32.mrb[0].mxu0
      %v4788 = vadd.f32 0.0, %v4787
      %v4789 = vpop.f32.mrb[0].mxu0
      %v4790 = vadd.f32 0.0, %v4789
      %v4791 = vpop.f32.mrb[0].mxu0
      %v4792 = vpop.f32.mrb[0].mxu0
      %4793 = vdwg.mxu0
      %4794 = vmatprep.subr.bf16.mxu0 %v4739
      %4795 = vmatpush1.bf16.msra.mxu0 %v4736
      %4796 = vmatprep.subr.bf16.mxu0 0
      %4797 = vmatpush1.bf16.msra.mxu0 0
      %4798 = vmatprep.subr.bf16.mxu0 0
      %4799 = vmatpush1.bf16.msra.mxu0 0
      %4800 = vmatprep.subr.bf16.mxu0 0
      %4801 = vmatpush1.bf16.msra.mxu0 0
      %4802 = vmatprep.subr.bf16.mxu0 0
      %4803 = vmatpush1.bf16.msra.mxu0 0
      %4804 = vmatprep.subr.bf16.mxu0 0
      %4805 = vmatpush1.bf16.msra.mxu0 0
      %4806 = vmatprep.subr.bf16.mxu0 0
      %4807 = vmatpush1.bf16.msra.mxu0 0
      %4808 = vmatprep.subr.bf16.mxu0 0
      %4809 = vmatpush1.bf16.msra.mxu0 0
      %4810 = vmatprep.subr.bf16.mxu0 0
      %4811 = vmatpush1.bf16.msra.mxu0 0
      %4812 = vmatprep.subr.bf16.mxu0 0
      %4813 = vmatpush1.bf16.msra.mxu0 0
      %4814 = vmatprep.subr.bf16.mxu0 0
      %4815 = vmatpush1.bf16.msra.mxu0 0
      %4816 = vmatprep.subr.bf16.mxu0 0
      %4817 = vmatpush1.bf16.msra.mxu0 0
      %4818 = vmatprep.subr.bf16.mxu0 0
      %4819 = vmatpush1.bf16.msra.mxu0 0
      %4820 = vmatprep.subr.bf16.mxu0 0
      %4821 = vmatpush1.bf16.msra.mxu0 0
      %4822 = vmatprep.subr.bf16.mxu0 0
      %4823 = vmatpush1.bf16.msra.mxu0 0
      %4824 = vmatprep.subr.bf16.mxu0 0
      %4825 = vmatpush1.bf16.msra.mxu0 0
      %4826 = vmatprep.mubr.bf16.mxu0 0
      %4827 = vmatmul.mubr.bf16.gmra.mrb[0].mxu0 %v4727
      %v4828 = vpop.f32.mrb[0].mxu0
      %v4829 = vadd.f32 0.0, %v4828
      %v4830 = vpop.f32.mrb[0].mxu0
      %v4831 = vadd.f32 0.0, %v4830
      %v4832 = vpop.f32.mrb[0].mxu0
      %v4833 = vpop.f32.mrb[0].mxu0
      %4834 = vdwg.mxu0
      %4835 = vmatprep.subr.bf16.mxu0 %v4745
      %4836 = vmatpush1.bf16.msra.mxu0 %v4742
      %4837 = vmatprep.subr.bf16.mxu0 0
      %4838 = vmatpush1.bf16.msra.mxu0 0
      %4839 = vmatprep.subr.bf16.mxu0 0
      %4840 = vmatpush1.bf16.msra.mxu0 0
      %4841 = vmatprep.subr.bf16.mxu0 0
      %4842 = vmatpush1.bf16.msra.mxu0 0
      %4843 = vmatprep.subr.bf16.mxu0 0
      %4844 = vmatpush1.bf16.msra.mxu0 0
      %4845 = vmatprep.subr.bf16.mxu0 0
      %4846 = vmatpush1.bf16.msra.mxu0 0
      %4847 = vmatprep.subr.bf16.mxu0 0
      %4848 = vmatpush1.bf16.msra.mxu0 0
      %4849 = vmatprep.subr.bf16.mxu0 0
      %4850 = vmatpush1.bf16.msra.mxu0 0
      %4851 = vmatprep.subr.bf16.mxu0 0
      %4852 = vmatpush1.bf16.msra.mxu0 0
      %4853 = vmatprep.subr.bf16.mxu0 0
      %4854 = vmatpush1.bf16.msra.mxu0 0
      %4855 = vmatprep.subr.bf16.mxu0 0
      %4856 = vmatpush1.bf16.msra.mxu0 0
      %4857 = vmatprep.subr.bf16.mxu0 0
      %4858 = vmatpush1.bf16.msra.mxu0 0
      %4859 = vmatprep.subr.bf16.mxu0 0
      %4860 = vmatpush1.bf16.msra.mxu0 0
      %4861 = vmatprep.subr.bf16.mxu0 0
      %4862 = vmatpush1.bf16.msra.mxu0 0
      %4863 = vmatprep.subr.bf16.mxu0 0
      %4864 = vmatpush1.bf16.msra.mxu0 0
      %4865 = vmatprep.subr.bf16.mxu0 0
      %4866 = vmatpush1.bf16.msra.mxu0 0
      %4867 = vmatprep.mubr.bf16.mxu0 0
      %4868 = vmatmul.mubr.bf16.gmra.mrb[0].mxu0 %v4727
      %v4869 = vpop.f32.mrb[0].mxu0
      %v4870 = vadd.f32 0.0, %v4869
      %v4871 = vpop.f32.mrb[0].mxu0
      %v4872 = vadd.f32 0.0, %v4871
      %v4873 = vpop.f32.mrb[0].mxu0
      %v4874 = vpop.f32.mrb[0].mxu0
      %4875 = vdwg.mxu0
      %4876 = vmatprep.subr.bf16.mxu0 %v4751
      %4877 = vmatpush1.bf16.msra.mxu0 %v4748
      %4878 = vmatprep.subr.bf16.mxu0 0
      %4879 = vmatpush1.bf16.msra.mxu0 0
      %4880 = vmatprep.subr.bf16.mxu0 0
      %4881 = vmatpush1.bf16.msra.mxu0 0
      %4882 = vmatprep.subr.bf16.mxu0 0
      %4883 = vmatpush1.bf16.msra.mxu0 0
      %4884 = vmatprep.subr.bf16.mxu0 0
      %4885 = vmatpush1.bf16.msra.mxu0 0
      %4886 = vmatprep.subr.bf16.mxu0 0
      %4887 = vmatpush1.bf16.msra.mxu0 0
      %4888 = vmatprep.subr.bf16.mxu0 0
      %4889 = vmatpush1.bf16.msra.mxu0 0
      %4890 = vmatprep.subr.bf16.mxu0 0
      %4891 = vmatpush1.bf16.msra.mxu0 0
      %4892 = vmatprep.subr.bf16.mxu0 0
      %4893 = vmatpush1.bf16.msra.mxu0 0
      %4894 = vmatprep.subr.bf16.mxu0 0
      %4895 = vmatpush1.bf16.msra.mxu0 0
      %4896 = vmatprep.subr.bf16.mxu0 0
      %4897 = vmatpush1.bf16.msra.mxu0 0
      %4898 = vmatprep.subr.bf16.mxu0 0
      %4899 = vmatpush1.bf16.msra.mxu0 0
      %4900 = vmatprep.subr.bf16.mxu0 0
      %4901 = vmatpush1.bf16.msra.mxu0 0
      %4902 = vmatprep.subr.bf16.mxu0 0
      %4903 = vmatpush1.bf16.msra.mxu0 0
      %4904 = vmatprep.subr.bf16.mxu0 0
      %4905 = vmatpush1.bf16.msra.mxu0 0
      %4906 = vmatprep.subr.bf16.mxu0 0
      %4907 = vmatpush1.bf16.msra.mxu0 0
      %4908 = vmatprep.mubr.bf16.mxu0 0
      %4909 = vmatmul.mubr.bf16.gmra.mrb[0].mxu0 %v4727
      %v4910 = vpop.f32.mrb[0].mxu0
      %v4911 = vadd.f32 0.0, %v4910
      %v4912 = vpop.f32.mrb[0].mxu0
      %v4913 = vadd.f32 0.0, %v4912
      %v4914 = vpop.f32.mrb[0].mxu0
      %v4915 = vpop.f32.mrb[0].mxu0
      %4916 = vdwg.mxu0
      %v4917 = vadd.f32 %v4689, %v4788
      %v4918 = vadd.f32 %v4690, %v4790
      %v4919 = vadd.f32 %v4691, %v4829
      %v4920 = vadd.f32 %v4692, %v4831
      %v4921 = vadd.f32 %v4693, %v4870
      %v4922 = vadd.f32 %v4694, %v4872
      %v4923 = vadd.f32 %v4695, %v4911
      %v4924 = vadd.f32 %v4696, %v4913
      %s4925 = scalar_lea.vmem %s1, 40
      %v4926 = vld [vmem:[%s4925] sm:$0x3]
      %4927 = vrot.lane.b32.xlu0 %v412, 54
      %v4928 = vpop.permute.xlu0 %4927
      %4929 = vrot.lane.b32.xlu0 %v413, 54
      %v4930 = vpop.permute.xlu0 %4929
      %4931 = vrot.lane.b32.xlu0 %v414, 54
      %v4932 = vpop.permute.xlu0 %4931
      %4933 = vrot.lane.b32.xlu0 %v415, 54
      %v4934 = vpop.permute.xlu0 %4933
      %4935 = vrot.lane.b32.xlu0 %v416, 54
      %v4936 = vpop.permute.xlu0 %4935
      %4937 = vrot.lane.b32.xlu0 %v417, 54
      %v4938 = vpop.permute.xlu0 %4937
      %4939 = vrot.lane.b32.xlu0 %v418, 54
      %v4940 = vpop.permute.xlu0 %4939
      %4941 = vrot.lane.b32.xlu0 %v419, 54
      %v4942 = vpop.permute.xlu0 %4941
      %4943 = vrot.lane.b32.xlu0 %v420, 54
      %v4944 = vpop.permute.xlu0 %4943
      %vm4945 = vcmask 441344
      %v4946 = vsel %vm4945, %v4928, %v4930
      %v4947 = vsel %vm4945, %v4930, %v4932
      %v4948 = vsel %vm4945, %v4932, %v4934
      %v4949 = vsel %vm4945, %v4934, %v4936
      %v4950 = vsel %vm4945, %v4936, %v4938
      %v4951 = vsel %vm4945, %v4938, %v4940
      %v4952 = vsel %vm4945, %v4940, %v4942
      %v4953 = vsel %vm4945, %v4942, %v4944
      %v4955 = vsel %vm456, %v4926, 0
      %v4958 = vsel %vm460, %v4946, 0
      %v4961 = vsel %vm460, %v4947, 0
      %v4964 = vsel %vm460, %v4948, 0
      %v4967 = vsel %vm460, %v4949, 0
      %v4970 = vsel %vm460, %v4950, 0
      %v4973 = vsel %vm460, %v4951, 0
      %v4976 = vsel %vm460, %v4952, 0
      %v4979 = vsel %vm460, %v4953, 0
      %4981 = vmatprep.subr.bf16.mxu0 %v4961
      %4982 = vmatpush1.bf16.msra.mxu0 %v4958
      %4983 = vmatprep.subr.bf16.mxu0 0
      %4984 = vmatpush1.bf16.msra.mxu0 0
      %4985 = vmatprep.subr.bf16.mxu0 0
      %4986 = vmatpush1.bf16.msra.mxu0 0
      %4987 = vmatprep.subr.bf16.mxu0 0
      %4988 = vmatpush1.bf16.msra.mxu0 0
      %4989 = vmatprep.subr.bf16.mxu0 0
      %4990 = vmatpush1.bf16.msra.mxu0 0
      %4991 = vmatprep.subr.bf16.mxu0 0
      %4992 = vmatpush1.bf16.msra.mxu0 0
      %4993 = vmatprep.subr.bf16.mxu0 0
      %4994 = vmatpush1.bf16.msra.mxu0 0
      %4995 = vmatprep.subr.bf16.mxu0 0
      %4996 = vmatpush1.bf16.msra.mxu0 0
      %4997 = vmatprep.subr.bf16.mxu0 0
      %4998 = vmatpush1.bf16.msra.mxu0 0
      %4999 = vmatprep.subr.bf16.mxu0 0
      %5000 = vmatpush1.bf16.msra.mxu0 0
      %5001 = vmatprep.subr.bf16.mxu0 0
      %5002 = vmatpush1.bf16.msra.mxu0 0
      %5003 = vmatprep.subr.bf16.mxu0 0
      %5004 = vmatpush1.bf16.msra.mxu0 0
      %5005 = vmatprep.subr.bf16.mxu0 0
      %5006 = vmatpush1.bf16.msra.mxu0 0
      %5007 = vmatprep.subr.bf16.mxu0 0
      %5008 = vmatpush1.bf16.msra.mxu0 0
      %5009 = vmatprep.subr.bf16.mxu0 0
      %5010 = vmatpush1.bf16.msra.mxu0 0
      %5011 = vmatprep.subr.bf16.mxu0 0
      %5012 = vmatpush1.bf16.msra.mxu0 0
      %5013 = vmatprep.mubr.bf16.mxu0 0
      %5014 = vmatmul.mubr.bf16.gmra.mrb[0].mxu0 %v4955
      %v5015 = vpop.f32.mrb[0].mxu0
      %v5016 = vadd.f32 0.0, %v5015
      %v5017 = vpop.f32.mrb[0].mxu0
      %v5018 = vadd.f32 0.0, %v5017
      %v5019 = vpop.f32.mrb[0].mxu0
      %v5020 = vpop.f32.mrb[0].mxu0
      %5021 = vdwg.mxu0
      %5022 = vmatprep.subr.bf16.mxu0 %v4967
      %5023 = vmatpush1.bf16.msra.mxu0 %v4964
      %5024 = vmatprep.subr.bf16.mxu0 0
      %5025 = vmatpush1.bf16.msra.mxu0 0
      %5026 = vmatprep.subr.bf16.mxu0 0
      %5027 = vmatpush1.bf16.msra.mxu0 0
      %5028 = vmatprep.subr.bf16.mxu0 0
      %5029 = vmatpush1.bf16.msra.mxu0 0
      %5030 = vmatprep.subr.bf16.mxu0 0
      %5031 = vmatpush1.bf16.msra.mxu0 0
      %5032 = vmatprep.subr.bf16.mxu0 0
      %5033 = vmatpush1.bf16.msra.mxu0 0
      %5034 = vmatprep.subr.bf16.mxu0 0
      %5035 = vmatpush1.bf16.msra.mxu0 0
      %5036 = vmatprep.subr.bf16.mxu0 0
      %5037 = vmatpush1.bf16.msra.mxu0 0
      %5038 = vmatprep.subr.bf16.mxu0 0
      %5039 = vmatpush1.bf16.msra.mxu0 0
      %5040 = vmatprep.subr.bf16.mxu0 0
      %5041 = vmatpush1.bf16.msra.mxu0 0
      %5042 = vmatprep.subr.bf16.mxu0 0
      %5043 = vmatpush1.bf16.msra.mxu0 0
      %5044 = vmatprep.subr.bf16.mxu0 0
      %5045 = vmatpush1.bf16.msra.mxu0 0
      %5046 = vmatprep.subr.bf16.mxu0 0
      %5047 = vmatpush1.bf16.msra.mxu0 0
      %5048 = vmatprep.subr.bf16.mxu0 0
      %5049 = vmatpush1.bf16.msra.mxu0 0
      %5050 = vmatprep.subr.bf16.mxu0 0
      %5051 = vmatpush1.bf16.msra.mxu0 0
      %5052 = vmatprep.subr.bf16.mxu0 0
      %5053 = vmatpush1.bf16.msra.mxu0 0
      %5054 = vmatprep.mubr.bf16.mxu0 0
      %5055 = vmatmul.mubr.bf16.gmra.mrb[0].mxu0 %v4955
      %v5056 = vpop.f32.mrb[0].mxu0
      %v5057 = vadd.f32 0.0, %v5056
      %v5058 = vpop.f32.mrb[0].mxu0
      %v5059 = vadd.f32 0.0, %v5058
      %v5060 = vpop.f32.mrb[0].mxu0
      %v5061 = vpop.f32.mrb[0].mxu0
      %5062 = vdwg.mxu0
      %5063 = vmatprep.subr.bf16.mxu0 %v4973
      %5064 = vmatpush1.bf16.msra.mxu0 %v4970
      %5065 = vmatprep.subr.bf16.mxu0 0
      %5066 = vmatpush1.bf16.msra.mxu0 0
      %5067 = vmatprep.subr.bf16.mxu0 0
      %5068 = vmatpush1.bf16.msra.mxu0 0
      %5069 = vmatprep.subr.bf16.mxu0 0
      %5070 = vmatpush1.bf16.msra.mxu0 0
      %5071 = vmatprep.subr.bf16.mxu0 0
      %5072 = vmatpush1.bf16.msra.mxu0 0
      %5073 = vmatprep.subr.bf16.mxu0 0
      %5074 = vmatpush1.bf16.msra.mxu0 0
      %5075 = vmatprep.subr.bf16.mxu0 0
      %5076 = vmatpush1.bf16.msra.mxu0 0
      %5077 = vmatprep.subr.bf16.mxu0 0
      %5078 = vmatpush1.bf16.msra.mxu0 0
      %5079 = vmatprep.subr.bf16.mxu0 0
      %5080 = vmatpush1.bf16.msra.mxu0 0
      %5081 = vmatprep.subr.bf16.mxu0 0
      %5082 = vmatpush1.bf16.msra.mxu0 0
      %5083 = vmatprep.subr.bf16.mxu0 0
      %5084 = vmatpush1.bf16.msra.mxu0 0
      %5085 = vmatprep.subr.bf16.mxu0 0
      %5086 = vmatpush1.bf16.msra.mxu0 0
      %5087 = vmatprep.subr.bf16.mxu0 0
      %5088 = vmatpush1.bf16.msra.mxu0 0
      %5089 = vmatprep.subr.bf16.mxu0 0
      %5090 = vmatpush1.bf16.msra.mxu0 0
      %5091 = vmatprep.subr.bf16.mxu0 0
      %5092 = vmatpush1.bf16.msra.mxu0 0
      %5093 = vmatprep.subr.bf16.mxu0 0
      %5094 = vmatpush1.bf16.msra.mxu0 0
      %5095 = vmatprep.mubr.bf16.mxu0 0
      %5096 = vmatmul.mubr.bf16.gmra.mrb[0].mxu0 %v4955
      %v5097 = vpop.f32.mrb[0].mxu0
      %v5098 = vadd.f32 0.0, %v5097
      %v5099 = vpop.f32.mrb[0].mxu0
      %v5100 = vadd.f32 0.0, %v5099
      %v5101 = vpop.f32.mrb[0].mxu0
      %v5102 = vpop.f32.mrb[0].mxu0
      %5103 = vdwg.mxu0
      %5104 = vmatprep.subr.bf16.mxu0 %v4979
      %5105 = vmatpush1.bf16.msra.mxu0 %v4976
      %5106 = vmatprep.subr.bf16.mxu0 0
      %5107 = vmatpush1.bf16.msra.mxu0 0
      %5108 = vmatprep.subr.bf16.mxu0 0
      %5109 = vmatpush1.bf16.msra.mxu0 0
      %5110 = vmatprep.subr.bf16.mxu0 0
      %5111 = vmatpush1.bf16.msra.mxu0 0
      %5112 = vmatprep.subr.bf16.mxu0 0
      %5113 = vmatpush1.bf16.msra.mxu0 0
      %5114 = vmatprep.subr.bf16.mxu0 0
      %5115 = vmatpush1.bf16.msra.mxu0 0
      %5116 = vmatprep.subr.bf16.mxu0 0
      %5117 = vmatpush1.bf16.msra.mxu0 0
      %5118 = vmatprep.subr.bf16.mxu0 0
      %5119 = vmatpush1.bf16.msra.mxu0 0
      %5120 = vmatprep.subr.bf16.mxu0 0
      %5121 = vmatpush1.bf16.msra.mxu0 0
      %5122 = vmatprep.subr.bf16.mxu0 0
      %5123 = vmatpush1.bf16.msra.mxu0 0
      %5124 = vmatprep.subr.bf16.mxu0 0
      %5125 = vmatpush1.bf16.msra.mxu0 0
      %5126 = vmatprep.subr.bf16.mxu0 0
      %5127 = vmatpush1.bf16.msra.mxu0 0
      %5128 = vmatprep.subr.bf16.mxu0 0
      %5129 = vmatpush1.bf16.msra.mxu0 0
      %5130 = vmatprep.subr.bf16.mxu0 0
      %5131 = vmatpush1.bf16.msra.mxu0 0
      %5132 = vmatprep.subr.bf16.mxu0 0
      %5133 = vmatpush1.bf16.msra.mxu0 0
      %5134 = vmatprep.subr.bf16.mxu0 0
      %5135 = vmatpush1.bf16.msra.mxu0 0
      %5136 = vmatprep.mubr.bf16.mxu0 0
      %5137 = vmatmul.mubr.bf16.gmra.mrb[0].mxu0 %v4955
      %v5138 = vpop.f32.mrb[0].mxu0
      %v5139 = vadd.f32 0.0, %v5138
      %v5140 = vpop.f32.mrb[0].mxu0
      %v5141 = vadd.f32 0.0, %v5140
      %v5142 = vpop.f32.mrb[0].mxu0
      %v5143 = vpop.f32.mrb[0].mxu0
      %5144 = vdwg.mxu0
      %v5145 = vadd.f32 %v4917, %v5016
      %v5146 = vadd.f32 %v4918, %v5018
      %v5147 = vadd.f32 %v4919, %v5057
      %v5148 = vadd.f32 %v4920, %v5059
      %v5149 = vadd.f32 %v4921, %v5098
      %v5150 = vadd.f32 %v4922, %v5100
      %v5151 = vadd.f32 %v4923, %v5139
      %v5152 = vadd.f32 %v4924, %v5141
      %s5153 = scalar_lea.vmem %s1, 42
      %v5154 = vld [vmem:[%s5153] sm:$0x3]
      %5155 = vrot.lane.b32.xlu0 %v412, 46
      %v5156 = vpop.permute.xlu0 %5155
      %5157 = vrot.lane.b32.xlu0 %v413, 46
      %v5158 = vpop.permute.xlu0 %5157
      %5159 = vrot.lane.b32.xlu0 %v414, 46
      %v5160 = vpop.permute.xlu0 %5159
      %5161 = vrot.lane.b32.xlu0 %v415, 46
      %v5162 = vpop.permute.xlu0 %5161
      %5163 = vrot.lane.b32.xlu0 %v416, 46
      %v5164 = vpop.permute.xlu0 %5163
      %5165 = vrot.lane.b32.xlu0 %v417, 46
      %v5166 = vpop.permute.xlu0 %5165
      %5167 = vrot.lane.b32.xlu0 %v418, 46
      %v5168 = vpop.permute.xlu0 %5167
      %5169 = vrot.lane.b32.xlu0 %v419, 46
      %v5170 = vpop.permute.xlu0 %5169
      %5171 = vrot.lane.b32.xlu0 %v420, 46
      %v5172 = vpop.permute.xlu0 %5171
      %vm5173 = vcmask 375808
      %v5174 = vsel %vm5173, %v5156, %v5158
      %v5175 = vsel %vm5173, %v5158, %v5160
      %v5176 = vsel %vm5173, %v5160, %v5162
      %v5177 = vsel %vm5173, %v5162, %v5164
      %v5178 = vsel %vm5173, %v5164, %v5166
      %v5179 = vsel %vm5173, %v5166, %v5168
      %v5180 = vsel %vm5173, %v5168, %v5170
      %v5181 = vsel %vm5173, %v5170, %v5172
      %v5183 = vsel %vm456, %v5154, 0
      %v5186 = vsel %vm460, %v5174, 0
      %v5189 = vsel %vm460, %v5175, 0
      %v5192 = vsel %vm460, %v5176, 0
      %v5195 = vsel %vm460, %v5177, 0
      %v5198 = vsel %vm460, %v5178, 0
      %v5201 = vsel %vm460, %v5179, 0
      %v5204 = vsel %vm460, %v5180, 0
      %v5207 = vsel %vm460, %v5181, 0
      %5209 = vmatprep.subr.bf16.mxu0 %v5189
      %5210 = vmatpush1.bf16.msra.mxu0 %v5186
      %5211 = vmatprep.subr.bf16.mxu0 0
      %5212 = vmatpush1.bf16.msra.mxu0 0
      %5213 = vmatprep.subr.bf16.mxu0 0
      %5214 = vmatpush1.bf16.msra.mxu0 0
      %5215 = vmatprep.subr.bf16.mxu0 0
      %5216 = vmatpush1.bf16.msra.mxu0 0
      %5217 = vmatprep.subr.bf16.mxu0 0
      %5218 = vmatpush1.bf16.msra.mxu0 0
      %5219 = vmatprep.subr.bf16.mxu0 0
      %5220 = vmatpush1.bf16.msra.mxu0 0
      %5221 = vmatprep.subr.bf16.mxu0 0
      %5222 = vmatpush1.bf16.msra.mxu0 0
      %5223 = vmatprep.subr.bf16.mxu0 0
      %5224 = vmatpush1.bf16.msra.mxu0 0
      %5225 = vmatprep.subr.bf16.mxu0 0
      %5226 = vmatpush1.bf16.msra.mxu0 0
      %5227 = vmatprep.subr.bf16.mxu0 0
      %5228 = vmatpush1.bf16.msra.mxu0 0
      %5229 = vmatprep.subr.bf16.mxu0 0
      %5230 = vmatpush1.bf16.msra.mxu0 0
      %5231 = vmatprep.subr.bf16.mxu0 0
      %5232 = vmatpush1.bf16.msra.mxu0 0
      %5233 = vmatprep.subr.bf16.mxu0 0
      %5234 = vmatpush1.bf16.msra.mxu0 0
      %5235 = vmatprep.subr.bf16.mxu0 0
      %5236 = vmatpush1.bf16.msra.mxu0 0
      %5237 = vmatprep.subr.bf16.mxu0 0
      %5238 = vmatpush1.bf16.msra.mxu0 0
      %5239 = vmatprep.subr.bf16.mxu0 0
      %5240 = vmatpush1.bf16.msra.mxu0 0
      %5241 = vmatprep.mubr.bf16.mxu0 0
      %5242 = vmatmul.mubr.bf16.gmra.mrb[0].mxu0 %v5183
      %v5243 = vpop.f32.mrb[0].mxu0
      %v5244 = vadd.f32 0.0, %v5243
      %v5245 = vpop.f32.mrb[0].mxu0
      %v5246 = vadd.f32 0.0, %v5245
      %v5247 = vpop.f32.mrb[0].mxu0
      %v5248 = vpop.f32.mrb[0].mxu0
      %5249 = vdwg.mxu0
      %5250 = vmatprep.subr.bf16.mxu0 %v5195
      %5251 = vmatpush1.bf16.msra.mxu0 %v5192
      %5252 = vmatprep.subr.bf16.mxu0 0
      %5253 = vmatpush1.bf16.msra.mxu0 0
      %5254 = vmatprep.subr.bf16.mxu0 0
      %5255 = vmatpush1.bf16.msra.mxu0 0
      %5256 = vmatprep.subr.bf16.mxu0 0
      %5257 = vmatpush1.bf16.msra.mxu0 0
      %5258 = vmatprep.subr.bf16.mxu0 0
      %5259 = vmatpush1.bf16.msra.mxu0 0
      %5260 = vmatprep.subr.bf16.mxu0 0
      %5261 = vmatpush1.bf16.msra.mxu0 0
      %5262 = vmatprep.subr.bf16.mxu0 0
      %5263 = vmatpush1.bf16.msra.mxu0 0
      %5264 = vmatprep.subr.bf16.mxu0 0
      %5265 = vmatpush1.bf16.msra.mxu0 0
      %5266 = vmatprep.subr.bf16.mxu0 0
      %5267 = vmatpush1.bf16.msra.mxu0 0
      %5268 = vmatprep.subr.bf16.mxu0 0
      %5269 = vmatpush1.bf16.msra.mxu0 0
      %5270 = vmatprep.subr.bf16.mxu0 0
      %5271 = vmatpush1.bf16.msra.mxu0 0
      %5272 = vmatprep.subr.bf16.mxu0 0
      %5273 = vmatpush1.bf16.msra.mxu0 0
      %5274 = vmatprep.subr.bf16.mxu0 0
      %5275 = vmatpush1.bf16.msra.mxu0 0
      %5276 = vmatprep.subr.bf16.mxu0 0
      %5277 = vmatpush1.bf16.msra.mxu0 0
      %5278 = vmatprep.subr.bf16.mxu0 0
      %5279 = vmatpush1.bf16.msra.mxu0 0
      %5280 = vmatprep.subr.bf16.mxu0 0
      %5281 = vmatpush1.bf16.msra.mxu0 0
      %5282 = vmatprep.mubr.bf16.mxu0 0
      %5283 = vmatmul.mubr.bf16.gmra.mrb[0].mxu0 %v5183
      %v5284 = vpop.f32.mrb[0].mxu0
      %v5285 = vadd.f32 0.0, %v5284
      %v5286 = vpop.f32.mrb[0].mxu0
      %v5287 = vadd.f32 0.0, %v5286
      %v5288 = vpop.f32.mrb[0].mxu0
      %v5289 = vpop.f32.mrb[0].mxu0
      %5290 = vdwg.mxu0
      %5291 = vmatprep.subr.bf16.mxu0 %v5201
      %5292 = vmatpush1.bf16.msra.mxu0 %v5198
      %5293 = vmatprep.subr.bf16.mxu0 0
      %5294 = vmatpush1.bf16.msra.mxu0 0
      %5295 = vmatprep.subr.bf16.mxu0 0
      %5296 = vmatpush1.bf16.msra.mxu0 0
      %5297 = vmatprep.subr.bf16.mxu0 0
      %5298 = vmatpush1.bf16.msra.mxu0 0
      %5299 = vmatprep.subr.bf16.mxu0 0
      %5300 = vmatpush1.bf16.msra.mxu0 0
      %5301 = vmatprep.subr.bf16.mxu0 0
      %5302 = vmatpush1.bf16.msra.mxu0 0
      %5303 = vmatprep.subr.bf16.mxu0 0
      %5304 = vmatpush1.bf16.msra.mxu0 0
      %5305 = vmatprep.subr.bf16.mxu0 0
      %5306 = vmatpush1.bf16.msra.mxu0 0
      %5307 = vmatprep.subr.bf16.mxu0 0
      %5308 = vmatpush1.bf16.msra.mxu0 0
      %5309 = vmatprep.subr.bf16.mxu0 0
      %5310 = vmatpush1.bf16.msra.mxu0 0
      %5311 = vmatprep.subr.bf16.mxu0 0
      %5312 = vmatpush1.bf16.msra.mxu0 0
      %5313 = vmatprep.subr.bf16.mxu0 0
      %5314 = vmatpush1.bf16.msra.mxu0 0
      %5315 = vmatprep.subr.bf16.mxu0 0
      %5316 = vmatpush1.bf16.msra.mxu0 0
      %5317 = vmatprep.subr.bf16.mxu0 0
      %5318 = vmatpush1.bf16.msra.mxu0 0
      %5319 = vmatprep.subr.bf16.mxu0 0
      %5320 = vmatpush1.bf16.msra.mxu0 0
      %5321 = vmatprep.subr.bf16.mxu0 0
      %5322 = vmatpush1.bf16.msra.mxu0 0
      %5323 = vmatprep.mubr.bf16.mxu0 0
      %5324 = vmatmul.mubr.bf16.gmra.mrb[0].mxu0 %v5183
      %v5325 = vpop.f32.mrb[0].mxu0
      %v5326 = vadd.f32 0.0, %v5325
      %v5327 = vpop.f32.mrb[0].mxu0
      %v5328 = vadd.f32 0.0, %v5327
      %v5329 = vpop.f32.mrb[0].mxu0
      %v5330 = vpop.f32.mrb[0].mxu0
      %5331 = vdwg.mxu0
      %5332 = vmatprep.subr.bf16.mxu0 %v5207
      %5333 = vmatpush1.bf16.msra.mxu0 %v5204
      %5334 = vmatprep.subr.bf16.mxu0 0
      %5335 = vmatpush1.bf16.msra.mxu0 0
      %5336 = vmatprep.subr.bf16.mxu0 0
      %5337 = vmatpush1.bf16.msra.mxu0 0
      %5338 = vmatprep.subr.bf16.mxu0 0
      %5339 = vmatpush1.bf16.msra.mxu0 0
      %5340 = vmatprep.subr.bf16.mxu0 0
      %5341 = vmatpush1.bf16.msra.mxu0 0
      %5342 = vmatprep.subr.bf16.mxu0 0
      %5343 = vmatpush1.bf16.msra.mxu0 0
      %5344 = vmatprep.subr.bf16.mxu0 0
      %5345 = vmatpush1.bf16.msra.mxu0 0
      %5346 = vmatprep.subr.bf16.mxu0 0
      %5347 = vmatpush1.bf16.msra.mxu0 0
      %5348 = vmatprep.subr.bf16.mxu0 0
      %5349 = vmatpush1.bf16.msra.mxu0 0
      %5350 = vmatprep.subr.bf16.mxu0 0
      %5351 = vmatpush1.bf16.msra.mxu0 0
      %5352 = vmatprep.subr.bf16.mxu0 0
      %5353 = vmatpush1.bf16.msra.mxu0 0
      %5354 = vmatprep.subr.bf16.mxu0 0
      %5355 = vmatpush1.bf16.msra.mxu0 0
      %5356 = vmatprep.subr.bf16.mxu0 0
      %5357 = vmatpush1.bf16.msra.mxu0 0
      %5358 = vmatprep.subr.bf16.mxu0 0
      %5359 = vmatpush1.bf16.msra.mxu0 0
      %5360 = vmatprep.subr.bf16.mxu0 0
      %5361 = vmatpush1.bf16.msra.mxu0 0
      %5362 = vmatprep.subr.bf16.mxu0 0
      %5363 = vmatpush1.bf16.msra.mxu0 0
      %5364 = vmatprep.mubr.bf16.mxu0 0
      %5365 = vmatmul.mubr.bf16.gmra.mrb[0].mxu0 %v5183
      %v5366 = vpop.f32.mrb[0].mxu0
      %v5367 = vadd.f32 0.0, %v5366
      %v5368 = vpop.f32.mrb[0].mxu0
      %v5369 = vadd.f32 0.0, %v5368
      %v5370 = vpop.f32.mrb[0].mxu0
      %v5371 = vpop.f32.mrb[0].mxu0
      %5372 = vdwg.mxu0
      %v5373 = vadd.f32 %v5145, %v5244
      %v5374 = vadd.f32 %v5146, %v5246
      %v5375 = vadd.f32 %v5147, %v5285
      %v5376 = vadd.f32 %v5148, %v5287
      %v5377 = vadd.f32 %v5149, %v5326
      %v5378 = vadd.f32 %v5150, %v5328
      %v5379 = vadd.f32 %v5151, %v5367
      %v5380 = vadd.f32 %v5152, %v5369
      %s5381 = scalar_lea.vmem %s1, 44
      %v5382 = vld [vmem:[%s5381] sm:$0x3]
      %5383 = vrot.lane.b32.xlu0 %v412, 45
      %v5384 = vpop.permute.xlu0 %5383
      %5385 = vrot.lane.b32.xlu0 %v413, 45
      %v5386 = vpop.permute.xlu0 %5385
      %5387 = vrot.lane.b32.xlu0 %v414, 45
      %v5388 = vpop.permute.xlu0 %5387
      %5389 = vrot.lane.b32.xlu0 %v415, 45
      %v5390 = vpop.permute.xlu0 %5389
      %5391 = vrot.lane.b32.xlu0 %v416, 45
      %v5392 = vpop.permute.xlu0 %5391
      %5393 = vrot.lane.b32.xlu0 %v417, 45
      %v5394 = vpop.permute.xlu0 %5393
      %5395 = vrot.lane.b32.xlu0 %v418, 45
      %v5396 = vpop.permute.xlu0 %5395
      %5397 = vrot.lane.b32.xlu0 %v419, 45
      %v5398 = vpop.permute.xlu0 %5397
      %5399 = vrot.lane.b32.xlu0 %v420, 45
      %v5400 = vpop.permute.xlu0 %5399
      %vm5401 = vcmask 367616
      %v5402 = vsel %vm5401, %v5384, %v5386
      %v5403 = vsel %vm5401, %v5386, %v5388
      %v5404 = vsel %vm5401, %v5388, %v5390
      %v5405 = vsel %vm5401, %v5390, %v5392
      %v5406 = vsel %vm5401, %v5392, %v5394
      %v5407 = vsel %vm5401, %v5394, %v5396
      %v5408 = vsel %vm5401, %v5396, %v5398
      %v5409 = vsel %vm5401, %v5398, %v5400
      %v5411 = vsel %vm456, %v5382, 0
      %v5414 = vsel %vm460, %v5402, 0
      %v5417 = vsel %vm460, %v5403, 0
      %v5420 = vsel %vm460, %v5404, 0
      %v5423 = vsel %vm460, %v5405, 0
      %v5426 = vsel %vm460, %v5406, 0
      %v5429 = vsel %vm460, %v5407, 0
      %v5432 = vsel %vm460, %v5408, 0
      %v5435 = vsel %vm460, %v5409, 0
      %5437 = vmatprep.subr.bf16.mxu0 %v5417
      %5438 = vmatpush1.bf16.msra.mxu0 %v5414
      %5439 = vmatprep.subr.bf16.mxu0 0
      %5440 = vmatpush1.bf16.msra.mxu0 0
      %5441 = vmatprep.subr.bf16.mxu0 0
      %5442 = vmatpush1.bf16.msra.mxu0 0
      %5443 = vmatprep.subr.bf16.mxu0 0
      %5444 = vmatpush1.bf16.msra.mxu0 0
      %5445 = vmatprep.subr.bf16.mxu0 0
      %5446 = vmatpush1.bf16.msra.mxu0 0
      %5447 = vmatprep.subr.bf16.mxu0 0
      %5448 = vmatpush1.bf16.msra.mxu0 0
      %5449 = vmatprep.subr.bf16.mxu0 0
      %5450 = vmatpush1.bf16.msra.mxu0 0
      %5451 = vmatprep.subr.bf16.mxu0 0
      %5452 = vmatpush1.bf16.msra.mxu0 0
      %5453 = vmatprep.subr.bf16.mxu0 0
      %5454 = vmatpush1.bf16.msra.mxu0 0
      %5455 = vmatprep.subr.bf16.mxu0 0
      %5456 = vmatpush1.bf16.msra.mxu0 0
      %5457 = vmatprep.subr.bf16.mxu0 0
      %5458 = vmatpush1.bf16.msra.mxu0 0
      %5459 = vmatprep.subr.bf16.mxu0 0
      %5460 = vmatpush1.bf16.msra.mxu0 0
      %5461 = vmatprep.subr.bf16.mxu0 0
      %5462 = vmatpush1.bf16.msra.mxu0 0
      %5463 = vmatprep.subr.bf16.mxu0 0
      %5464 = vmatpush1.bf16.msra.mxu0 0
      %5465 = vmatprep.subr.bf16.mxu0 0
      %5466 = vmatpush1.bf16.msra.mxu0 0
      %5467 = vmatprep.subr.bf16.mxu0 0
      %5468 = vmatpush1.bf16.msra.mxu0 0
      %5469 = vmatprep.mubr.bf16.mxu0 0
      %5470 = vmatmul.mubr.bf16.gmra.mrb[0].mxu0 %v5411
      %v5471 = vpop.f32.mrb[0].mxu0
      %v5472 = vadd.f32 0.0, %v5471
      %v5473 = vpop.f32.mrb[0].mxu0
      %v5474 = vadd.f32 0.0, %v5473
      %v5475 = vpop.f32.mrb[0].mxu0
      %v5476 = vpop.f32.mrb[0].mxu0
      %5477 = vdwg.mxu0
      %5478 = vmatprep.subr.bf16.mxu0 %v5423
      %5479 = vmatpush1.bf16.msra.mxu0 %v5420
      %5480 = vmatprep.subr.bf16.mxu0 0
      %5481 = vmatpush1.bf16.msra.mxu0 0
      %5482 = vmatprep.subr.bf16.mxu0 0
      %5483 = vmatpush1.bf16.msra.mxu0 0
      %5484 = vmatprep.subr.bf16.mxu0 0
      %5485 = vmatpush1.bf16.msra.mxu0 0
      %5486 = vmatprep.subr.bf16.mxu0 0
      %5487 = vmatpush1.bf16.msra.mxu0 0
      %5488 = vmatprep.subr.bf16.mxu0 0
      %5489 = vmatpush1.bf16.msra.mxu0 0
      %5490 = vmatprep.subr.bf16.mxu0 0
      %5491 = vmatpush1.bf16.msra.mxu0 0
      %5492 = vmatprep.subr.bf16.mxu0 0
      %5493 = vmatpush1.bf16.msra.mxu0 0
      %5494 = vmatprep.subr.bf16.mxu0 0
      %5495 = vmatpush1.bf16.msra.mxu0 0
      %5496 = vmatprep.subr.bf16.mxu0 0
      %5497 = vmatpush1.bf16.msra.mxu0 0
      %5498 = vmatprep.subr.bf16.mxu0 0
      %5499 = vmatpush1.bf16.msra.mxu0 0
      %5500 = vmatprep.subr.bf16.mxu0 0
      %5501 = vmatpush1.bf16.msra.mxu0 0
      %5502 = vmatprep.subr.bf16.mxu0 0
      %5503 = vmatpush1.bf16.msra.mxu0 0
      %5504 = vmatprep.subr.bf16.mxu0 0
      %5505 = vmatpush1.bf16.msra.mxu0 0
      %5506 = vmatprep.subr.bf16.mxu0 0
      %5507 = vmatpush1.bf16.msra.mxu0 0
      %5508 = vmatprep.subr.bf16.mxu0 0
      %5509 = vmatpush1.bf16.msra.mxu0 0
      %5510 = vmatprep.mubr.bf16.mxu0 0
      %5511 = vmatmul.mubr.bf16.gmra.mrb[0].mxu0 %v5411
      %v5512 = vpop.f32.mrb[0].mxu0
      %v5513 = vadd.f32 0.0, %v5512
      %v5514 = vpop.f32.mrb[0].mxu0
      %v5515 = vadd.f32 0.0, %v5514
      %v5516 = vpop.f32.mrb[0].mxu0
      %v5517 = vpop.f32.mrb[0].mxu0
      %5518 = vdwg.mxu0
      %5519 = vmatprep.subr.bf16.mxu0 %v5429
      %5520 = vmatpush1.bf16.msra.mxu0 %v5426
      %5521 = vmatprep.subr.bf16.mxu0 0
      %5522 = vmatpush1.bf16.msra.mxu0 0
      %5523 = vmatprep.subr.bf16.mxu0 0
      %5524 = vmatpush1.bf16.msra.mxu0 0
      %5525 = vmatprep.subr.bf16.mxu0 0
      %5526 = vmatpush1.bf16.msra.mxu0 0
      %5527 = vmatprep.subr.bf16.mxu0 0
      %5528 = vmatpush1.bf16.msra.mxu0 0
      %5529 = vmatprep.subr.bf16.mxu0 0
      %5530 = vmatpush1.bf16.msra.mxu0 0
      %5531 = vmatprep.subr.bf16.mxu0 0
      %5532 = vmatpush1.bf16.msra.mxu0 0
      %5533 = vmatprep.subr.bf16.mxu0 0
      %5534 = vmatpush1.bf16.msra.mxu0 0
      %5535 = vmatprep.subr.bf16.mxu0 0
      %5536 = vmatpush1.bf16.msra.mxu0 0
      %5537 = vmatprep.subr.bf16.mxu0 0
      %5538 = vmatpush1.bf16.msra.mxu0 0
      %5539 = vmatprep.subr.bf16.mxu0 0
      %5540 = vmatpush1.bf16.msra.mxu0 0
      %5541 = vmatprep.subr.bf16.mxu0 0
      %5542 = vmatpush1.bf16.msra.mxu0 0
      %5543 = vmatprep.subr.bf16.mxu0 0
      %5544 = vmatpush1.bf16.msra.mxu0 0
      %5545 = vmatprep.subr.bf16.mxu0 0
      %5546 = vmatpush1.bf16.msra.mxu0 0
      %5547 = vmatprep.subr.bf16.mxu0 0
      %5548 = vmatpush1.bf16.msra.mxu0 0
      %5549 = vmatprep.subr.bf16.mxu0 0
      %5550 = vmatpush1.bf16.msra.mxu0 0
      %5551 = vmatprep.mubr.bf16.mxu0 0
      %5552 = vmatmul.mubr.bf16.gmra.mrb[0].mxu0 %v5411
      %v5553 = vpop.f32.mrb[0].mxu0
      %v5554 = vadd.f32 0.0, %v5553
      %v5555 = vpop.f32.mrb[0].mxu0
      %v5556 = vadd.f32 0.0, %v5555
      %v5557 = vpop.f32.mrb[0].mxu0
      %v5558 = vpop.f32.mrb[0].mxu0
      %5559 = vdwg.mxu0
      %5560 = vmatprep.subr.bf16.mxu0 %v5435
      %5561 = vmatpush1.bf16.msra.mxu0 %v5432
      %5562 = vmatprep.subr.bf16.mxu0 0
      %5563 = vmatpush1.bf16.msra.mxu0 0
      %5564 = vmatprep.subr.bf16.mxu0 0
      %5565 = vmatpush1.bf16.msra.mxu0 0
      %5566 = vmatprep.subr.bf16.mxu0 0
      %5567 = vmatpush1.bf16.msra.mxu0 0
      %5568 = vmatprep.subr.bf16.mxu0 0
      %5569 = vmatpush1.bf16.msra.mxu0 0
      %5570 = vmatprep.subr.bf16.mxu0 0
      %5571 = vmatpush1.bf16.msra.mxu0 0
      %5572 = vmatprep.subr.bf16.mxu0 0
      %5573 = vmatpush1.bf16.msra.mxu0 0
      %5574 = vmatprep.subr.bf16.mxu0 0
      %5575 = vmatpush1.bf16.msra.mxu0 0
      %5576 = vmatprep.subr.bf16.mxu0 0
      %5577 = vmatpush1.bf16.msra.mxu0 0
      %5578 = vmatprep.subr.bf16.mxu0 0
      %5579 = vmatpush1.bf16.msra.mxu0 0
      %5580 = vmatprep.subr.bf16.mxu0 0
      %5581 = vmatpush1.bf16.msra.mxu0 0
      %5582 = vmatprep.subr.bf16.mxu0 0
      %5583 = vmatpush1.bf16.msra.mxu0 0
      %5584 = vmatprep.subr.bf16.mxu0 0
      %5585 = vmatpush1.bf16.msra.mxu0 0
      %5586 = vmatprep.subr.bf16.mxu0 0
      %5587 = vmatpush1.bf16.msra.mxu0 0
      %5588 = vmatprep.subr.bf16.mxu0 0
      %5589 = vmatpush1.bf16.msra.mxu0 0
      %5590 = vmatprep.subr.bf16.mxu0 0
      %5591 = vmatpush1.bf16.msra.mxu0 0
      %5592 = vmatprep.mubr.bf16.mxu0 0
      %5593 = vmatmul.mubr.bf16.gmra.mrb[0].mxu0 %v5411
      %v5594 = vpop.f32.mrb[0].mxu0
      %v5595 = vadd.f32 0.0, %v5594
      %v5596 = vpop.f32.mrb[0].mxu0
      %v5597 = vadd.f32 0.0, %v5596
      %v5598 = vpop.f32.mrb[0].mxu0
      %v5599 = vpop.f32.mrb[0].mxu0
      %5600 = vdwg.mxu0
      %v5601 = vadd.f32 %v5373, %v5472
      %v5602 = vadd.f32 %v5374, %v5474
      %v5603 = vadd.f32 %v5375, %v5513
      %v5604 = vadd.f32 %v5376, %v5515
      %v5605 = vadd.f32 %v5377, %v5554
      %v5606 = vadd.f32 %v5378, %v5556
      %v5607 = vadd.f32 %v5379, %v5595
      %v5608 = vadd.f32 %v5380, %v5597
      %s5609 = scalar_lea.vmem %s1, 46
      %v5610 = vld [vmem:[%s5609] sm:$0x3]
      %5611 = vrot.lane.b32.xlu0 %v412, 44
      %v5612 = vpop.permute.xlu0 %5611
      %5613 = vrot.lane.b32.xlu0 %v413, 44
      %v5614 = vpop.permute.xlu0 %5613
      %5615 = vrot.lane.b32.xlu0 %v414, 44
      %v5616 = vpop.permute.xlu0 %5615
      %5617 = vrot.lane.b32.xlu0 %v415, 44
      %v5618 = vpop.permute.xlu0 %5617
      %5619 = vrot.lane.b32.xlu0 %v416, 44
      %v5620 = vpop.permute.xlu0 %5619
      %5621 = vrot.lane.b32.xlu0 %v417, 44
      %v5622 = vpop.permute.xlu0 %5621
      %5623 = vrot.lane.b32.xlu0 %v418, 44
      %v5624 = vpop.permute.xlu0 %5623
      %5625 = vrot.lane.b32.xlu0 %v419, 44
      %v5626 = vpop.permute.xlu0 %5625
      %5627 = vrot.lane.b32.xlu0 %v420, 44
      %v5628 = vpop.permute.xlu0 %5627
      %vm5629 = vcmask 359424
      %v5630 = vsel %vm5629, %v5612, %v5614
      %v5631 = vsel %vm5629, %v5614, %v5616
      %v5632 = vsel %vm5629, %v5616, %v5618
      %v5633 = vsel %vm5629, %v5618, %v5620
      %v5634 = vsel %vm5629, %v5620, %v5622
      %v5635 = vsel %vm5629, %v5622, %v5624
      %v5636 = vsel %vm5629, %v5624, %v5626
      %v5637 = vsel %vm5629, %v5626, %v5628
      %v5639 = vsel %vm456, %v5610, 0
      %v5642 = vsel %vm460, %v5630, 0
      %v5645 = vsel %vm460, %v5631, 0
      %v5648 = vsel %vm460, %v5632, 0
      %v5651 = vsel %vm460, %v5633, 0
      %v5654 = vsel %vm460, %v5634, 0
      %v5657 = vsel %vm460, %v5635, 0
      %v5660 = vsel %vm460, %v5636, 0
      %v5663 = vsel %vm460, %v5637, 0
      %5665 = vmatprep.subr.bf16.mxu0 %v5645
      %5666 = vmatpush1.bf16.msra.mxu0 %v5642
      %5667 = vmatprep.subr.bf16.mxu0 0
      %5668 = vmatpush1.bf16.msra.mxu0 0
      %5669 = vmatprep.subr.bf16.mxu0 0
      %5670 = vmatpush1.bf16.msra.mxu0 0
      %5671 = vmatprep.subr.bf16.mxu0 0
      %5672 = vmatpush1.bf16.msra.mxu0 0
      %5673 = vmatprep.subr.bf16.mxu0 0
      %5674 = vmatpush1.bf16.msra.mxu0 0
      %5675 = vmatprep.subr.bf16.mxu0 0
      %5676 = vmatpush1.bf16.msra.mxu0 0
      %5677 = vmatprep.subr.bf16.mxu0 0
      %5678 = vmatpush1.bf16.msra.mxu0 0
      %5679 = vmatprep.subr.bf16.mxu0 0
      %5680 = vmatpush1.bf16.msra.mxu0 0
      %5681 = vmatprep.subr.bf16.mxu0 0
      %5682 = vmatpush1.bf16.msra.mxu0 0
      %5683 = vmatprep.subr.bf16.mxu0 0
      %5684 = vmatpush1.bf16.msra.mxu0 0
      %5685 = vmatprep.subr.bf16.mxu0 0
      %5686 = vmatpush1.bf16.msra.mxu0 0
      %5687 = vmatprep.subr.bf16.mxu0 0
      %5688 = vmatpush1.bf16.msra.mxu0 0
      %5689 = vmatprep.subr.bf16.mxu0 0
      %5690 = vmatpush1.bf16.msra.mxu0 0
      %5691 = vmatprep.subr.bf16.mxu0 0
      %5692 = vmatpush1.bf16.msra.mxu0 0
      %5693 = vmatprep.subr.bf16.mxu0 0
      %5694 = vmatpush1.bf16.msra.mxu0 0
      %5695 = vmatprep.subr.bf16.mxu0 0
      %5696 = vmatpush1.bf16.msra.mxu0 0
      %5697 = vmatprep.mubr.bf16.mxu0 0
      %5698 = vmatmul.mubr.bf16.gmra.mrb[0].mxu0 %v5639
      %v5699 = vpop.f32.mrb[0].mxu0
      %v5700 = vadd.f32 0.0, %v5699
      %v5701 = vpop.f32.mrb[0].mxu0
      %v5702 = vadd.f32 0.0, %v5701
      %v5703 = vpop.f32.mrb[0].mxu0
      %v5704 = vpop.f32.mrb[0].mxu0
      %5705 = vdwg.mxu0
      %5706 = vmatprep.subr.bf16.mxu0 %v5651
      %5707 = vmatpush1.bf16.msra.mxu0 %v5648
      %5708 = vmatprep.subr.bf16.mxu0 0
      %5709 = vmatpush1.bf16.msra.mxu0 0
      %5710 = vmatprep.subr.bf16.mxu0 0
      %5711 = vmatpush1.bf16.msra.mxu0 0
      %5712 = vmatprep.subr.bf16.mxu0 0
      %5713 = vmatpush1.bf16.msra.mxu0 0
      %5714 = vmatprep.subr.bf16.mxu0 0
      %5715 = vmatpush1.bf16.msra.mxu0 0
      %5716 = vmatprep.subr.bf16.mxu0 0
      %5717 = vmatpush1.bf16.msra.mxu0 0
      %5718 = vmatprep.subr.bf16.mxu0 0
      %5719 = vmatpush1.bf16.msra.mxu0 0
      %5720 = vmatprep.subr.bf16.mxu0 0
      %5721 = vmatpush1.bf16.msra.mxu0 0
      %5722 = vmatprep.subr.bf16.mxu0 0
      %5723 = vmatpush1.bf16.msra.mxu0 0
      %5724 = vmatprep.subr.bf16.mxu0 0
      %5725 = vmatpush1.bf16.msra.mxu0 0
      %5726 = vmatprep.subr.bf16.mxu0 0
      %5727 = vmatpush1.bf16.msra.mxu0 0
      %5728 = vmatprep.subr.bf16.mxu0 0
      %5729 = vmatpush1.bf16.msra.mxu0 0
      %5730 = vmatprep.subr.bf16.mxu0 0
      %5731 = vmatpush1.bf16.msra.mxu0 0
      %5732 = vmatprep.subr.bf16.mxu0 0
      %5733 = vmatpush1.bf16.msra.mxu0 0
      %5734 = vmatprep.subr.bf16.mxu0 0
      %5735 = vmatpush1.bf16.msra.mxu0 0
      %5736 = vmatprep.subr.bf16.mxu0 0
      %5737 = vmatpush1.bf16.msra.mxu0 0
      %5738 = vmatprep.mubr.bf16.mxu0 0
      %5739 = vmatmul.mubr.bf16.gmra.mrb[0].mxu0 %v5639
      %v5740 = vpop.f32.mrb[0].mxu0
      %v5741 = vadd.f32 0.0, %v5740
      %v5742 = vpop.f32.mrb[0].mxu0
      %v5743 = vadd.f32 0.0, %v5742
      %v5744 = vpop.f32.mrb[0].mxu0
      %v5745 = vpop.f32.mrb[0].mxu0
      %5746 = vdwg.mxu0
      %5747 = vmatprep.subr.bf16.mxu0 %v5657
      %5748 = vmatpush1.bf16.msra.mxu0 %v5654
      %5749 = vmatprep.subr.bf16.mxu0 0
      %5750 = vmatpush1.bf16.msra.mxu0 0
      %5751 = vmatprep.subr.bf16.mxu0 0
      %5752 = vmatpush1.bf16.msra.mxu0 0
      %5753 = vmatprep.subr.bf16.mxu0 0
      %5754 = vmatpush1.bf16.msra.mxu0 0
      %5755 = vmatprep.subr.bf16.mxu0 0
      %5756 = vmatpush1.bf16.msra.mxu0 0
      %5757 = vmatprep.subr.bf16.mxu0 0
      %5758 = vmatpush1.bf16.msra.mxu0 0
      %5759 = vmatprep.subr.bf16.mxu0 0
      %5760 = vmatpush1.bf16.msra.mxu0 0
      %5761 = vmatprep.subr.bf16.mxu0 0
      %5762 = vmatpush1.bf16.msra.mxu0 0
      %5763 = vmatprep.subr.bf16.mxu0 0
      %5764 = vmatpush1.bf16.msra.mxu0 0
      %5765 = vmatprep.subr.bf16.mxu0 0
      %5766 = vmatpush1.bf16.msra.mxu0 0
      %5767 = vmatprep.subr.bf16.mxu0 0
      %5768 = vmatpush1.bf16.msra.mxu0 0
      %5769 = vmatprep.subr.bf16.mxu0 0
      %5770 = vmatpush1.bf16.msra.mxu0 0
      %5771 = vmatprep.subr.bf16.mxu0 0
      %5772 = vmatpush1.bf16.msra.mxu0 0
      %5773 = vmatprep.subr.bf16.mxu0 0
      %5774 = vmatpush1.bf16.msra.mxu0 0
      %5775 = vmatprep.subr.bf16.mxu0 0
      %5776 = vmatpush1.bf16.msra.mxu0 0
      %5777 = vmatprep.subr.bf16.mxu0 0
      %5778 = vmatpush1.bf16.msra.mxu0 0
      %5779 = vmatprep.mubr.bf16.mxu0 0
      %5780 = vmatmul.mubr.bf16.gmra.mrb[0].mxu0 %v5639
      %v5781 = vpop.f32.mrb[0].mxu0
      %v5782 = vadd.f32 0.0, %v5781
      %v5783 = vpop.f32.mrb[0].mxu0
      %v5784 = vadd.f32 0.0, %v5783
      %v5785 = vpop.f32.mrb[0].mxu0
      %v5786 = vpop.f32.mrb[0].mxu0
      %5787 = vdwg.mxu0
      %5788 = vmatprep.subr.bf16.mxu0 %v5663
      %5789 = vmatpush1.bf16.msra.mxu0 %v5660
      %5790 = vmatprep.subr.bf16.mxu0 0
      %5791 = vmatpush1.bf16.msra.mxu0 0
      %5792 = vmatprep.subr.bf16.mxu0 0
      %5793 = vmatpush1.bf16.msra.mxu0 0
      %5794 = vmatprep.subr.bf16.mxu0 0
      %5795 = vmatpush1.bf16.msra.mxu0 0
      %5796 = vmatprep.subr.bf16.mxu0 0
      %5797 = vmatpush1.bf16.msra.mxu0 0
      %5798 = vmatprep.subr.bf16.mxu0 0
      %5799 = vmatpush1.bf16.msra.mxu0 0
      %5800 = vmatprep.subr.bf16.mxu0 0
      %5801 = vmatpush1.bf16.msra.mxu0 0
      %5802 = vmatprep.subr.bf16.mxu0 0
      %5803 = vmatpush1.bf16.msra.mxu0 0
      %5804 = vmatprep.subr.bf16.mxu0 0
      %5805 = vmatpush1.bf16.msra.mxu0 0
      %5806 = vmatprep.subr.bf16.mxu0 0
      %5807 = vmatpush1.bf16.msra.mxu0 0
      %5808 = vmatprep.subr.bf16.mxu0 0
      %5809 = vmatpush1.bf16.msra.mxu0 0
      %5810 = vmatprep.subr.bf16.mxu0 0
      %5811 = vmatpush1.bf16.msra.mxu0 0
      %5812 = vmatprep.subr.bf16.mxu0 0
      %5813 = vmatpush1.bf16.msra.mxu0 0
      %5814 = vmatprep.subr.bf16.mxu0 0
      %5815 = vmatpush1.bf16.msra.mxu0 0
      %5816 = vmatprep.subr.bf16.mxu0 0
      %5817 = vmatpush1.bf16.msra.mxu0 0
      %5818 = vmatprep.subr.bf16.mxu0 0
      %5819 = vmatpush1.bf16.msra.mxu0 0
      %5820 = vmatprep.mubr.bf16.mxu0 0
      %5821 = vmatmul.mubr.bf16.gmra.mrb[0].mxu0 %v5639
      %v5822 = vpop.f32.mrb[0].mxu0
      %v5823 = vadd.f32 0.0, %v5822
      %v5824 = vpop.f32.mrb[0].mxu0
      %v5825 = vadd.f32 0.0, %v5824
      %v5826 = vpop.f32.mrb[0].mxu0
      %v5827 = vpop.f32.mrb[0].mxu0
      %5828 = vdwg.mxu0
      %v5829 = vadd.f32 %v5601, %v5700
      %v5830 = vadd.f32 %v5602, %v5702
      %v5831 = vadd.f32 %v5603, %v5741
      %v5832 = vadd.f32 %v5604, %v5743
      %v5833 = vadd.f32 %v5605, %v5782
      %v5834 = vadd.f32 %v5606, %v5784
      %v5835 = vadd.f32 %v5607, %v5823
      %v5836 = vadd.f32 %v5608, %v5825
      %s5837 = scalar_lea.vmem %s1, 48
      %v5838 = vld [vmem:[%s5837] sm:$0x3]
      %5839 = vrot.lane.b32.xlu0 %v412, 36
      %v5840 = vpop.permute.xlu0 %5839
      %5841 = vrot.lane.b32.xlu0 %v413, 36
      %v5842 = vpop.permute.xlu0 %5841
      %5843 = vrot.lane.b32.xlu0 %v414, 36
      %v5844 = vpop.permute.xlu0 %5843
      %5845 = vrot.lane.b32.xlu0 %v415, 36
      %v5846 = vpop.permute.xlu0 %5845
      %5847 = vrot.lane.b32.xlu0 %v416, 36
      %v5848 = vpop.permute.xlu0 %5847
      %5849 = vrot.lane.b32.xlu0 %v417, 36
      %v5850 = vpop.permute.xlu0 %5849
      %5851 = vrot.lane.b32.xlu0 %v418, 36
      %v5852 = vpop.permute.xlu0 %5851
      %5853 = vrot.lane.b32.xlu0 %v419, 36
      %v5854 = vpop.permute.xlu0 %5853
      %5855 = vrot.lane.b32.xlu0 %v420, 36
      %v5856 = vpop.permute.xlu0 %5855
      %vm5857 = vcmask 293888
      %v5858 = vsel %vm5857, %v5840, %v5842
      %v5859 = vsel %vm5857, %v5842, %v5844
      %v5860 = vsel %vm5857, %v5844, %v5846
      %v5861 = vsel %vm5857, %v5846, %v5848
      %v5862 = vsel %vm5857, %v5848, %v5850
      %v5863 = vsel %vm5857, %v5850, %v5852
      %v5864 = vsel %vm5857, %v5852, %v5854
      %v5865 = vsel %vm5857, %v5854, %v5856
      %v5867 = vsel %vm456, %v5838, 0
      %v5870 = vsel %vm460, %v5858, 0
      %v5873 = vsel %vm460, %v5859, 0
      %v5876 = vsel %vm460, %v5860, 0
      %v5879 = vsel %vm460, %v5861, 0
      %v5882 = vsel %vm460, %v5862, 0
      %v5885 = vsel %vm460, %v5863, 0
      %v5888 = vsel %vm460, %v5864, 0
      %v5891 = vsel %vm460, %v5865, 0
      %5893 = vmatprep.subr.bf16.mxu0 %v5873
      %5894 = vmatpush1.bf16.msra.mxu0 %v5870
      %5895 = vmatprep.subr.bf16.mxu0 0
      %5896 = vmatpush1.bf16.msra.mxu0 0
      %5897 = vmatprep.subr.bf16.mxu0 0
      %5898 = vmatpush1.bf16.msra.mxu0 0
      %5899 = vmatprep.subr.bf16.mxu0 0
      %5900 = vmatpush1.bf16.msra.mxu0 0
      %5901 = vmatprep.subr.bf16.mxu0 0
      %5902 = vmatpush1.bf16.msra.mxu0 0
      %5903 = vmatprep.subr.bf16.mxu0 0
      %5904 = vmatpush1.bf16.msra.mxu0 0
      %5905 = vmatprep.subr.bf16.mxu0 0
      %5906 = vmatpush1.bf16.msra.mxu0 0
      %5907 = vmatprep.subr.bf16.mxu0 0
      %5908 = vmatpush1.bf16.msra.mxu0 0
      %5909 = vmatprep.subr.bf16.mxu0 0
      %5910 = vmatpush1.bf16.msra.mxu0 0
      %5911 = vmatprep.subr.bf16.mxu0 0
      %5912 = vmatpush1.bf16.msra.mxu0 0
      %5913 = vmatprep.subr.bf16.mxu0 0
      %5914 = vmatpush1.bf16.msra.mxu0 0
      %5915 = vmatprep.subr.bf16.mxu0 0
      %5916 = vmatpush1.bf16.msra.mxu0 0
      %5917 = vmatprep.subr.bf16.mxu0 0
      %5918 = vmatpush1.bf16.msra.mxu0 0
      %5919 = vmatprep.subr.bf16.mxu0 0
      %5920 = vmatpush1.bf16.msra.mxu0 0
      %5921 = vmatprep.subr.bf16.mxu0 0
      %5922 = vmatpush1.bf16.msra.mxu0 0
      %5923 = vmatprep.subr.bf16.mxu0 0
      %5924 = vmatpush1.bf16.msra.mxu0 0
      %5925 = vmatprep.mubr.bf16.mxu0 0
      %5926 = vmatmul.mubr.bf16.gmra.mrb[0].mxu0 %v5867
      %v5927 = vpop.f32.mrb[0].mxu0
      %v5928 = vadd.f32 0.0, %v5927
      %v5929 = vpop.f32.mrb[0].mxu0
      %v5930 = vadd.f32 0.0, %v5929
      %v5931 = vpop.f32.mrb[0].mxu0
      %v5932 = vpop.f32.mrb[0].mxu0
      %5933 = vdwg.mxu0
      %5934 = vmatprep.subr.bf16.mxu0 %v5879
      %5935 = vmatpush1.bf16.msra.mxu0 %v5876
      %5936 = vmatprep.subr.bf16.mxu0 0
      %5937 = vmatpush1.bf16.msra.mxu0 0
      %5938 = vmatprep.subr.bf16.mxu0 0
      %5939 = vmatpush1.bf16.msra.mxu0 0
      %5940 = vmatprep.subr.bf16.mxu0 0
      %5941 = vmatpush1.bf16.msra.mxu0 0
      %5942 = vmatprep.subr.bf16.mxu0 0
      %5943 = vmatpush1.bf16.msra.mxu0 0
      %5944 = vmatprep.subr.bf16.mxu0 0
      %5945 = vmatpush1.bf16.msra.mxu0 0
      %5946 = vmatprep.subr.bf16.mxu0 0
      %5947 = vmatpush1.bf16.msra.mxu0 0
      %5948 = vmatprep.subr.bf16.mxu0 0
      %5949 = vmatpush1.bf16.msra.mxu0 0
      %5950 = vmatprep.subr.bf16.mxu0 0
      %5951 = vmatpush1.bf16.msra.mxu0 0
      %5952 = vmatprep.subr.bf16.mxu0 0
      %5953 = vmatpush1.bf16.msra.mxu0 0
      %5954 = vmatprep.subr.bf16.mxu0 0
      %5955 = vmatpush1.bf16.msra.mxu0 0
      %5956 = vmatprep.subr.bf16.mxu0 0
      %5957 = vmatpush1.bf16.msra.mxu0 0
      %5958 = vmatprep.subr.bf16.mxu0 0
      %5959 = vmatpush1.bf16.msra.mxu0 0
      %5960 = vmatprep.subr.bf16.mxu0 0
      %5961 = vmatpush1.bf16.msra.mxu0 0
      %5962 = vmatprep.subr.bf16.mxu0 0
      %5963 = vmatpush1.bf16.msra.mxu0 0
      %5964 = vmatprep.subr.bf16.mxu0 0
      %5965 = vmatpush1.bf16.msra.mxu0 0
      %5966 = vmatprep.mubr.bf16.mxu0 0
      %5967 = vmatmul.mubr.bf16.gmra.mrb[0].mxu0 %v5867
      %v5968 = vpop.f32.mrb[0].mxu0
      %v5969 = vadd.f32 0.0, %v5968
      %v5970 = vpop.f32.mrb[0].mxu0
      %v5971 = vadd.f32 0.0, %v5970
      %v5972 = vpop.f32.mrb[0].mxu0
      %v5973 = vpop.f32.mrb[0].mxu0
      %5974 = vdwg.mxu0
      %5975 = vmatprep.subr.bf16.mxu0 %v5885
      %5976 = vmatpush1.bf16.msra.mxu0 %v5882
      %5977 = vmatprep.subr.bf16.mxu0 0
      %5978 = vmatpush1.bf16.msra.mxu0 0
      %5979 = vmatprep.subr.bf16.mxu0 0
      %5980 = vmatpush1.bf16.msra.mxu0 0
      %5981 = vmatprep.subr.bf16.mxu0 0
      %5982 = vmatpush1.bf16.msra.mxu0 0
      %5983 = vmatprep.subr.bf16.mxu0 0
      %5984 = vmatpush1.bf16.msra.mxu0 0
      %5985 = vmatprep.subr.bf16.mxu0 0
      %5986 = vmatpush1.bf16.msra.mxu0 0
      %5987 = vmatprep.subr.bf16.mxu0 0
      %5988 = vmatpush1.bf16.msra.mxu0 0
      %5989 = vmatprep.subr.bf16.mxu0 0
      %5990 = vmatpush1.bf16.msra.mxu0 0
      %5991 = vmatprep.subr.bf16.mxu0 0
      %5992 = vmatpush1.bf16.msra.mxu0 0
      %5993 = vmatprep.subr.bf16.mxu0 0
      %5994 = vmatpush1.bf16.msra.mxu0 0
      %5995 = vmatprep.subr.bf16.mxu0 0
      %5996 = vmatpush1.bf16.msra.mxu0 0
      %5997 = vmatprep.subr.bf16.mxu0 0
      %5998 = vmatpush1.bf16.msra.mxu0 0
      %5999 = vmatprep.subr.bf16.mxu0 0
      %6000 = vmatpush1.bf16.msra.mxu0 0
      %6001 = vmatprep.subr.bf16.mxu0 0
      %6002 = vmatpush1.bf16.msra.mxu0 0
      %6003 = vmatprep.subr.bf16.mxu0 0
      %6004 = vmatpush1.bf16.msra.mxu0 0
      %6005 = vmatprep.subr.bf16.mxu0 0
      %6006 = vmatpush1.bf16.msra.mxu0 0
      %6007 = vmatprep.mubr.bf16.mxu0 0
      %6008 = vmatmul.mubr.bf16.gmra.mrb[0].mxu0 %v5867
      %v6009 = vpop.f32.mrb[0].mxu0
      %v6010 = vadd.f32 0.0, %v6009
      %v6011 = vpop.f32.mrb[0].mxu0
      %v6012 = vadd.f32 0.0, %v6011
      %v6013 = vpop.f32.mrb[0].mxu0
      %v6014 = vpop.f32.mrb[0].mxu0
      %6015 = vdwg.mxu0
      %6016 = vmatprep.subr.bf16.mxu0 %v5891
      %6017 = vmatpush1.bf16.msra.mxu0 %v5888
      %6018 = vmatprep.subr.bf16.mxu0 0
      %6019 = vmatpush1.bf16.msra.mxu0 0
      %6020 = vmatprep.subr.bf16.mxu0 0
      %6021 = vmatpush1.bf16.msra.mxu0 0
      %6022 = vmatprep.subr.bf16.mxu0 0
      %6023 = vmatpush1.bf16.msra.mxu0 0
      %6024 = vmatprep.subr.bf16.mxu0 0
      %6025 = vmatpush1.bf16.msra.mxu0 0
      %6026 = vmatprep.subr.bf16.mxu0 0
      %6027 = vmatpush1.bf16.msra.mxu0 0
      %6028 = vmatprep.subr.bf16.mxu0 0
      %6029 = vmatpush1.bf16.msra.mxu0 0
      %6030 = vmatprep.subr.bf16.mxu0 0
      %6031 = vmatpush1.bf16.msra.mxu0 0
      %6032 = vmatprep.subr.bf16.mxu0 0
      %6033 = vmatpush1.bf16.msra.mxu0 0
      %6034 = vmatprep.subr.bf16.mxu0 0
      %6035 = vmatpush1.bf16.msra.mxu0 0
      %6036 = vmatprep.subr.bf16.mxu0 0
      %6037 = vmatpush1.bf16.msra.mxu0 0
      %6038 = vmatprep.subr.bf16.mxu0 0
      %6039 = vmatpush1.bf16.msra.mxu0 0
      %6040 = vmatprep.subr.bf16.mxu0 0
      %6041 = vmatpush1.bf16.msra.mxu0 0
      %6042 = vmatprep.subr.bf16.mxu0 0
      %6043 = vmatpush1.bf16.msra.mxu0 0
      %6044 = vmatprep.subr.bf16.mxu0 0
      %6045 = vmatpush1.bf16.msra.mxu0 0
      %6046 = vmatprep.subr.bf16.mxu0 0
      %6047 = vmatpush1.bf16.msra.mxu0 0
      %6048 = vmatprep.mubr.bf16.mxu0 0
      %6049 = vmatmul.mubr.bf16.gmra.mrb[0].mxu0 %v5867
      %v6050 = vpop.f32.mrb[0].mxu0
      %v6051 = vadd.f32 0.0, %v6050
      %v6052 = vpop.f32.mrb[0].mxu0
      %v6053 = vadd.f32 0.0, %v6052
      %v6054 = vpop.f32.mrb[0].mxu0
      %v6055 = vpop.f32.mrb[0].mxu0
      %6056 = vdwg.mxu0
      %v6057 = vadd.f32 %v5829, %v5928
      %v6058 = vadd.f32 %v5830, %v5930
      %v6059 = vadd.f32 %v5831, %v5969
      %v6060 = vadd.f32 %v5832, %v5971
      %v6061 = vadd.f32 %v5833, %v6010
      %v6062 = vadd.f32 %v5834, %v6012
      %v6063 = vadd.f32 %v5835, %v6051
      %v6064 = vadd.f32 %v5836, %v6053
      %s6065 = scalar_lea.vmem %s1, 50
      %v6066 = vld [vmem:[%s6065] sm:$0x3]
      %6067 = vrot.lane.b32.xlu0 %v412, 35
      %v6068 = vpop.permute.xlu0 %6067
      %6069 = vrot.lane.b32.xlu0 %v413, 35
      %v6070 = vpop.permute.xlu0 %6069
      %6071 = vrot.lane.b32.xlu0 %v414, 35
      %v6072 = vpop.permute.xlu0 %6071
      %6073 = vrot.lane.b32.xlu0 %v415, 35
      %v6074 = vpop.permute.xlu0 %6073
      %6075 = vrot.lane.b32.xlu0 %v416, 35
      %v6076 = vpop.permute.xlu0 %6075
      %6077 = vrot.lane.b32.xlu0 %v417, 35
      %v6078 = vpop.permute.xlu0 %6077
      %6079 = vrot.lane.b32.xlu0 %v418, 35
      %v6080 = vpop.permute.xlu0 %6079
      %6081 = vrot.lane.b32.xlu0 %v419, 35
      %v6082 = vpop.permute.xlu0 %6081
      %6083 = vrot.lane.b32.xlu0 %v420, 35
      %v6084 = vpop.permute.xlu0 %6083
      %vm6085 = vcmask 285696
      %v6086 = vsel %vm6085, %v6068, %v6070
      %v6087 = vsel %vm6085, %v6070, %v6072
      %v6088 = vsel %vm6085, %v6072, %v6074
      %v6089 = vsel %vm6085, %v6074, %v6076
      %v6090 = vsel %vm6085, %v6076, %v6078
      %v6091 = vsel %vm6085, %v6078, %v6080
      %v6092 = vsel %vm6085, %v6080, %v6082
      %v6093 = vsel %vm6085, %v6082, %v6084
      %v6095 = vsel %vm456, %v6066, 0
      %v6098 = vsel %vm460, %v6086, 0
      %v6101 = vsel %vm460, %v6087, 0
      %v6104 = vsel %vm460, %v6088, 0
      %v6107 = vsel %vm460, %v6089, 0
      %v6110 = vsel %vm460, %v6090, 0
      %v6113 = vsel %vm460, %v6091, 0
      %v6116 = vsel %vm460, %v6092, 0
      %v6119 = vsel %vm460, %v6093, 0
      %6121 = vmatprep.subr.bf16.mxu0 %v6101
      %6122 = vmatpush1.bf16.msra.mxu0 %v6098
      %6123 = vmatprep.subr.bf16.mxu0 0
      %6124 = vmatpush1.bf16.msra.mxu0 0
      %6125 = vmatprep.subr.bf16.mxu0 0
      %6126 = vmatpush1.bf16.msra.mxu0 0
      %6127 = vmatprep.subr.bf16.mxu0 0
      %6128 = vmatpush1.bf16.msra.mxu0 0
      %6129 = vmatprep.subr.bf16.mxu0 0
      %6130 = vmatpush1.bf16.msra.mxu0 0
      %6131 = vmatprep.subr.bf16.mxu0 0
      %6132 = vmatpush1.bf16.msra.mxu0 0
      %6133 = vmatprep.subr.bf16.mxu0 0
      %6134 = vmatpush1.bf16.msra.mxu0 0
      %6135 = vmatprep.subr.bf16.mxu0 0
      %6136 = vmatpush1.bf16.msra.mxu0 0
      %6137 = vmatprep.subr.bf16.mxu0 0
      %6138 = vmatpush1.bf16.msra.mxu0 0
      %6139 = vmatprep.subr.bf16.mxu0 0
      %6140 = vmatpush1.bf16.msra.mxu0 0
      %6141 = vmatprep.subr.bf16.mxu0 0
      %6142 = vmatpush1.bf16.msra.mxu0 0
      %6143 = vmatprep.subr.bf16.mxu0 0
      %6144 = vmatpush1.bf16.msra.mxu0 0
      %6145 = vmatprep.subr.bf16.mxu0 0
      %6146 = vmatpush1.bf16.msra.mxu0 0
      %6147 = vmatprep.subr.bf16.mxu0 0
      %6148 = vmatpush1.bf16.msra.mxu0 0
      %6149 = vmatprep.subr.bf16.mxu0 0
      %6150 = vmatpush1.bf16.msra.mxu0 0
      %6151 = vmatprep.subr.bf16.mxu0 0
      %6152 = vmatpush1.bf16.msra.mxu0 0
      %6153 = vmatprep.mubr.bf16.mxu0 0
      %6154 = vmatmul.mubr.bf16.gmra.mrb[0].mxu0 %v6095
      %v6155 = vpop.f32.mrb[0].mxu0
      %v6156 = vadd.f32 0.0, %v6155
      %v6157 = vpop.f32.mrb[0].mxu0
      %v6158 = vadd.f32 0.0, %v6157
      %v6159 = vpop.f32.mrb[0].mxu0
      %v6160 = vpop.f32.mrb[0].mxu0
      %6161 = vdwg.mxu0
      %6162 = vmatprep.subr.bf16.mxu0 %v6107
      %6163 = vmatpush1.bf16.msra.mxu0 %v6104
      %6164 = vmatprep.subr.bf16.mxu0 0
      %6165 = vmatpush1.bf16.msra.mxu0 0
      %6166 = vmatprep.subr.bf16.mxu0 0
      %6167 = vmatpush1.bf16.msra.mxu0 0
      %6168 = vmatprep.subr.bf16.mxu0 0
      %6169 = vmatpush1.bf16.msra.mxu0 0
      %6170 = vmatprep.subr.bf16.mxu0 0
      %6171 = vmatpush1.bf16.msra.mxu0 0
      %6172 = vmatprep.subr.bf16.mxu0 0
      %6173 = vmatpush1.bf16.msra.mxu0 0
      %6174 = vmatprep.subr.bf16.mxu0 0
      %6175 = vmatpush1.bf16.msra.mxu0 0
      %6176 = vmatprep.subr.bf16.mxu0 0
      %6177 = vmatpush1.bf16.msra.mxu0 0
      %6178 = vmatprep.subr.bf16.mxu0 0
      %6179 = vmatpush1.bf16.msra.mxu0 0
      %6180 = vmatprep.subr.bf16.mxu0 0
      %6181 = vmatpush1.bf16.msra.mxu0 0
      %6182 = vmatprep.subr.bf16.mxu0 0
      %6183 = vmatpush1.bf16.msra.mxu0 0
      %6184 = vmatprep.subr.bf16.mxu0 0
      %6185 = vmatpush1.bf16.msra.mxu0 0
      %6186 = vmatprep.subr.bf16.mxu0 0
      %6187 = vmatpush1.bf16.msra.mxu0 0
      %6188 = vmatprep.subr.bf16.mxu0 0
      %6189 = vmatpush1.bf16.msra.mxu0 0
      %6190 = vmatprep.subr.bf16.mxu0 0
      %6191 = vmatpush1.bf16.msra.mxu0 0
      %6192 = vmatprep.subr.bf16.mxu0 0
      %6193 = vmatpush1.bf16.msra.mxu0 0
      %6194 = vmatprep.mubr.bf16.mxu0 0
      %6195 = vmatmul.mubr.bf16.gmra.mrb[0].mxu0 %v6095
      %v6196 = vpop.f32.mrb[0].mxu0
      %v6197 = vadd.f32 0.0, %v6196
      %v6198 = vpop.f32.mrb[0].mxu0
      %v6199 = vadd.f32 0.0, %v6198
      %v6200 = vpop.f32.mrb[0].mxu0
      %v6201 = vpop.f32.mrb[0].mxu0
      %6202 = vdwg.mxu0
      %6203 = vmatprep.subr.bf16.mxu0 %v6113
      %6204 = vmatpush1.bf16.msra.mxu0 %v6110
      %6205 = vmatprep.subr.bf16.mxu0 0
      %6206 = vmatpush1.bf16.msra.mxu0 0
      %6207 = vmatprep.subr.bf16.mxu0 0
      %6208 = vmatpush1.bf16.msra.mxu0 0
      %6209 = vmatprep.subr.bf16.mxu0 0
      %6210 = vmatpush1.bf16.msra.mxu0 0
      %6211 = vmatprep.subr.bf16.mxu0 0
      %6212 = vmatpush1.bf16.msra.mxu0 0
      %6213 = vmatprep.subr.bf16.mxu0 0
      %6214 = vmatpush1.bf16.msra.mxu0 0
      %6215 = vmatprep.subr.bf16.mxu0 0
      %6216 = vmatpush1.bf16.msra.mxu0 0
      %6217 = vmatprep.subr.bf16.mxu0 0
      %6218 = vmatpush1.bf16.msra.mxu0 0
      %6219 = vmatprep.subr.bf16.mxu0 0
      %6220 = vmatpush1.bf16.msra.mxu0 0
      %6221 = vmatprep.subr.bf16.mxu0 0
      %6222 = vmatpush1.bf16.msra.mxu0 0
      %6223 = vmatprep.subr.bf16.mxu0 0
      %6224 = vmatpush1.bf16.msra.mxu0 0
      %6225 = vmatprep.subr.bf16.mxu0 0
      %6226 = vmatpush1.bf16.msra.mxu0 0
      %6227 = vmatprep.subr.bf16.mxu0 0
      %6228 = vmatpush1.bf16.msra.mxu0 0
      %6229 = vmatprep.subr.bf16.mxu0 0
      %6230 = vmatpush1.bf16.msra.mxu0 0
      %6231 = vmatprep.subr.bf16.mxu0 0
      %6232 = vmatpush1.bf16.msra.mxu0 0
      %6233 = vmatprep.subr.bf16.mxu0 0
      %6234 = vmatpush1.bf16.msra.mxu0 0
      %6235 = vmatprep.mubr.bf16.mxu0 0
      %6236 = vmatmul.mubr.bf16.gmra.mrb[0].mxu0 %v6095
      %v6237 = vpop.f32.mrb[0].mxu0
      %v6238 = vadd.f32 0.0, %v6237
      %v6239 = vpop.f32.mrb[0].mxu0
      %v6240 = vadd.f32 0.0, %v6239
      %v6241 = vpop.f32.mrb[0].mxu0
      %v6242 = vpop.f32.mrb[0].mxu0
      %6243 = vdwg.mxu0
      %6244 = vmatprep.subr.bf16.mxu0 %v6119
      %6245 = vmatpush1.bf16.msra.mxu0 %v6116
      %6246 = vmatprep.subr.bf16.mxu0 0
      %6247 = vmatpush1.bf16.msra.mxu0 0
      %6248 = vmatprep.subr.bf16.mxu0 0
      %6249 = vmatpush1.bf16.msra.mxu0 0
      %6250 = vmatprep.subr.bf16.mxu0 0
      %6251 = vmatpush1.bf16.msra.mxu0 0
      %6252 = vmatprep.subr.bf16.mxu0 0
      %6253 = vmatpush1.bf16.msra.mxu0 0
      %6254 = vmatprep.subr.bf16.mxu0 0
      %6255 = vmatpush1.bf16.msra.mxu0 0
      %6256 = vmatprep.subr.bf16.mxu0 0
      %6257 = vmatpush1.bf16.msra.mxu0 0
      %6258 = vmatprep.subr.bf16.mxu0 0
      %6259 = vmatpush1.bf16.msra.mxu0 0
      %6260 = vmatprep.subr.bf16.mxu0 0
      %6261 = vmatpush1.bf16.msra.mxu0 0
      %6262 = vmatprep.subr.bf16.mxu0 0
      %6263 = vmatpush1.bf16.msra.mxu0 0
      %6264 = vmatprep.subr.bf16.mxu0 0
      %6265 = vmatpush1.bf16.msra.mxu0 0
      %6266 = vmatprep.subr.bf16.mxu0 0
      %6267 = vmatpush1.bf16.msra.mxu0 0
      %6268 = vmatprep.subr.bf16.mxu0 0
      %6269 = vmatpush1.bf16.msra.mxu0 0
      %6270 = vmatprep.subr.bf16.mxu0 0
      %6271 = vmatpush1.bf16.msra.mxu0 0
      %6272 = vmatprep.subr.bf16.mxu0 0
      %6273 = vmatpush1.bf16.msra.mxu0 0
      %6274 = vmatprep.subr.bf16.mxu0 0
      %6275 = vmatpush1.bf16.msra.mxu0 0
      %6276 = vmatprep.mubr.bf16.mxu0 0
      %6277 = vmatmul.mubr.bf16.gmra.mrb[0].mxu0 %v6095
      %v6278 = vpop.f32.mrb[0].mxu0
      %v6279 = vadd.f32 0.0, %v6278
      %v6280 = vpop.f32.mrb[0].mxu0
      %v6281 = vadd.f32 0.0, %v6280
      %v6282 = vpop.f32.mrb[0].mxu0
      %v6283 = vpop.f32.mrb[0].mxu0
      %6284 = vdwg.mxu0
      %v6285 = vadd.f32 %v6057, %v6156
      %v6286 = vadd.f32 %v6058, %v6158
      %v6287 = vadd.f32 %v6059, %v6197
      %v6288 = vadd.f32 %v6060, %v6199
      %v6289 = vadd.f32 %v6061, %v6238
      %v6290 = vadd.f32 %v6062, %v6240
      %v6291 = vadd.f32 %v6063, %v6279
      %v6292 = vadd.f32 %v6064, %v6281
      %s6293 = scalar_lea.vmem %s1, 52
      %v6294 = vld [vmem:[%s6293] sm:$0x3]
      %6295 = vrot.lane.b32.xlu0 %v412, 34
      %v6296 = vpop.permute.xlu0 %6295
      %6297 = vrot.lane.b32.xlu0 %v413, 34
      %v6298 = vpop.permute.xlu0 %6297
      %6299 = vrot.lane.b32.xlu0 %v414, 34
      %v6300 = vpop.permute.xlu0 %6299
      %6301 = vrot.lane.b32.xlu0 %v415, 34
      %v6302 = vpop.permute.xlu0 %6301
      %6303 = vrot.lane.b32.xlu0 %v416, 34
      %v6304 = vpop.permute.xlu0 %6303
      %6305 = vrot.lane.b32.xlu0 %v417, 34
      %v6306 = vpop.permute.xlu0 %6305
      %6307 = vrot.lane.b32.xlu0 %v418, 34
      %v6308 = vpop.permute.xlu0 %6307
      %6309 = vrot.lane.b32.xlu0 %v419, 34
      %v6310 = vpop.permute.xlu0 %6309
      %6311 = vrot.lane.b32.xlu0 %v420, 34
      %v6312 = vpop.permute.xlu0 %6311
      %vm6313 = vcmask 277504
      %v6314 = vsel %vm6313, %v6296, %v6298
      %v6315 = vsel %vm6313, %v6298, %v6300
      %v6316 = vsel %vm6313, %v6300, %v6302
      %v6317 = vsel %vm6313, %v6302, %v6304
      %v6318 = vsel %vm6313, %v6304, %v6306
      %v6319 = vsel %vm6313, %v6306, %v6308
      %v6320 = vsel %vm6313, %v6308, %v6310
      %v6321 = vsel %vm6313, %v6310, %v6312
      %v6323 = vsel %vm456, %v6294, 0
      %v6326 = vsel %vm460, %v6314, 0
      %v6329 = vsel %vm460, %v6315, 0
      %v6332 = vsel %vm460, %v6316, 0
      %v6335 = vsel %vm460, %v6317, 0
      %v6338 = vsel %vm460, %v6318, 0
      %v6341 = vsel %vm460, %v6319, 0
      %v6344 = vsel %vm460, %v6320, 0
      %v6347 = vsel %vm460, %v6321, 0
      %6349 = vmatprep.subr.bf16.mxu0 %v6329
      %6350 = vmatpush1.bf16.msra.mxu0 %v6326
      %6351 = vmatprep.subr.bf16.mxu0 0
      %6352 = vmatpush1.bf16.msra.mxu0 0
      %6353 = vmatprep.subr.bf16.mxu0 0
      %6354 = vmatpush1.bf16.msra.mxu0 0
      %6355 = vmatprep.subr.bf16.mxu0 0
      %6356 = vmatpush1.bf16.msra.mxu0 0
      %6357 = vmatprep.subr.bf16.mxu0 0
      %6358 = vmatpush1.bf16.msra.mxu0 0
      %6359 = vmatprep.subr.bf16.mxu0 0
      %6360 = vmatpush1.bf16.msra.mxu0 0
      %6361 = vmatprep.subr.bf16.mxu0 0
      %6362 = vmatpush1.bf16.msra.mxu0 0
      %6363 = vmatprep.subr.bf16.mxu0 0
      %6364 = vmatpush1.bf16.msra.mxu0 0
      %6365 = vmatprep.subr.bf16.mxu0 0
      %6366 = vmatpush1.bf16.msra.mxu0 0
      %6367 = vmatprep.subr.bf16.mxu0 0
      %6368 = vmatpush1.bf16.msra.mxu0 0
      %6369 = vmatprep.subr.bf16.mxu0 0
      %6370 = vmatpush1.bf16.msra.mxu0 0
      %6371 = vmatprep.subr.bf16.mxu0 0
      %6372 = vmatpush1.bf16.msra.mxu0 0
      %6373 = vmatprep.subr.bf16.mxu0 0
      %6374 = vmatpush1.bf16.msra.mxu0 0
      %6375 = vmatprep.subr.bf16.mxu0 0
      %6376 = vmatpush1.bf16.msra.mxu0 0
      %6377 = vmatprep.subr.bf16.mxu0 0
      %6378 = vmatpush1.bf16.msra.mxu0 0
      %6379 = vmatprep.subr.bf16.mxu0 0
      %6380 = vmatpush1.bf16.msra.mxu0 0
      %6381 = vmatprep.mubr.bf16.mxu0 0
      %6382 = vmatmul.mubr.bf16.gmra.mrb[0].mxu0 %v6323
      %v6383 = vpop.f32.mrb[0].mxu0
      %v6384 = vadd.f32 0.0, %v6383
      %v6385 = vpop.f32.mrb[0].mxu0
      %v6386 = vadd.f32 0.0, %v6385
      %v6387 = vpop.f32.mrb[0].mxu0
      %v6388 = vpop.f32.mrb[0].mxu0
      %6389 = vdwg.mxu0
      %6390 = vmatprep.subr.bf16.mxu0 %v6335
      %6391 = vmatpush1.bf16.msra.mxu0 %v6332
      %6392 = vmatprep.subr.bf16.mxu0 0
      %6393 = vmatpush1.bf16.msra.mxu0 0
      %6394 = vmatprep.subr.bf16.mxu0 0
      %6395 = vmatpush1.bf16.msra.mxu0 0
      %6396 = vmatprep.subr.bf16.mxu0 0
      %6397 = vmatpush1.bf16.msra.mxu0 0
      %6398 = vmatprep.subr.bf16.mxu0 0
      %6399 = vmatpush1.bf16.msra.mxu0 0
      %6400 = vmatprep.subr.bf16.mxu0 0
      %6401 = vmatpush1.bf16.msra.mxu0 0
      %6402 = vmatprep.subr.bf16.mxu0 0
      %6403 = vmatpush1.bf16.msra.mxu0 0
      %6404 = vmatprep.subr.bf16.mxu0 0
      %6405 = vmatpush1.bf16.msra.mxu0 0
      %6406 = vmatprep.subr.bf16.mxu0 0
      %6407 = vmatpush1.bf16.msra.mxu0 0
      %6408 = vmatprep.subr.bf16.mxu0 0
      %6409 = vmatpush1.bf16.msra.mxu0 0
      %6410 = vmatprep.subr.bf16.mxu0 0
      %6411 = vmatpush1.bf16.msra.mxu0 0
      %6412 = vmatprep.subr.bf16.mxu0 0
      %6413 = vmatpush1.bf16.msra.mxu0 0
      %6414 = vmatprep.subr.bf16.mxu0 0
      %6415 = vmatpush1.bf16.msra.mxu0 0
      %6416 = vmatprep.subr.bf16.mxu0 0
      %6417 = vmatpush1.bf16.msra.mxu0 0
      %6418 = vmatprep.subr.bf16.mxu0 0
      %6419 = vmatpush1.bf16.msra.mxu0 0
      %6420 = vmatprep.subr.bf16.mxu0 0
      %6421 = vmatpush1.bf16.msra.mxu0 0
      %6422 = vmatprep.mubr.bf16.mxu0 0
      %6423 = vmatmul.mubr.bf16.gmra.mrb[0].mxu0 %v6323
      %v6424 = vpop.f32.mrb[0].mxu0
      %v6425 = vadd.f32 0.0, %v6424
      %v6426 = vpop.f32.mrb[0].mxu0
      %v6427 = vadd.f32 0.0, %v6426
      %v6428 = vpop.f32.mrb[0].mxu0
      %v6429 = vpop.f32.mrb[0].mxu0
      %6430 = vdwg.mxu0
      %6431 = vmatprep.subr.bf16.mxu0 %v6341
      %6432 = vmatpush1.bf16.msra.mxu0 %v6338
      %6433 = vmatprep.subr.bf16.mxu0 0
      %6434 = vmatpush1.bf16.msra.mxu0 0
      %6435 = vmatprep.subr.bf16.mxu0 0
      %6436 = vmatpush1.bf16.msra.mxu0 0
      %6437 = vmatprep.subr.bf16.mxu0 0
      %6438 = vmatpush1.bf16.msra.mxu0 0
      %6439 = vmatprep.subr.bf16.mxu0 0
      %6440 = vmatpush1.bf16.msra.mxu0 0
      %6441 = vmatprep.subr.bf16.mxu0 0
      %6442 = vmatpush1.bf16.msra.mxu0 0
      %6443 = vmatprep.subr.bf16.mxu0 0
      %6444 = vmatpush1.bf16.msra.mxu0 0
      %6445 = vmatprep.subr.bf16.mxu0 0
      %6446 = vmatpush1.bf16.msra.mxu0 0
      %6447 = vmatprep.subr.bf16.mxu0 0
      %6448 = vmatpush1.bf16.msra.mxu0 0
      %6449 = vmatprep.subr.bf16.mxu0 0
      %6450 = vmatpush1.bf16.msra.mxu0 0
      %6451 = vmatprep.subr.bf16.mxu0 0
      %6452 = vmatpush1.bf16.msra.mxu0 0
      %6453 = vmatprep.subr.bf16.mxu0 0
      %6454 = vmatpush1.bf16.msra.mxu0 0
      %6455 = vmatprep.subr.bf16.mxu0 0
      %6456 = vmatpush1.bf16.msra.mxu0 0
      %6457 = vmatprep.subr.bf16.mxu0 0
      %6458 = vmatpush1.bf16.msra.mxu0 0
      %6459 = vmatprep.subr.bf16.mxu0 0
      %6460 = vmatpush1.bf16.msra.mxu0 0
      %6461 = vmatprep.subr.bf16.mxu0 0
      %6462 = vmatpush1.bf16.msra.mxu0 0
      %6463 = vmatprep.mubr.bf16.mxu0 0
      %6464 = vmatmul.mubr.bf16.gmra.mrb[0].mxu0 %v6323
      %v6465 = vpop.f32.mrb[0].mxu0
      %v6466 = vadd.f32 0.0, %v6465
      %v6467 = vpop.f32.mrb[0].mxu0
      %v6468 = vadd.f32 0.0, %v6467
      %v6469 = vpop.f32.mrb[0].mxu0
      %v6470 = vpop.f32.mrb[0].mxu0
      %6471 = vdwg.mxu0
      %6472 = vmatprep.subr.bf16.mxu0 %v6347
      %6473 = vmatpush1.bf16.msra.mxu0 %v6344
      %6474 = vmatprep.subr.bf16.mxu0 0
      %6475 = vmatpush1.bf16.msra.mxu0 0
      %6476 = vmatprep.subr.bf16.mxu0 0
      %6477 = vmatpush1.bf16.msra.mxu0 0
      %6478 = vmatprep.subr.bf16.mxu0 0
      %6479 = vmatpush1.bf16.msra.mxu0 0
      %6480 = vmatprep.subr.bf16.mxu0 0
      %6481 = vmatpush1.bf16.msra.mxu0 0
      %6482 = vmatprep.subr.bf16.mxu0 0
      %6483 = vmatpush1.bf16.msra.mxu0 0
      %6484 = vmatprep.subr.bf16.mxu0 0
      %6485 = vmatpush1.bf16.msra.mxu0 0
      %6486 = vmatprep.subr.bf16.mxu0 0
      %6487 = vmatpush1.bf16.msra.mxu0 0
      %6488 = vmatprep.subr.bf16.mxu0 0
      %6489 = vmatpush1.bf16.msra.mxu0 0
      %6490 = vmatprep.subr.bf16.mxu0 0
      %6491 = vmatpush1.bf16.msra.mxu0 0
      %6492 = vmatprep.subr.bf16.mxu0 0
      %6493 = vmatpush1.bf16.msra.mxu0 0
      %6494 = vmatprep.subr.bf16.mxu0 0
      %6495 = vmatpush1.bf16.msra.mxu0 0
      %6496 = vmatprep.subr.bf16.mxu0 0
      %6497 = vmatpush1.bf16.msra.mxu0 0
      %6498 = vmatprep.subr.bf16.mxu0 0
      %6499 = vmatpush1.bf16.msra.mxu0 0
      %6500 = vmatprep.subr.bf16.mxu0 0
      %6501 = vmatpush1.bf16.msra.mxu0 0
      %6502 = vmatprep.subr.bf16.mxu0 0
      %6503 = vmatpush1.bf16.msra.mxu0 0
      %6504 = vmatprep.mubr.bf16.mxu0 0
      %6505 = vmatmul.mubr.bf16.gmra.mrb[0].mxu0 %v6323
      %v6506 = vpop.f32.mrb[0].mxu0
      %v6507 = vadd.f32 0.0, %v6506
      %v6508 = vpop.f32.mrb[0].mxu0
      %v6509 = vadd.f32 0.0, %v6508
      %v6510 = vpop.f32.mrb[0].mxu0
      %v6511 = vpop.f32.mrb[0].mxu0
      %6512 = vdwg.mxu0
      %v6513 = vadd.f32 %v6285, %v6384
      %v6514 = vadd.f32 %v6286, %v6386
      %v6515 = vadd.f32 %v6287, %v6425
      %v6516 = vadd.f32 %v6288, %v6427
      %v6517 = vadd.f32 %v6289, %v6466
      %v6518 = vadd.f32 %v6290, %v6468
      %v6519 = vadd.f32 %v6291, %v6507
      %v6520 = vadd.f32 %v6292, %v6509
      %v6529 = vcombine.low %v6513, %v6514
      %v6530 = vcombine.low %v6515, %v6516
      %v6531 = vcombine.low %v6517, %v6518
      %v6532 = vcombine.low %v6519, %v6520
      %6537 = vst [vmem:[%s285] sm:$0xff] %v6529
      %6538 = vst [vmem:[%s285 + $0x8] sm:$0xff] %v6530
      %6539 = vst [vmem:[%s285 + $0x10] sm:$0xff] %v6531
      %vm6540 = vcmask 1043456
      %vm6541 = vcmask 850948
      %vm6542 = vmor %vm6541, %vm6540
      %6543 = vst.msk [vmem:[%s285 + $0x18] sm:$0xff] %vm6542, %v6532
      %v6544 = vld [vmem:[%s5] sm:$0xff]
      %v6546 = vlaneseq
      %v6547 = vshrl.u32 %v6546, 7
      %v6548 = vsub.s32 0, %v6547
      %v6549 = vrot.slane %v6544, %v6548
      %v6550 = vlaneseq
      %v6551 = vshrl.u32 %v6550, 7
      %v6552 = vsub.s32 1, %v6551
      %v6553 = vrot.slane %v6544, %v6552
      %v6554 = vlaneseq
      %v6555 = vshrl.u32 %v6554, 7
      %v6556 = vsub.s32 2, %v6555
      %v6557 = vrot.slane %v6544, %v6556
      %v6558 = vlaneseq
      %v6559 = vshrl.u32 %v6558, 7
      %v6560 = vsub.s32 3, %v6559
      %v6561 = vrot.slane %v6544, %v6560
      %v6562 = vlaneseq
      %v6563 = vshrl.u32 %v6562, 7
      %v6564 = vsub.s32 4, %v6563
      %v6565 = vrot.slane %v6544, %v6564
      %v6566 = vlaneseq
      %v6567 = vshrl.u32 %v6566, 7
      %v6568 = vsub.s32 5, %v6567
      %v6569 = vrot.slane %v6544, %v6568
      %v6570 = vlaneseq
      %v6571 = vshrl.u32 %v6570, 7
      %v6572 = vsub.s32 6, %v6571
      %v6573 = vrot.slane %v6544, %v6572
      %v6574 = vlaneseq
      %v6575 = vshrl.u32 %v6574, 7
      %v6576 = vsub.s32 7, %v6575
      %v6577 = vrot.slane %v6544, %v6576
      %v6586 = vmul.f32 %v6513, %v6549
      %v6587 = vmul.f32 %v6514, %v6553
      %v6588 = vmul.f32 %v6515, %v6557
      %v6589 = vmul.f32 %v6516, %v6561
      %v6590 = vmul.f32 %v6517, %v6565
      %v6591 = vmul.f32 %v6518, %v6569
      %v6592 = vmul.f32 %v6519, %v6573
      %v6593 = vmul.f32 %v6520, %v6577
      %v6594 = vsel %vm6540, %v6586, 0.0
      %v6595 = vsel %vm6540, %v6587, 0.0
      %v6596 = vadd.f32 %v6594, %v6595
      %v6597 = vsel %vm6540, %v6588, 0.0
      %v6598 = vadd.f32 %v6596, %v6597
      %v6599 = vsel %vm6540, %v6589, 0.0
      %v6600 = vadd.f32 %v6598, %v6599
      %v6601 = vsel %vm6540, %v6590, 0.0
      %v6602 = vadd.f32 %v6600, %v6601
      %v6603 = vsel %vm6540, %v6591, 0.0
      %v6604 = vadd.f32 %v6602, %v6603
      %v6605 = vsel %vm6540, %v6592, 0.0
      %v6606 = vadd.f32 %v6604, %v6605
      %vm6607 = vcmask 846848
      %v6608 = vsel %vm6607, %v6593, 0.0
      %v6609 = vadd.f32 %v6606, %v6608
      %6610 = vadd.xlane.f32.xlu0 %v6609
      %v6611 = vpop.xlane.xlu0 %6610
      %v6612 = vmul.f32 %v6586, %v6513
      %v6613 = vmul.f32 %v6587, %v6514
      %v6614 = vmul.f32 %v6588, %v6515
      %v6615 = vmul.f32 %v6589, %v6516
      %v6616 = vmul.f32 %v6590, %v6517
      %v6617 = vmul.f32 %v6591, %v6518
      %v6618 = vmul.f32 %v6592, %v6519
      %v6619 = vmul.f32 %v6593, %v6520
      %v6620 = vsel %vm6540, %v6612, 0.0
      %v6621 = vsel %vm6540, %v6613, 0.0
      %v6622 = vadd.f32 %v6620, %v6621
      %v6623 = vsel %vm6540, %v6614, 0.0
      %v6624 = vadd.f32 %v6622, %v6623
      %v6625 = vsel %vm6540, %v6615, 0.0
      %v6626 = vadd.f32 %v6624, %v6625
      %v6627 = vsel %vm6540, %v6616, 0.0
      %v6628 = vadd.f32 %v6626, %v6627
      %v6629 = vsel %vm6540, %v6617, 0.0
      %v6630 = vadd.f32 %v6628, %v6629
      %v6631 = vsel %vm6540, %v6618, 0.0
      %v6632 = vadd.f32 %v6630, %v6631
      %v6633 = vsel %vm6607, %v6619, 0.0
      %v6634 = vadd.f32 %v6632, %v6633
      %6635 = vadd.xlane.f32.xlu0 %v6634
      %v6636 = vpop.xlane.xlu0 %6635
      %vm6637 = vcmask 7168
      %v6638 = vsel %vm6637, %v6611, %v6636
      %vm6639 = vcmask 11264
      %6640 = vst.msk [vmem:[%s289] sm:$0xf] %vm6639, %v6638
      %p6641 = scmp.lt.s32.totalorder %s19, 1
      %s6642 = scalar_select %p6641, %s19, 1
      %s6643 = smul.addr %s6642, 8
      %s6644 = smul.addr %s6643, 4
      %s6645 = scalar_lea.vmem %s6, %s6644
      %p6646 = scmp.lt.s32.totalorder %s19, 1
      %s6647 = scalar_select %p6646, %s19, 1
      %s6648 = smul.addr %s6647, 4
      %s6649 = scalar_lea.vmem %s7, %s6648
      // Predicated region
      $region45: #{bottleneck_forward.5} parent=43 // pred_check
        %p6650 = pneg %p168
      $region46: #{bottleneck_forward.5} parent=43 // pred_check_branch
        %6652 = sbr.rel (%p6650) target = $region48
      $region47: #{bottleneck_forward.5} parent=43 // pred_region
        _
      $region48: #{bottleneck_forward.5} parent=43 // pred_fallthru
        _
      // Predicated region
      $region49: #{bottleneck_forward.5} parent=43 // pred_check
        %p6653 = pneg %p194
      $region50: #{bottleneck_forward.5} parent=43 // pred_check_branch
        %6655 = sbr.rel (%p6653) target = $region52
      $region51: #{bottleneck_forward.5} parent=43 // pred_region
        _
      $region52: #{bottleneck_forward.5} parent=43 // pred_fallthru
        _
    $region44: #{bottleneck_forward.5} parent=5 // pred_fallthru
      _
    %p6656 = scmp.le.s32.totalorder 2, %s14
    // Predicated region
    $region53: #{bottleneck_forward.5} parent=5 // pred_check
      %p6657 = pneg %p6656
    $region54: #{bottleneck_forward.5} parent=5 // pred_check_branch
      %6659 = sbr.rel (%p6657) target = $region56
    $region55: #{bottleneck_forward.5} parent=5 // pred_region
      %s6660 = ssub.s32 %s14, 2
      // Predicated region
      $region57: #{bottleneck_forward.5} parent=55 // pred_check
        %p6661 = pneg %p174
      $region58: #{bottleneck_forward.5} parent=55 // pred_check_branch
        %6663 = sbr.rel (%p6661) target = $region60
      $region59: #{bottleneck_forward.5} parent=55 // pred_region
        %p6664 = scmp.lt.s32.totalorder %s20, 1
        %s6665 = scalar_select %p6664, %s20, 1
        %s6666 = smul.addr %s6665, 8
        %s6667 = smul.addr %s6666, 4
        %s6668 = scalar_lea.vmem %s6, %s6667
      $region60: #{bottleneck_forward.5} parent=55 // pred_fallthru
        _
      // Predicated region
      $region61: #{bottleneck_forward.5} parent=55 // pred_check
        %p6669 = pneg %p200
      $region62: #{bottleneck_forward.5} parent=55 // pred_check_branch
        %6671 = sbr.rel (%p6669) target = $region64
      $region63: #{bottleneck_forward.5} parent=55 // pred_region
        %p6672 = scmp.lt.s32.totalorder %s20, 1
        %s6673 = scalar_select %p6672, %s20, 1
        %s6674 = smul.addr %s6673, 4
        %s6675 = scalar_lea.vmem %s7, %s6674
      $region64: #{bottleneck_forward.5} parent=55 // pred_fallthru
        _
    $region56: #{bottleneck_forward.5} parent=5 // pred_fallthru
      _
  $region6: #{bottleneck_forward.5} parent=0 // loop_footer
    %s18 = sadd.s32 1, %s14
  $region7: #{bottleneck_forward.5} parent=0 // loop_footer_branch
    %13 = sbr.rel target = $region3
  $region8: #{bottleneck_forward.5} parent=0 // loop_exit
    _

</llo_original>
